<compile_context>
chip_gen: v7x
topology: tpu7x:2x2x1
jax: 0.10.0
libtpu: 0.0.40
codegen_flags: <defaults>
</compile_context>

<pallas_src>
import functools

import jax
import jax.numpy as jnp
from jax.experimental import pallas as pl
from jax.experimental.pallas import tpu as pltpu


# ----------------------------------------------------------------------------
# In-kernel math helpers
# ----------------------------------------------------------------------------
def _erf(x):
    # Abramowitz & Stegun 7.1.26 (|err| < 1.5e-7) so GELU tracks PyTorch's erf GELU.
    a1, a2, a3, a4, a5 = 0.254829592, -0.284496736, 1.421413741, -1.453152027, 1.061405429
    p = 0.3275911
    sgn = jnp.where(x >= 0.0, 1.0, -1.0)
    ax = jnp.abs(x)
    t = 1.0 / (1.0 + p * ax)
    poly = ((((a5 * t + a4) * t + a3) * t + a2) * t + a1) * t
    return sgn * (1.0 - poly * jnp.exp(-ax * ax))


def _gelu(x):
    return 0.5 * x * (1.0 + _erf(x * 0.7071067811865476))


def _row_tile(m, cap=512):
    """Largest row tile: full M when small, else an 8-aligned divisor <= cap."""
    if m <= cap:
        return m
    for t in range(cap - cap % 8, 7, -8):
        if m % t == 0:
            return t
    return m  # fallback: single block


def _time_tile(t, cap=128):
    if t <= cap:
        return t
    for tt in range(cap, 0, -1):
        if t % tt == 0:
            return tt
    return t


# ----------------------------------------------------------------------------
# Kernel: generic matmul + bias (+gelu)   (used only for the tiny Cin=1 stem conv)
# ----------------------------------------------------------------------------
def _matmul_bias_kernel(x_ref, w_ref, b_ref, o_ref, *, act):
    y = jnp.dot(x_ref[...], w_ref[...], preferred_element_type=jnp.float32) + b_ref[...]
    if act == "gelu":
        y = _gelu(y)
    o_ref[...] = y


def matmul_bias(x, w, b, act=None):
    m, k = x.shape
    n = w.shape[1]
    tm = _row_tile(m)
    return pl.pallas_call(
        functools.partial(_matmul_bias_kernel, act=act),
        out_shape=jax.ShapeDtypeStruct((m, n), jnp.float32),
        grid=(m // tm,),
        in_specs=[pl.BlockSpec((tm, k), lambda i: (i, 0)),
                  pl.BlockSpec((k, n), lambda i: (0, 0)),
                  pl.BlockSpec((1, n), lambda i: (0, 0))],
        out_specs=pl.BlockSpec((tm, n), lambda i: (i, 0)),
        compiler_params=pltpu.CompilerParams(dimension_semantics=("parallel",)),
    )(x, w, b.reshape(1, n))


# ----------------------------------------------------------------------------
# Kernel: CNNLayerNorm (over F) + GELU + zero-pad, transposeless, lane-dense (T*C)
# ----------------------------------------------------------------------------
def _cnn_ln_gelu_pad_kernel(x_ref, g_ref, b_ref, o_ref, *, c):
    x = x_ref[...]                                      # (F, T*C)
    mu = jnp.mean(x, axis=0, keepdims=True)
    xc = x - mu
    var = jnp.mean(xc * xc, axis=0, keepdims=True)
    y = _gelu(xc * jax.lax.rsqrt(var + 1e-5) * g_ref[...] + b_ref[...])
    f, tc = x.shape
    o_ref[...] = jnp.zeros(o_ref.shape, jnp.float32)    # zero border
    o_ref[pl.ds(1, f), pl.ds(c, tc)] = y                # interior = LN+GELU result


def cnn_ln_gelu_pad(x, gamma, beta):
    """x: (B, F, T, C) -> LayerNorm over F (per-F affine) -> GELU -> pad spatial by 1.
    Returns (B, F+2, T+2, C), ready for the 3x3 conv kernel."""
    bsz, f, t, c = x.shape
    x3 = x.reshape(bsz, f, t * c)
    out = pl.pallas_call(
        functools.partial(_cnn_ln_gelu_pad_kernel, c=c),
        out_shape=jax.ShapeDtypeStruct((bsz, f + 2, (t + 2) * c), jnp.float32),
        grid=(bsz,),
        in_specs=[pl.BlockSpec((None, f, t * c), lambda b: (b, 0, 0)),
                  pl.BlockSpec((f, 1), lambda b: (0, 0)),
                  pl.BlockSpec((f, 1), lambda b: (0, 0))],
        out_specs=pl.BlockSpec((None, f + 2, (t + 2) * c), lambda b: (b, 0, 0)),
        compiler_params=pltpu.CompilerParams(dimension_semantics=("parallel",)),
    )(x3, gamma.reshape(f, 1), beta.reshape(f, 1))
    return out.reshape(bsz, f + 2, t + 2, c)


# ----------------------------------------------------------------------------
# Kernel: 3x3 stride-1 conv as in-kernel 9-tap accumulation (no im2col), + residual
# ----------------------------------------------------------------------------
def _conv3x3_kernel(*refs, fo, to, add_residual):
    if add_residual:
        x_ref, w_ref, b_ref, r_ref, o_ref = refs
    else:
        x_ref, w_ref, b_ref, o_ref = refs
    acc = None
    for kh in range(3):
        for kw in range(3):
            xs = x_ref[pl.ds(kh, fo), pl.ds(kw, to), :]       # (fo, to, Cin)
            xs = xs.reshape(fo * to, xs.shape[-1])
            d = jnp.dot(xs, w_ref[kh * 3 + kw], preferred_element_type=jnp.float32)
            acc = d if acc is None else acc + d
    y = (acc + b_ref[...]).reshape(fo, to, -1)
    if add_residual:
        y = y + r_ref[...]
    o_ref[...] = y


def conv3x3_s1(xpad, w, b, residual=None):
    """xpad: (B, F+2, T+2, Cin) already zero-padded.  w: (3,3,Cin,Cout)."""
    bsz, fp, tp, cin = xpad.shape
    fo, to = fp - 2, tp - 2
    cout = w.shape[-1]
    w9 = w.reshape(9, cin, cout)
    in_specs = [pl.BlockSpec((None, fp, tp, cin), lambda i: (i, 0, 0, 0)),
                pl.BlockSpec((9, cin, cout), lambda i: (0, 0, 0)),
                pl.BlockSpec((1, cout), lambda i: (0, 0))]
    args = [xpad, w9, b.reshape(1, cout)]
    if residual is not None:
        in_specs.append(pl.BlockSpec((None, fo, to, cout), lambda i: (i, 0, 0, 0)))
        args.append(residual)
    return pl.pallas_call(
        functools.partial(_conv3x3_kernel, fo=fo, to=to, add_residual=residual is not None),
        out_shape=jax.ShapeDtypeStruct((bsz, fo, to, cout), jnp.float32),
        grid=(bsz,),
        in_specs=in_specs,
        out_specs=pl.BlockSpec((None, fo, to, cout), lambda i: (i, 0, 0, 0)),
        compiler_params=pltpu.CompilerParams(dimension_semantics=("parallel",)),
    )(*args)


# ----------------------------------------------------------------------------
# Kernel: fused  [FC +] LayerNorm + GELU + GRU input projection (both directions)
# Output layout: (2, R, 3H)  --  [0]=forward gates per time, [1]=backward gates.
# ----------------------------------------------------------------------------
def _fc_ln_gelu_gi_kernel(x_ref, fcw_ref, fcb_ref, g_ref, b_ref, wih_ref, bih_ref, o_ref):
    h = jnp.dot(x_ref[...], fcw_ref[...], preferred_element_type=jnp.float32) + fcb_ref[...]
    mu = jnp.mean(h, axis=-1, keepdims=True)
    hc = h - mu
    var = jnp.mean(hc * hc, axis=-1, keepdims=True)
    hn = _gelu(hc * jax.lax.rsqrt(var + 1e-5) * g_ref[...] + b_ref[...])
    gi = jnp.dot(hn, wih_ref[...], preferred_element_type=jnp.float32) + bih_ref[...]
    n3 = o_ref.shape[-1]
    o_ref[0] = gi[:, :n3]
    o_ref[1] = gi[:, n3:]


def fc_ln_gelu_gi(x, fc_w, fc_b, ln_g, ln_b, wih, bih):
    r, k = x.shape
    d = fc_w.shape[1]
    n6 = wih.shape[1]
    n3 = n6 // 2
    tm = _row_tile(r)
    return pl.pallas_call(
        _fc_ln_gelu_gi_kernel,
        out_shape=jax.ShapeDtypeStruct((2, r, n3), jnp.float32),
        grid=(r // tm,),
        in_specs=[pl.BlockSpec((tm, k), lambda i: (i, 0)),
                  pl.BlockSpec((k, d), lambda i: (0, 0)),
                  pl.BlockSpec((1, d), lambda i: (0, 0)),
                  pl.BlockSpec((1, d), lambda i: (0, 0)),
                  pl.BlockSpec((1, d), lambda i: (0, 0)),
                  pl.BlockSpec((d, n6), lambda i: (0, 0)),
                  pl.BlockSpec((1, n6), lambda i: (0, 0))],
        out_specs=pl.BlockSpec((2, tm, n3), lambda i: (0, i, 0)),
        compiler_params=pltpu.CompilerParams(dimension_semantics=("parallel",)),
    )(x, fc_w, fc_b.reshape(1, d), ln_g.reshape(1, d), ln_b.reshape(1, d), wih, bih)


def _bi_ln_gelu_gi_kernel(f_ref, bk_ref, g_ref, b_ref, wih_ref, bih_ref, o_ref):
    x = jnp.concatenate([f_ref[...], bk_ref[...]], axis=-1)          # (tm, 2H)
    mu = jnp.mean(x, axis=-1, keepdims=True)
    xc = x - mu
    var = jnp.mean(xc * xc, axis=-1, keepdims=True)
    xn = _gelu(xc * jax.lax.rsqrt(var + 1e-5) * g_ref[...] + b_ref[...])
    gi = jnp.dot(xn, wih_ref[...], preferred_element_type=jnp.float32) + bih_ref[...]
    n3 = o_ref.shape[-1]
    o_ref[0] = gi[:, :n3]
    o_ref[1] = gi[:, n3:]


def bi_ln_gelu_gi(f, bk, ln_g, ln_b, wih, bih):
    r, h = f.shape
    d = 2 * h
    n6 = wih.shape[1]
    n3 = n6 // 2
    tm = _row_tile(r)
    return pl.pallas_call(
        _bi_ln_gelu_gi_kernel,
        out_shape=jax.ShapeDtypeStruct((2, r, n3), jnp.float32),
        grid=(r // tm,),
        in_specs=[pl.BlockSpec((tm, h), lambda i: (i, 0)),
                  pl.BlockSpec((tm, h), lambda i: (i, 0)),
                  pl.BlockSpec((1, d), lambda i: (0, 0)),
                  pl.BlockSpec((1, d), lambda i: (0, 0)),
                  pl.BlockSpec((d, n6), lambda i: (0, 0)),
                  pl.BlockSpec((1, n6), lambda i: (0, 0))],
        out_specs=pl.BlockSpec((2, tm, n3), lambda i: (0, i, 0)),
        compiler_params=pltpu.CompilerParams(dimension_semantics=("parallel",)),
    )(f, bk, ln_g.reshape(1, d), ln_b.reshape(1, d), wih, bih)


# ----------------------------------------------------------------------------
# Kernel: fused bidirectional GRU recurrence (input projection precomputed).
# gi: (2, T, B, 3H).  Forward gates streamed in time order, backward gates streamed
# in reverse block order via a second BlockSpec on the same array.  Hidden state
# h = [h_fwd | h_bwd] (B, 2H) is a VMEM scratch; per step a single h @ whh_bd GEMM
# (whh_bd = block-diag of W_hh_fwd, W_hh_bwd) produces both directions' gates.
# ----------------------------------------------------------------------------
def _gru_bidir_kernel(gif_ref, gib_ref, whh_ref, bhh_ref, of_ref, ob_ref, h_ref,
                      *, hidden, tt):
    H = hidden

    @pl.when(pl.program_id(0) == 0)
    def _():
        h_ref[...] = jnp.zeros_like(h_ref)

    whh = whh_ref[...]
    bhh = bhh_ref[...]

    def step(tl, h):
        gi_f = gif_ref[tl]                      # (B, 3H) forward gates at global time
        gi_b = gib_ref[tt - 1 - tl]             # (B, 3H) backward gates at mirrored time
        gh = jnp.dot(h, whh, preferred_element_type=jnp.float32) + bhh   # (B, 6H)
        ghf, ghb = gh[:, :3 * H], gh[:, 3 * H:]
        hf, hb = h[:, :H], h[:, H:]

        rf = jax.nn.sigmoid(gi_f[:, :H] + ghf[:, :H])
        zf = jax.nn.sigmoid(gi_f[:, H:2 * H] + ghf[:, H:2 * H])
        nf = jnp.tanh(gi_f[:, 2 * H:] + rf * ghf[:, 2 * H:])
        hf_new = (1.0 - zf) * nf + zf * hf

        rb = jax.nn.sigmoid(gi_b[:, :H] + ghb[:, :H])
        zb = jax.nn.sigmoid(gi_b[:, H:2 * H] + ghb[:, H:2 * H])
        nb = jnp.tanh(gi_b[:, 2 * H:] + rb * ghb[:, 2 * H:])
        hb_new = (1.0 - zb) * nb + zb * hb

        of_ref[tl] = hf_new
        ob_ref[tt - 1 - tl] = hb_new
        return jnp.concatenate([hf_new, hb_new], axis=-1)

    h_ref[...] = jax.lax.fori_loop(0, tt, step, h_ref[...])


def gru_bidir(gi, whh_bd, bhh, hidden):
    """gi: (2, T, B, 3H).  Returns (fwd, bwd), each (T, B, H) in natural time order."""
    _, T, B, n3 = gi.shape
    tt = _time_tile(T)
    nblk = T // tt

    blk_bytes = 4 * (2 * tt * B * n3 + 2 * tt * B * hidden)
    fixed = 4 * (whh_bd.size + bhh.size + B * 2 * hidden)
    vmem_limit = int(min(64 * 1024 * 1024, 2 * blk_bytes + fixed + (4 << 20)))

    return pl.pallas_call(
        functools.partial(_gru_bidir_kernel, hidden=hidden, tt=tt),
        out_shape=(jax.ShapeDtypeStruct((T, B, hidden), jnp.float32),
                   jax.ShapeDtypeStruct((T, B, hidden), jnp.float32)),
        grid=(nblk,),
        in_specs=[pl.BlockSpec((None, tt, B, n3), lambda i: (0, i, 0, 0)),
                  pl.BlockSpec((None, tt, B, n3), lambda i: (1, nblk - 1 - i, 0, 0)),
                  pl.BlockSpec((2 * hidden, 6 * hidden), lambda i: (0, 0)),
                  pl.BlockSpec((1, 6 * hidden), lambda i: (0, 0))],
        out_specs=(pl.BlockSpec((tt, B, hidden), lambda i: (i, 0, 0)),
                   pl.BlockSpec((tt, B, hidden), lambda i: (nblk - 1 - i, 0, 0))),
        scratch_shapes=[pltpu.VMEM((B, 2 * hidden), jnp.float32)],
        compiler_params=pltpu.CompilerParams(
            dimension_semantics=("arbitrary",), vmem_limit_bytes=vmem_limit),
    )(gi, gi, whh_bd, bhh)


# ----------------------------------------------------------------------------
# Kernel: fused classifier  (concat directions -> Linear -> GELU -> Linear)
# ----------------------------------------------------------------------------
def _bi_classifier_kernel(f_ref, bk_ref, w1_ref, b1_ref, w2_ref, b2_ref, o_ref):
    x = jnp.concatenate([f_ref[...], bk_ref[...]], axis=-1)
    h = _gelu(jnp.dot(x, w1_ref[...], preferred_element_type=jnp.float32) + b1_ref[...])
    o_ref[...] = jnp.dot(h, w2_ref[...], preferred_element_type=jnp.float32) + b2_ref[...]


def bi_classifier(f, bk, w1, b1, w2, b2):
    r, h = f.shape
    d1 = w1.shape[1]
    nc = w2.shape[1]
    tm = _row_tile(r)
    return pl.pallas_call(
        _bi_classifier_kernel,
        out_shape=jax.ShapeDtypeStruct((r, nc), jnp.float32),
        grid=(r // tm,),
        in_specs=[pl.BlockSpec((tm, h), lambda i: (i, 0)),
                  pl.BlockSpec((tm, h), lambda i: (i, 0)),
                  pl.BlockSpec((2 * h, d1), lambda i: (0, 0)),
                  pl.BlockSpec((1, d1), lambda i: (0, 0)),
                  pl.BlockSpec((d1, nc), lambda i: (0, 0)),
                  pl.BlockSpec((1, nc), lambda i: (0, 0))],
        out_specs=pl.BlockSpec((tm, nc), lambda i: (i, 0)),
        compiler_params=pltpu.CompilerParams(dimension_semantics=("parallel",)),
    )(f, bk, w1, b1.reshape(1, d1), w2, b2.reshape(1, nc))


# ----------------------------------------------------------------------------
# Model pieces (JAX glue)
# ----------------------------------------------------------------------------
def conv2d_stem(x, w, b, stride=2):
    # TODO(synk): stem conv (Cin=1) still uses a tiny im2col; residual convs use the
    # in-kernel 9-tap accumulation instead.
    B, H, W, Cin = x.shape
    Cout = w.shape[-1]
    Ho = (H + 2 - 3) // stride + 1
    Wo = (W + 2 - 3) // stride + 1
    xp = jnp.pad(x, ((0, 0), (1, 1), (1, 1), (0, 0)))
    cols = [xp[:, kh:kh + (Ho - 1) * stride + 1:stride,
               kw:kw + (Wo - 1) * stride + 1:stride, :]
            for kh in range(3) for kw in range(3)]
    patches = jnp.stack(cols, axis=3)                       # (B, Ho, Wo, 9, Cin)
    y = matmul_bias(patches.reshape(B * Ho * Wo, 9 * Cin), w.reshape(9 * Cin, Cout), b)
    return y.reshape(B, Ho, Wo, Cout)


def residual_block(x, p):
    # Matches ResidualCNN: the single CNNLayerNorm is reused for both LN calls.
    xp = cnn_ln_gelu_pad(x, p["ln_g"], p["ln_b"])
    h = conv3x3_s1(xp, p["conv1_w"], p["conv1_b"])
    hp = cnn_ln_gelu_pad(h, p["ln_g"], p["ln_b"])
    return conv3x3_s1(hp, p["conv2_w"], p["conv2_b"], residual=x)


def speech_recognition_forward(x_nchw, params):
    # x_nchw: (B, in_channels, n_feats, time) — PyTorch NCHW convention.
    x = jnp.transpose(x_nchw, (0, 2, 3, 1)).astype(jnp.float32)        # (B, F, T, C)
    x = conv2d_stem(x, params["conv0_w"], params["conv0_b"])           # (B, F/2, T/2, 32)
    x = residual_block(x, params["res1"])
    x = residual_block(x, params["res2"])

    bsz, f2, t2, c = x.shape
    rnn_dim = params["fc_w"].shape[1]
    # torch: view(B, C*F, T).transpose(1,2) -> per-(b,t) feature index = c*F + f.
    # Keep rows time-major (t, b) for the whole RNN/classifier stage.
    z = jnp.transpose(x, (2, 0, 3, 1)).reshape(t2 * bsz, c * f2)       # (T*B, C*F)

    g1 = params["gru1"]
    gi1 = fc_ln_gelu_gi(z, params["fc_w"], params["fc_b"],
                        g1["ln_g"], g1["ln_b"], g1["wih"], g1["bih"])  # (2, T*B, 3H)
    f1, b1 = gru_bidir(gi1.reshape(2, t2, bsz, 3 * rnn_dim), g1["whh_bd"], g1["bhh"],
                       rnn_dim)                                        # (T,B,H) each

    g2 = params["gru2"]
    gi2 = bi_ln_gelu_gi(f1.reshape(t2 * bsz, rnn_dim), b1.reshape(t2 * bsz, rnn_dim),
                        g2["ln_g"], g2["ln_b"], g2["wih"], g2["bih"])
    f2h, b2h = gru_bidir(gi2.reshape(2, t2, bsz, 3 * rnn_dim), g2["whh_bd"], g2["bhh"],
                         rnn_dim)

    y = bi_classifier(f2h.reshape(t2 * bsz, rnn_dim), b2h.reshape(t2 * bsz, rnn_dim),
                      params["cls_w1"], params["cls_b1"],
                      params["cls_w2"], params["cls_b2"])              # (T*B, n_class)
    n_class = params["cls_w2"].shape[1]
    return jnp.transpose(y.reshape(t2, bsz, n_class), (1, 0, 2))       # (B, T', n_class)


# ----------------------------------------------------------------------------
# Deterministic parameter init (synthetic weights; shapes match the nn.Module)
# ----------------------------------------------------------------------------
def _pack_bigru(wih_f, whh_f, bih_f, bhh_f, wih_b, whh_b, bih_b, bhh_b):
    """Pack per-direction GRU weights (cols = [r|z|n]) into the fused kernel layout:
    direction-major gates [fwd 3H | bwd 3H], block-diagonal recurrent matrix."""
    H = whh_f.shape[0]
    wih = jnp.concatenate([wih_f, wih_b], axis=1)            # (D, 6H)
    bih = jnp.concatenate([bih_f, bih_b], axis=1)            # (1, 6H)
    bhh = jnp.concatenate([bhh_f, bhh_b], axis=1)            # (1, 6H)
    whh_bd = jnp.zeros((2 * H, 6 * H), jnp.float32)
    whh_bd = whh_bd.at[:H, :3 * H].set(whh_f)
    whh_bd = whh_bd.at[H:, 3 * H:].set(whh_b)
    return wih, bih, whh_bd, bhh


def init_params(key, n_class, n_feats, in_channels, out_channels, rnn_dim):
    nf = n_feats // 2
    keys = iter(jax.random.split(key, 80))

    def nrm(shape, scale=0.05):
        return (scale * jax.random.normal(next(keys), shape)).astype(jnp.float32)

    p = {
        "conv0_w": nrm((3, 3, in_channels, out_channels)),
        "conv0_b": nrm((out_channels,)),
        "fc_w": nrm((nf * 32, rnn_dim)),
        "fc_b": nrm((rnn_dim,)),
        "cls_w1": nrm((2 * rnn_dim, rnn_dim)),
        "cls_b1": nrm((rnn_dim,)),
        "cls_w2": nrm((rnn_dim, n_class)),
        "cls_b2": nrm((n_class,)),
    }
    for name in ("res1", "res2"):
        p[name] = {
            "ln_g": jnp.ones((nf,), jnp.float32),
            "ln_b": jnp.zeros((nf,), jnp.float32),   # nn.init.zeros_ on LN bias
            "conv1_w": nrm((3, 3, 32, 32)), "conv1_b": nrm((32,)),
            "conv2_w": nrm((3, 3, 32, 32)), "conv2_b": nrm((32,)),
        }
    for i, name in enumerate(("gru1", "gru2")):
        d_in = rnn_dim if i == 0 else 2 * rnn_dim
        H = rnn_dim
        wih_f, whh_f = nrm((d_in, 3 * H)), nrm((H, 3 * H))
        bih_f, bhh_f = nrm((1, 3 * H)), nrm((1, 3 * H))
        wih_b, whh_b = nrm((d_in, 3 * H)), nrm((H, 3 * H))
        bih_b, bhh_b = nrm((1, 3 * H)), nrm((1, 3 * H))
        wih, bih, whh_bd, bhh = _pack_bigru(wih_f, whh_f, bih_f, bhh_f,
                                            wih_b, whh_b, bih_b, bhh_b)
        p[name] = {
            "ln_g": jnp.ones((d_in,), jnp.float32),
            "ln_b": jnp.zeros((d_in,), jnp.float32),
            "wih": wih, "bih": bih, "whh_bd": whh_bd, "bhh": bhh,
        }
    return p


if __name__ == "__main__":
    n_class, n_feats, in_channels, out_channels, rnn_dim = 10, 16, 1, 32, 32
    batch, time = 2, 16

    root = jax.random.PRNGKey(0)
    pkey, xkey = jax.random.split(root)
    params = init_params(pkey, n_class, n_feats, in_channels, out_channels, rnn_dim)
    x = jax.random.normal(xkey, (batch, in_channels, n_feats, time), dtype=jnp.float32)

    fwd = jax.jit(speech_recognition_forward)
    out = jax.block_until_ready(fwd(x, params))

    assert out.shape == (batch, time // 2, n_class), out.shape
    assert bool(jnp.all(jnp.isfinite(out)))
    print("KERNEL_OK")
</pallas_src>

<mosaic_0001>
module attributes {stable_mosaic.version = 11 : i64} {
  func.func @_matmul_bias_kernel(%arg0: i32, %arg1: memref<128x9xf32, #tpu.memory_space<vmem>>, %arg2: memref<9x32xf32, #tpu.memory_space<vmem>>, %arg3: memref<1x32xf32, #tpu.memory_space<vmem>>, %arg4: memref<128x32xf32, #tpu.memory_space<vmem>>) attributes {dimension_semantics = [#tpu.dimension_semantics<parallel>], iteration_bounds = array<i64: 1>, scalar_prefetch = 0 : i64, scratch_operands = 0 : i64, tpu.core_type = #tpu.core_type<tc>, window_params = [{transform_indices = @transform_0, window_bounds = array<i64: 128, 9>}, {pipeline_mode = #tpu.pipeline_mode<synchronous>, transform_indices = @transform_1, window_bounds = array<i64: 9, 32>}, {pipeline_mode = #tpu.pipeline_mode<synchronous>, transform_indices = @transform_2, window_bounds = array<i64: 1, 32>}, {transform_indices = @transform_3, window_bounds = array<i64: 128, 32>}]} {
    %c0 = arith.constant 0 : index
    %c0_0 = arith.constant 0 : index
    %0 = vector.load %arg1[%c0, %c0_0] : memref<128x9xf32, #tpu.memory_space<vmem>>, vector<128x9xf32>
    %c0_1 = arith.constant 0 : index
    %c0_2 = arith.constant 0 : index
    %1 = vector.load %arg2[%c0_1, %c0_2] : memref<9x32xf32, #tpu.memory_space<vmem>>, vector<9x32xf32>
    %cst = arith.constant dense<0.000000e+00> : vector<128x32xf32>
    %2 = tpu.matmul %0, %1, %cst {dimension_numbers = #tpu.dot_dimension_numbers<[1], [0], [0], [1], [0, 0, 1, 1], [], []>} : vector<128x9xf32>, vector<9x32xf32>, vector<128x32xf32> -> vector<128x32xf32>
    %c0_3 = arith.constant 0 : index
    %c0_4 = arith.constant 0 : index
    %3 = vector.load %arg3[%c0_3, %c0_4] : memref<1x32xf32, #tpu.memory_space<vmem>>, vector<1x32xf32>
    %4 = vector.broadcast %3 : vector<1x32xf32> to vector<128x32xf32>
    %5 = arith.addf %2, %4 : vector<128x32xf32>
    %c0_5 = arith.constant 0 : index
    %c0_6 = arith.constant 0 : index
    %6 = vector.load %arg4[%c0_5, %c0_6] : memref<128x32xf32, #tpu.memory_space<vmem>>, vector<128x32xf32>
    tpu.vector_store %arg4[%c0_5, %c0_6], %5 {strides = array<i32>} : memref<128x32xf32, #tpu.memory_space<vmem>>, vector<128x32xf32>,
    return
  }
  func.func @transform_0(%arg0: i32) -> (i32, i32) {
    %c0_i32 = arith.constant 0 : i32
    %c0_i32_0 = arith.constant 0 : i32
    return %arg0, %c0_i32 : i32, i32
  }
  func.func @transform_1(%arg0: i32) -> (i32, i32) {
    %c0_i32 = arith.constant 0 : i32
    %c0_i32_0 = arith.constant 0 : i32
    %c0_i32_1 = arith.constant 0 : i32
    return %c0_i32, %c0_i32_0 : i32, i32
  }
  func.func @transform_2(%arg0: i32) -> (i32, i32) {
    %c0_i32 = arith.constant 0 : i32
    %c0_i32_0 = arith.constant 0 : i32
    %c0_i32_1 = arith.constant 0 : i32
    return %c0_i32, %c0_i32_0 : i32, i32
  }
  func.func @transform_3(%arg0: i32) -> (i32, i32) {
    %c0_i32 = arith.constant 0 : i32
    %c0_i32_0 = arith.constant 0 : i32
    return %arg0, %c0_i32 : i32, i32
  }
}

module attributes {stable_mosaic.version = 11 : i64} {
  func.func @_conv3x3_kernel(%arg0: i32, %arg1: memref<1x10x10x32xf32, #tpu.memory_space<vmem>>, %arg2: memref<9x32x32xf32, #tpu.memory_space<vmem>>, %arg3: memref<1x32xf32, #tpu.memory_space<vmem>>, %arg4: memref<1x8x8x32xf32, #tpu.memory_space<vmem>>) attributes {dimension_semantics = [#tpu.dimension_semantics<parallel>], iteration_bounds = array<i64: 2>, scalar_prefetch = 0 : i64, scratch_operands = 0 : i64, tpu.core_type = #tpu.core_type<tc>, window_params = [{transform_indices = @transform_0, window_bounds = array<i64: 1, 10, 10, 32>}, {pipeline_mode = #tpu.pipeline_mode<synchronous>, transform_indices = @transform_1, window_bounds = array<i64: 9, 32, 32>}, {pipeline_mode = #tpu.pipeline_mode<synchronous>, transform_indices = @transform_2, window_bounds = array<i64: 1, 32>}, {transform_indices = @transform_3, window_bounds = array<i64: 1, 8, 8, 32>}]} {
    %c0 = arith.constant 0 : index
    %c0_0 = arith.constant 0 : index
    %c0_1 = arith.constant 0 : index
    %c0_2 = arith.constant 0 : index
    %0 = vector.load %arg1[%c0, %c0_0, %c0_1, %c0_2] : memref<1x10x10x32xf32, #tpu.memory_space<vmem>>, vector<1x8x8x32xf32>
    %1 = vector.shape_cast %0 : vector<1x8x8x32xf32> to vector<8x8x32xf32>
    %2 = vector.shape_cast %1 : vector<8x8x32xf32> to vector<64x32xf32>
    %c0_3 = arith.constant 0 : index
    %c0_4 = arith.constant 0 : index
    %c0_5 = arith.constant 0 : index
    %3 = vector.load %arg2[%c0_3, %c0_4, %c0_5] : memref<9x32x32xf32, #tpu.memory_space<vmem>>, vector<1x32x32xf32>
    %4 = vector.shape_cast %3 : vector<1x32x32xf32> to vector<32x32xf32>
    %cst = arith.constant dense<0.000000e+00> : vector<64x32xf32>
    %5 = tpu.matmul %2, %4, %cst {dimension_numbers = #tpu.dot_dimension_numbers<[1], [0], [0], [1], [0, 0, 1, 1], [], []>} : vector<64x32xf32>, vector<32x32xf32>, vector<64x32xf32> -> vector<64x32xf32>
    %c0_6 = arith.constant 0 : index
    %c0_7 = arith.constant 0 : index
    %c1 = arith.constant 1 : index
    %c0_8 = arith.constant 0 : index
    %6 = vector.load %arg1[%c0_6, %c0_7, %c1, %c0_8] : memref<1x10x10x32xf32, #tpu.memory_space<vmem>>, vector<1x8x8x32xf32>
    %7 = vector.shape_cast %6 : vector<1x8x8x32xf32> to vector<8x8x32xf32>
    %8 = vector.shape_cast %7 : vector<8x8x32xf32> to vector<64x32xf32>
    %c1_9 = arith.constant 1 : index
    %c0_10 = arith.constant 0 : index
    %c0_11 = arith.constant 0 : index
    %9 = vector.load %arg2[%c1_9, %c0_10, %c0_11] : memref<9x32x32xf32, #tpu.memory_space<vmem>>, vector<1x32x32xf32>
    %10 = vector.shape_cast %9 : vector<1x32x32xf32> to vector<32x32xf32>
    %cst_12 = arith.constant dense<0.000000e+00> : vector<64x32xf32>
    %11 = tpu.matmul %8, %10, %cst_12 {dimension_numbers = #tpu.dot_dimension_numbers<[1], [0], [0], [1], [0, 0, 1, 1], [], []>} : vector<64x32xf32>, vector<32x32xf32>, vector<64x32xf32> -> vector<64x32xf32>
    %12 = arith.addf %5, %11 : vector<64x32xf32>
    %c0_13 = arith.constant 0 : index
    %c0_14 = arith.constant 0 : index
    %c2 = arith.constant 2 : index
    %c0_15 = arith.constant 0 : index
    %13 = vector.load %arg1[%c0_13, %c0_14, %c2, %c0_15] : memref<1x10x10x32xf32, #tpu.memory_space<vmem>>, vector<1x8x8x32xf32>
    %14 = vector.shape_cast %13 : vector<1x8x8x32xf32> to vector<8x8x32xf32>
    %15 = vector.shape_cast %14 : vector<8x8x32xf32> to vector<64x32xf32>
    %c2_16 = arith.constant 2 : index
    %c0_17 = arith.constant 0 : index
    %c0_18 = arith.constant 0 : index
    %16 = vector.load %arg2[%c2_16, %c0_17, %c0_18] : memref<9x32x32xf32, #tpu.memory_space<vmem>>, vector<1x32x32xf32>
    %17 = vector.shape_cast %16 : vector<1x32x32xf32> to vector<32x32xf32>
    %cst_19 = arith.constant dense<0.000000e+00> : vector<64x32xf32>
    %18 = tpu.matmul %15, %17, %cst_19 {dimension_numbers = #tpu.dot_dimension_numbers<[1], [0], [0], [1], [0, 0, 1, 1], [], []>} : vector<64x32xf32>, vector<32x32xf32>, vector<64x32xf32> -> vector<64x32xf32>
    %19 = arith.addf %12, %18 : vector<64x32xf32>
    %c0_20 = arith.constant 0 : index
    %c1_21 = arith.constant 1 : index
    %c0_22 = arith.constant 0 : index
    %c0_23 = arith.constant 0 : index
    %20 = vector.load %arg1[%c0_20, %c1_21, %c0_22, %c0_23] : memref<1x10x10x32xf32, #tpu.memory_space<vmem>>, vector<1x8x8x32xf32>
    %21 = vector.shape_cast %20 : vector<1x8x8x32xf32> to vector<8x8x32xf32>
    %22 = vector.shape_cast %21 : vector<8x8x32xf32> to vector<64x32xf32>
    %c3 = arith.constant 3 : index
    %c0_24 = arith.constant 0 : index
    %c0_25 = arith.constant 0 : index
    %23 = vector.load %arg2[%c3, %c0_24, %c0_25] : memref<9x32x32xf32, #tpu.memory_space<vmem>>, vector<1x32x32xf32>
    %24 = vector.shape_cast %23 : vector<1x32x32xf32> to vector<32x32xf32>
    %cst_26 = arith.constant dense<0.000000e+00> : vector<64x32xf32>
    %25 = tpu.matmul %22, %24, %cst_26 {dimension_numbers = #tpu.dot_dimension_numbers<[1], [0], [0], [1], [0, 0, 1, 1], [], []>} : vector<64x32xf32>, vector<32x32xf32>, vector<64x32xf32> -> vector<64x32xf32>
    %26 = arith.addf %19, %25 : vector<64x32xf32>
    %c0_27 = arith.constant 0 : index
    %c1_28 = arith.constant 1 : index
    %c1_29 = arith.constant 1 : index
    %c0_30 = arith.constant 0 : index
    %27 = vector.load %arg1[%c0_27, %c1_28, %c1_29, %c0_30] : memref<1x10x10x32xf32, #tpu.memory_space<vmem>>, vector<1x8x8x32xf32>
    %28 = vector.shape_cast %27 : vector<1x8x8x32xf32> to vector<8x8x32xf32>
    %29 = vector.shape_cast %28 : vector<8x8x32xf32> to vector<64x32xf32>
    %c4 = arith.constant 4 : index
    %c0_31 = arith.constant 0 : index
    %c0_32 = arith.constant 0 : index
    %30 = vector.load %arg2[%c4, %c0_31, %c0_32] : memref<9x32x32xf32, #tpu.memory_space<vmem>>, vector<1x32x32xf32>
    %31 = vector.shape_cast %30 : vector<1x32x32xf32> to vector<32x32xf32>
    %cst_33 = arith.constant dense<0.000000e+00> : vector<64x32xf32>
    %32 = tpu.matmul %29, %31, %cst_33 {dimension_numbers = #tpu.dot_dimension_numbers<[1], [0], [0], [1], [0, 0, 1, 1], [], []>} : vector<64x32xf32>, vector<32x32xf32>, vector<64x32xf32> -> vector<64x32xf32>
    %33 = arith.addf %26, %32 : vector<64x32xf32>
    %c0_34 = arith.constant 0 : index
    %c1_35 = arith.constant 1 : index
    %c2_36 = arith.constant 2 : index
    %c0_37 = arith.constant 0 : index
    %34 = vector.load %arg1[%c0_34, %c1_35, %c2_36, %c0_37] : memref<1x10x10x32xf32, #tpu.memory_space<vmem>>, vector<1x8x8x32xf32>
    %35 = vector.shape_cast %34 : vector<1x8x8x32xf32> to vector<8x8x32xf32>
    %36 = vector.shape_cast %35 : vector<8x8x32xf32> to vector<64x32xf32>
    %c5 = arith.constant 5 : index
    %c0_38 = arith.constant 0 : index
    %c0_39 = arith.constant 0 : index
    %37 = vector.load %arg2[%c5, %c0_38, %c0_39] : memref<9x32x32xf32, #tpu.memory_space<vmem>>, vector<1x32x32xf32>
    %38 = vector.shape_cast %37 : vector<1x32x32xf32> to vector<32x32xf32>
    %cst_40 = arith.constant dense<0.000000e+00> : vector<64x32xf32>
    %39 = tpu.matmul %36, %38, %cst_40 {dimension_numbers = #tpu.dot_dimension_numbers<[1], [0], [0], [1], [0, 0, 1, 1], [], []>} : vector<64x32xf32>, vector<32x32xf32>, vector<64x32xf32> -> vector<64x32xf32>
    %40 = arith.addf %33, %39 : vector<64x32xf32>
    %c0_41 = arith.constant 0 : index
    %c2_42 = arith.constant 2 : index
    %c0_43 = arith.constant 0 : index
    %c0_44 = arith.constant 0 : index
    %41 = vector.load %arg1[%c0_41, %c2_42, %c0_43, %c0_44] : memref<1x10x10x32xf32, #tpu.memory_space<vmem>>, vector<1x8x8x32xf32>
    %42 = vector.shape_cast %41 : vector<1x8x8x32xf32> to vector<8x8x32xf32>
    %43 = vector.shape_cast %42 : vector<8x8x32xf32> to vector<64x32xf32>
    %c6 = arith.constant 6 : index
    %c0_45 = arith.constant 0 : index
    %c0_46 = arith.constant 0 : index
    %44 = vector.load %arg2[%c6, %c0_45, %c0_46] : memref<9x32x32xf32, #tpu.memory_space<vmem>>, vector<1x32x32xf32>
    %45 = vector.shape_cast %44 : vector<1x32x32xf32> to vector<32x32xf32>
    %cst_47 = arith.constant dense<0.000000e+00> : vector<64x32xf32>
    %46 = tpu.matmul %43, %45, %cst_47 {dimension_numbers = #tpu.dot_dimension_numbers<[1], [0], [0], [1], [0, 0, 1, 1], [], []>} : vector<64x32xf32>, vector<32x32xf32>, vector<64x32xf32> -> vector<64x32xf32>
    %47 = arith.addf %40, %46 : vector<64x32xf32>
    %c0_48 = arith.constant 0 : index
    %c2_49 = arith.constant 2 : index
    %c1_50 = arith.constant 1 : index
    %c0_51 = arith.constant 0 : index
    %48 = vector.load %arg1[%c0_48, %c2_49, %c1_50, %c0_51] : memref<1x10x10x32xf32, #tpu.memory_space<vmem>>, vector<1x8x8x32xf32>
    %49 = vector.shape_cast %48 : vector<1x8x8x32xf32> to vector<8x8x32xf32>
    %50 = vector.shape_cast %49 : vector<8x8x32xf32> to vector<64x32xf32>
    %c7 = arith.constant 7 : index
    %c0_52 = arith.constant 0 : index
    %c0_53 = arith.constant 0 : index
    %51 = vector.load %arg2[%c7, %c0_52, %c0_53] : memref<9x32x32xf32, #tpu.memory_space<vmem>>, vector<1x32x32xf32>
    %52 = vector.shape_cast %51 : vector<1x32x32xf32> to vector<32x32xf32>
    %cst_54 = arith.constant dense<0.000000e+00> : vector<64x32xf32>
    %53 = tpu.matmul %50, %52, %cst_54 {dimension_numbers = #tpu.dot_dimension_numbers<[1], [0], [0], [1], [0, 0, 1, 1], [], []>} : vector<64x32xf32>, vector<32x32xf32>, vector<64x32xf32> -> vector<64x32xf32>
    %54 = arith.addf %47, %53 : vector<64x32xf32>
    %c0_55 = arith.constant 0 : index
    %c2_56 = arith.constant 2 : index
    %c2_57 = arith.constant 2 : index
    %c0_58 = arith.constant 0 : index
    %55 = vector.load %arg1[%c0_55, %c2_56, %c2_57, %c0_58] : memref<1x10x10x32xf32, #tpu.memory_space<vmem>>, vector<1x8x8x32xf32>
    %56 = vector.shape_cast %55 : vector<1x8x8x32xf32> to vector<8x8x32xf32>
    %57 = vector.shape_cast %56 : vector<8x8x32xf32> to vector<64x32xf32>
    %c8 = arith.constant 8 : index
    %c0_59 = arith.constant 0 : index
    %c0_60 = arith.constant 0 : index
    %58 = vector.load %arg2[%c8, %c0_59, %c0_60] : memref<9x32x32xf32, #tpu.memory_space<vmem>>, vector<1x32x32xf32>
    %59 = vector.shape_cast %58 : vector<1x32x32xf32> to vector<32x32xf32>
    %cst_61 = arith.constant dense<0.000000e+00> : vector<64x32xf32>
    %60 = tpu.matmul %57, %59, %cst_61 {dimension_numbers = #tpu.dot_dimension_numbers<[1], [0], [0], [1], [0, 0, 1, 1], [], []>} : vector<64x32xf32>, vector<32x32xf32>, vector<64x32xf32> -> vector<64x32xf32>
    %61 = arith.addf %54, %60 : vector<64x32xf32>
    %c0_62 = arith.constant 0 : index
    %c0_63 = arith.constant 0 : index
    %62 = vector.load %arg3[%c0_62, %c0_63] : memref<1x32xf32, #tpu.memory_space<vmem>>, vector<1x32xf32>
    %63 = vector.broadcast %62 : vector<1x32xf32> to vector<64x32xf32>
    %64 = arith.addf %61, %63 : vector<64x32xf32>
    %65 = vector.shape_cast %64 : vector<64x32xf32> to vector<8x8x32xf32>
    %c0_64 = arith.constant 0 : index
    %c0_65 = arith.constant 0 : index
    %c0_66 = arith.constant 0 : index
    %c0_67 = arith.constant 0 : index
    %66 = vector.load %arg4[%c0_64, %c0_65, %c0_66, %c0_67] : memref<1x8x8x32xf32, #tpu.memory_space<vmem>>, vector<1x8x8x32xf32>
    %67 = vector.shape_cast %66 : vector<1x8x8x32xf32> to vector<8x8x32xf32>
    %68 = vector.shape_cast %65 : vector<8x8x32xf32> to vector<1x8x8x32xf32>
    tpu.vector_store %arg4[%c0_64, %c0_65, %c0_66, %c0_67], %68 {strides = array<i32>} : memref<1x8x8x32xf32, #tpu.memory_space<vmem>>, vector<1x8x8x32xf32>,
    return
  }
  func.func @transform_0(%arg0: i32) -> (i32, i32, i32, i32) {
    %c0_i32 = arith.constant 0 : i32
    %c0_i32_0 = arith.constant 0 : i32
    %c0_i32_1 = arith.constant 0 : i32
    %c0_i32_2 = arith.constant 0 : i32
    return %arg0, %c0_i32, %c0_i32_0, %c0_i32_1 : i32, i32, i32, i32
  }
  func.func @transform_1(%arg0: i32) -> (i32, i32, i32) {
    %c0_i32 = arith.constant 0 : i32
    %c0_i32_0 = arith.constant 0 : i32
    %c0_i32_1 = arith.constant 0 : i32
    %c0_i32_2 = arith.constant 0 : i32
    return %c0_i32, %c0_i32_0, %c0_i32_1 : i32, i32, i32
  }
  func.func @transform_2(%arg0: i32) -> (i32, i32) {
    %c0_i32 = arith.constant 0 : i32
    %c0_i32_0 = arith.constant 0 : i32
    %c0_i32_1 = arith.constant 0 : i32
    return %c0_i32, %c0_i32_0 : i32, i32
  }
  func.func @transform_3(%arg0: i32) -> (i32, i32, i32, i32) {
    %c0_i32 = arith.constant 0 : i32
    %c0_i32_0 = arith.constant 0 : i32
    %c0_i32_1 = arith.constant 0 : i32
    %c0_i32_2 = arith.constant 0 : i32
    return %arg0, %c0_i32, %c0_i32_0, %c0_i32_1 : i32, i32, i32, i32
  }
}

module attributes {stable_mosaic.version = 11 : i64} {
  func.func @_cnn_ln_gelu_pad_kernel(%arg0: i32, %arg1: memref<1x8x256xf32, #tpu.memory_space<vmem>>, %arg2: memref<8x1xf32, #tpu.memory_space<vmem>>, %arg3: memref<8x1xf32, #tpu.memory_space<vmem>>, %arg4: memref<1x10x320xf32, #tpu.memory_space<vmem>>) attributes {dimension_semantics = [#tpu.dimension_semantics<parallel>], iteration_bounds = array<i64: 2>, scalar_prefetch = 0 : i64, scratch_operands = 0 : i64, tpu.core_type = #tpu.core_type<tc>, window_params = [{transform_indices = @transform_0, window_bounds = array<i64: 1, 8, 256>}, {pipeline_mode = #tpu.pipeline_mode<synchronous>, transform_indices = @transform_1, window_bounds = array<i64: 8, 1>}, {pipeline_mode = #tpu.pipeline_mode<synchronous>, transform_indices = @transform_2, window_bounds = array<i64: 8, 1>}, {transform_indices = @transform_3, window_bounds = array<i64: 1, 10, 320>}]} {
    %c0 = arith.constant 0 : index
    %c0_0 = arith.constant 0 : index
    %c0_1 = arith.constant 0 : index
    %0 = vector.load %arg1[%c0, %c0_0, %c0_1] : memref<1x8x256xf32, #tpu.memory_space<vmem>>, vector<1x8x256xf32>
    %1 = vector.shape_cast %0 : vector<1x8x256xf32> to vector<8x256xf32>
    %cst = arith.constant dense<0.000000e+00> : vector<256xf32>
    %2 = vector.multi_reduction <add>, %1, %cst [0] : vector<8x256xf32> to vector<256xf32>
    %3 = vector.shape_cast %2 : vector<256xf32> to vector<1x256xf32>
    %cst_2 = arith.constant 8.000000e+00 : f32
    %4 = vector.broadcast %cst_2 : f32 to vector<1x256xf32>
    %5 = arith.divf %3, %4 : vector<1x256xf32>
    %6 = vector.broadcast %5 : vector<1x256xf32> to vector<8x256xf32>
    %7 = arith.subf %1, %6 : vector<8x256xf32>
    %8 = arith.mulf %7, %7 : vector<8x256xf32>
    %cst_3 = arith.constant dense<0.000000e+00> : vector<256xf32>
    %9 = vector.multi_reduction <add>, %8, %cst_3 [0] : vector<8x256xf32> to vector<256xf32>
    %10 = vector.shape_cast %9 : vector<256xf32> to vector<1x256xf32>
    %cst_4 = arith.constant 8.000000e+00 : f32
    %11 = vector.broadcast %cst_4 : f32 to vector<1x256xf32>
    %12 = arith.divf %10, %11 : vector<1x256xf32>
    %cst_5 = arith.constant 9.99999974E-6 : f32
    %13 = vector.broadcast %cst_5 : f32 to vector<1x256xf32>
    %14 = arith.addf %12, %13 : vector<1x256xf32>
    %15 = math.rsqrt %14 : vector<1x256xf32>
    %16 = vector.broadcast %15 : vector<1x256xf32> to vector<8x256xf32>
    %17 = arith.mulf %7, %16 : vector<8x256xf32>
    %c0_6 = arith.constant 0 : index
    %c0_7 = arith.constant 0 : index
    %18 = vector.load %arg2[%c0_6, %c0_7] : memref<8x1xf32, #tpu.memory_space<vmem>>, vector<8x1xf32>
    %19 = vector.broadcast %18 : vector<8x1xf32> to vector<8x256xf32>
    %20 = arith.mulf %17, %19 : vector<8x256xf32>
    %c0_8 = arith.constant 0 : index
    %c0_9 = arith.constant 0 : index
    %21 = vector.load %arg3[%c0_8, %c0_9] : memref<8x1xf32, #tpu.memory_space<vmem>>, vector<8x1xf32>
    %22 = vector.broadcast %21 : vector<8x1xf32> to vector<8x256xf32>
    %23 = arith.addf %20, %22 : vector<8x256xf32>
    %cst_10 = arith.constant 5.000000e-01 : f32
    %24 = vector.broadcast %cst_10 : f32 to vector<8x256xf32>
    %25 = arith.mulf %24, %23 : vector<8x256xf32>
    %cst_11 = arith.constant 0.707106769 : f32
    %26 = vector.broadcast %cst_11 : f32 to vector<8x256xf32>
    %27 = arith.mulf %23, %26 : vector<8x256xf32>
    %cst_12 = arith.constant 0.000000e+00 : f32
    %28 = vector.broadcast %cst_12 : f32 to vector<8x256xf32>
    %29 = arith.cmpf oge, %27, %28 : vector<8x256xf32>
    %cst_13 = arith.constant 1.000000e+00 : f32
    %cst_14 = arith.constant -1.000000e+00 : f32
    %30 = vector.broadcast %cst_13 : f32 to vector<8x256xf32>
    %31 = vector.broadcast %cst_14 : f32 to vector<8x256xf32>
    %32 = arith.select %29, %30, %31 : vector<8x256xi1>, vector<8x256xf32>
    %33 = math.absf %27 : vector<8x256xf32>
    %cst_15 = arith.constant 0.327591091 : f32
    %34 = vector.broadcast %cst_15 : f32 to vector<8x256xf32>
    %35 = arith.mulf %34, %33 : vector<8x256xf32>
    %cst_16 = arith.constant 1.000000e+00 : f32
    %36 = vector.broadcast %cst_16 : f32 to vector<8x256xf32>
    %37 = arith.addf %36, %35 : vector<8x256xf32>
    %cst_17 = arith.constant 1.000000e+00 : f32
    %38 = vector.broadcast %cst_17 : f32 to vector<8x256xf32>
    %39 = arith.divf %38, %37 : vector<8x256xf32>
    %cst_18 = arith.constant 1.06140542 : f32
    %40 = vector.broadcast %cst_18 : f32 to vector<8x256xf32>
    %41 = arith.mulf %40, %39 : vector<8x256xf32>
    %cst_19 = arith.constant -1.45315206 : f32
    %42 = vector.broadcast %cst_19 : f32 to vector<8x256xf32>
    %43 = arith.addf %41, %42 : vector<8x256xf32>
    %44 = arith.mulf %43, %39 : vector<8x256xf32>
    %cst_20 = arith.constant 1.42141378 : f32
    %45 = vector.broadcast %cst_20 : f32 to vector<8x256xf32>
    %46 = arith.addf %44, %45 : vector<8x256xf32>
    %47 = arith.mulf %46, %39 : vector<8x256xf32>
    %cst_21 = arith.constant -0.284496725 : f32
    %48 = vector.broadcast %cst_21 : f32 to vector<8x256xf32>
    %49 = arith.addf %47, %48 : vector<8x256xf32>
    %50 = arith.mulf %49, %39 : vector<8x256xf32>
    %cst_22 = arith.constant 0.254829586 : f32
    %51 = vector.broadcast %cst_22 : f32 to vector<8x256xf32>
    %52 = arith.addf %50, %51 : vector<8x256xf32>
    %53 = arith.mulf %52, %39 : vector<8x256xf32>
    %cst_23 = arith.constant 0.000000e+00 : f32
    %54 = vector.broadcast %cst_23 : f32 to vector<8x256xf32>
    %55 = arith.subf %54, %33 : vector<8x256xf32>
    %56 = arith.mulf %55, %33 : vector<8x256xf32>
    %57 = math.exp %56 : vector<8x256xf32>
    %58 = arith.mulf %53, %57 : vector<8x256xf32>
    %cst_24 = arith.constant 1.000000e+00 : f32
    %59 = vector.broadcast %cst_24 : f32 to vector<8x256xf32>
    %60 = arith.subf %59, %58 : vector<8x256xf32>
    %61 = arith.mulf %32, %60 : vector<8x256xf32>
    %cst_25 = arith.constant 1.000000e+00 : f32
    %62 = vector.broadcast %cst_25 : f32 to vector<8x256xf32>
    %63 = arith.addf %62, %61 : vector<8x256xf32>
    %64 = arith.mulf %25, %63 : vector<8x256xf32>
    %cst_26 = arith.constant 0.000000e+00 : f32
    %65 = vector.broadcast %cst_26 : f32 to vector<10x320xf32>
    %c0_27 = arith.constant 0 : index
    %c0_28 = arith.constant 0 : index
    %c0_29 = arith.constant 0 : index
    %66 = vector.load %arg4[%c0_27, %c0_28, %c0_29] : memref<1x10x320xf32, #tpu.memory_space<vmem>>, vector<1x10x320xf32>
    %67 = vector.shape_cast %66 : vector<1x10x320xf32> to vector<10x320xf32>
    %68 = vector.shape_cast %65 : vector<10x320xf32> to vector<1x10x320xf32>
    tpu.vector_store %arg4[%c0_27, %c0_28, %c0_29], %68 {strides = array<i32>} : memref<1x10x320xf32, #tpu.memory_space<vmem>>, vector<1x10x320xf32>,
    %c0_30 = arith.constant 0 : index
    %c1 = arith.constant 1 : index
    %c32 = arith.constant 32 : index
    %69 = vector.load %arg4[%c0_30, %c1, %c32] : memref<1x10x320xf32, #tpu.memory_space<vmem>>, vector<1x8x256xf32>
    %70 = vector.shape_cast %69 : vector<1x8x256xf32> to vector<8x256xf32>
    %71 = vector.shape_cast %64 : vector<8x256xf32> to vector<1x8x256xf32>
    tpu.vector_store %arg4[%c0_30, %c1, %c32], %71 {strides = array<i32>} : memref<1x10x320xf32, #tpu.memory_space<vmem>>, vector<1x8x256xf32>,
    return
  }
  func.func @transform_0(%arg0: i32) -> (i32, i32, i32) {
    %c0_i32 = arith.constant 0 : i32
    %c0_i32_0 = arith.constant 0 : i32
    %c0_i32_1 = arith.constant 0 : i32
    return %arg0, %c0_i32, %c0_i32_0 : i32, i32, i32
  }
  func.func @transform_1(%arg0: i32) -> (i32, i32) {
    %c0_i32 = arith.constant 0 : i32
    %c0_i32_0 = arith.constant 0 : i32
    %c0_i32_1 = arith.constant 0 : i32
    return %c0_i32, %c0_i32_0 : i32, i32
  }
  func.func @transform_2(%arg0: i32) -> (i32, i32) {
    %c0_i32 = arith.constant 0 : i32
    %c0_i32_0 = arith.constant 0 : i32
    %c0_i32_1 = arith.constant 0 : i32
    return %c0_i32, %c0_i32_0 : i32, i32
  }
  func.func @transform_3(%arg0: i32) -> (i32, i32, i32) {
    %c0_i32 = arith.constant 0 : i32
    %c0_i32_0 = arith.constant 0 : i32
    %c0_i32_1 = arith.constant 0 : i32
    return %arg0, %c0_i32, %c0_i32_0 : i32, i32, i32
  }
}

module attributes {stable_mosaic.version = 11 : i64} {
  func.func @_conv3x3_kernel(%arg0: i32, %arg1: memref<1x10x10x32xf32, #tpu.memory_space<vmem>>, %arg2: memref<9x32x32xf32, #tpu.memory_space<vmem>>, %arg3: memref<1x32xf32, #tpu.memory_space<vmem>>, %arg4: memref<1x8x8x32xf32, #tpu.memory_space<vmem>>, %arg5: memref<1x8x8x32xf32, #tpu.memory_space<vmem>>) attributes {dimension_semantics = [#tpu.dimension_semantics<parallel>], iteration_bounds = array<i64: 2>, scalar_prefetch = 0 : i64, scratch_operands = 0 : i64, tpu.core_type = #tpu.core_type<tc>, window_params = [{transform_indices = @transform_0, window_bounds = array<i64: 1, 10, 10, 32>}, {pipeline_mode = #tpu.pipeline_mode<synchronous>, transform_indices = @transform_1, window_bounds = array<i64: 9, 32, 32>}, {pipeline_mode = #tpu.pipeline_mode<synchronous>, transform_indices = @transform_2, window_bounds = array<i64: 1, 32>}, {transform_indices = @transform_3, window_bounds = array<i64: 1, 8, 8, 32>}, {transform_indices = @transform_4, window_bounds = array<i64: 1, 8, 8, 32>}]} {
    %c0 = arith.constant 0 : index
    %c0_0 = arith.constant 0 : index
    %c0_1 = arith.constant 0 : index
    %c0_2 = arith.constant 0 : index
    %0 = vector.load %arg1[%c0, %c0_0, %c0_1, %c0_2] : memref<1x10x10x32xf32, #tpu.memory_space<vmem>>, vector<1x8x8x32xf32>
    %1 = vector.shape_cast %0 : vector<1x8x8x32xf32> to vector<8x8x32xf32>
    %2 = vector.shape_cast %1 : vector<8x8x32xf32> to vector<64x32xf32>
    %c0_3 = arith.constant 0 : index
    %c0_4 = arith.constant 0 : index
    %c0_5 = arith.constant 0 : index
    %3 = vector.load %arg2[%c0_3, %c0_4, %c0_5] : memref<9x32x32xf32, #tpu.memory_space<vmem>>, vector<1x32x32xf32>
    %4 = vector.shape_cast %3 : vector<1x32x32xf32> to vector<32x32xf32>
    %cst = arith.constant dense<0.000000e+00> : vector<64x32xf32>
    %5 = tpu.matmul %2, %4, %cst {dimension_numbers = #tpu.dot_dimension_numbers<[1], [0], [0], [1], [0, 0, 1, 1], [], []>} : vector<64x32xf32>, vector<32x32xf32>, vector<64x32xf32> -> vector<64x32xf32>
    %c0_6 = arith.constant 0 : index
    %c0_7 = arith.constant 0 : index
    %c1 = arith.constant 1 : index
    %c0_8 = arith.constant 0 : index
    %6 = vector.load %arg1[%c0_6, %c0_7, %c1, %c0_8] : memref<1x10x10x32xf32, #tpu.memory_space<vmem>>, vector<1x8x8x32xf32>
    %7 = vector.shape_cast %6 : vector<1x8x8x32xf32> to vector<8x8x32xf32>
    %8 = vector.shape_cast %7 : vector<8x8x32xf32> to vector<64x32xf32>
    %c1_9 = arith.constant 1 : index
    %c0_10 = arith.constant 0 : index
    %c0_11 = arith.constant 0 : index
    %9 = vector.load %arg2[%c1_9, %c0_10, %c0_11] : memref<9x32x32xf32, #tpu.memory_space<vmem>>, vector<1x32x32xf32>
    %10 = vector.shape_cast %9 : vector<1x32x32xf32> to vector<32x32xf32>
    %cst_12 = arith.constant dense<0.000000e+00> : vector<64x32xf32>
    %11 = tpu.matmul %8, %10, %cst_12 {dimension_numbers = #tpu.dot_dimension_numbers<[1], [0], [0], [1], [0, 0, 1, 1], [], []>} : vector<64x32xf32>, vector<32x32xf32>, vector<64x32xf32> -> vector<64x32xf32>
    %12 = arith.addf %5, %11 : vector<64x32xf32>
    %c0_13 = arith.constant 0 : index
    %c0_14 = arith.constant 0 : index
    %c2 = arith.constant 2 : index
    %c0_15 = arith.constant 0 : index
    %13 = vector.load %arg1[%c0_13, %c0_14, %c2, %c0_15] : memref<1x10x10x32xf32, #tpu.memory_space<vmem>>, vector<1x8x8x32xf32>
    %14 = vector.shape_cast %13 : vector<1x8x8x32xf32> to vector<8x8x32xf32>
    %15 = vector.shape_cast %14 : vector<8x8x32xf32> to vector<64x32xf32>
    %c2_16 = arith.constant 2 : index
    %c0_17 = arith.constant 0 : index
    %c0_18 = arith.constant 0 : index
    %16 = vector.load %arg2[%c2_16, %c0_17, %c0_18] : memref<9x32x32xf32, #tpu.memory_space<vmem>>, vector<1x32x32xf32>
    %17 = vector.shape_cast %16 : vector<1x32x32xf32> to vector<32x32xf32>
    %cst_19 = arith.constant dense<0.000000e+00> : vector<64x32xf32>
    %18 = tpu.matmul %15, %17, %cst_19 {dimension_numbers = #tpu.dot_dimension_numbers<[1], [0], [0], [1], [0, 0, 1, 1], [], []>} : vector<64x32xf32>, vector<32x32xf32>, vector<64x32xf32> -> vector<64x32xf32>
    %19 = arith.addf %12, %18 : vector<64x32xf32>
    %c0_20 = arith.constant 0 : index
    %c1_21 = arith.constant 1 : index
    %c0_22 = arith.constant 0 : index
    %c0_23 = arith.constant 0 : index
    %20 = vector.load %arg1[%c0_20, %c1_21, %c0_22, %c0_23] : memref<1x10x10x32xf32, #tpu.memory_space<vmem>>, vector<1x8x8x32xf32>
    %21 = vector.shape_cast %20 : vector<1x8x8x32xf32> to vector<8x8x32xf32>
    %22 = vector.shape_cast %21 : vector<8x8x32xf32> to vector<64x32xf32>
    %c3 = arith.constant 3 : index
    %c0_24 = arith.constant 0 : index
    %c0_25 = arith.constant 0 : index
    %23 = vector.load %arg2[%c3, %c0_24, %c0_25] : memref<9x32x32xf32, #tpu.memory_space<vmem>>, vector<1x32x32xf32>
    %24 = vector.shape_cast %23 : vector<1x32x32xf32> to vector<32x32xf32>
    %cst_26 = arith.constant dense<0.000000e+00> : vector<64x32xf32>
    %25 = tpu.matmul %22, %24, %cst_26 {dimension_numbers = #tpu.dot_dimension_numbers<[1], [0], [0], [1], [0, 0, 1, 1], [], []>} : vector<64x32xf32>, vector<32x32xf32>, vector<64x32xf32> -> vector<64x32xf32>
    %26 = arith.addf %19, %25 : vector<64x32xf32>
    %c0_27 = arith.constant 0 : index
    %c1_28 = arith.constant 1 : index
    %c1_29 = arith.constant 1 : index
    %c0_30 = arith.constant 0 : index
    %27 = vector.load %arg1[%c0_27, %c1_28, %c1_29, %c0_30] : memref<1x10x10x32xf32, #tpu.memory_space<vmem>>, vector<1x8x8x32xf32>
    %28 = vector.shape_cast %27 : vector<1x8x8x32xf32> to vector<8x8x32xf32>
    %29 = vector.shape_cast %28 : vector<8x8x32xf32> to vector<64x32xf32>
    %c4 = arith.constant 4 : index
    %c0_31 = arith.constant 0 : index
    %c0_32 = arith.constant 0 : index
    %30 = vector.load %arg2[%c4, %c0_31, %c0_32] : memref<9x32x32xf32, #tpu.memory_space<vmem>>, vector<1x32x32xf32>
    %31 = vector.shape_cast %30 : vector<1x32x32xf32> to vector<32x32xf32>
    %cst_33 = arith.constant dense<0.000000e+00> : vector<64x32xf32>
    %32 = tpu.matmul %29, %31, %cst_33 {dimension_numbers = #tpu.dot_dimension_numbers<[1], [0], [0], [1], [0, 0, 1, 1], [], []>} : vector<64x32xf32>, vector<32x32xf32>, vector<64x32xf32> -> vector<64x32xf32>
    %33 = arith.addf %26, %32 : vector<64x32xf32>
    %c0_34 = arith.constant 0 : index
    %c1_35 = arith.constant 1 : index
    %c2_36 = arith.constant 2 : index
    %c0_37 = arith.constant 0 : index
    %34 = vector.load %arg1[%c0_34, %c1_35, %c2_36, %c0_37] : memref<1x10x10x32xf32, #tpu.memory_space<vmem>>, vector<1x8x8x32xf32>
    %35 = vector.shape_cast %34 : vector<1x8x8x32xf32> to vector<8x8x32xf32>
    %36 = vector.shape_cast %35 : vector<8x8x32xf32> to vector<64x32xf32>
    %c5 = arith.constant 5 : index
    %c0_38 = arith.constant 0 : index
    %c0_39 = arith.constant 0 : index
    %37 = vector.load %arg2[%c5, %c0_38, %c0_39] : memref<9x32x32xf32, #tpu.memory_space<vmem>>, vector<1x32x32xf32>
    %38 = vector.shape_cast %37 : vector<1x32x32xf32> to vector<32x32xf32>
    %cst_40 = arith.constant dense<0.000000e+00> : vector<64x32xf32>
    %39 = tpu.matmul %36, %38, %cst_40 {dimension_numbers = #tpu.dot_dimension_numbers<[1], [0], [0], [1], [0, 0, 1, 1], [], []>} : vector<64x32xf32>, vector<32x32xf32>, vector<64x32xf32> -> vector<64x32xf32>
    %40 = arith.addf %33, %39 : vector<64x32xf32>
    %c0_41 = arith.constant 0 : index
    %c2_42 = arith.constant 2 : index
    %c0_43 = arith.constant 0 : index
    %c0_44 = arith.constant 0 : index
    %41 = vector.load %arg1[%c0_41, %c2_42, %c0_43, %c0_44] : memref<1x10x10x32xf32, #tpu.memory_space<vmem>>, vector<1x8x8x32xf32>
    %42 = vector.shape_cast %41 : vector<1x8x8x32xf32> to vector<8x8x32xf32>
    %43 = vector.shape_cast %42 : vector<8x8x32xf32> to vector<64x32xf32>
    %c6 = arith.constant 6 : index
    %c0_45 = arith.constant 0 : index
    %c0_46 = arith.constant 0 : index
    %44 = vector.load %arg2[%c6, %c0_45, %c0_46] : memref<9x32x32xf32, #tpu.memory_space<vmem>>, vector<1x32x32xf32>
    %45 = vector.shape_cast %44 : vector<1x32x32xf32> to vector<32x32xf32>
    %cst_47 = arith.constant dense<0.000000e+00> : vector<64x32xf32>
    %46 = tpu.matmul %43, %45, %cst_47 {dimension_numbers = #tpu.dot_dimension_numbers<[1], [0], [0], [1], [0, 0, 1, 1], [], []>} : vector<64x32xf32>, vector<32x32xf32>, vector<64x32xf32> -> vector<64x32xf32>
    %47 = arith.addf %40, %46 : vector<64x32xf32>
    %c0_48 = arith.constant 0 : index
    %c2_49 = arith.constant 2 : index
    %c1_50 = arith.constant 1 : index
    %c0_51 = arith.constant 0 : index
    %48 = vector.load %arg1[%c0_48, %c2_49, %c1_50, %c0_51] : memref<1x10x10x32xf32, #tpu.memory_space<vmem>>, vector<1x8x8x32xf32>
    %49 = vector.shape_cast %48 : vector<1x8x8x32xf32> to vector<8x8x32xf32>
    %50 = vector.shape_cast %49 : vector<8x8x32xf32> to vector<64x32xf32>
    %c7 = arith.constant 7 : index
    %c0_52 = arith.constant 0 : index
    %c0_53 = arith.constant 0 : index
    %51 = vector.load %arg2[%c7, %c0_52, %c0_53] : memref<9x32x32xf32, #tpu.memory_space<vmem>>, vector<1x32x32xf32>
    %52 = vector.shape_cast %51 : vector<1x32x32xf32> to vector<32x32xf32>
    %cst_54 = arith.constant dense<0.000000e+00> : vector<64x32xf32>
    %53 = tpu.matmul %50, %52, %cst_54 {dimension_numbers = #tpu.dot_dimension_numbers<[1], [0], [0], [1], [0, 0, 1, 1], [], []>} : vector<64x32xf32>, vector<32x32xf32>, vector<64x32xf32> -> vector<64x32xf32>
    %54 = arith.addf %47, %53 : vector<64x32xf32>
    %c0_55 = arith.constant 0 : index
    %c2_56 = arith.constant 2 : index
    %c2_57 = arith.constant 2 : index
    %c0_58 = arith.constant 0 : index
    %55 = vector.load %arg1[%c0_55, %c2_56, %c2_57, %c0_58] : memref<1x10x10x32xf32, #tpu.memory_space<vmem>>, vector<1x8x8x32xf32>
    %56 = vector.shape_cast %55 : vector<1x8x8x32xf32> to vector<8x8x32xf32>
    %57 = vector.shape_cast %56 : vector<8x8x32xf32> to vector<64x32xf32>
    %c8 = arith.constant 8 : index
    %c0_59 = arith.constant 0 : index
    %c0_60 = arith.constant 0 : index
    %58 = vector.load %arg2[%c8, %c0_59, %c0_60] : memref<9x32x32xf32, #tpu.memory_space<vmem>>, vector<1x32x32xf32>
    %59 = vector.shape_cast %58 : vector<1x32x32xf32> to vector<32x32xf32>
    %cst_61 = arith.constant dense<0.000000e+00> : vector<64x32xf32>
    %60 = tpu.matmul %57, %59, %cst_61 {dimension_numbers = #tpu.dot_dimension_numbers<[1], [0], [0], [1], [0, 0, 1, 1], [], []>} : vector<64x32xf32>, vector<32x32xf32>, vector<64x32xf32> -> vector<64x32xf32>
    %61 = arith.addf %54, %60 : vector<64x32xf32>
    %c0_62 = arith.constant 0 : index
    %c0_63 = arith.constant 0 : index
    %62 = vector.load %arg3[%c0_62, %c0_63] : memref<1x32xf32, #tpu.memory_space<vmem>>, vector<1x32xf32>
    %63 = vector.broadcast %62 : vector<1x32xf32> to vector<64x32xf32>
    %64 = arith.addf %61, %63 : vector<64x32xf32>
    %65 = vector.shape_cast %64 : vector<64x32xf32> to vector<8x8x32xf32>
    %c0_64 = arith.constant 0 : index
    %c0_65 = arith.constant 0 : index
    %c0_66 = arith.constant 0 : index
    %c0_67 = arith.constant 0 : index
    %66 = vector.load %arg4[%c0_64, %c0_65, %c0_66, %c0_67] : memref<1x8x8x32xf32, #tpu.memory_space<vmem>>, vector<1x8x8x32xf32>
    %67 = vector.shape_cast %66 : vector<1x8x8x32xf32> to vector<8x8x32xf32>
    %68 = arith.addf %65, %67 : vector<8x8x32xf32>
    %c0_68 = arith.constant 0 : index
    %c0_69 = arith.constant 0 : index
    %c0_70 = arith.constant 0 : index
    %c0_71 = arith.constant 0 : index
    %69 = vector.load %arg5[%c0_68, %c0_69, %c0_70, %c0_71] : memref<1x8x8x32xf32, #tpu.memory_space<vmem>>, vector<1x8x8x32xf32>
    %70 = vector.shape_cast %69 : vector<1x8x8x32xf32> to vector<8x8x32xf32>
    %71 = vector.shape_cast %68 : vector<8x8x32xf32> to vector<1x8x8x32xf32>
    tpu.vector_store %arg5[%c0_68, %c0_69, %c0_70, %c0_71], %71 {strides = array<i32>} : memref<1x8x8x32xf32, #tpu.memory_space<vmem>>, vector<1x8x8x32xf32>,
    return
  }
  func.func @transform_0(%arg0: i32) -> (i32, i32, i32, i32) {
    %c0_i32 = arith.constant 0 : i32
    %c0_i32_0 = arith.constant 0 : i32
    %c0_i32_1 = arith.constant 0 : i32
    %c0_i32_2 = arith.constant 0 : i32
    return %arg0, %c0_i32, %c0_i32_0, %c0_i32_1 : i32, i32, i32, i32
  }
  func.func @transform_1(%arg0: i32) -> (i32, i32, i32) {
    %c0_i32 = arith.constant 0 : i32
    %c0_i32_0 = arith.constant 0 : i32
    %c0_i32_1 = arith.constant 0 : i32
    %c0_i32_2 = arith.constant 0 : i32
    return %c0_i32, %c0_i32_0, %c0_i32_1 : i32, i32, i32
  }
  func.func @transform_2(%arg0: i32) -> (i32, i32) {
    %c0_i32 = arith.constant 0 : i32
    %c0_i32_0 = arith.constant 0 : i32
    %c0_i32_1 = arith.constant 0 : i32
    return %c0_i32, %c0_i32_0 : i32, i32
  }
  func.func @transform_3(%arg0: i32) -> (i32, i32, i32, i32) {
    %c0_i32 = arith.constant 0 : i32
    %c0_i32_0 = arith.constant 0 : i32
    %c0_i32_1 = arith.constant 0 : i32
    %c0_i32_2 = arith.constant 0 : i32
    return %arg0, %c0_i32, %c0_i32_0, %c0_i32_1 : i32, i32, i32, i32
  }
  func.func @transform_4(%arg0: i32) -> (i32, i32, i32, i32) {
    %c0_i32 = arith.constant 0 : i32
    %c0_i32_0 = arith.constant 0 : i32
    %c0_i32_1 = arith.constant 0 : i32
    %c0_i32_2 = arith.constant 0 : i32
    return %arg0, %c0_i32, %c0_i32_0, %c0_i32_1 : i32, i32, i32, i32
  }
}

module attributes {stable_mosaic.version = 11 : i64} {
  func.func @_gru_bidir_kernel(%arg0: i32, %arg1: memref<1x8x2x96xf32, #tpu.memory_space<vmem>>, %arg2: memref<1x8x2x96xf32, #tpu.memory_space<vmem>>, %arg3: memref<64x192xf32, #tpu.memory_space<vmem>>, %arg4: memref<1x192xf32, #tpu.memory_space<vmem>>, %arg5: memref<8x2x32xf32, #tpu.memory_space<vmem>>, %arg6: memref<8x2x32xf32, #tpu.memory_space<vmem>>, %arg7: memref<2x64xf32, #tpu.memory_space<vmem>>) attributes {dimension_semantics = [#tpu.dimension_semantics<arbitrary>], iteration_bounds = array<i64: 1>, scalar_prefetch = 0 : i64, scratch_operands = 1 : i64, tpu.core_type = #tpu.core_type<tc>, window_params = [{transform_indices = @transform_0, window_bounds = array<i64: 1, 8, 2, 96>}, {transform_indices = @transform_1, window_bounds = array<i64: 1, 8, 2, 96>}, {pipeline_mode = #tpu.pipeline_mode<synchronous>, transform_indices = @transform_2, window_bounds = array<i64: 64, 192>}, {pipeline_mode = #tpu.pipeline_mode<synchronous>, transform_indices = @transform_3, window_bounds = array<i64: 1, 192>}, {transform_indices = @transform_4, window_bounds = array<i64: 8, 2, 32>}, {transform_indices = @transform_5, window_bounds = array<i64: 8, 2, 32>}]} {
    %c0_i32 = arith.constant 0 : i32
    %0 = arith.cmpi eq, %arg0, %c0_i32 : i32
    %1 = arith.extui %0 : i1 to i32
    %c0_i32_0 = arith.constant 0 : i32
    %2 = arith.cmpi ne, %1, %c0_i32_0 : i32
    scf.if %2 {
      %cst = arith.constant 0.000000e+00 : f32
      %9 = vector.broadcast %cst : f32 to vector<2x64xf32>
      %c0_10 = arith.constant 0 : index
      %c0_11 = arith.constant 0 : index
      %10 = vector.load %arg7[%c0_10, %c0_11] : memref<2x64xf32, #tpu.memory_space<vmem>>, vector<2x64xf32>
      tpu.vector_store %arg7[%c0_10, %c0_11], %9 {strides = array<i32>} : memref<2x64xf32, #tpu.memory_space<vmem>>, vector<2x64xf32>,
    } else {
    }
    %c0 = arith.constant 0 : index
    %c0_1 = arith.constant 0 : index
    %3 = vector.load %arg3[%c0, %c0_1] : memref<64x192xf32, #tpu.memory_space<vmem>>, vector<64x192xf32>
    %c0_2 = arith.constant 0 : index
    %c0_3 = arith.constant 0 : index
    %4 = vector.load %arg4[%c0_2, %c0_3] : memref<1x192xf32, #tpu.memory_space<vmem>>, vector<1x192xf32>
    %c0_4 = arith.constant 0 : index
    %c0_5 = arith.constant 0 : index
    %5 = vector.load %arg7[%c0_4, %c0_5] : memref<2x64xf32, #tpu.memory_space<vmem>>, vector<2x64xf32>
    %c0_i32_6 = arith.constant 0 : i32
    %c8_i32 = arith.constant 8 : i32
    %6 = arith.addi %c0_i32_6, %c8_i32 : i32
    %c1_i32 = arith.constant 1 : i32
    %7 = scf.for %arg8 = %c0_i32_6 to %6 step %c1_i32 iter_args(%arg9 = %5) -> (vector<2x64xf32>)  : i32 {
      %c0_10 = arith.constant 0 : index
      %9 = arith.index_cast %arg8 : i32 to index
      %c0_11 = arith.constant 0 : index
      %c0_12 = arith.constant 0 : index
      %10 = vector.load %arg1[%c0_10, %9, %c0_11, %c0_12] : memref<1x8x2x96xf32, #tpu.memory_space<vmem>>, vector<1x1x2x96xf32>
      %11 = vector.shape_cast %10 : vector<1x1x2x96xf32> to vector<2x96xf32>
      %c7_i32 = arith.constant 7 : i32
      %12 = arith.subi %c7_i32, %arg8 : i32
      %c0_13 = arith.constant 0 : index
      %13 = arith.index_cast %12 : i32 to index
      %c0_14 = arith.constant 0 : index
      %c0_15 = arith.constant 0 : index
      %14 = vector.load %arg2[%c0_13, %13, %c0_14, %c0_15] : memref<1x8x2x96xf32, #tpu.memory_space<vmem>>, vector<1x1x2x96xf32>
      %15 = vector.shape_cast %14 : vector<1x1x2x96xf32> to vector<2x96xf32>
      %cst = arith.constant dense<0.000000e+00> : vector<2x192xf32>
      %16 = tpu.matmul %arg9, %3, %cst {dimension_numbers = #tpu.dot_dimension_numbers<[1], [0], [0], [1], [0, 0, 1, 1], [], []>} : vector<2x64xf32>, vector<64x192xf32>, vector<2x192xf32> -> vector<2x192xf32>
      %17 = vector.broadcast %4 : vector<1x192xf32> to vector<2x192xf32>
      %18 = arith.addf %16, %17 : vector<2x192xf32>
      %19 = vector.extract_strided_slice %18 {offsets = [0, 0], sizes = [2, 96], strides = [1, 1]} : vector<2x192xf32> to vector<2x96xf32>
      %20 = vector.extract_strided_slice %18 {offsets = [0, 96], sizes = [2, 96], strides = [1, 1]} : vector<2x192xf32> to vector<2x96xf32>
      %21 = vector.extract_strided_slice %arg9 {offsets = [0, 0], sizes = [2, 32], strides = [1, 1]} : vector<2x64xf32> to vector<2x32xf32>
      %22 = vector.extract_strided_slice %arg9 {offsets = [0, 32], sizes = [2, 32], strides = [1, 1]} : vector<2x64xf32> to vector<2x32xf32>
      %23 = vector.extract_strided_slice %11 {offsets = [0, 0], sizes = [2, 32], strides = [1, 1]} : vector<2x96xf32> to vector<2x32xf32>
      %24 = vector.extract_strided_slice %19 {offsets = [0, 0], sizes = [2, 32], strides = [1, 1]} : vector<2x96xf32> to vector<2x32xf32>
      %25 = arith.addf %23, %24 : vector<2x32xf32>
      %26 = arith.negf %25 : vector<2x32xf32>
      %27 = math.exp %26 : vector<2x32xf32>
      %cst_16 = arith.constant 1.000000e+00 : f32
      %28 = vector.broadcast %cst_16 : f32 to vector<2x32xf32>
      %29 = arith.addf %28, %27 : vector<2x32xf32>
      %30 = arith.divf %28, %29 : vector<2x32xf32>
      %31 = vector.extract_strided_slice %11 {offsets = [0, 32], sizes = [2, 32], strides = [1, 1]} : vector<2x96xf32> to vector<2x32xf32>
      %32 = vector.extract_strided_slice %19 {offsets = [0, 32], sizes = [2, 32], strides = [1, 1]} : vector<2x96xf32> to vector<2x32xf32>
      %33 = arith.addf %31, %32 : vector<2x32xf32>
      %34 = arith.negf %33 : vector<2x32xf32>
      %35 = math.exp %34 : vector<2x32xf32>
      %cst_17 = arith.constant 1.000000e+00 : f32
      %36 = vector.broadcast %cst_17 : f32 to vector<2x32xf32>
      %37 = arith.addf %36, %35 : vector<2x32xf32>
      %38 = arith.divf %36, %37 : vector<2x32xf32>
      %39 = vector.extract_strided_slice %11 {offsets = [0, 64], sizes = [2, 32], strides = [1, 1]} : vector<2x96xf32> to vector<2x32xf32>
      %40 = vector.extract_strided_slice %19 {offsets = [0, 64], sizes = [2, 32], strides = [1, 1]} : vector<2x96xf32> to vector<2x32xf32>
      %41 = arith.mulf %30, %40 : vector<2x32xf32>
      %42 = arith.addf %39, %41 : vector<2x32xf32>
      %43 = math.tanh %42 : vector<2x32xf32>
      %cst_18 = arith.constant 1.000000e+00 : f32
      %44 = vector.broadcast %cst_18 : f32 to vector<2x32xf32>
      %45 = arith.subf %44, %38 : vector<2x32xf32>
      %46 = arith.mulf %45, %43 : vector<2x32xf32>
      %47 = arith.mulf %38, %21 : vector<2x32xf32>
      %48 = arith.addf %46, %47 : vector<2x32xf32>
      %49 = vector.extract_strided_slice %15 {offsets = [0, 0], sizes = [2, 32], strides = [1, 1]} : vector<2x96xf32> to vector<2x32xf32>
      %50 = vector.extract_strided_slice %20 {offsets = [0, 0], sizes = [2, 32], strides = [1, 1]} : vector<2x96xf32> to vector<2x32xf32>
      %51 = arith.addf %49, %50 : vector<2x32xf32>
      %52 = arith.negf %51 : vector<2x32xf32>
      %53 = math.exp %52 : vector<2x32xf32>
      %cst_19 = arith.constant 1.000000e+00 : f32
      %54 = vector.broadcast %cst_19 : f32 to vector<2x32xf32>
      %55 = arith.addf %54, %53 : vector<2x32xf32>
      %56 = arith.divf %54, %55 : vector<2x32xf32>
      %57 = vector.extract_strided_slice %15 {offsets = [0, 32], sizes = [2, 32], strides = [1, 1]} : vector<2x96xf32> to vector<2x32xf32>
      %58 = vector.extract_strided_slice %20 {offsets = [0, 32], sizes = [2, 32], strides = [1, 1]} : vector<2x96xf32> to vector<2x32xf32>
      %59 = arith.addf %57, %58 : vector<2x32xf32>
      %60 = arith.negf %59 : vector<2x32xf32>
      %61 = math.exp %60 : vector<2x32xf32>
      %cst_20 = arith.constant 1.000000e+00 : f32
      %62 = vector.broadcast %cst_20 : f32 to vector<2x32xf32>
      %63 = arith.addf %62, %61 : vector<2x32xf32>
      %64 = arith.divf %62, %63 : vector<2x32xf32>
      %65 = vector.extract_strided_slice %15 {offsets = [0, 64], sizes = [2, 32], strides = [1, 1]} : vector<2x96xf32> to vector<2x32xf32>
      %66 = vector.extract_strided_slice %20 {offsets = [0, 64], sizes = [2, 32], strides = [1, 1]} : vector<2x96xf32> to vector<2x32xf32>
      %67 = arith.mulf %56, %66 : vector<2x32xf32>
      %68 = arith.addf %65, %67 : vector<2x32xf32>
      %69 = math.tanh %68 : vector<2x32xf32>
      %cst_21 = arith.constant 1.000000e+00 : f32
      %70 = vector.broadcast %cst_21 : f32 to vector<2x32xf32>
      %71 = arith.subf %70, %64 : vector<2x32xf32>
      %72 = arith.mulf %71, %69 : vector<2x32xf32>
      %73 = arith.mulf %64, %22 : vector<2x32xf32>
      %74 = arith.addf %72, %73 : vector<2x32xf32>
      %75 = arith.index_cast %arg8 : i32 to index
      %c0_22 = arith.constant 0 : index
      %c0_23 = arith.constant 0 : index
      %76 = vector.load %arg5[%75, %c0_22, %c0_23] : memref<8x2x32xf32, #tpu.memory_space<vmem>>, vector<1x2x32xf32>
      %77 = vector.shape_cast %76 : vector<1x2x32xf32> to vector<2x32xf32>
      %78 = vector.shape_cast %48 : vector<2x32xf32> to vector<1x2x32xf32>
      tpu.vector_store %arg5[%75, %c0_22, %c0_23], %78 {strides = array<i32>} : memref<8x2x32xf32, #tpu.memory_space<vmem>>, vector<1x2x32xf32>,
      %c7_i32_24 = arith.constant 7 : i32
      %79 = arith.subi %c7_i32_24, %arg8 : i32
      %80 = arith.index_cast %79 : i32 to index
      %c0_25 = arith.constant 0 : index
      %c0_26 = arith.constant 0 : index
      %81 = vector.load %arg6[%80, %c0_25, %c0_26] : memref<8x2x32xf32, #tpu.memory_space<vmem>>, vector<1x2x32xf32>
      %82 = vector.shape_cast %81 : vector<1x2x32xf32> to vector<2x32xf32>
      %83 = vector.shape_cast %74 : vector<2x32xf32> to vector<1x2x32xf32>
      tpu.vector_store %arg6[%80, %c0_25, %c0_26], %83 {strides = array<i32>} : memref<8x2x32xf32, #tpu.memory_space<vmem>>, vector<1x2x32xf32>,
      %84 = tpu.concatenate %48, %74 in 1 : vector<2x32xf32>, vector<2x32xf32> -> vector<2x64xf32>
      scf.yield %84 : vector<2x64xf32>
    }
    %c8_i32_7 = arith.constant 8 : i32
    %c0_8 = arith.constant 0 : index
    %c0_9 = arith.constant 0 : index
    %8 = vector.load %arg7[%c0_8, %c0_9] : memref<2x64xf32, #tpu.memory_space<vmem>>, vector<2x64xf32>
    tpu.vector_store %arg7[%c0_8, %c0_9], %7 {strides = array<i32>} : memref<2x64xf32, #tpu.memory_space<vmem>>, vector<2x64xf32>,
    return
  }
  func.func @transform_0(%arg0: i32) -> (i32, i32, i32, i32) {
    %c0_i32 = arith.constant 0 : i32
    %c0_i32_0 = arith.constant 0 : i32
    %c0_i32_1 = arith.constant 0 : i32
    %c0_i32_2 = arith.constant 0 : i32
    return %c0_i32, %arg0, %c0_i32_0, %c0_i32_1 : i32, i32, i32, i32
  }
  func.func @transform_1(%arg0: i32) -> (i32, i32, i32, i32) {
    %c0_i32 = arith.constant 0 : i32
    %0 = arith.subi %c0_i32, %arg0 : i32
    %c1_i32 = arith.constant 1 : i32
    %c0_i32_0 = arith.constant 0 : i32
    %c0_i32_1 = arith.constant 0 : i32
    %c0_i32_2 = arith.constant 0 : i32
    return %c1_i32, %0, %c0_i32_0, %c0_i32_1 : i32, i32, i32, i32
  }
  func.func @transform_2(%arg0: i32) -> (i32, i32) {
    %c0_i32 = arith.constant 0 : i32
    %c0_i32_0 = arith.constant 0 : i32
    %c0_i32_1 = arith.constant 0 : i32
    return %c0_i32, %c0_i32_0 : i32, i32
  }
  func.func @transform_3(%arg0: i32) -> (i32, i32) {
    %c0_i32 = arith.constant 0 : i32
    %c0_i32_0 = arith.constant 0 : i32
    %c0_i32_1 = arith.constant 0 : i32
    return %c0_i32, %c0_i32_0 : i32, i32
  }
  func.func @transform_4(%arg0: i32) -> (i32, i32, i32) {
    %c0_i32 = arith.constant 0 : i32
    %c0_i32_0 = arith.constant 0 : i32
    %c0_i32_1 = arith.constant 0 : i32
    return %arg0, %c0_i32, %c0_i32_0 : i32, i32, i32
  }
  func.func @transform_5(%arg0: i32) -> (i32, i32, i32) {
    %c0_i32 = arith.constant 0 : i32
    %0 = arith.subi %c0_i32, %arg0 : i32
    %c0_i32_0 = arith.constant 0 : i32
    %c0_i32_1 = arith.constant 0 : i32
    %c0_i32_2 = arith.constant 0 : i32
    return %0, %c0_i32_0, %c0_i32_1 : i32, i32, i32
  }
}

module attributes {stable_mosaic.version = 11 : i64} {
  func.func @_bi_ln_gelu_gi_kernel(%arg0: i32, %arg1: memref<16x32xf32, #tpu.memory_space<vmem>>, %arg2: memref<16x32xf32, #tpu.memory_space<vmem>>, %arg3: memref<1x64xf32, #tpu.memory_space<vmem>>, %arg4: memref<1x64xf32, #tpu.memory_space<vmem>>, %arg5: memref<64x192xf32, #tpu.memory_space<vmem>>, %arg6: memref<1x192xf32, #tpu.memory_space<vmem>>, %arg7: memref<2x16x96xf32, #tpu.memory_space<vmem>>) attributes {dimension_semantics = [#tpu.dimension_semantics<parallel>], iteration_bounds = array<i64: 1>, scalar_prefetch = 0 : i64, scratch_operands = 0 : i64, tpu.core_type = #tpu.core_type<tc>, window_params = [{transform_indices = @transform_0, window_bounds = array<i64: 16, 32>}, {transform_indices = @transform_1, window_bounds = array<i64: 16, 32>}, {pipeline_mode = #tpu.pipeline_mode<synchronous>, transform_indices = @transform_2, window_bounds = array<i64: 1, 64>}, {pipeline_mode = #tpu.pipeline_mode<synchronous>, transform_indices = @transform_3, window_bounds = array<i64: 1, 64>}, {pipeline_mode = #tpu.pipeline_mode<synchronous>, transform_indices = @transform_4, window_bounds = array<i64: 64, 192>}, {pipeline_mode = #tpu.pipeline_mode<synchronous>, transform_indices = @transform_5, window_bounds = array<i64: 1, 192>}, {transform_indices = @transform_6, window_bounds = array<i64: 2, 16, 96>}]} {
    %c0 = arith.constant 0 : index
    %c0_0 = arith.constant 0 : index
    %0 = vector.load %arg1[%c0, %c0_0] : memref<16x32xf32, #tpu.memory_space<vmem>>, vector<16x32xf32>
    %c0_1 = arith.constant 0 : index
    %c0_2 = arith.constant 0 : index
    %1 = vector.load %arg2[%c0_1, %c0_2] : memref<16x32xf32, #tpu.memory_space<vmem>>, vector<16x32xf32>
    %2 = tpu.concatenate %0, %1 in 1 : vector<16x32xf32>, vector<16x32xf32> -> vector<16x64xf32>
    %cst = arith.constant dense<0.000000e+00> : vector<16xf32>
    %3 = vector.multi_reduction <add>, %2, %cst [1] : vector<16x64xf32> to vector<16xf32>
    %4 = vector.shape_cast %3 : vector<16xf32> to vector<16x1xf32>
    %cst_3 = arith.constant 6.400000e+01 : f32
    %5 = vector.broadcast %cst_3 : f32 to vector<16x1xf32>
    %6 = arith.divf %4, %5 : vector<16x1xf32>
    %7 = vector.broadcast %6 : vector<16x1xf32> to vector<16x64xf32>
    %8 = arith.subf %2, %7 : vector<16x64xf32>
    %9 = arith.mulf %8, %8 : vector<16x64xf32>
    %cst_4 = arith.constant dense<0.000000e+00> : vector<16xf32>
    %10 = vector.multi_reduction <add>, %9, %cst_4 [1] : vector<16x64xf32> to vector<16xf32>
    %11 = vector.shape_cast %10 : vector<16xf32> to vector<16x1xf32>
    %cst_5 = arith.constant 6.400000e+01 : f32
    %12 = vector.broadcast %cst_5 : f32 to vector<16x1xf32>
    %13 = arith.divf %11, %12 : vector<16x1xf32>
    %cst_6 = arith.constant 9.99999974E-6 : f32
    %14 = vector.broadcast %cst_6 : f32 to vector<16x1xf32>
    %15 = arith.addf %13, %14 : vector<16x1xf32>
    %16 = math.rsqrt %15 : vector<16x1xf32>
    %17 = vector.broadcast %16 : vector<16x1xf32> to vector<16x64xf32>
    %18 = arith.mulf %8, %17 : vector<16x64xf32>
    %c0_7 = arith.constant 0 : index
    %c0_8 = arith.constant 0 : index
    %19 = vector.load %arg3[%c0_7, %c0_8] : memref<1x64xf32, #tpu.memory_space<vmem>>, vector<1x64xf32>
    %20 = vector.broadcast %19 : vector<1x64xf32> to vector<16x64xf32>
    %21 = arith.mulf %18, %20 : vector<16x64xf32>
    %c0_9 = arith.constant 0 : index
    %c0_10 = arith.constant 0 : index
    %22 = vector.load %arg4[%c0_9, %c0_10] : memref<1x64xf32, #tpu.memory_space<vmem>>, vector<1x64xf32>
    %23 = vector.broadcast %22 : vector<1x64xf32> to vector<16x64xf32>
    %24 = arith.addf %21, %23 : vector<16x64xf32>
    %cst_11 = arith.constant 5.000000e-01 : f32
    %25 = vector.broadcast %cst_11 : f32 to vector<16x64xf32>
    %26 = arith.mulf %25, %24 : vector<16x64xf32>
    %cst_12 = arith.constant 0.707106769 : f32
    %27 = vector.broadcast %cst_12 : f32 to vector<16x64xf32>
    %28 = arith.mulf %24, %27 : vector<16x64xf32>
    %cst_13 = arith.constant 0.000000e+00 : f32
    %29 = vector.broadcast %cst_13 : f32 to vector<16x64xf32>
    %30 = arith.cmpf oge, %28, %29 : vector<16x64xf32>
    %cst_14 = arith.constant 1.000000e+00 : f32
    %cst_15 = arith.constant -1.000000e+00 : f32
    %31 = vector.broadcast %cst_14 : f32 to vector<16x64xf32>
    %32 = vector.broadcast %cst_15 : f32 to vector<16x64xf32>
    %33 = arith.select %30, %31, %32 : vector<16x64xi1>, vector<16x64xf32>
    %34 = math.absf %28 : vector<16x64xf32>
    %cst_16 = arith.constant 0.327591091 : f32
    %35 = vector.broadcast %cst_16 : f32 to vector<16x64xf32>
    %36 = arith.mulf %35, %34 : vector<16x64xf32>
    %cst_17 = arith.constant 1.000000e+00 : f32
    %37 = vector.broadcast %cst_17 : f32 to vector<16x64xf32>
    %38 = arith.addf %37, %36 : vector<16x64xf32>
    %cst_18 = arith.constant 1.000000e+00 : f32
    %39 = vector.broadcast %cst_18 : f32 to vector<16x64xf32>
    %40 = arith.divf %39, %38 : vector<16x64xf32>
    %cst_19 = arith.constant 1.06140542 : f32
    %41 = vector.broadcast %cst_19 : f32 to vector<16x64xf32>
    %42 = arith.mulf %41, %40 : vector<16x64xf32>
    %cst_20 = arith.constant -1.45315206 : f32
    %43 = vector.broadcast %cst_20 : f32 to vector<16x64xf32>
    %44 = arith.addf %42, %43 : vector<16x64xf32>
    %45 = arith.mulf %44, %40 : vector<16x64xf32>
    %cst_21 = arith.constant 1.42141378 : f32
    %46 = vector.broadcast %cst_21 : f32 to vector<16x64xf32>
    %47 = arith.addf %45, %46 : vector<16x64xf32>
    %48 = arith.mulf %47, %40 : vector<16x64xf32>
    %cst_22 = arith.constant -0.284496725 : f32
    %49 = vector.broadcast %cst_22 : f32 to vector<16x64xf32>
    %50 = arith.addf %48, %49 : vector<16x64xf32>
    %51 = arith.mulf %50, %40 : vector<16x64xf32>
    %cst_23 = arith.constant 0.254829586 : f32
    %52 = vector.broadcast %cst_23 : f32 to vector<16x64xf32>
    %53 = arith.addf %51, %52 : vector<16x64xf32>
    %54 = arith.mulf %53, %40 : vector<16x64xf32>
    %cst_24 = arith.constant 0.000000e+00 : f32
    %55 = vector.broadcast %cst_24 : f32 to vector<16x64xf32>
    %56 = arith.subf %55, %34 : vector<16x64xf32>
    %57 = arith.mulf %56, %34 : vector<16x64xf32>
    %58 = math.exp %57 : vector<16x64xf32>
    %59 = arith.mulf %54, %58 : vector<16x64xf32>
    %cst_25 = arith.constant 1.000000e+00 : f32
    %60 = vector.broadcast %cst_25 : f32 to vector<16x64xf32>
    %61 = arith.subf %60, %59 : vector<16x64xf32>
    %62 = arith.mulf %33, %61 : vector<16x64xf32>
    %cst_26 = arith.constant 1.000000e+00 : f32
    %63 = vector.broadcast %cst_26 : f32 to vector<16x64xf32>
    %64 = arith.addf %63, %62 : vector<16x64xf32>
    %65 = arith.mulf %26, %64 : vector<16x64xf32>
    %c0_27 = arith.constant 0 : index
    %c0_28 = arith.constant 0 : index
    %66 = vector.load %arg5[%c0_27, %c0_28] : memref<64x192xf32, #tpu.memory_space<vmem>>, vector<64x192xf32>
    %cst_29 = arith.constant dense<0.000000e+00> : vector<16x192xf32>
    %67 = tpu.matmul %65, %66, %cst_29 {dimension_numbers = #tpu.dot_dimension_numbers<[1], [0], [0], [1], [0, 0, 1, 1], [], []>} : vector<16x64xf32>, vector<64x192xf32>, vector<16x192xf32> -> vector<16x192xf32>
    %c0_30 = arith.constant 0 : index
    %c0_31 = arith.constant 0 : index
    %68 = vector.load %arg6[%c0_30, %c0_31] : memref<1x192xf32, #tpu.memory_space<vmem>>, vector<1x192xf32>
    %69 = vector.broadcast %68 : vector<1x192xf32> to vector<16x192xf32>
    %70 = arith.addf %67, %69 : vector<16x192xf32>
    %71 = vector.extract_strided_slice %70 {offsets = [0, 0], sizes = [16, 96], strides = [1, 1]} : vector<16x192xf32> to vector<16x96xf32>
    %c0_32 = arith.constant 0 : index
    %c0_33 = arith.constant 0 : index
    %c0_34 = arith.constant 0 : index
    %72 = vector.load %arg7[%c0_32, %c0_33, %c0_34] : memref<2x16x96xf32, #tpu.memory_space<vmem>>, vector<1x16x96xf32>
    %73 = vector.shape_cast %72 : vector<1x16x96xf32> to vector<16x96xf32>
    %74 = vector.shape_cast %71 : vector<16x96xf32> to vector<1x16x96xf32>
    tpu.vector_store %arg7[%c0_32, %c0_33, %c0_34], %74 {strides = array<i32>} : memref<2x16x96xf32, #tpu.memory_space<vmem>>, vector<1x16x96xf32>,
    %75 = vector.extract_strided_slice %70 {offsets = [0, 96], sizes = [16, 96], strides = [1, 1]} : vector<16x192xf32> to vector<16x96xf32>
    %c1 = arith.constant 1 : index
    %c0_35 = arith.constant 0 : index
    %c0_36 = arith.constant 0 : index
    %76 = vector.load %arg7[%c1, %c0_35, %c0_36] : memref<2x16x96xf32, #tpu.memory_space<vmem>>, vector<1x16x96xf32>
    %77 = vector.shape_cast %76 : vector<1x16x96xf32> to vector<16x96xf32>
    %78 = vector.shape_cast %75 : vector<16x96xf32> to vector<1x16x96xf32>
    tpu.vector_store %arg7[%c1, %c0_35, %c0_36], %78 {strides = array<i32>} : memref<2x16x96xf32, #tpu.memory_space<vmem>>, vector<1x16x96xf32>,
    return
  }
  func.func @transform_0(%arg0: i32) -> (i32, i32) {
    %c0_i32 = arith.constant 0 : i32
    %c0_i32_0 = arith.constant 0 : i32
    return %arg0, %c0_i32 : i32, i32
  }
  func.func @transform_1(%arg0: i32) -> (i32, i32) {
    %c0_i32 = arith.constant 0 : i32
    %c0_i32_0 = arith.constant 0 : i32
    return %arg0, %c0_i32 : i32, i32
  }
  func.func @transform_2(%arg0: i32) -> (i32, i32) {
    %c0_i32 = arith.constant 0 : i32
    %c0_i32_0 = arith.constant 0 : i32
    %c0_i32_1 = arith.constant 0 : i32
    return %c0_i32, %c0_i32_0 : i32, i32
  }
  func.func @transform_3(%arg0: i32) -> (i32, i32) {
    %c0_i32 = arith.constant 0 : i32
    %c0_i32_0 = arith.constant 0 : i32
    %c0_i32_1 = arith.constant 0 : i32
    return %c0_i32, %c0_i32_0 : i32, i32
  }
  func.func @transform_4(%arg0: i32) -> (i32, i32) {
    %c0_i32 = arith.constant 0 : i32
    %c0_i32_0 = arith.constant 0 : i32
    %c0_i32_1 = arith.constant 0 : i32
    return %c0_i32, %c0_i32_0 : i32, i32
  }
  func.func @transform_5(%arg0: i32) -> (i32, i32) {
    %c0_i32 = arith.constant 0 : i32
    %c0_i32_0 = arith.constant 0 : i32
    %c0_i32_1 = arith.constant 0 : i32
    return %c0_i32, %c0_i32_0 : i32, i32
  }
  func.func @transform_6(%arg0: i32) -> (i32, i32, i32) {
    %c0_i32 = arith.constant 0 : i32
    %c0_i32_0 = arith.constant 0 : i32
    %c0_i32_1 = arith.constant 0 : i32
    return %c0_i32, %arg0, %c0_i32_0 : i32, i32, i32
  }
}

module attributes {stable_mosaic.version = 11 : i64} {
  func.func @_fc_ln_gelu_gi_kernel(%arg0: i32, %arg1: memref<16x256xf32, #tpu.memory_space<vmem>>, %arg2: memref<256x32xf32, #tpu.memory_space<vmem>>, %arg3: memref<1x32xf32, #tpu.memory_space<vmem>>, %arg4: memref<1x32xf32, #tpu.memory_space<vmem>>, %arg5: memref<1x32xf32, #tpu.memory_space<vmem>>, %arg6: memref<32x192xf32, #tpu.memory_space<vmem>>, %arg7: memref<1x192xf32, #tpu.memory_space<vmem>>, %arg8: memref<2x16x96xf32, #tpu.memory_space<vmem>>) attributes {dimension_semantics = [#tpu.dimension_semantics<parallel>], iteration_bounds = array<i64: 1>, scalar_prefetch = 0 : i64, scratch_operands = 0 : i64, tpu.core_type = #tpu.core_type<tc>, window_params = [{transform_indices = @transform_0, window_bounds = array<i64: 16, 256>}, {pipeline_mode = #tpu.pipeline_mode<synchronous>, transform_indices = @transform_1, window_bounds = array<i64: 256, 32>}, {pipeline_mode = #tpu.pipeline_mode<synchronous>, transform_indices = @transform_2, window_bounds = array<i64: 1, 32>}, {pipeline_mode = #tpu.pipeline_mode<synchronous>, transform_indices = @transform_3, window_bounds = array<i64: 1, 32>}, {pipeline_mode = #tpu.pipeline_mode<synchronous>, transform_indices = @transform_4, window_bounds = array<i64: 1, 32>}, {pipeline_mode = #tpu.pipeline_mode<synchronous>, transform_indices = @transform_5, window_bounds = array<i64: 32, 192>}, {pipeline_mode = #tpu.pipeline_mode<synchronous>, transform_indices = @transform_6, window_bounds = array<i64: 1, 192>}, {transform_indices = @transform_7, window_bounds = array<i64: 2, 16, 96>}]} {
    %c0 = arith.constant 0 : index
    %c0_0 = arith.constant 0 : index
    %0 = vector.load %arg1[%c0, %c0_0] : memref<16x256xf32, #tpu.memory_space<vmem>>, vector<16x256xf32>
    %c0_1 = arith.constant 0 : index
    %c0_2 = arith.constant 0 : index
    %1 = vector.load %arg2[%c0_1, %c0_2] : memref<256x32xf32, #tpu.memory_space<vmem>>, vector<256x32xf32>
    %cst = arith.constant dense<0.000000e+00> : vector<16x32xf32>
    %2 = tpu.matmul %0, %1, %cst {dimension_numbers = #tpu.dot_dimension_numbers<[1], [0], [0], [1], [0, 0, 1, 1], [], []>} : vector<16x256xf32>, vector<256x32xf32>, vector<16x32xf32> -> vector<16x32xf32>
    %c0_3 = arith.constant 0 : index
    %c0_4 = arith.constant 0 : index
    %3 = vector.load %arg3[%c0_3, %c0_4] : memref<1x32xf32, #tpu.memory_space<vmem>>, vector<1x32xf32>
    %4 = vector.broadcast %3 : vector<1x32xf32> to vector<16x32xf32>
    %5 = arith.addf %2, %4 : vector<16x32xf32>
    %cst_5 = arith.constant dense<0.000000e+00> : vector<16xf32>
    %6 = vector.multi_reduction <add>, %5, %cst_5 [1] : vector<16x32xf32> to vector<16xf32>
    %7 = vector.shape_cast %6 : vector<16xf32> to vector<16x1xf32>
    %cst_6 = arith.constant 3.200000e+01 : f32
    %8 = vector.broadcast %cst_6 : f32 to vector<16x1xf32>
    %9 = arith.divf %7, %8 : vector<16x1xf32>
    %10 = vector.broadcast %9 : vector<16x1xf32> to vector<16x32xf32>
    %11 = arith.subf %5, %10 : vector<16x32xf32>
    %12 = arith.mulf %11, %11 : vector<16x32xf32>
    %cst_7 = arith.constant dense<0.000000e+00> : vector<16xf32>
    %13 = vector.multi_reduction <add>, %12, %cst_7 [1] : vector<16x32xf32> to vector<16xf32>
    %14 = vector.shape_cast %13 : vector<16xf32> to vector<16x1xf32>
    %cst_8 = arith.constant 3.200000e+01 : f32
    %15 = vector.broadcast %cst_8 : f32 to vector<16x1xf32>
    %16 = arith.divf %14, %15 : vector<16x1xf32>
    %cst_9 = arith.constant 9.99999974E-6 : f32
    %17 = vector.broadcast %cst_9 : f32 to vector<16x1xf32>
    %18 = arith.addf %16, %17 : vector<16x1xf32>
    %19 = math.rsqrt %18 : vector<16x1xf32>
    %20 = vector.broadcast %19 : vector<16x1xf32> to vector<16x32xf32>
    %21 = arith.mulf %11, %20 : vector<16x32xf32>
    %c0_10 = arith.constant 0 : index
    %c0_11 = arith.constant 0 : index
    %22 = vector.load %arg4[%c0_10, %c0_11] : memref<1x32xf32, #tpu.memory_space<vmem>>, vector<1x32xf32>
    %23 = vector.broadcast %22 : vector<1x32xf32> to vector<16x32xf32>
    %24 = arith.mulf %21, %23 : vector<16x32xf32>
    %c0_12 = arith.constant 0 : index
    %c0_13 = arith.constant 0 : index
    %25 = vector.load %arg5[%c0_12, %c0_13] : memref<1x32xf32, #tpu.memory_space<vmem>>, vector<1x32xf32>
    %26 = vector.broadcast %25 : vector<1x32xf32> to vector<16x32xf32>
    %27 = arith.addf %24, %26 : vector<16x32xf32>
    %cst_14 = arith.constant 5.000000e-01 : f32
    %28 = vector.broadcast %cst_14 : f32 to vector<16x32xf32>
    %29 = arith.mulf %28, %27 : vector<16x32xf32>
    %cst_15 = arith.constant 0.707106769 : f32
    %30 = vector.broadcast %cst_15 : f32 to vector<16x32xf32>
    %31 = arith.mulf %27, %30 : vector<16x32xf32>
    %cst_16 = arith.constant 0.000000e+00 : f32
    %32 = vector.broadcast %cst_16 : f32 to vector<16x32xf32>
    %33 = arith.cmpf oge, %31, %32 : vector<16x32xf32>
    %cst_17 = arith.constant 1.000000e+00 : f32
    %cst_18 = arith.constant -1.000000e+00 : f32
    %34 = vector.broadcast %cst_17 : f32 to vector<16x32xf32>
    %35 = vector.broadcast %cst_18 : f32 to vector<16x32xf32>
    %36 = arith.select %33, %34, %35 : vector<16x32xi1>, vector<16x32xf32>
    %37 = math.absf %31 : vector<16x32xf32>
    %cst_19 = arith.constant 0.327591091 : f32
    %38 = vector.broadcast %cst_19 : f32 to vector<16x32xf32>
    %39 = arith.mulf %38, %37 : vector<16x32xf32>
    %cst_20 = arith.constant 1.000000e+00 : f32
    %40 = vector.broadcast %cst_20 : f32 to vector<16x32xf32>
    %41 = arith.addf %40, %39 : vector<16x32xf32>
    %cst_21 = arith.constant 1.000000e+00 : f32
    %42 = vector.broadcast %cst_21 : f32 to vector<16x32xf32>
    %43 = arith.divf %42, %41 : vector<16x32xf32>
    %cst_22 = arith.constant 1.06140542 : f32
    %44 = vector.broadcast %cst_22 : f32 to vector<16x32xf32>
    %45 = arith.mulf %44, %43 : vector<16x32xf32>
    %cst_23 = arith.constant -1.45315206 : f32
    %46 = vector.broadcast %cst_23 : f32 to vector<16x32xf32>
    %47 = arith.addf %45, %46 : vector<16x32xf32>
    %48 = arith.mulf %47, %43 : vector<16x32xf32>
    %cst_24 = arith.constant 1.42141378 : f32
    %49 = vector.broadcast %cst_24 : f32 to vector<16x32xf32>
    %50 = arith.addf %48, %49 : vector<16x32xf32>
    %51 = arith.mulf %50, %43 : vector<16x32xf32>
    %cst_25 = arith.constant -0.284496725 : f32
    %52 = vector.broadcast %cst_25 : f32 to vector<16x32xf32>
    %53 = arith.addf %51, %52 : vector<16x32xf32>
    %54 = arith.mulf %53, %43 : vector<16x32xf32>
    %cst_26 = arith.constant 0.254829586 : f32
    %55 = vector.broadcast %cst_26 : f32 to vector<16x32xf32>
    %56 = arith.addf %54, %55 : vector<16x32xf32>
    %57 = arith.mulf %56, %43 : vector<16x32xf32>
    %cst_27 = arith.constant 0.000000e+00 : f32
    %58 = vector.broadcast %cst_27 : f32 to vector<16x32xf32>
    %59 = arith.subf %58, %37 : vector<16x32xf32>
    %60 = arith.mulf %59, %37 : vector<16x32xf32>
    %61 = math.exp %60 : vector<16x32xf32>
    %62 = arith.mulf %57, %61 : vector<16x32xf32>
    %cst_28 = arith.constant 1.000000e+00 : f32
    %63 = vector.broadcast %cst_28 : f32 to vector<16x32xf32>
    %64 = arith.subf %63, %62 : vector<16x32xf32>
    %65 = arith.mulf %36, %64 : vector<16x32xf32>
    %cst_29 = arith.constant 1.000000e+00 : f32
    %66 = vector.broadcast %cst_29 : f32 to vector<16x32xf32>
    %67 = arith.addf %66, %65 : vector<16x32xf32>
    %68 = arith.mulf %29, %67 : vector<16x32xf32>
    %c0_30 = arith.constant 0 : index
    %c0_31 = arith.constant 0 : index
    %69 = vector.load %arg6[%c0_30, %c0_31] : memref<32x192xf32, #tpu.memory_space<vmem>>, vector<32x192xf32>
    %cst_32 = arith.constant dense<0.000000e+00> : vector<16x192xf32>
    %70 = tpu.matmul %68, %69, %cst_32 {dimension_numbers = #tpu.dot_dimension_numbers<[1], [0], [0], [1], [0, 0, 1, 1], [], []>} : vector<16x32xf32>, vector<32x192xf32>, vector<16x192xf32> -> vector<16x192xf32>
    %c0_33 = arith.constant 0 : index
    %c0_34 = arith.constant 0 : index
    %71 = vector.load %arg7[%c0_33, %c0_34] : memref<1x192xf32, #tpu.memory_space<vmem>>, vector<1x192xf32>
    %72 = vector.broadcast %71 : vector<1x192xf32> to vector<16x192xf32>
    %73 = arith.addf %70, %72 : vector<16x192xf32>
    %74 = vector.extract_strided_slice %73 {offsets = [0, 0], sizes = [16, 96], strides = [1, 1]} : vector<16x192xf32> to vector<16x96xf32>
    %c0_35 = arith.constant 0 : index
    %c0_36 = arith.constant 0 : index
    %c0_37 = arith.constant 0 : index
    %75 = vector.load %arg8[%c0_35, %c0_36, %c0_37] : memref<2x16x96xf32, #tpu.memory_space<vmem>>, vector<1x16x96xf32>
    %76 = vector.shape_cast %75 : vector<1x16x96xf32> to vector<16x96xf32>
    %77 = vector.shape_cast %74 : vector<16x96xf32> to vector<1x16x96xf32>
    tpu.vector_store %arg8[%c0_35, %c0_36, %c0_37], %77 {strides = array<i32>} : memref<2x16x96xf32, #tpu.memory_space<vmem>>, vector<1x16x96xf32>,
    %78 = vector.extract_strided_slice %73 {offsets = [0, 96], sizes = [16, 96], strides = [1, 1]} : vector<16x192xf32> to vector<16x96xf32>
    %c1 = arith.constant 1 : index
    %c0_38 = arith.constant 0 : index
    %c0_39 = arith.constant 0 : index
    %79 = vector.load %arg8[%c1, %c0_38, %c0_39] : memref<2x16x96xf32, #tpu.memory_space<vmem>>, vector<1x16x96xf32>
    %80 = vector.shape_cast %79 : vector<1x16x96xf32> to vector<16x96xf32>
    %81 = vector.shape_cast %78 : vector<16x96xf32> to vector<1x16x96xf32>
    tpu.vector_store %arg8[%c1, %c0_38, %c0_39], %81 {strides = array<i32>} : memref<2x16x96xf32, #tpu.memory_space<vmem>>, vector<1x16x96xf32>,
    return
  }
  func.func @transform_0(%arg0: i32) -> (i32, i32) {
    %c0_i32 = arith.constant 0 : i32
    %c0_i32_0 = arith.constant 0 : i32
    return %arg0, %c0_i32 : i32, i32
  }
  func.func @transform_1(%arg0: i32) -> (i32, i32) {
    %c0_i32 = arith.constant 0 : i32
    %c0_i32_0 = arith.constant 0 : i32
    %c0_i32_1 = arith.constant 0 : i32
    return %c0_i32, %c0_i32_0 : i32, i32
  }
  func.func @transform_2(%arg0: i32) -> (i32, i32) {
    %c0_i32 = arith.constant 0 : i32
    %c0_i32_0 = arith.constant 0 : i32
    %c0_i32_1 = arith.constant 0 : i32
    return %c0_i32, %c0_i32_0 : i32, i32
  }
  func.func @transform_3(%arg0: i32) -> (i32, i32) {
    %c0_i32 = arith.constant 0 : i32
    %c0_i32_0 = arith.constant 0 : i32
    %c0_i32_1 = arith.constant 0 : i32
    return %c0_i32, %c0_i32_0 : i32, i32
  }
  func.func @transform_4(%arg0: i32) -> (i32, i32) {
    %c0_i32 = arith.constant 0 : i32
    %c0_i32_0 = arith.constant 0 : i32
    %c0_i32_1 = arith.constant 0 : i32
    return %c0_i32, %c0_i32_0 : i32, i32
  }
  func.func @transform_5(%arg0: i32) -> (i32, i32) {
    %c0_i32 = arith.constant 0 : i32
    %c0_i32_0 = arith.constant 0 : i32
    %c0_i32_1 = arith.constant 0 : i32
    return %c0_i32, %c0_i32_0 : i32, i32
  }
  func.func @transform_6(%arg0: i32) -> (i32, i32) {
    %c0_i32 = arith.constant 0 : i32
    %c0_i32_0 = arith.constant 0 : i32
    %c0_i32_1 = arith.constant 0 : i32
    return %c0_i32, %c0_i32_0 : i32, i32
  }
  func.func @transform_7(%arg0: i32) -> (i32, i32, i32) {
    %c0_i32 = arith.constant 0 : i32
    %c0_i32_0 = arith.constant 0 : i32
    %c0_i32_1 = arith.constant 0 : i32
    return %c0_i32, %arg0, %c0_i32_0 : i32, i32, i32
  }
}

module attributes {stable_mosaic.version = 11 : i64} {
  func.func @_bi_classifier_kernel(%arg0: i32, %arg1: memref<16x32xf32, #tpu.memory_space<vmem>>, %arg2: memref<16x32xf32, #tpu.memory_space<vmem>>, %arg3: memref<64x32xf32, #tpu.memory_space<vmem>>, %arg4: memref<1x32xf32, #tpu.memory_space<vmem>>, %arg5: memref<32x10xf32, #tpu.memory_space<vmem>>, %arg6: memref<1x10xf32, #tpu.memory_space<vmem>>, %arg7: memref<16x10xf32, #tpu.memory_space<vmem>>) attributes {dimension_semantics = [#tpu.dimension_semantics<parallel>], iteration_bounds = array<i64: 1>, scalar_prefetch = 0 : i64, scratch_operands = 0 : i64, tpu.core_type = #tpu.core_type<tc>, window_params = [{transform_indices = @transform_0, window_bounds = array<i64: 16, 32>}, {transform_indices = @transform_1, window_bounds = array<i64: 16, 32>}, {pipeline_mode = #tpu.pipeline_mode<synchronous>, transform_indices = @transform_2, window_bounds = array<i64: 64, 32>}, {pipeline_mode = #tpu.pipeline_mode<synchronous>, transform_indices = @transform_3, window_bounds = array<i64: 1, 32>}, {pipeline_mode = #tpu.pipeline_mode<synchronous>, transform_indices = @transform_4, window_bounds = array<i64: 32, 10>}, {pipeline_mode = #tpu.pipeline_mode<synchronous>, transform_indices = @transform_5, window_bounds = array<i64: 1, 10>}, {transform_indices = @transform_6, window_bounds = array<i64: 16, 10>}]} {
    %c0 = arith.constant 0 : index
    %c0_0 = arith.constant 0 : index
    %0 = vector.load %arg1[%c0, %c0_0] : memref<16x32xf32, #tpu.memory_space<vmem>>, vector<16x32xf32>
    %c0_1 = arith.constant 0 : index
    %c0_2 = arith.constant 0 : index
    %1 = vector.load %arg2[%c0_1, %c0_2] : memref<16x32xf32, #tpu.memory_space<vmem>>, vector<16x32xf32>
    %2 = tpu.concatenate %0, %1 in 1 : vector<16x32xf32>, vector<16x32xf32> -> vector<16x64xf32>
    %c0_3 = arith.constant 0 : index
    %c0_4 = arith.constant 0 : index
    %3 = vector.load %arg3[%c0_3, %c0_4] : memref<64x32xf32, #tpu.memory_space<vmem>>, vector<64x32xf32>
    %cst = arith.constant dense<0.000000e+00> : vector<16x32xf32>
    %4 = tpu.matmul %2, %3, %cst {dimension_numbers = #tpu.dot_dimension_numbers<[1], [0], [0], [1], [0, 0, 1, 1], [], []>} : vector<16x64xf32>, vector<64x32xf32>, vector<16x32xf32> -> vector<16x32xf32>
    %c0_5 = arith.constant 0 : index
    %c0_6 = arith.constant 0 : index
    %5 = vector.load %arg4[%c0_5, %c0_6] : memref<1x32xf32, #tpu.memory_space<vmem>>, vector<1x32xf32>
    %6 = vector.broadcast %5 : vector<1x32xf32> to vector<16x32xf32>
    %7 = arith.addf %4, %6 : vector<16x32xf32>
    %cst_7 = arith.constant 5.000000e-01 : f32
    %8 = vector.broadcast %cst_7 : f32 to vector<16x32xf32>
    %9 = arith.mulf %8, %7 : vector<16x32xf32>
    %cst_8 = arith.constant 0.707106769 : f32
    %10 = vector.broadcast %cst_8 : f32 to vector<16x32xf32>
    %11 = arith.mulf %7, %10 : vector<16x32xf32>
    %cst_9 = arith.constant 0.000000e+00 : f32
    %12 = vector.broadcast %cst_9 : f32 to vector<16x32xf32>
    %13 = arith.cmpf oge, %11, %12 : vector<16x32xf32>
    %cst_10 = arith.constant 1.000000e+00 : f32
    %cst_11 = arith.constant -1.000000e+00 : f32
    %14 = vector.broadcast %cst_10 : f32 to vector<16x32xf32>
    %15 = vector.broadcast %cst_11 : f32 to vector<16x32xf32>
    %16 = arith.select %13, %14, %15 : vector<16x32xi1>, vector<16x32xf32>
    %17 = math.absf %11 : vector<16x32xf32>
    %cst_12 = arith.constant 0.327591091 : f32
    %18 = vector.broadcast %cst_12 : f32 to vector<16x32xf32>
    %19 = arith.mulf %18, %17 : vector<16x32xf32>
    %cst_13 = arith.constant 1.000000e+00 : f32
    %20 = vector.broadcast %cst_13 : f32 to vector<16x32xf32>
    %21 = arith.addf %20, %19 : vector<16x32xf32>
    %cst_14 = arith.constant 1.000000e+00 : f32
    %22 = vector.broadcast %cst_14 : f32 to vector<16x32xf32>
    %23 = arith.divf %22, %21 : vector<16x32xf32>
    %cst_15 = arith.constant 1.06140542 : f32
    %24 = vector.broadcast %cst_15 : f32 to vector<16x32xf32>
    %25 = arith.mulf %24, %23 : vector<16x32xf32>
    %cst_16 = arith.constant -1.45315206 : f32
    %26 = vector.broadcast %cst_16 : f32 to vector<16x32xf32>
    %27 = arith.addf %25, %26 : vector<16x32xf32>
    %28 = arith.mulf %27, %23 : vector<16x32xf32>
    %cst_17 = arith.constant 1.42141378 : f32
    %29 = vector.broadcast %cst_17 : f32 to vector<16x32xf32>
    %30 = arith.addf %28, %29 : vector<16x32xf32>
    %31 = arith.mulf %30, %23 : vector<16x32xf32>
    %cst_18 = arith.constant -0.284496725 : f32
    %32 = vector.broadcast %cst_18 : f32 to vector<16x32xf32>
    %33 = arith.addf %31, %32 : vector<16x32xf32>
    %34 = arith.mulf %33, %23 : vector<16x32xf32>
    %cst_19 = arith.constant 0.254829586 : f32
    %35 = vector.broadcast %cst_19 : f32 to vector<16x32xf32>
    %36 = arith.addf %34, %35 : vector<16x32xf32>
    %37 = arith.mulf %36, %23 : vector<16x32xf32>
    %cst_20 = arith.constant 0.000000e+00 : f32
    %38 = vector.broadcast %cst_20 : f32 to vector<16x32xf32>
    %39 = arith.subf %38, %17 : vector<16x32xf32>
    %40 = arith.mulf %39, %17 : vector<16x32xf32>
    %41 = math.exp %40 : vector<16x32xf32>
    %42 = arith.mulf %37, %41 : vector<16x32xf32>
    %cst_21 = arith.constant 1.000000e+00 : f32
    %43 = vector.broadcast %cst_21 : f32 to vector<16x32xf32>
    %44 = arith.subf %43, %42 : vector<16x32xf32>
    %45 = arith.mulf %16, %44 : vector<16x32xf32>
    %cst_22 = arith.constant 1.000000e+00 : f32
    %46 = vector.broadcast %cst_22 : f32 to vector<16x32xf32>
    %47 = arith.addf %46, %45 : vector<16x32xf32>
    %48 = arith.mulf %9, %47 : vector<16x32xf32>
    %c0_23 = arith.constant 0 : index
    %c0_24 = arith.constant 0 : index
    %49 = vector.load %arg5[%c0_23, %c0_24] : memref<32x10xf32, #tpu.memory_space<vmem>>, vector<32x10xf32>
    %cst_25 = arith.constant dense<0.000000e+00> : vector<16x10xf32>
    %50 = tpu.matmul %48, %49, %cst_25 {dimension_numbers = #tpu.dot_dimension_numbers<[1], [0], [0], [1], [0, 0, 1, 1], [], []>} : vector<16x32xf32>, vector<32x10xf32>, vector<16x10xf32> -> vector<16x10xf32>
    %c0_26 = arith.constant 0 : index
    %c0_27 = arith.constant 0 : index
    %51 = vector.load %arg6[%c0_26, %c0_27] : memref<1x10xf32, #tpu.memory_space<vmem>>, vector<1x10xf32>
    %52 = vector.broadcast %51 : vector<1x10xf32> to vector<16x10xf32>
    %53 = arith.addf %50, %52 : vector<16x10xf32>
    %c0_28 = arith.constant 0 : index
    %c0_29 = arith.constant 0 : index
    %54 = vector.load %arg7[%c0_28, %c0_29] : memref<16x10xf32, #tpu.memory_space<vmem>>, vector<16x10xf32>
    tpu.vector_store %arg7[%c0_28, %c0_29], %53 {strides = array<i32>} : memref<16x10xf32, #tpu.memory_space<vmem>>, vector<16x10xf32>,
    return
  }
  func.func @transform_0(%arg0: i32) -> (i32, i32) {
    %c0_i32 = arith.constant 0 : i32
    %c0_i32_0 = arith.constant 0 : i32
    return %arg0, %c0_i32 : i32, i32
  }
  func.func @transform_1(%arg0: i32) -> (i32, i32) {
    %c0_i32 = arith.constant 0 : i32
    %c0_i32_0 = arith.constant 0 : i32
    return %arg0, %c0_i32 : i32, i32
  }
  func.func @transform_2(%arg0: i32) -> (i32, i32) {
    %c0_i32 = arith.constant 0 : i32
    %c0_i32_0 = arith.constant 0 : i32
    %c0_i32_1 = arith.constant 0 : i32
    return %c0_i32, %c0_i32_0 : i32, i32
  }
  func.func @transform_3(%arg0: i32) -> (i32, i32) {
    %c0_i32 = arith.constant 0 : i32
    %c0_i32_0 = arith.constant 0 : i32
    %c0_i32_1 = arith.constant 0 : i32
    return %c0_i32, %c0_i32_0 : i32, i32
  }
  func.func @transform_4(%arg0: i32) -> (i32, i32) {
    %c0_i32 = arith.constant 0 : i32
    %c0_i32_0 = arith.constant 0 : i32
    %c0_i32_1 = arith.constant 0 : i32
    return %c0_i32, %c0_i32_0 : i32, i32
  }
  func.func @transform_5(%arg0: i32) -> (i32, i32) {
    %c0_i32 = arith.constant 0 : i32
    %c0_i32_0 = arith.constant 0 : i32
    %c0_i32_1 = arith.constant 0 : i32
    return %c0_i32, %c0_i32_0 : i32, i32
  }
  func.func @transform_6(%arg0: i32) -> (i32, i32) {
    %c0_i32 = arith.constant 0 : i32
    %c0_i32_0 = arith.constant 0 : i32
    return %arg0, %c0_i32 : i32, i32
  }
}

</mosaic_0001>

<llo_original>
// kernel: speech_recognition_forward.15
$region0: #{speech_recognition_forward.15}
  #allocation0 [shape = 'u32[]', space=smem, size = 0x4, offset = 0x4, fixed_abs, tag = 'smem constant byte address 0x4 - core index']
  #allocation1 [shape = 'u32[144,128]{1,0:T(1,128)}', space=vmem, size = 0x12000, scoped, tag = 'internal scratch']
  %s0 = inlined_call_operand.vmem [shape: f32[2,8,256], index: 0, kind: input, shape index: {}]
  %s1 = inlined_call_operand.vmem [shape: f32[8,1], index: 1, kind: input, shape index: {}]
  %s2 = inlined_call_operand.vmem [shape: f32[8,1], index: 2, kind: input, shape index: {}]
  %s3 = inlined_call_operand.vmem [shape: f32[2,10,320], index: 3, kind: output, shape index: {}]
  %s4 = sld [smem:[#allocation0]]
  $region45: #{speech_recognition_forward.15} parent=0
    _
  %s6 = ssub.s32 1, %s4
  %s7 = scalar_select 0, %s6, %s4
  loop: start=0, step=1, limit=4
  $region2: #{speech_recognition_forward.15} parent=0 // loop_pre_header
    _
  $region3: #{speech_recognition_forward.15} parent=0 // loop_header
    %s9 = sphi 0, %s13
    %p10 = scmp.ge.s32.totalorder %s9, 4
    %s19 = sphi 0, %s21
    %s22 = sphi 0, %s19
    %s23 = sphi 0, %s22
    %s39 = sphi 0, %s23
    %s43 = sphi 0, %s43
    %s45 = sphi 0, %s43
    %s46 = sphi 0, %s45
    %s60 = sphi 0, %s46
    %s64 = sphi 0, %s64
    %s66 = sphi 0, %s64
    %s67 = sphi 0, %s66
    %s81 = sphi 0, %s67
    %s87 = sphi 0, %s89
    %s90 = sphi 0, %s87
    %s91 = sphi 0, %s90
    %s107 = sphi 0, %s91
  $region4: #{speech_recognition_forward.15} parent=0 // loop_header_branch
    %12 = sbr.rel (%p10) target = $region8
  $region5: #{speech_recognition_forward.15} parent=0 // loop_body
    %s14 = ssub.s32 %s9, 1
    %s15 = ssub.s32 %s9, 2
    %s16 = sadd.s32 %s9, 1
    %s17 = ssub.s32 %s9, %s16
    %p18 = scmp.eq.s32.totalorder %s17, 0
    %s20 = sadd.s32 %s19, 1
    %s21 = scalar_select %p18, %s19, %s20
    %p24 = pneg %p18
    %p25 = scmp.eq.s32.totalorder %s9, 1
    %p26 = por %p24, %p25
    %p27 = scmp.ne.s32.totalorder %s19, %s22
    %p28 = scmp.eq.s32.totalorder %s9, 0
    %p29 = por %p27, %p28
    %p30 = scmp.ne.s32.totalorder %s19, %s22
    %p31 = scmp.eq.s32.totalorder %s14, 1
    %p32 = por %p30, %p31
    %p33 = scmp.ne.s32.totalorder %s22, %s23
    %p34 = scmp.eq.s32.totalorder %s14, 0
    %p35 = por %p33, %p34
    %p36 = scmp.ne.s32.totalorder %s22, %s23
    %p37 = scmp.eq.s32.totalorder %s15, 1
    %p38 = por %p36, %p37
    %p40 = scmp.ne.s32.totalorder %s23, %s39
    %p41 = scmp.eq.s32.totalorder %s15, 0
    %p42 = por %p40, %p41
    %s44 = sadd.s32 %s43, 1
    %p47 = scmp.eq.s32.totalorder %s9, 1
    %p48 = scmp.ne.s32.totalorder %s43, %s45
    %p49 = scmp.eq.s32.totalorder %s9, 0
    %p50 = por %p48, %p49
    %p51 = scmp.ne.s32.totalorder %s43, %s45
    %p52 = scmp.eq.s32.totalorder %s14, 1
    %p53 = por %p51, %p52
    %p54 = scmp.ne.s32.totalorder %s45, %s46
    %p55 = scmp.eq.s32.totalorder %s14, 0
    %p56 = por %p54, %p55
    %p57 = scmp.ne.s32.totalorder %s45, %s46
    %p58 = scmp.eq.s32.totalorder %s15, 1
    %p59 = por %p57, %p58
    %p61 = scmp.ne.s32.totalorder %s46, %s60
    %p62 = scmp.eq.s32.totalorder %s15, 0
    %p63 = por %p61, %p62
    %s65 = sadd.s32 %s64, 1
    %p68 = scmp.eq.s32.totalorder %s9, 1
    %p69 = scmp.ne.s32.totalorder %s64, %s66
    %p70 = scmp.eq.s32.totalorder %s9, 0
    %p71 = por %p69, %p70
    %p72 = scmp.ne.s32.totalorder %s64, %s66
    %p73 = scmp.eq.s32.totalorder %s14, 1
    %p74 = por %p72, %p73
    %p75 = scmp.ne.s32.totalorder %s66, %s67
    %p76 = scmp.eq.s32.totalorder %s14, 0
    %p77 = por %p75, %p76
    %p78 = scmp.ne.s32.totalorder %s66, %s67
    %p79 = scmp.eq.s32.totalorder %s15, 1
    %p80 = por %p78, %p79
    %p82 = scmp.ne.s32.totalorder %s67, %s81
    %p83 = scmp.eq.s32.totalorder %s15, 0
    %p84 = por %p82, %p83
    %s85 = ssub.s32 %s9, %s16
    %p86 = scmp.eq.s32.totalorder %s85, 0
    %s88 = sadd.s32 %s87, 1
    %s89 = scalar_select %p86, %s87, %s88
    %p92 = pneg %p86
    %p93 = scmp.eq.s32.totalorder %s9, 1
    %p94 = por %p92, %p93
    %p95 = scmp.ne.s32.totalorder %s87, %s90
    %p96 = scmp.eq.s32.totalorder %s9, 0
    %p97 = por %p95, %p96
    %p98 = scmp.ne.s32.totalorder %s87, %s90
    %p99 = scmp.eq.s32.totalorder %s14, 1
    %p100 = por %p98, %p99
    %p101 = scmp.ne.s32.totalorder %s90, %s91
    %p102 = scmp.eq.s32.totalorder %s14, 0
    %p103 = por %p101, %p102
    %p104 = scmp.ne.s32.totalorder %s90, %s91
    %p105 = scmp.eq.s32.totalorder %s15, 1
    %p106 = por %p104, %p105
    %p108 = scmp.ne.s32.totalorder %s91, %s107
    %p109 = scmp.eq.s32.totalorder %s15, 0
    %p110 = por %p108, %p109
    %p111 = scmp.le.s32.totalorder 1, %s9
    %p112 = scmp.lt.s32.totalorder %s9, 3
    %p113 = pnand %p111, %p112
    %p114 = pneg %p113
    // Predicated region
    $region9: #{speech_recognition_forward.15} parent=5 // pred_check
      _
    $region10: #{speech_recognition_forward.15} parent=5 // pred_check_branch
      %116 = sbr.rel (%p113) target = $region12
    $region11: #{speech_recognition_forward.15} parent=5 // pred_region
      %s117 = ssub.s32 %s9, 1
      // Predicated region
      $region13: #{speech_recognition_forward.15} parent=11 // pred_check
        %p118 = pneg %p56
      $region14: #{speech_recognition_forward.15} parent=11 // pred_check_branch
        %120 = sbr.rel (%p118) target = $region16
      $region15: #{speech_recognition_forward.15} parent=11 // pred_region
        _
      $region16: #{speech_recognition_forward.15} parent=11 // pred_fallthru
        _
      // Predicated region
      $region17: #{speech_recognition_forward.15} parent=11 // pred_check
        %p121 = pneg %p77
      $region18: #{speech_recognition_forward.15} parent=11 // pred_check_branch
        %123 = sbr.rel (%p121) target = $region20
      $region19: #{speech_recognition_forward.15} parent=11 // pred_region
        _
      $region20: #{speech_recognition_forward.15} parent=11 // pred_fallthru
        _
    $region12: #{speech_recognition_forward.15} parent=5 // pred_fallthru
      _
    %p124 = scmp.lt.s32.totalorder %s9, 2
    // Predicated region
    $region21: #{speech_recognition_forward.15} parent=5 // pred_check
      %p125 = pneg %p124
    $region22: #{speech_recognition_forward.15} parent=5 // pred_check_branch
      %127 = sbr.rel (%p125) target = $region24
    $region23: #{speech_recognition_forward.15} parent=5 // pred_region
      // Predicated region
      $region25: #{speech_recognition_forward.15} parent=23 // pred_check
        %p128 = pneg %p29
      $region26: #{speech_recognition_forward.15} parent=23 // pred_check_branch
        %130 = sbr.rel (%p128) target = $region28
      $region27: #{speech_recognition_forward.15} parent=23 // pred_region
        %p131 = scmp.lt.s32.totalorder %s9, 1
        %s132 = scalar_select %p131, %s9, 1
        %s133 = smul.addr %s132, 2
        %s134 = smul.addr %s133, 8
        %s135 = scalar_lea.vmem %s0, %s134
      $region28: #{speech_recognition_forward.15} parent=23 // pred_fallthru
        _
    $region24: #{speech_recognition_forward.15} parent=5 // pred_fallthru
      _
    %p136 = scmp.le.s32.totalorder 1, %s9
    %p137 = scmp.lt.s32.totalorder %s9, 3
    %p138 = pnand %p136, %p137
    %p139 = pneg %p138
    // Predicated region
    $region29: #{speech_recognition_forward.15} parent=5 // pred_check
      _
    $region30: #{speech_recognition_forward.15} parent=5 // pred_check_branch
      %141 = sbr.rel (%p138) target = $region32
    $region31: #{speech_recognition_forward.15} parent=5 // pred_region
      %s142 = ssub.s32 %s9, 1
      %p143 = scmp.lt.s32.totalorder %s14, 1
      %s144 = scalar_select %p143, %s14, 1
      %s145 = smul.addr %s144, 2
      %s146 = smul.addr %s145, 8
      %s147 = scalar_lea.vmem %s0, %s146
      %p148 = pneg %p35
      %p149 = pneg %p32
      %p150 = pneg %p56
      %p151 = pneg %p53
      %p152 = pneg %p77
      %p153 = pneg %p74
      %p154 = pneg %p103
      %p155 = pneg %p100
      %p156 = scmp.lt.s32.totalorder %s14, 1
      %s157 = scalar_select %p156, %s14, 1
      %s158 = smul.addr %s157, 6
      %s159 = smul.addr %s158, 8
      %s160 = scalar_lea.vmem %s3, %s159
      %p161 = scmp.lt.s32.totalorder %s14, 1
      %s162 = scalar_select %p161, %s14, 1
      %s163 = smul.addr %s162, 2
      %s164 = smul.addr %s163, 8
      %s165 = scalar_lea.vmem %s0, %s164
      %p166 = scmp.lt.s32.totalorder %s14, 1
      %s167 = scalar_select %p166, %s14, 1
      %s168 = smul.addr %s167, 6
      %s169 = smul.addr %s168, 8
      %s170 = scalar_lea.vmem %s3, %s169
      %v171 = vld [vmem:[%s165] sm:$0xff]
      %v172 = vld [vmem:[%s165 + $0x8] sm:$0xff]
      %v173 = vrot.slane %v171, 4
      %v174 = vadd.f32 %v171, %v173
      %v175 = vrot.slane %v174, 2
      %v176 = vadd.f32 %v174, %v175
      %v177 = vrot.slane %v176, 1
      %v178 = vadd.f32 %v176, %v177
      %v179 = vrot.slane %v172, 4
      %v180 = vadd.f32 %v172, %v179
      %v181 = vrot.slane %v180, 2
      %v182 = vadd.f32 %v180, %v181
      %v183 = vrot.slane %v182, 1
      %v184 = vadd.f32 %v182, %v183
      %v185 = vrcp.pop 8.0
      %v186 = vmul.f32 %v178, %v185
      %v187 = vmul.f32 %v184, %v185
      %v188 = vsub.f32 %v171, %v186
      %v189 = vsub.f32 %v172, %v187
      %v190 = vmul.f32 %v188, %v188
      %v191 = vmul.f32 %v189, %v189
      %v192 = vrot.slane %v190, 4
      %v193 = vadd.f32 %v190, %v192
      %v194 = vrot.slane %v193, 2
      %v195 = vadd.f32 %v193, %v194
      %v196 = vrot.slane %v195, 1
      %v197 = vadd.f32 %v195, %v196
      %v198 = vrot.slane %v191, 4
      %v199 = vadd.f32 %v191, %v198
      %v200 = vrot.slane %v199, 2
      %v201 = vadd.f32 %v199, %v200
      %v202 = vrot.slane %v201, 1
      %v203 = vadd.f32 %v201, %v202
      %v204 = vmul.f32 %v197, %v185
      %v205 = vmul.f32 %v203, %v185
      %v206 = vadd.f32 %v204, 1e-05
      %v207 = vadd.f32 %v205, 1e-05
      %v208 = vrsqrt.pop %v206
      %v209 = vrsqrt.pop %v207
      %v210 = vmul.f32 %v188, %v208
      %v211 = vmul.f32 %v189, %v209
      %v212 = vld [vmem:[%s1] sm:$0xff]
      %214 = vset.pattern.permute.xlu0 0
      %215 = vperm.xlu0 %214, %v212
      %v216 = vpop.permute.xlu0 %215
      %v218 = vmul.f32 %v210, %v216
      %v219 = vmul.f32 %v211, %v216
      %v220 = vld [vmem:[%s2] sm:$0xff]
      %222 = vset.pattern.permute.xlu0 0
      %223 = vperm.xlu0 %222, %v220
      %v224 = vpop.permute.xlu0 %223
      %v226 = vadd.f32 %v218, %v224
      %v227 = vadd.f32 %v219, %v224
      %v228 = vmul.f32 %v226, 0.5
      %v229 = vmul.f32 %v227, 0.5
      %v230 = vmul.f32 %v226, 0.70710677
      %v231 = vmul.f32 %v227, 0.70710677
      %vm232 = vcmp.ge.f32.partialorder %v230, 0.0
      %vm233 = vcmp.ge.f32.partialorder %v231, 0.0
      %v234 = vsel %vm232, 1.0, -1.0
      %v235 = vsel %vm233, 1.0, -1.0
      %v236 = vand.u32 2147483647, %v230
      %v237 = vand.u32 2147483647, %v231
      %v238 = vmul.f32 %v236, 0.3275911
      %v239 = vmul.f32 %v237, 0.3275911
      %v240 = vadd.f32 %v238, 1.0
      %v241 = vadd.f32 %v239, 1.0
      %v242 = vrcp.pop %v240
      %v243 = vmul.f32 1.0, %v242
      %v244 = vrcp.pop %v241
      %v245 = vmul.f32 1.0, %v244
      %v246 = vmul.f32 %v243, 1.0614054
      %v247 = vmul.f32 %v245, 1.0614054
      %v248 = vadd.f32 %v246, -1.4531521
      %v249 = vadd.f32 %v247, -1.4531521
      %v250 = vmul.f32 %v248, %v243
      %v251 = vmul.f32 %v249, %v245
      %v252 = vadd.f32 %v250, 1.4214138
      %v253 = vadd.f32 %v251, 1.4214138
      %v254 = vmul.f32 %v252, %v243
      %v255 = vmul.f32 %v253, %v245
      %v256 = vadd.f32 %v254, -0.28449672
      %v257 = vadd.f32 %v255, -0.28449672
      %v258 = vmul.f32 %v256, %v243
      %v259 = vmul.f32 %v257, %v245
      %v260 = vadd.f32 %v258, 0.2548296
      %v261 = vadd.f32 %v259, 0.2548296
      %v262 = vmul.f32 %v260, %v243
      %v263 = vmul.f32 %v261, %v245
      %v264 = vsub.f32 0.0, %v236
      %v265 = vsub.f32 0.0, %v237
      %v266 = vmul.f32 %v264, %v236
      %v267 = vmul.f32 %v265, %v237
      %v268 = vmul.f32 %v266, 1.442695
      %v269 = vpow.pop %v268
      %v270 = vmul.f32 %v267, 1.442695
      %v271 = vpow.pop %v270
      %v272 = vmul.f32 %v262, %v269
      %v273 = vmul.f32 %v263, %v271
      %v274 = vsub.f32 1.0, %v272
      %v275 = vsub.f32 1.0, %v273
      %v276 = vmul.f32 %v234, %v274
      %v277 = vmul.f32 %v235, %v275
      %v278 = vadd.f32 %v276, 1.0
      %v279 = vadd.f32 %v277, 1.0
      %v280 = vmul.f32 %v228, %v278
      %v281 = vmul.f32 %v229, %v279
      %282 = vst [vmem:[%s170] sm:$0xff] 0.0
      %283 = vst [vmem:[%s170 + $0x8] sm:$0xff] 0.0
      %vm284 = vcmask 523264
      %285 = vst.msk [vmem:[%s170 + $0x10] sm:$0xff] %vm284, 0.0
      %286 = vst [vmem:[%s170 + $0x18] sm:$0x3] 0.0
      %287 = vst [vmem:[%s170 + $0x20] sm:$0x3] 0.0
      %vm288 = vcmask 517120
      %289 = vst.msk [vmem:[%s170 + $0x28] sm:$0x3] %vm288, 0.0
      %v292 = vrot.slane %v280, 7
      %v293 = vrot.slane %v281, 7
      %294 = vrot.lane.b32.xlu0 %v292, 32
      %v295 = vpop.permute.xlu0 %294
      %296 = vrot.lane.b32.xlu0 %v293, 32
      %v297 = vpop.permute.xlu0 %296
      %vm298 = vcmask 261120
      %v299 = vsel %vm298, %v295, %v297
      %vm303 = vcmask 1047809
      %304 = vst.msk [vmem:[%s170] sm:$0xfe] %vm303, %v295
      %305 = vst [vmem:[%s170 + $0x8] sm:$0xfe] %v299
      %vm306 = vcmask 261121
      %307 = vst.msk [vmem:[%s170 + $0x10] sm:$0xfe] %vm306, %v297
      %vm308 = vcmask 1040640
      %309 = vst.msk [vmem:[%s170 + $0x18] sm:$0x1] %vm308, %v295
      %310 = vst [vmem:[%s170 + $0x20] sm:$0x1] %v299
      %vm311 = vcmask 253952
      %312 = vst.msk [vmem:[%s170 + $0x28] sm:$0x1] %vm311, %v297
      %p313 = scmp.lt.s32.totalorder %s14, 1
      %s314 = scalar_select %p313, %s14, 1
      %s315 = smul.addr %s314, 6
      %s316 = smul.addr %s315, 8
      %s317 = scalar_lea.vmem %s3, %s316
      // Predicated region
      $region33: #{speech_recognition_forward.15} parent=31 // pred_check
        %p318 = pneg %p100
      $region34: #{speech_recognition_forward.15} parent=31 // pred_check_branch
        %320 = sbr.rel (%p318) target = $region36
      $region35: #{speech_recognition_forward.15} parent=31 // pred_region
        _
      $region36: #{speech_recognition_forward.15} parent=31 // pred_fallthru
        _
    $region32: #{speech_recognition_forward.15} parent=5 // pred_fallthru
      _
    %p321 = scmp.le.s32.totalorder 2, %s9
    // Predicated region
    $region37: #{speech_recognition_forward.15} parent=5 // pred_check
      %p322 = pneg %p321
    $region38: #{speech_recognition_forward.15} parent=5 // pred_check_branch
      %324 = sbr.rel (%p322) target = $region40
    $region39: #{speech_recognition_forward.15} parent=5 // pred_region
      %s325 = ssub.s32 %s9, 2
      // Predicated region
      $region41: #{speech_recognition_forward.15} parent=39 // pred_check
        %p326 = pneg %p106
      $region42: #{speech_recognition_forward.15} parent=39 // pred_check_branch
        %328 = sbr.rel (%p326) target = $region44
      $region43: #{speech_recognition_forward.15} parent=39 // pred_region
        %p329 = scmp.lt.s32.totalorder %s15, 1
        %s330 = scalar_select %p329, %s15, 1
        %s331 = smul.addr %s330, 6
        %s332 = smul.addr %s331, 8
        %s333 = scalar_lea.vmem %s3, %s332
      $region44: #{speech_recognition_forward.15} parent=39 // pred_fallthru
        _
    $region40: #{speech_recognition_forward.15} parent=5 // pred_fallthru
      _
  $region6: #{speech_recognition_forward.15} parent=0 // loop_footer
    %s13 = sadd.s32 1, %s9
  $region7: #{speech_recognition_forward.15} parent=0 // loop_footer_branch
    %8 = sbr.rel target = $region3
  $region8: #{speech_recognition_forward.15} parent=0 // loop_exit
    _

// kernel: speech_recognition_forward.14
$region0: #{speech_recognition_forward.14}
  #allocation0 [shape = 'u32[]', space=smem, size = 0x4, offset = 0x4, fixed_abs, tag = 'smem constant byte address 0x4 - core index']
  #allocation1 [shape = 'u32[144,128]{1,0:T(1,128)}', space=vmem, size = 0x12000, scoped, tag = 'internal scratch']
  %s0 = inlined_call_operand.vmem [shape: f32[128,9], index: 0, kind: input, shape index: {}]
  %s1 = inlined_call_operand.vmem [shape: f32[9,32], index: 1, kind: input, shape index: {}]
  %s2 = inlined_call_operand.vmem [shape: f32[1,32], index: 2, kind: input, shape index: {}]
  %s3 = inlined_call_operand.vmem [shape: f32[128,32], index: 3, kind: output, shape index: {}]
  %s4 = sld [smem:[#allocation0]]
  $region22: #{speech_recognition_forward.14} parent=0
    _
  %s6 = ssub.s32 1, %s4
  %s7 = scalar_select 0, %s6, %s4
  // Predicated region
  $region2: #{speech_recognition_forward.14} parent=0 // pred_check
    _
  $region3: #{speech_recognition_forward.14} parent=0 // pred_check_branch
    %9 = sbr.rel (0) target = $region5
  $region4: #{speech_recognition_forward.14} parent=0 // pred_region
    _
  $region5: #{speech_recognition_forward.14} parent=0 // pred_fallthru
    _
  // Predicated region
  $region6: #{speech_recognition_forward.14} parent=0 // pred_check
    _
  $region7: #{speech_recognition_forward.14} parent=0 // pred_check_branch
    %11 = sbr.rel (0) target = $region9
  $region8: #{speech_recognition_forward.14} parent=0 // pred_region
    _
  $region9: #{speech_recognition_forward.14} parent=0 // pred_fallthru
    _
  // Predicated region
  $region10: #{speech_recognition_forward.14} parent=0 // pred_check
    _
  $region11: #{speech_recognition_forward.14} parent=0 // pred_check_branch
    %13 = sbr.rel (0) target = $region13
  $region12: #{speech_recognition_forward.14} parent=0 // pred_region
    _
  $region13: #{speech_recognition_forward.14} parent=0 // pred_fallthru
    _
  %v14 = vld [vmem:[%s0] sm:$0xff]
  %v15 = vld [vmem:[%s0 + $0x8] sm:$0xff]
  %v16 = vld [vmem:[%s0 + $0x10] sm:$0xff]
  %v17 = vld [vmem:[%s0 + $0x18] sm:$0xff]
  %v18 = vld [vmem:[%s0 + $0x20] sm:$0xff]
  %v19 = vld [vmem:[%s0 + $0x28] sm:$0xff]
  %v20 = vld [vmem:[%s0 + $0x30] sm:$0xff]
  %v21 = vld [vmem:[%s0 + $0x38] sm:$0xff]
  %v22 = vld [vmem:[%s0 + $0x40] sm:$0xff]
  %v23 = vld [vmem:[%s0 + $0x48] sm:$0xff]
  %v24 = vld [vmem:[%s0 + $0x50] sm:$0xff]
  %v25 = vld [vmem:[%s0 + $0x58] sm:$0xff]
  %v26 = vld [vmem:[%s0 + $0x60] sm:$0xff]
  %v27 = vld [vmem:[%s0 + $0x68] sm:$0xff]
  %v28 = vld [vmem:[%s0 + $0x70] sm:$0xff]
  %v29 = vld [vmem:[%s0 + $0x78] sm:$0xff]
  %v30 = vld [vmem:[%s1] sm:$0xff]
  %v31 = vld [vmem:[%s1 + $0x8] sm:$0x1]
  %v32 = vld [vmem:[%s2] sm:$0x1]
  %v34 = vlaneseq
  %v35 = vshrl.u32 %v34, 7
  %v36 = vsub.s32 0, %v35
  %v37 = vrot.slane %v32, %v36
  %vm39 = vcmask 72704
  %v41 = vsel %vm39, %v14, 0
  %v44 = vsel %vm39, %v15, 0
  %v47 = vsel %vm39, %v16, 0
  %v50 = vsel %vm39, %v17, 0
  %v53 = vsel %vm39, %v18, 0
  %v56 = vsel %vm39, %v19, 0
  %v59 = vsel %vm39, %v20, 0
  %v62 = vsel %vm39, %v21, 0
  %v65 = vsel %vm39, %v22, 0
  %v68 = vsel %vm39, %v23, 0
  %v71 = vsel %vm39, %v24, 0
  %v74 = vsel %vm39, %v25, 0
  %v77 = vsel %vm39, %v26, 0
  %v80 = vsel %vm39, %v27, 0
  %v83 = vsel %vm39, %v28, 0
  %v86 = vsel %vm39, %v29, 0
  %vm88 = vcmask 1040384
  %v90 = vsel %vm88, %v31, 0
  %92 = vmatprep.subr.mxu0 0.0
  %93 = vmatpush1.msra.mxu0 %v30
  %94 = vmatprep.subr.mxu0 0.0
  %95 = vmatpush1.msra.mxu0 %v90
  %96 = vmatprep.subr.mxu0 0.0
  %97 = vmatpush1.msra.mxu0 0.0
  %98 = vmatprep.subr.mxu0 0.0
  %99 = vmatpush1.msra.mxu0 0.0
  %100 = vmatprep.subr.mxu0 0.0
  %101 = vmatpush1.msra.mxu0 0.0
  %102 = vmatprep.subr.mxu0 0.0
  %103 = vmatpush1.msra.mxu0 0.0
  %104 = vmatprep.subr.mxu0 0.0
  %105 = vmatpush1.msra.mxu0 0.0
  %106 = vmatprep.subr.mxu0 0.0
  %107 = vmatpush1.msra.mxu0 0.0
  %108 = vmatprep.subr.mxu0 0.0
  %109 = vmatpush1.msra.mxu0 0.0
  %110 = vmatprep.subr.mxu0 0.0
  %111 = vmatpush1.msra.mxu0 0.0
  %112 = vmatprep.subr.mxu0 0.0
  %113 = vmatpush1.msra.mxu0 0.0
  %114 = vmatprep.subr.mxu0 0.0
  %115 = vmatpush1.msra.mxu0 0.0
  %116 = vmatprep.subr.mxu0 0.0
  %117 = vmatpush1.msra.mxu0 0.0
  %118 = vmatprep.subr.mxu0 0.0
  %119 = vmatpush1.msra.mxu0 0.0
  %120 = vmatprep.subr.mxu0 0.0
  %121 = vmatpush1.msra.mxu0 0.0
  %122 = vmatprep.subr.mxu0 0.0
  %123 = vmatpush1.msra.mxu0 0.0
  %124 = vmatprep.subr.mxu0 0.0
  %125 = vmatpush1.msra.mxu0 0.0
  %126 = vmatprep.subr.mxu0 0.0
  %127 = vmatpush1.msra.mxu0 0.0
  %128 = vmatprep.subr.mxu0 0.0
  %129 = vmatpush1.msra.mxu0 0.0
  %130 = vmatprep.subr.mxu0 0.0
  %131 = vmatpush1.msra.mxu0 0.0
  %132 = vmatprep.subr.mxu0 0.0
  %133 = vmatpush1.msra.mxu0 0.0
  %134 = vmatprep.subr.mxu0 0.0
  %135 = vmatpush1.msra.mxu0 0.0
  %136 = vmatprep.subr.mxu0 0.0
  %137 = vmatpush1.msra.mxu0 0.0
  %138 = vmatprep.subr.mxu0 0.0
  %139 = vmatpush1.msra.mxu0 0.0
  %140 = vmatprep.subr.mxu0 0.0
  %141 = vmatpush1.msra.mxu0 0.0
  %142 = vmatprep.subr.mxu0 0.0
  %143 = vmatpush1.msra.mxu0 0.0
  %144 = vmatprep.subr.mxu0 0.0
  %145 = vmatpush1.msra.mxu0 0.0
  %146 = vmatprep.subr.mxu0 0.0
  %147 = vmatpush1.msra.mxu0 0.0
  %148 = vmatprep.subr.mxu0 0.0
  %149 = vmatpush1.msra.mxu0 0.0
  %150 = vmatprep.subr.mxu0 0.0
  %151 = vmatpush1.msra.mxu0 0.0
  %152 = vmatprep.subr.mxu0 0.0
  %153 = vmatpush1.msra.mxu0 0.0
  %154 = vmatprep.subr.mxu0 0.0
  %155 = vmatpush1.msra.mxu0 0.0
  %156 = vmatprep.mubr.f32.mxu0 0.0
  %157 = vmatmul.mubr.f32.gmra.mrb[0].mxu0 %v41
  %v158 = vpop.f32.mrb[0].mxu0
  %v159 = vadd.f32 %v37, %v158
  %v160 = vpop.f32.mrb[0].mxu0
  %161 = vmatprep.mubr.f32.mxu0 0.0
  %162 = vmatmul.mubr.f32.gmra.mrb[0].mxu0 %v44
  %v163 = vpop.f32.mrb[0].mxu0
  %v164 = vadd.f32 %v37, %v163
  %v165 = vpop.f32.mrb[0].mxu0
  %166 = vmatprep.mubr.f32.mxu0 0.0
  %167 = vmatmul.mubr.f32.gmra.mrb[0].mxu0 %v47
  %v168 = vpop.f32.mrb[0].mxu0
  %v169 = vadd.f32 %v37, %v168
  %v170 = vpop.f32.mrb[0].mxu0
  %171 = vmatprep.mubr.f32.mxu0 0.0
  %172 = vmatmul.mubr.f32.gmra.mrb[0].mxu0 %v50
  %v173 = vpop.f32.mrb[0].mxu0
  %v174 = vadd.f32 %v37, %v173
  %v175 = vpop.f32.mrb[0].mxu0
  %176 = vmatprep.mubr.f32.mxu0 0.0
  %177 = vmatmul.mubr.f32.gmra.mrb[0].mxu0 %v53
  %v178 = vpop.f32.mrb[0].mxu0
  %v179 = vadd.f32 %v37, %v178
  %v180 = vpop.f32.mrb[0].mxu0
  %181 = vmatprep.mubr.f32.mxu0 0.0
  %182 = vmatmul.mubr.f32.gmra.mrb[0].mxu0 %v56
  %v183 = vpop.f32.mrb[0].mxu0
  %v184 = vadd.f32 %v37, %v183
  %v185 = vpop.f32.mrb[0].mxu0
  %186 = vmatprep.mubr.f32.mxu0 0.0
  %187 = vmatmul.mubr.f32.gmra.mrb[0].mxu0 %v59
  %v188 = vpop.f32.mrb[0].mxu0
  %v189 = vadd.f32 %v37, %v188
  %v190 = vpop.f32.mrb[0].mxu0
  %191 = vmatprep.mubr.f32.mxu0 0.0
  %192 = vmatmul.mubr.f32.gmra.mrb[0].mxu0 %v62
  %v193 = vpop.f32.mrb[0].mxu0
  %v194 = vadd.f32 %v37, %v193
  %v195 = vpop.f32.mrb[0].mxu0
  %196 = vmatprep.mubr.f32.mxu0 0.0
  %197 = vmatmul.mubr.f32.gmra.mrb[0].mxu0 %v65
  %v198 = vpop.f32.mrb[0].mxu0
  %v199 = vadd.f32 %v37, %v198
  %v200 = vpop.f32.mrb[0].mxu0
  %201 = vmatprep.mubr.f32.mxu0 0.0
  %202 = vmatmul.mubr.f32.gmra.mrb[0].mxu0 %v68
  %v203 = vpop.f32.mrb[0].mxu0
  %v204 = vadd.f32 %v37, %v203
  %v205 = vpop.f32.mrb[0].mxu0
  %206 = vmatprep.mubr.f32.mxu0 0.0
  %207 = vmatmul.mubr.f32.gmra.mrb[0].mxu0 %v71
  %v208 = vpop.f32.mrb[0].mxu0
  %v209 = vadd.f32 %v37, %v208
  %v210 = vpop.f32.mrb[0].mxu0
  %211 = vmatprep.mubr.f32.mxu0 0.0
  %212 = vmatmul.mubr.f32.gmra.mrb[0].mxu0 %v74
  %v213 = vpop.f32.mrb[0].mxu0
  %v214 = vadd.f32 %v37, %v213
  %v215 = vpop.f32.mrb[0].mxu0
  %216 = vmatprep.mubr.f32.mxu0 0.0
  %217 = vmatmul.mubr.f32.gmra.mrb[0].mxu0 %v77
  %v218 = vpop.f32.mrb[0].mxu0
  %v219 = vadd.f32 %v37, %v218
  %v220 = vpop.f32.mrb[0].mxu0
  %221 = vmatprep.mubr.f32.mxu0 0.0
  %222 = vmatmul.mubr.f32.gmra.mrb[0].mxu0 %v80
  %v223 = vpop.f32.mrb[0].mxu0
  %v224 = vadd.f32 %v37, %v223
  %v225 = vpop.f32.mrb[0].mxu0
  %226 = vmatprep.mubr.f32.mxu0 0.0
  %227 = vmatmul.mubr.f32.gmra.mrb[0].mxu0 %v83
  %v228 = vpop.f32.mrb[0].mxu0
  %v229 = vadd.f32 %v37, %v228
  %v230 = vpop.f32.mrb[0].mxu0
  %231 = vmatprep.mubr.f32.mxu0 0.0
  %232 = vmatmul.mubr.f32.gmra.mrb[0].mxu0 %v86
  %v233 = vpop.f32.mrb[0].mxu0
  %v234 = vadd.f32 %v37, %v233
  %v235 = vpop.f32.mrb[0].mxu0
  %236 = vdwg.mxu0
  %vm237 = vcmask 261120
  %238 = vst.msk [vmem:[%s3] sm:$0xff] %vm237, %v159
  %239 = vst.msk [vmem:[%s3 + $0x8] sm:$0xff] %vm237, %v164
  %240 = vst.msk [vmem:[%s3 + $0x10] sm:$0xff] %vm237, %v169
  %241 = vst.msk [vmem:[%s3 + $0x18] sm:$0xff] %vm237, %v174
  %242 = vst.msk [vmem:[%s3 + $0x20] sm:$0xff] %vm237, %v179
  %243 = vst.msk [vmem:[%s3 + $0x28] sm:$0xff] %vm237, %v184
  %244 = vst.msk [vmem:[%s3 + $0x30] sm:$0xff] %vm237, %v189
  %245 = vst.msk [vmem:[%s3 + $0x38] sm:$0xff] %vm237, %v194
  %246 = vst.msk [vmem:[%s3 + $0x40] sm:$0xff] %vm237, %v199
  %247 = vst.msk [vmem:[%s3 + $0x48] sm:$0xff] %vm237, %v204
  %248 = vst.msk [vmem:[%s3 + $0x50] sm:$0xff] %vm237, %v209
  %249 = vst.msk [vmem:[%s3 + $0x58] sm:$0xff] %vm237, %v214
  %250 = vst.msk [vmem:[%s3 + $0x60] sm:$0xff] %vm237, %v219
  %251 = vst.msk [vmem:[%s3 + $0x68] sm:$0xff] %vm237, %v224
  %252 = vst.msk [vmem:[%s3 + $0x70] sm:$0xff] %vm237, %v229
  %253 = vst.msk [vmem:[%s3 + $0x78] sm:$0xff] %vm237, %v234
  // Predicated region
  $region14: #{speech_recognition_forward.14} parent=0 // pred_check
    _
  $region15: #{speech_recognition_forward.14} parent=0 // pred_check_branch
    %255 = sbr.rel (0) target = $region17
  $region16: #{speech_recognition_forward.14} parent=0 // pred_region
    _
  $region17: #{speech_recognition_forward.14} parent=0 // pred_fallthru
    _
  // Predicated region
  $region18: #{speech_recognition_forward.14} parent=0 // pred_check
    _
  $region19: #{speech_recognition_forward.14} parent=0 // pred_check_branch
    %257 = sbr.rel (0) target = $region21
  $region20: #{speech_recognition_forward.14} parent=0 // pred_region
    _
  $region21: #{speech_recognition_forward.14} parent=0 // pred_fallthru
    _

// kernel: speech_recognition_forward.16
$region0: #{speech_recognition_forward.16}
  #allocation0 [shape = 'u32[]', space=smem, size = 0x4, offset = 0x4, fixed_abs, tag = 'smem constant byte address 0x4 - core index']
  #allocation1 [shape = 'u32[144,128]{1,0:T(1,128)}', space=vmem, size = 0x12000, scoped, tag = 'internal scratch']
  %s0 = inlined_call_operand.vmem [shape: f32[2,10,10,32], index: 0, kind: input, shape index: {}]
  %s1 = inlined_call_operand.vmem [shape: f32[9,32,32], index: 1, kind: input, shape index: {}]
  %s2 = inlined_call_operand.vmem [shape: f32[1,32], index: 2, kind: input, shape index: {}]
  %s3 = inlined_call_operand.vmem [shape: f32[2,8,8,32], index: 3, kind: output, shape index: {}]
  %s4 = sld [smem:[#allocation0]]
  $region45: #{speech_recognition_forward.16} parent=0
    _
  %s6 = ssub.s32 1, %s4
  %s7 = scalar_select 0, %s6, %s4
  loop: start=0, step=1, limit=4
  $region2: #{speech_recognition_forward.16} parent=0 // loop_pre_header
    _
  $region3: #{speech_recognition_forward.16} parent=0 // loop_header
    %s9 = sphi 0, %s13
    %p10 = scmp.ge.s32.totalorder %s9, 4
    %s19 = sphi 0, %s21
    %s22 = sphi 0, %s19
    %s23 = sphi 0, %s22
    %s39 = sphi 0, %s23
    %s43 = sphi 0, %s43
    %s45 = sphi 0, %s43
    %s46 = sphi 0, %s45
    %s60 = sphi 0, %s46
    %s64 = sphi 0, %s64
    %s66 = sphi 0, %s64
    %s67 = sphi 0, %s66
    %s81 = sphi 0, %s67
    %s87 = sphi 0, %s89
    %s90 = sphi 0, %s87
    %s91 = sphi 0, %s90
    %s107 = sphi 0, %s91
  $region4: #{speech_recognition_forward.16} parent=0 // loop_header_branch
    %12 = sbr.rel (%p10) target = $region8
  $region5: #{speech_recognition_forward.16} parent=0 // loop_body
    %s14 = ssub.s32 %s9, 1
    %s15 = ssub.s32 %s9, 2
    %s16 = sadd.s32 %s9, 1
    %s17 = ssub.s32 %s9, %s16
    %p18 = scmp.eq.s32.totalorder %s17, 0
    %s20 = sadd.s32 %s19, 1
    %s21 = scalar_select %p18, %s19, %s20
    %p24 = pneg %p18
    %p25 = scmp.eq.s32.totalorder %s9, 1
    %p26 = por %p24, %p25
    %p27 = scmp.ne.s32.totalorder %s19, %s22
    %p28 = scmp.eq.s32.totalorder %s9, 0
    %p29 = por %p27, %p28
    %p30 = scmp.ne.s32.totalorder %s19, %s22
    %p31 = scmp.eq.s32.totalorder %s14, 1
    %p32 = por %p30, %p31
    %p33 = scmp.ne.s32.totalorder %s22, %s23
    %p34 = scmp.eq.s32.totalorder %s14, 0
    %p35 = por %p33, %p34
    %p36 = scmp.ne.s32.totalorder %s22, %s23
    %p37 = scmp.eq.s32.totalorder %s15, 1
    %p38 = por %p36, %p37
    %p40 = scmp.ne.s32.totalorder %s23, %s39
    %p41 = scmp.eq.s32.totalorder %s15, 0
    %p42 = por %p40, %p41
    %s44 = sadd.s32 %s43, 1
    %p47 = scmp.eq.s32.totalorder %s9, 1
    %p48 = scmp.ne.s32.totalorder %s43, %s45
    %p49 = scmp.eq.s32.totalorder %s9, 0
    %p50 = por %p48, %p49
    %p51 = scmp.ne.s32.totalorder %s43, %s45
    %p52 = scmp.eq.s32.totalorder %s14, 1
    %p53 = por %p51, %p52
    %p54 = scmp.ne.s32.totalorder %s45, %s46
    %p55 = scmp.eq.s32.totalorder %s14, 0
    %p56 = por %p54, %p55
    %p57 = scmp.ne.s32.totalorder %s45, %s46
    %p58 = scmp.eq.s32.totalorder %s15, 1
    %p59 = por %p57, %p58
    %p61 = scmp.ne.s32.totalorder %s46, %s60
    %p62 = scmp.eq.s32.totalorder %s15, 0
    %p63 = por %p61, %p62
    %s65 = sadd.s32 %s64, 1
    %p68 = scmp.eq.s32.totalorder %s9, 1
    %p69 = scmp.ne.s32.totalorder %s64, %s66
    %p70 = scmp.eq.s32.totalorder %s9, 0
    %p71 = por %p69, %p70
    %p72 = scmp.ne.s32.totalorder %s64, %s66
    %p73 = scmp.eq.s32.totalorder %s14, 1
    %p74 = por %p72, %p73
    %p75 = scmp.ne.s32.totalorder %s66, %s67
    %p76 = scmp.eq.s32.totalorder %s14, 0
    %p77 = por %p75, %p76
    %p78 = scmp.ne.s32.totalorder %s66, %s67
    %p79 = scmp.eq.s32.totalorder %s15, 1
    %p80 = por %p78, %p79
    %p82 = scmp.ne.s32.totalorder %s67, %s81
    %p83 = scmp.eq.s32.totalorder %s15, 0
    %p84 = por %p82, %p83
    %s85 = ssub.s32 %s9, %s16
    %p86 = scmp.eq.s32.totalorder %s85, 0
    %s88 = sadd.s32 %s87, 1
    %s89 = scalar_select %p86, %s87, %s88
    %p92 = pneg %p86
    %p93 = scmp.eq.s32.totalorder %s9, 1
    %p94 = por %p92, %p93
    %p95 = scmp.ne.s32.totalorder %s87, %s90
    %p96 = scmp.eq.s32.totalorder %s9, 0
    %p97 = por %p95, %p96
    %p98 = scmp.ne.s32.totalorder %s87, %s90
    %p99 = scmp.eq.s32.totalorder %s14, 1
    %p100 = por %p98, %p99
    %p101 = scmp.ne.s32.totalorder %s90, %s91
    %p102 = scmp.eq.s32.totalorder %s14, 0
    %p103 = por %p101, %p102
    %p104 = scmp.ne.s32.totalorder %s90, %s91
    %p105 = scmp.eq.s32.totalorder %s15, 1
    %p106 = por %p104, %p105
    %p108 = scmp.ne.s32.totalorder %s91, %s107
    %p109 = scmp.eq.s32.totalorder %s15, 0
    %p110 = por %p108, %p109
    %p111 = scmp.le.s32.totalorder 1, %s9
    %p112 = scmp.lt.s32.totalorder %s9, 3
    %p113 = pnand %p111, %p112
    %p114 = pneg %p113
    // Predicated region
    $region9: #{speech_recognition_forward.16} parent=5 // pred_check
      _
    $region10: #{speech_recognition_forward.16} parent=5 // pred_check_branch
      %116 = sbr.rel (%p113) target = $region12
    $region11: #{speech_recognition_forward.16} parent=5 // pred_region
      %s117 = ssub.s32 %s9, 1
      // Predicated region
      $region13: #{speech_recognition_forward.16} parent=11 // pred_check
        %p118 = pneg %p56
      $region14: #{speech_recognition_forward.16} parent=11 // pred_check_branch
        %120 = sbr.rel (%p118) target = $region16
      $region15: #{speech_recognition_forward.16} parent=11 // pred_region
        _
      $region16: #{speech_recognition_forward.16} parent=11 // pred_fallthru
        _
      // Predicated region
      $region17: #{speech_recognition_forward.16} parent=11 // pred_check
        %p121 = pneg %p77
      $region18: #{speech_recognition_forward.16} parent=11 // pred_check_branch
        %123 = sbr.rel (%p121) target = $region20
      $region19: #{speech_recognition_forward.16} parent=11 // pred_region
        _
      $region20: #{speech_recognition_forward.16} parent=11 // pred_fallthru
        _
    $region12: #{speech_recognition_forward.16} parent=5 // pred_fallthru
      _
    %p124 = scmp.lt.s32.totalorder %s9, 2
    // Predicated region
    $region21: #{speech_recognition_forward.16} parent=5 // pred_check
      %p125 = pneg %p124
    $region22: #{speech_recognition_forward.16} parent=5 // pred_check_branch
      %127 = sbr.rel (%p125) target = $region24
    $region23: #{speech_recognition_forward.16} parent=5 // pred_region
      // Predicated region
      $region25: #{speech_recognition_forward.16} parent=23 // pred_check
        %p128 = pneg %p29
      $region26: #{speech_recognition_forward.16} parent=23 // pred_check_branch
        %130 = sbr.rel (%p128) target = $region28
      $region27: #{speech_recognition_forward.16} parent=23 // pred_region
        %p131 = scmp.lt.s32.totalorder %s9, 1
        %s132 = scalar_select %p131, %s9, 1
        %s133 = smul.addr %s132, 20
        %s134 = smul.addr %s133, 8
        %s135 = scalar_lea.vmem %s0, %s134
      $region28: #{speech_recognition_forward.16} parent=23 // pred_fallthru
        _
    $region24: #{speech_recognition_forward.16} parent=5 // pred_fallthru
      _
    %p136 = scmp.le.s32.totalorder 1, %s9
    %p137 = scmp.lt.s32.totalorder %s9, 3
    %p138 = pnand %p136, %p137
    %p139 = pneg %p138
    // Predicated region
    $region29: #{speech_recognition_forward.16} parent=5 // pred_check
      _
    $region30: #{speech_recognition_forward.16} parent=5 // pred_check_branch
      %141 = sbr.rel (%p138) target = $region32
    $region31: #{speech_recognition_forward.16} parent=5 // pred_region
      %s142 = ssub.s32 %s9, 1
      %p143 = scmp.lt.s32.totalorder %s14, 1
      %s144 = scalar_select %p143, %s14, 1
      %s145 = smul.addr %s144, 20
      %s146 = smul.addr %s145, 8
      %s147 = scalar_lea.vmem %s0, %s146
      %p148 = pneg %p35
      %p149 = pneg %p32
      %p150 = pneg %p56
      %p151 = pneg %p53
      %p152 = pneg %p77
      %p153 = pneg %p74
      %p154 = pneg %p103
      %p155 = pneg %p100
      %p156 = scmp.lt.s32.totalorder %s14, 1
      %s157 = scalar_select %p156, %s14, 1
      %s158 = smul.addr %s157, 8
      %s159 = smul.addr %s158, 8
      %s160 = scalar_lea.vmem %s3, %s159
      %p161 = scmp.lt.s32.totalorder %s14, 1
      %s162 = scalar_select %p161, %s14, 1
      %s163 = smul.addr %s162, 20
      %s164 = smul.addr %s163, 8
      %s165 = scalar_lea.vmem %s0, %s164
      %p166 = scmp.lt.s32.totalorder %s14, 1
      %s167 = scalar_select %p166, %s14, 1
      %s168 = smul.addr %s167, 8
      %s169 = smul.addr %s168, 8
      %s170 = scalar_lea.vmem %s3, %s169
      %v171 = vld [vmem:[%s165] sm:$0xff]
      %v172 = vld [vmem:[%s165 + $0x10] sm:$0xff]
      %v173 = vld [vmem:[%s165 + $0x20] sm:$0xff]
      %v174 = vld [vmem:[%s165 + $0x30] sm:$0xff]
      %v175 = vld [vmem:[%s165 + $0x40] sm:$0xff]
      %v176 = vld [vmem:[%s165 + $0x50] sm:$0xff]
      %v177 = vld [vmem:[%s165 + $0x60] sm:$0xff]
      %v178 = vld [vmem:[%s165 + $0x70] sm:$0xff]
      %v179 = vld [vmem:[%s1] sm:$0xff]
      %v180 = vld [vmem:[%s1 + $0x8] sm:$0xff]
      %v181 = vld [vmem:[%s1 + $0x10] sm:$0xff]
      %v182 = vld [vmem:[%s1 + $0x18] sm:$0xff]
      %v183 = vld [vmem:[%s165 + $0x1] sm:$0xff]
      %v184 = vld [vmem:[%s165 + $0x11] sm:$0xff]
      %v185 = vld [vmem:[%s165 + $0x21] sm:$0xff]
      %v186 = vld [vmem:[%s165 + $0x31] sm:$0xff]
      %v187 = vld [vmem:[%s165 + $0x41] sm:$0xff]
      %v188 = vld [vmem:[%s165 + $0x51] sm:$0xff]
      %v189 = vld [vmem:[%s165 + $0x61] sm:$0xff]
      %v190 = vld [vmem:[%s165 + $0x71] sm:$0xff]
      %s191 = scalar_lea.vmem %s1, 32
      %v192 = vld [vmem:[%s191] sm:$0xff]
      %v193 = vld [vmem:[%s191 + $0x8] sm:$0xff]
      %v194 = vld [vmem:[%s191 + $0x10] sm:$0xff]
      %v195 = vld [vmem:[%s191 + $0x18] sm:$0xff]
      %vm196 = vcmask 261120
      %v198 = vsel %vm196, %v183, 0
      %v201 = vsel %vm196, %v184, 0
      %v204 = vsel %vm196, %v185, 0
      %v207 = vsel %vm196, %v186, 0
      %v210 = vsel %vm196, %v187, 0
      %v213 = vsel %vm196, %v188, 0
      %v216 = vsel %vm196, %v189, 0
      %v219 = vsel %vm196, %v190, 0
      %221 = vmatprep.subr.mxu0 0.0
      %222 = vmatpush1.msra.mxu0 %v192
      %223 = vmatprep.subr.mxu0 0.0
      %224 = vmatpush1.msra.mxu0 %v193
      %225 = vmatprep.subr.mxu0 0.0
      %226 = vmatpush1.msra.mxu0 %v194
      %227 = vmatprep.subr.mxu0 0.0
      %228 = vmatpush1.msra.mxu0 %v195
      %229 = vmatprep.subr.mxu0 0.0
      %230 = vmatpush1.msra.mxu0 0.0
      %231 = vmatprep.subr.mxu0 0.0
      %232 = vmatpush1.msra.mxu0 0.0
      %233 = vmatprep.subr.mxu0 0.0
      %234 = vmatpush1.msra.mxu0 0.0
      %235 = vmatprep.subr.mxu0 0.0
      %236 = vmatpush1.msra.mxu0 0.0
      %237 = vmatprep.subr.mxu0 0.0
      %238 = vmatpush1.msra.mxu0 0.0
      %239 = vmatprep.subr.mxu0 0.0
      %240 = vmatpush1.msra.mxu0 0.0
      %241 = vmatprep.subr.mxu0 0.0
      %242 = vmatpush1.msra.mxu0 0.0
      %243 = vmatprep.subr.mxu0 0.0
      %244 = vmatpush1.msra.mxu0 0.0
      %245 = vmatprep.subr.mxu0 0.0
      %246 = vmatpush1.msra.mxu0 0.0
      %247 = vmatprep.subr.mxu0 0.0
      %248 = vmatpush1.msra.mxu0 0.0
      %249 = vmatprep.subr.mxu0 0.0
      %250 = vmatpush1.msra.mxu0 0.0
      %251 = vmatprep.subr.mxu0 0.0
      %252 = vmatpush1.msra.mxu0 0.0
      %253 = vmatprep.subr.mxu0 0.0
      %254 = vmatpush1.msra.mxu0 0.0
      %255 = vmatprep.subr.mxu0 0.0
      %256 = vmatpush1.msra.mxu0 0.0
      %257 = vmatprep.subr.mxu0 0.0
      %258 = vmatpush1.msra.mxu0 0.0
      %259 = vmatprep.subr.mxu0 0.0
      %260 = vmatpush1.msra.mxu0 0.0
      %261 = vmatprep.subr.mxu0 0.0
      %262 = vmatpush1.msra.mxu0 0.0
      %263 = vmatprep.subr.mxu0 0.0
      %264 = vmatpush1.msra.mxu0 0.0
      %265 = vmatprep.subr.mxu0 0.0
      %266 = vmatpush1.msra.mxu0 0.0
      %267 = vmatprep.subr.mxu0 0.0
      %268 = vmatpush1.msra.mxu0 0.0
      %269 = vmatprep.subr.mxu0 0.0
      %270 = vmatpush1.msra.mxu0 0.0
      %271 = vmatprep.subr.mxu0 0.0
      %272 = vmatpush1.msra.mxu0 0.0
      %273 = vmatprep.subr.mxu0 0.0
      %274 = vmatpush1.msra.mxu0 0.0
      %275 = vmatprep.subr.mxu0 0.0
      %276 = vmatpush1.msra.mxu0 0.0
      %277 = vmatprep.subr.mxu0 0.0
      %278 = vmatpush1.msra.mxu0 0.0
      %279 = vmatprep.subr.mxu0 0.0
      %280 = vmatpush1.msra.mxu0 0.0
      %281 = vmatprep.subr.mxu0 0.0
      %282 = vmatpush1.msra.mxu0 0.0
      %283 = vmatprep.subr.mxu0 0.0
      %284 = vmatpush1.msra.mxu0 0.0
      %285 = vmatprep.mubr.f32.mxu0 0.0
      %286 = vmatmul.mubr.f32.gmra.mrb[0].mxu0 %v198
      %v287 = vpop.f32.mrb[0].mxu0
      %v288 = vadd.f32 0.0, %v287
      %v289 = vpop.f32.mrb[0].mxu0
      %290 = vmatprep.mubr.f32.mxu0 0.0
      %291 = vmatmul.mubr.f32.gmra.mrb[0].mxu0 %v201
      %v292 = vpop.f32.mrb[0].mxu0
      %v293 = vadd.f32 0.0, %v292
      %v294 = vpop.f32.mrb[0].mxu0
      %295 = vmatprep.mubr.f32.mxu0 0.0
      %296 = vmatmul.mubr.f32.gmra.mrb[0].mxu0 %v204
      %v297 = vpop.f32.mrb[0].mxu0
      %v298 = vadd.f32 0.0, %v297
      %v299 = vpop.f32.mrb[0].mxu0
      %300 = vmatprep.mubr.f32.mxu0 0.0
      %301 = vmatmul.mubr.f32.gmra.mrb[0].mxu0 %v207
      %v302 = vpop.f32.mrb[0].mxu0
      %v303 = vadd.f32 0.0, %v302
      %v304 = vpop.f32.mrb[0].mxu0
      %305 = vmatprep.mubr.f32.mxu0 0.0
      %306 = vmatmul.mubr.f32.gmra.mrb[0].mxu0 %v210
      %v307 = vpop.f32.mrb[0].mxu0
      %v308 = vadd.f32 0.0, %v307
      %v309 = vpop.f32.mrb[0].mxu0
      %310 = vmatprep.mubr.f32.mxu0 0.0
      %311 = vmatmul.mubr.f32.gmra.mrb[0].mxu0 %v213
      %v312 = vpop.f32.mrb[0].mxu0
      %v313 = vadd.f32 0.0, %v312
      %v314 = vpop.f32.mrb[0].mxu0
      %315 = vmatprep.mubr.f32.mxu0 0.0
      %316 = vmatmul.mubr.f32.gmra.mrb[0].mxu0 %v216
      %v317 = vpop.f32.mrb[0].mxu0
      %v318 = vadd.f32 0.0, %v317
      %v319 = vpop.f32.mrb[0].mxu0
      %320 = vmatprep.mubr.f32.mxu0 0.0
      %321 = vmatmul.mubr.f32.gmra.mrb[0].mxu0 %v219
      %v322 = vpop.f32.mrb[0].mxu0
      %v323 = vadd.f32 0.0, %v322
      %v324 = vpop.f32.mrb[0].mxu0
      %325 = vdwg.mxu0
      %v327 = vsel %vm196, %v171, 0
      %v330 = vsel %vm196, %v172, 0
      %v333 = vsel %vm196, %v173, 0
      %v336 = vsel %vm196, %v174, 0
      %v339 = vsel %vm196, %v175, 0
      %v342 = vsel %vm196, %v176, 0
      %v345 = vsel %vm196, %v177, 0
      %v348 = vsel %vm196, %v178, 0
      %350 = vmatprep.subr.mxu0 0.0
      %351 = vmatpush1.msra.mxu0 %v179
      %352 = vmatprep.subr.mxu0 0.0
      %353 = vmatpush1.msra.mxu0 %v180
      %354 = vmatprep.subr.mxu0 0.0
      %355 = vmatpush1.msra.mxu0 %v181
      %356 = vmatprep.subr.mxu0 0.0
      %357 = vmatpush1.msra.mxu0 %v182
      %358 = vmatprep.subr.mxu0 0.0
      %359 = vmatpush1.msra.mxu0 0.0
      %360 = vmatprep.subr.mxu0 0.0
      %361 = vmatpush1.msra.mxu0 0.0
      %362 = vmatprep.subr.mxu0 0.0
      %363 = vmatpush1.msra.mxu0 0.0
      %364 = vmatprep.subr.mxu0 0.0
      %365 = vmatpush1.msra.mxu0 0.0
      %366 = vmatprep.subr.mxu0 0.0
      %367 = vmatpush1.msra.mxu0 0.0
      %368 = vmatprep.subr.mxu0 0.0
      %369 = vmatpush1.msra.mxu0 0.0
      %370 = vmatprep.subr.mxu0 0.0
      %371 = vmatpush1.msra.mxu0 0.0
      %372 = vmatprep.subr.mxu0 0.0
      %373 = vmatpush1.msra.mxu0 0.0
      %374 = vmatprep.subr.mxu0 0.0
      %375 = vmatpush1.msra.mxu0 0.0
      %376 = vmatprep.subr.mxu0 0.0
      %377 = vmatpush1.msra.mxu0 0.0
      %378 = vmatprep.subr.mxu0 0.0
      %379 = vmatpush1.msra.mxu0 0.0
      %380 = vmatprep.subr.mxu0 0.0
      %381 = vmatpush1.msra.mxu0 0.0
      %382 = vmatprep.subr.mxu0 0.0
      %383 = vmatpush1.msra.mxu0 0.0
      %384 = vmatprep.subr.mxu0 0.0
      %385 = vmatpush1.msra.mxu0 0.0
      %386 = vmatprep.subr.mxu0 0.0
      %387 = vmatpush1.msra.mxu0 0.0
      %388 = vmatprep.subr.mxu0 0.0
      %389 = vmatpush1.msra.mxu0 0.0
      %390 = vmatprep.subr.mxu0 0.0
      %391 = vmatpush1.msra.mxu0 0.0
      %392 = vmatprep.subr.mxu0 0.0
      %393 = vmatpush1.msra.mxu0 0.0
      %394 = vmatprep.subr.mxu0 0.0
      %395 = vmatpush1.msra.mxu0 0.0
      %396 = vmatprep.subr.mxu0 0.0
      %397 = vmatpush1.msra.mxu0 0.0
      %398 = vmatprep.subr.mxu0 0.0
      %399 = vmatpush1.msra.mxu0 0.0
      %400 = vmatprep.subr.mxu0 0.0
      %401 = vmatpush1.msra.mxu0 0.0
      %402 = vmatprep.subr.mxu0 0.0
      %403 = vmatpush1.msra.mxu0 0.0
      %404 = vmatprep.subr.mxu0 0.0
      %405 = vmatpush1.msra.mxu0 0.0
      %406 = vmatprep.subr.mxu0 0.0
      %407 = vmatpush1.msra.mxu0 0.0
      %408 = vmatprep.subr.mxu0 0.0
      %409 = vmatpush1.msra.mxu0 0.0
      %410 = vmatprep.subr.mxu0 0.0
      %411 = vmatpush1.msra.mxu0 0.0
      %412 = vmatprep.subr.mxu0 0.0
      %413 = vmatpush1.msra.mxu0 0.0
      %414 = vmatprep.mubr.f32.mxu0 0.0
      %415 = vmatmul.mubr.f32.gmra.mrb[0].mxu0 %v327
      %v416 = vpop.f32.mrb[0].mxu0
      %v417 = vadd.f32 %v288, %v416
      %v418 = vpop.f32.mrb[0].mxu0
      %419 = vmatprep.mubr.f32.mxu0 0.0
      %420 = vmatmul.mubr.f32.gmra.mrb[0].mxu0 %v330
      %v421 = vpop.f32.mrb[0].mxu0
      %v422 = vadd.f32 %v293, %v421
      %v423 = vpop.f32.mrb[0].mxu0
      %424 = vmatprep.mubr.f32.mxu0 0.0
      %425 = vmatmul.mubr.f32.gmra.mrb[0].mxu0 %v333
      %v426 = vpop.f32.mrb[0].mxu0
      %v427 = vadd.f32 %v298, %v426
      %v428 = vpop.f32.mrb[0].mxu0
      %429 = vmatprep.mubr.f32.mxu0 0.0
      %430 = vmatmul.mubr.f32.gmra.mrb[0].mxu0 %v336
      %v431 = vpop.f32.mrb[0].mxu0
      %v432 = vadd.f32 %v303, %v431
      %v433 = vpop.f32.mrb[0].mxu0
      %434 = vmatprep.mubr.f32.mxu0 0.0
      %435 = vmatmul.mubr.f32.gmra.mrb[0].mxu0 %v339
      %v436 = vpop.f32.mrb[0].mxu0
      %v437 = vadd.f32 %v308, %v436
      %v438 = vpop.f32.mrb[0].mxu0
      %439 = vmatprep.mubr.f32.mxu0 0.0
      %440 = vmatmul.mubr.f32.gmra.mrb[0].mxu0 %v342
      %v441 = vpop.f32.mrb[0].mxu0
      %v442 = vadd.f32 %v313, %v441
      %v443 = vpop.f32.mrb[0].mxu0
      %444 = vmatprep.mubr.f32.mxu0 0.0
      %445 = vmatmul.mubr.f32.gmra.mrb[0].mxu0 %v345
      %v446 = vpop.f32.mrb[0].mxu0
      %v447 = vadd.f32 %v318, %v446
      %v448 = vpop.f32.mrb[0].mxu0
      %449 = vmatprep.mubr.f32.mxu0 0.0
      %450 = vmatmul.mubr.f32.gmra.mrb[0].mxu0 %v348
      %v451 = vpop.f32.mrb[0].mxu0
      %v452 = vadd.f32 %v323, %v451
      %v453 = vpop.f32.mrb[0].mxu0
      %454 = vdwg.mxu0
      %v455 = vld [vmem:[%s165 + $0x2] sm:$0xff]
      %v456 = vld [vmem:[%s165 + $0x12] sm:$0xff]
      %v457 = vld [vmem:[%s165 + $0x22] sm:$0xff]
      %v458 = vld [vmem:[%s165 + $0x32] sm:$0xff]
      %v459 = vld [vmem:[%s165 + $0x42] sm:$0xff]
      %v460 = vld [vmem:[%s165 + $0x52] sm:$0xff]
      %v461 = vld [vmem:[%s165 + $0x62] sm:$0xff]
      %v462 = vld [vmem:[%s165 + $0x72] sm:$0xff]
      %s463 = scalar_lea.vmem %s1, 64
      %v464 = vld [vmem:[%s463] sm:$0xff]
      %v465 = vld [vmem:[%s463 + $0x8] sm:$0xff]
      %v466 = vld [vmem:[%s463 + $0x10] sm:$0xff]
      %v467 = vld [vmem:[%s463 + $0x18] sm:$0xff]
      %v469 = vsel %vm196, %v455, 0
      %v472 = vsel %vm196, %v456, 0
      %v475 = vsel %vm196, %v457, 0
      %v478 = vsel %vm196, %v458, 0
      %v481 = vsel %vm196, %v459, 0
      %v484 = vsel %vm196, %v460, 0
      %v487 = vsel %vm196, %v461, 0
      %v490 = vsel %vm196, %v462, 0
      %492 = vmatprep.subr.mxu0 0.0
      %493 = vmatpush1.msra.mxu0 %v464
      %494 = vmatprep.subr.mxu0 0.0
      %495 = vmatpush1.msra.mxu0 %v465
      %496 = vmatprep.subr.mxu0 0.0
      %497 = vmatpush1.msra.mxu0 %v466
      %498 = vmatprep.subr.mxu0 0.0
      %499 = vmatpush1.msra.mxu0 %v467
      %500 = vmatprep.subr.mxu0 0.0
      %501 = vmatpush1.msra.mxu0 0.0
      %502 = vmatprep.subr.mxu0 0.0
      %503 = vmatpush1.msra.mxu0 0.0
      %504 = vmatprep.subr.mxu0 0.0
      %505 = vmatpush1.msra.mxu0 0.0
      %506 = vmatprep.subr.mxu0 0.0
      %507 = vmatpush1.msra.mxu0 0.0
      %508 = vmatprep.subr.mxu0 0.0
      %509 = vmatpush1.msra.mxu0 0.0
      %510 = vmatprep.subr.mxu0 0.0
      %511 = vmatpush1.msra.mxu0 0.0
      %512 = vmatprep.subr.mxu0 0.0
      %513 = vmatpush1.msra.mxu0 0.0
      %514 = vmatprep.subr.mxu0 0.0
      %515 = vmatpush1.msra.mxu0 0.0
      %516 = vmatprep.subr.mxu0 0.0
      %517 = vmatpush1.msra.mxu0 0.0
      %518 = vmatprep.subr.mxu0 0.0
      %519 = vmatpush1.msra.mxu0 0.0
      %520 = vmatprep.subr.mxu0 0.0
      %521 = vmatpush1.msra.mxu0 0.0
      %522 = vmatprep.subr.mxu0 0.0
      %523 = vmatpush1.msra.mxu0 0.0
      %524 = vmatprep.subr.mxu0 0.0
      %525 = vmatpush1.msra.mxu0 0.0
      %526 = vmatprep.subr.mxu0 0.0
      %527 = vmatpush1.msra.mxu0 0.0
      %528 = vmatprep.subr.mxu0 0.0
      %529 = vmatpush1.msra.mxu0 0.0
      %530 = vmatprep.subr.mxu0 0.0
      %531 = vmatpush1.msra.mxu0 0.0
      %532 = vmatprep.subr.mxu0 0.0
      %533 = vmatpush1.msra.mxu0 0.0
      %534 = vmatprep.subr.mxu0 0.0
      %535 = vmatpush1.msra.mxu0 0.0
      %536 = vmatprep.subr.mxu0 0.0
      %537 = vmatpush1.msra.mxu0 0.0
      %538 = vmatprep.subr.mxu0 0.0
      %539 = vmatpush1.msra.mxu0 0.0
      %540 = vmatprep.subr.mxu0 0.0
      %541 = vmatpush1.msra.mxu0 0.0
      %542 = vmatprep.subr.mxu0 0.0
      %543 = vmatpush1.msra.mxu0 0.0
      %544 = vmatprep.subr.mxu0 0.0
      %545 = vmatpush1.msra.mxu0 0.0
      %546 = vmatprep.subr.mxu0 0.0
      %547 = vmatpush1.msra.mxu0 0.0
      %548 = vmatprep.subr.mxu0 0.0
      %549 = vmatpush1.msra.mxu0 0.0
      %550 = vmatprep.subr.mxu0 0.0
      %551 = vmatpush1.msra.mxu0 0.0
      %552 = vmatprep.subr.mxu0 0.0
      %553 = vmatpush1.msra.mxu0 0.0
      %554 = vmatprep.subr.mxu0 0.0
      %555 = vmatpush1.msra.mxu0 0.0
      %556 = vmatprep.mubr.f32.mxu0 0.0
      %557 = vmatmul.mubr.f32.gmra.mrb[0].mxu0 %v469
      %v558 = vpop.f32.mrb[0].mxu0
      %v559 = vadd.f32 0.0, %v558
      %v560 = vpop.f32.mrb[0].mxu0
      %561 = vmatprep.mubr.f32.mxu0 0.0
      %562 = vmatmul.mubr.f32.gmra.mrb[0].mxu0 %v472
      %v563 = vpop.f32.mrb[0].mxu0
      %v564 = vadd.f32 0.0, %v563
      %v565 = vpop.f32.mrb[0].mxu0
      %566 = vmatprep.mubr.f32.mxu0 0.0
      %567 = vmatmul.mubr.f32.gmra.mrb[0].mxu0 %v475
      %v568 = vpop.f32.mrb[0].mxu0
      %v569 = vadd.f32 0.0, %v568
      %v570 = vpop.f32.mrb[0].mxu0
      %571 = vmatprep.mubr.f32.mxu0 0.0
      %572 = vmatmul.mubr.f32.gmra.mrb[0].mxu0 %v478
      %v573 = vpop.f32.mrb[0].mxu0
      %v574 = vadd.f32 0.0, %v573
      %v575 = vpop.f32.mrb[0].mxu0
      %576 = vmatprep.mubr.f32.mxu0 0.0
      %577 = vmatmul.mubr.f32.gmra.mrb[0].mxu0 %v481
      %v578 = vpop.f32.mrb[0].mxu0
      %v579 = vadd.f32 0.0, %v578
      %v580 = vpop.f32.mrb[0].mxu0
      %581 = vmatprep.mubr.f32.mxu0 0.0
      %582 = vmatmul.mubr.f32.gmra.mrb[0].mxu0 %v484
      %v583 = vpop.f32.mrb[0].mxu0
      %v584 = vadd.f32 0.0, %v583
      %v585 = vpop.f32.mrb[0].mxu0
      %586 = vmatprep.mubr.f32.mxu0 0.0
      %587 = vmatmul.mubr.f32.gmra.mrb[0].mxu0 %v487
      %v588 = vpop.f32.mrb[0].mxu0
      %v589 = vadd.f32 0.0, %v588
      %v590 = vpop.f32.mrb[0].mxu0
      %591 = vmatprep.mubr.f32.mxu0 0.0
      %592 = vmatmul.mubr.f32.gmra.mrb[0].mxu0 %v490
      %v593 = vpop.f32.mrb[0].mxu0
      %v594 = vadd.f32 0.0, %v593
      %v595 = vpop.f32.mrb[0].mxu0
      %596 = vdwg.mxu0
      %v597 = vadd.f32 %v417, %v559
      %v598 = vadd.f32 %v422, %v564
      %v599 = vadd.f32 %v427, %v569
      %v600 = vadd.f32 %v432, %v574
      %v601 = vadd.f32 %v437, %v579
      %v602 = vadd.f32 %v442, %v584
      %v603 = vadd.f32 %v447, %v589
      %v604 = vadd.f32 %v452, %v594
      %s605 = scalar_lea.vmem %s165, 16
      %v606 = vld [vmem:[%s605] sm:$0xff]
      %v607 = vld [vmem:[%s605 + $0x10] sm:$0xff]
      %v608 = vld [vmem:[%s605 + $0x20] sm:$0xff]
      %v609 = vld [vmem:[%s605 + $0x30] sm:$0xff]
      %v610 = vld [vmem:[%s605 + $0x40] sm:$0xff]
      %v611 = vld [vmem:[%s605 + $0x50] sm:$0xff]
      %v612 = vld [vmem:[%s605 + $0x60] sm:$0xff]
      %v613 = vld [vmem:[%s605 + $0x70] sm:$0xff]
      %s614 = scalar_lea.vmem %s1, 96
      %v615 = vld [vmem:[%s614] sm:$0xff]
      %v616 = vld [vmem:[%s614 + $0x8] sm:$0xff]
      %v617 = vld [vmem:[%s614 + $0x10] sm:$0xff]
      %v618 = vld [vmem:[%s614 + $0x18] sm:$0xff]
      %v620 = vsel %vm196, %v606, 0
      %v623 = vsel %vm196, %v607, 0
      %v626 = vsel %vm196, %v608, 0
      %v629 = vsel %vm196, %v609, 0
      %v632 = vsel %vm196, %v610, 0
      %v635 = vsel %vm196, %v611, 0
      %v638 = vsel %vm196, %v612, 0
      %v641 = vsel %vm196, %v613, 0
      %643 = vmatprep.subr.mxu0 0.0
      %644 = vmatpush1.msra.mxu0 %v615
      %645 = vmatprep.subr.mxu0 0.0
      %646 = vmatpush1.msra.mxu0 %v616
      %647 = vmatprep.subr.mxu0 0.0
      %648 = vmatpush1.msra.mxu0 %v617
      %649 = vmatprep.subr.mxu0 0.0
      %650 = vmatpush1.msra.mxu0 %v618
      %651 = vmatprep.subr.mxu0 0.0
      %652 = vmatpush1.msra.mxu0 0.0
      %653 = vmatprep.subr.mxu0 0.0
      %654 = vmatpush1.msra.mxu0 0.0
      %655 = vmatprep.subr.mxu0 0.0
      %656 = vmatpush1.msra.mxu0 0.0
      %657 = vmatprep.subr.mxu0 0.0
      %658 = vmatpush1.msra.mxu0 0.0
      %659 = vmatprep.subr.mxu0 0.0
      %660 = vmatpush1.msra.mxu0 0.0
      %661 = vmatprep.subr.mxu0 0.0
      %662 = vmatpush1.msra.mxu0 0.0
      %663 = vmatprep.subr.mxu0 0.0
      %664 = vmatpush1.msra.mxu0 0.0
      %665 = vmatprep.subr.mxu0 0.0
      %666 = vmatpush1.msra.mxu0 0.0
      %667 = vmatprep.subr.mxu0 0.0
      %668 = vmatpush1.msra.mxu0 0.0
      %669 = vmatprep.subr.mxu0 0.0
      %670 = vmatpush1.msra.mxu0 0.0
      %671 = vmatprep.subr.mxu0 0.0
      %672 = vmatpush1.msra.mxu0 0.0
      %673 = vmatprep.subr.mxu0 0.0
      %674 = vmatpush1.msra.mxu0 0.0
      %675 = vmatprep.subr.mxu0 0.0
      %676 = vmatpush1.msra.mxu0 0.0
      %677 = vmatprep.subr.mxu0 0.0
      %678 = vmatpush1.msra.mxu0 0.0
      %679 = vmatprep.subr.mxu0 0.0
      %680 = vmatpush1.msra.mxu0 0.0
      %681 = vmatprep.subr.mxu0 0.0
      %682 = vmatpush1.msra.mxu0 0.0
      %683 = vmatprep.subr.mxu0 0.0
      %684 = vmatpush1.msra.mxu0 0.0
      %685 = vmatprep.subr.mxu0 0.0
      %686 = vmatpush1.msra.mxu0 0.0
      %687 = vmatprep.subr.mxu0 0.0
      %688 = vmatpush1.msra.mxu0 0.0
      %689 = vmatprep.subr.mxu0 0.0
      %690 = vmatpush1.msra.mxu0 0.0
      %691 = vmatprep.subr.mxu0 0.0
      %692 = vmatpush1.msra.mxu0 0.0
      %693 = vmatprep.subr.mxu0 0.0
      %694 = vmatpush1.msra.mxu0 0.0
      %695 = vmatprep.subr.mxu0 0.0
      %696 = vmatpush1.msra.mxu0 0.0
      %697 = vmatprep.subr.mxu0 0.0
      %698 = vmatpush1.msra.mxu0 0.0
      %699 = vmatprep.subr.mxu0 0.0
      %700 = vmatpush1.msra.mxu0 0.0
      %701 = vmatprep.subr.mxu0 0.0
      %702 = vmatpush1.msra.mxu0 0.0
      %703 = vmatprep.subr.mxu0 0.0
      %704 = vmatpush1.msra.mxu0 0.0
      %705 = vmatprep.subr.mxu0 0.0
      %706 = vmatpush1.msra.mxu0 0.0
      %707 = vmatprep.mubr.f32.mxu0 0.0
      %708 = vmatmul.mubr.f32.gmra.mrb[0].mxu0 %v620
      %v709 = vpop.f32.mrb[0].mxu0
      %v710 = vadd.f32 0.0, %v709
      %v711 = vpop.f32.mrb[0].mxu0
      %712 = vmatprep.mubr.f32.mxu0 0.0
      %713 = vmatmul.mubr.f32.gmra.mrb[0].mxu0 %v623
      %v714 = vpop.f32.mrb[0].mxu0
      %v715 = vadd.f32 0.0, %v714
      %v716 = vpop.f32.mrb[0].mxu0
      %717 = vmatprep.mubr.f32.mxu0 0.0
      %718 = vmatmul.mubr.f32.gmra.mrb[0].mxu0 %v626
      %v719 = vpop.f32.mrb[0].mxu0
      %v720 = vadd.f32 0.0, %v719
      %v721 = vpop.f32.mrb[0].mxu0
      %722 = vmatprep.mubr.f32.mxu0 0.0
      %723 = vmatmul.mubr.f32.gmra.mrb[0].mxu0 %v629
      %v724 = vpop.f32.mrb[0].mxu0
      %v725 = vadd.f32 0.0, %v724
      %v726 = vpop.f32.mrb[0].mxu0
      %727 = vmatprep.mubr.f32.mxu0 0.0
      %728 = vmatmul.mubr.f32.gmra.mrb[0].mxu0 %v632
      %v729 = vpop.f32.mrb[0].mxu0
      %v730 = vadd.f32 0.0, %v729
      %v731 = vpop.f32.mrb[0].mxu0
      %732 = vmatprep.mubr.f32.mxu0 0.0
      %733 = vmatmul.mubr.f32.gmra.mrb[0].mxu0 %v635
      %v734 = vpop.f32.mrb[0].mxu0
      %v735 = vadd.f32 0.0, %v734
      %v736 = vpop.f32.mrb[0].mxu0
      %737 = vmatprep.mubr.f32.mxu0 0.0
      %738 = vmatmul.mubr.f32.gmra.mrb[0].mxu0 %v638
      %v739 = vpop.f32.mrb[0].mxu0
      %v740 = vadd.f32 0.0, %v739
      %v741 = vpop.f32.mrb[0].mxu0
      %742 = vmatprep.mubr.f32.mxu0 0.0
      %743 = vmatmul.mubr.f32.gmra.mrb[0].mxu0 %v641
      %v744 = vpop.f32.mrb[0].mxu0
      %v745 = vadd.f32 0.0, %v744
      %v746 = vpop.f32.mrb[0].mxu0
      %747 = vdwg.mxu0
      %v748 = vadd.f32 %v597, %v710
      %v749 = vadd.f32 %v598, %v715
      %v750 = vadd.f32 %v599, %v720
      %v751 = vadd.f32 %v600, %v725
      %v752 = vadd.f32 %v601, %v730
      %v753 = vadd.f32 %v602, %v735
      %v754 = vadd.f32 %v603, %v740
      %v755 = vadd.f32 %v604, %v745
      %v756 = vld [vmem:[%s605 + $0x1] sm:$0xff]
      %v757 = vld [vmem:[%s605 + $0x11] sm:$0xff]
      %v758 = vld [vmem:[%s605 + $0x21] sm:$0xff]
      %v759 = vld [vmem:[%s605 + $0x31] sm:$0xff]
      %v760 = vld [vmem:[%s605 + $0x41] sm:$0xff]
      %v761 = vld [vmem:[%s605 + $0x51] sm:$0xff]
      %v762 = vld [vmem:[%s605 + $0x61] sm:$0xff]
      %v763 = vld [vmem:[%s605 + $0x71] sm:$0xff]
      %s764 = scalar_lea.vmem %s1, 128
      %v765 = vld [vmem:[%s764] sm:$0xff]
      %v766 = vld [vmem:[%s764 + $0x8] sm:$0xff]
      %v767 = vld [vmem:[%s764 + $0x10] sm:$0xff]
      %v768 = vld [vmem:[%s764 + $0x18] sm:$0xff]
      %v770 = vsel %vm196, %v756, 0
      %v773 = vsel %vm196, %v757, 0
      %v776 = vsel %vm196, %v758, 0
      %v779 = vsel %vm196, %v759, 0
      %v782 = vsel %vm196, %v760, 0
      %v785 = vsel %vm196, %v761, 0
      %v788 = vsel %vm196, %v762, 0
      %v791 = vsel %vm196, %v763, 0
      %793 = vmatprep.subr.mxu0 0.0
      %794 = vmatpush1.msra.mxu0 %v765
      %795 = vmatprep.subr.mxu0 0.0
      %796 = vmatpush1.msra.mxu0 %v766
      %797 = vmatprep.subr.mxu0 0.0
      %798 = vmatpush1.msra.mxu0 %v767
      %799 = vmatprep.subr.mxu0 0.0
      %800 = vmatpush1.msra.mxu0 %v768
      %801 = vmatprep.subr.mxu0 0.0
      %802 = vmatpush1.msra.mxu0 0.0
      %803 = vmatprep.subr.mxu0 0.0
      %804 = vmatpush1.msra.mxu0 0.0
      %805 = vmatprep.subr.mxu0 0.0
      %806 = vmatpush1.msra.mxu0 0.0
      %807 = vmatprep.subr.mxu0 0.0
      %808 = vmatpush1.msra.mxu0 0.0
      %809 = vmatprep.subr.mxu0 0.0
      %810 = vmatpush1.msra.mxu0 0.0
      %811 = vmatprep.subr.mxu0 0.0
      %812 = vmatpush1.msra.mxu0 0.0
      %813 = vmatprep.subr.mxu0 0.0
      %814 = vmatpush1.msra.mxu0 0.0
      %815 = vmatprep.subr.mxu0 0.0
      %816 = vmatpush1.msra.mxu0 0.0
      %817 = vmatprep.subr.mxu0 0.0
      %818 = vmatpush1.msra.mxu0 0.0
      %819 = vmatprep.subr.mxu0 0.0
      %820 = vmatpush1.msra.mxu0 0.0
      %821 = vmatprep.subr.mxu0 0.0
      %822 = vmatpush1.msra.mxu0 0.0
      %823 = vmatprep.subr.mxu0 0.0
      %824 = vmatpush1.msra.mxu0 0.0
      %825 = vmatprep.subr.mxu0 0.0
      %826 = vmatpush1.msra.mxu0 0.0
      %827 = vmatprep.subr.mxu0 0.0
      %828 = vmatpush1.msra.mxu0 0.0
      %829 = vmatprep.subr.mxu0 0.0
      %830 = vmatpush1.msra.mxu0 0.0
      %831 = vmatprep.subr.mxu0 0.0
      %832 = vmatpush1.msra.mxu0 0.0
      %833 = vmatprep.subr.mxu0 0.0
      %834 = vmatpush1.msra.mxu0 0.0
      %835 = vmatprep.subr.mxu0 0.0
      %836 = vmatpush1.msra.mxu0 0.0
      %837 = vmatprep.subr.mxu0 0.0
      %838 = vmatpush1.msra.mxu0 0.0
      %839 = vmatprep.subr.mxu0 0.0
      %840 = vmatpush1.msra.mxu0 0.0
      %841 = vmatprep.subr.mxu0 0.0
      %842 = vmatpush1.msra.mxu0 0.0
      %843 = vmatprep.subr.mxu0 0.0
      %844 = vmatpush1.msra.mxu0 0.0
      %845 = vmatprep.subr.mxu0 0.0
      %846 = vmatpush1.msra.mxu0 0.0
      %847 = vmatprep.subr.mxu0 0.0
      %848 = vmatpush1.msra.mxu0 0.0
      %849 = vmatprep.subr.mxu0 0.0
      %850 = vmatpush1.msra.mxu0 0.0
      %851 = vmatprep.subr.mxu0 0.0
      %852 = vmatpush1.msra.mxu0 0.0
      %853 = vmatprep.subr.mxu0 0.0
      %854 = vmatpush1.msra.mxu0 0.0
      %855 = vmatprep.subr.mxu0 0.0
      %856 = vmatpush1.msra.mxu0 0.0
      %857 = vmatprep.mubr.f32.mxu0 0.0
      %858 = vmatmul.mubr.f32.gmra.mrb[0].mxu0 %v770
      %v859 = vpop.f32.mrb[0].mxu0
      %v860 = vadd.f32 0.0, %v859
      %v861 = vpop.f32.mrb[0].mxu0
      %862 = vmatprep.mubr.f32.mxu0 0.0
      %863 = vmatmul.mubr.f32.gmra.mrb[0].mxu0 %v773
      %v864 = vpop.f32.mrb[0].mxu0
      %v865 = vadd.f32 0.0, %v864
      %v866 = vpop.f32.mrb[0].mxu0
      %867 = vmatprep.mubr.f32.mxu0 0.0
      %868 = vmatmul.mubr.f32.gmra.mrb[0].mxu0 %v776
      %v869 = vpop.f32.mrb[0].mxu0
      %v870 = vadd.f32 0.0, %v869
      %v871 = vpop.f32.mrb[0].mxu0
      %872 = vmatprep.mubr.f32.mxu0 0.0
      %873 = vmatmul.mubr.f32.gmra.mrb[0].mxu0 %v779
      %v874 = vpop.f32.mrb[0].mxu0
      %v875 = vadd.f32 0.0, %v874
      %v876 = vpop.f32.mrb[0].mxu0
      %877 = vmatprep.mubr.f32.mxu0 0.0
      %878 = vmatmul.mubr.f32.gmra.mrb[0].mxu0 %v782
      %v879 = vpop.f32.mrb[0].mxu0
      %v880 = vadd.f32 0.0, %v879
      %v881 = vpop.f32.mrb[0].mxu0
      %882 = vmatprep.mubr.f32.mxu0 0.0
      %883 = vmatmul.mubr.f32.gmra.mrb[0].mxu0 %v785
      %v884 = vpop.f32.mrb[0].mxu0
      %v885 = vadd.f32 0.0, %v884
      %v886 = vpop.f32.mrb[0].mxu0
      %887 = vmatprep.mubr.f32.mxu0 0.0
      %888 = vmatmul.mubr.f32.gmra.mrb[0].mxu0 %v788
      %v889 = vpop.f32.mrb[0].mxu0
      %v890 = vadd.f32 0.0, %v889
      %v891 = vpop.f32.mrb[0].mxu0
      %892 = vmatprep.mubr.f32.mxu0 0.0
      %893 = vmatmul.mubr.f32.gmra.mrb[0].mxu0 %v791
      %v894 = vpop.f32.mrb[0].mxu0
      %v895 = vadd.f32 0.0, %v894
      %v896 = vpop.f32.mrb[0].mxu0
      %897 = vdwg.mxu0
      %v898 = vadd.f32 %v748, %v860
      %v899 = vadd.f32 %v749, %v865
      %v900 = vadd.f32 %v750, %v870
      %v901 = vadd.f32 %v751, %v875
      %v902 = vadd.f32 %v752, %v880
      %v903 = vadd.f32 %v753, %v885
      %v904 = vadd.f32 %v754, %v890
      %v905 = vadd.f32 %v755, %v895
      %v906 = vld [vmem:[%s605 + $0x2] sm:$0xff]
      %v907 = vld [vmem:[%s605 + $0x12] sm:$0xff]
      %v908 = vld [vmem:[%s605 + $0x22] sm:$0xff]
      %v909 = vld [vmem:[%s605 + $0x32] sm:$0xff]
      %v910 = vld [vmem:[%s605 + $0x42] sm:$0xff]
      %v911 = vld [vmem:[%s605 + $0x52] sm:$0xff]
      %v912 = vld [vmem:[%s605 + $0x62] sm:$0xff]
      %v913 = vld [vmem:[%s605 + $0x72] sm:$0xff]
      %s914 = scalar_lea.vmem %s1, 160
      %v915 = vld [vmem:[%s914] sm:$0xff]
      %v916 = vld [vmem:[%s914 + $0x8] sm:$0xff]
      %v917 = vld [vmem:[%s914 + $0x10] sm:$0xff]
      %v918 = vld [vmem:[%s914 + $0x18] sm:$0xff]
      %v920 = vsel %vm196, %v906, 0
      %v923 = vsel %vm196, %v907, 0
      %v926 = vsel %vm196, %v908, 0
      %v929 = vsel %vm196, %v909, 0
      %v932 = vsel %vm196, %v910, 0
      %v935 = vsel %vm196, %v911, 0
      %v938 = vsel %vm196, %v912, 0
      %v941 = vsel %vm196, %v913, 0
      %943 = vmatprep.subr.mxu0 0.0
      %944 = vmatpush1.msra.mxu0 %v915
      %945 = vmatprep.subr.mxu0 0.0
      %946 = vmatpush1.msra.mxu0 %v916
      %947 = vmatprep.subr.mxu0 0.0
      %948 = vmatpush1.msra.mxu0 %v917
      %949 = vmatprep.subr.mxu0 0.0
      %950 = vmatpush1.msra.mxu0 %v918
      %951 = vmatprep.subr.mxu0 0.0
      %952 = vmatpush1.msra.mxu0 0.0
      %953 = vmatprep.subr.mxu0 0.0
      %954 = vmatpush1.msra.mxu0 0.0
      %955 = vmatprep.subr.mxu0 0.0
      %956 = vmatpush1.msra.mxu0 0.0
      %957 = vmatprep.subr.mxu0 0.0
      %958 = vmatpush1.msra.mxu0 0.0
      %959 = vmatprep.subr.mxu0 0.0
      %960 = vmatpush1.msra.mxu0 0.0
      %961 = vmatprep.subr.mxu0 0.0
      %962 = vmatpush1.msra.mxu0 0.0
      %963 = vmatprep.subr.mxu0 0.0
      %964 = vmatpush1.msra.mxu0 0.0
      %965 = vmatprep.subr.mxu0 0.0
      %966 = vmatpush1.msra.mxu0 0.0
      %967 = vmatprep.subr.mxu0 0.0
      %968 = vmatpush1.msra.mxu0 0.0
      %969 = vmatprep.subr.mxu0 0.0
      %970 = vmatpush1.msra.mxu0 0.0
      %971 = vmatprep.subr.mxu0 0.0
      %972 = vmatpush1.msra.mxu0 0.0
      %973 = vmatprep.subr.mxu0 0.0
      %974 = vmatpush1.msra.mxu0 0.0
      %975 = vmatprep.subr.mxu0 0.0
      %976 = vmatpush1.msra.mxu0 0.0
      %977 = vmatprep.subr.mxu0 0.0
      %978 = vmatpush1.msra.mxu0 0.0
      %979 = vmatprep.subr.mxu0 0.0
      %980 = vmatpush1.msra.mxu0 0.0
      %981 = vmatprep.subr.mxu0 0.0
      %982 = vmatpush1.msra.mxu0 0.0
      %983 = vmatprep.subr.mxu0 0.0
      %984 = vmatpush1.msra.mxu0 0.0
      %985 = vmatprep.subr.mxu0 0.0
      %986 = vmatpush1.msra.mxu0 0.0
      %987 = vmatprep.subr.mxu0 0.0
      %988 = vmatpush1.msra.mxu0 0.0
      %989 = vmatprep.subr.mxu0 0.0
      %990 = vmatpush1.msra.mxu0 0.0
      %991 = vmatprep.subr.mxu0 0.0
      %992 = vmatpush1.msra.mxu0 0.0
      %993 = vmatprep.subr.mxu0 0.0
      %994 = vmatpush1.msra.mxu0 0.0
      %995 = vmatprep.subr.mxu0 0.0
      %996 = vmatpush1.msra.mxu0 0.0
      %997 = vmatprep.subr.mxu0 0.0
      %998 = vmatpush1.msra.mxu0 0.0
      %999 = vmatprep.subr.mxu0 0.0
      %1000 = vmatpush1.msra.mxu0 0.0
      %1001 = vmatprep.subr.mxu0 0.0
      %1002 = vmatpush1.msra.mxu0 0.0
      %1003 = vmatprep.subr.mxu0 0.0
      %1004 = vmatpush1.msra.mxu0 0.0
      %1005 = vmatprep.subr.mxu0 0.0
      %1006 = vmatpush1.msra.mxu0 0.0
      %1007 = vmatprep.mubr.f32.mxu0 0.0
      %1008 = vmatmul.mubr.f32.gmra.mrb[0].mxu0 %v920
      %v1009 = vpop.f32.mrb[0].mxu0
      %v1010 = vadd.f32 0.0, %v1009
      %v1011 = vpop.f32.mrb[0].mxu0
      %1012 = vmatprep.mubr.f32.mxu0 0.0
      %1013 = vmatmul.mubr.f32.gmra.mrb[0].mxu0 %v923
      %v1014 = vpop.f32.mrb[0].mxu0
      %v1015 = vadd.f32 0.0, %v1014
      %v1016 = vpop.f32.mrb[0].mxu0
      %1017 = vmatprep.mubr.f32.mxu0 0.0
      %1018 = vmatmul.mubr.f32.gmra.mrb[0].mxu0 %v926
      %v1019 = vpop.f32.mrb[0].mxu0
      %v1020 = vadd.f32 0.0, %v1019
      %v1021 = vpop.f32.mrb[0].mxu0
      %1022 = vmatprep.mubr.f32.mxu0 0.0
      %1023 = vmatmul.mubr.f32.gmra.mrb[0].mxu0 %v929
      %v1024 = vpop.f32.mrb[0].mxu0
      %v1025 = vadd.f32 0.0, %v1024
      %v1026 = vpop.f32.mrb[0].mxu0
      %1027 = vmatprep.mubr.f32.mxu0 0.0
      %1028 = vmatmul.mubr.f32.gmra.mrb[0].mxu0 %v932
      %v1029 = vpop.f32.mrb[0].mxu0
      %v1030 = vadd.f32 0.0, %v1029
      %v1031 = vpop.f32.mrb[0].mxu0
      %1032 = vmatprep.mubr.f32.mxu0 0.0
      %1033 = vmatmul.mubr.f32.gmra.mrb[0].mxu0 %v935
      %v1034 = vpop.f32.mrb[0].mxu0
      %v1035 = vadd.f32 0.0, %v1034
      %v1036 = vpop.f32.mrb[0].mxu0
      %1037 = vmatprep.mubr.f32.mxu0 0.0
      %1038 = vmatmul.mubr.f32.gmra.mrb[0].mxu0 %v938
      %v1039 = vpop.f32.mrb[0].mxu0
      %v1040 = vadd.f32 0.0, %v1039
      %v1041 = vpop.f32.mrb[0].mxu0
      %1042 = vmatprep.mubr.f32.mxu0 0.0
      %1043 = vmatmul.mubr.f32.gmra.mrb[0].mxu0 %v941
      %v1044 = vpop.f32.mrb[0].mxu0
      %v1045 = vadd.f32 0.0, %v1044
      %v1046 = vpop.f32.mrb[0].mxu0
      %1047 = vdwg.mxu0
      %v1048 = vadd.f32 %v898, %v1010
      %v1049 = vadd.f32 %v899, %v1015
      %v1050 = vadd.f32 %v900, %v1020
      %v1051 = vadd.f32 %v901, %v1025
      %v1052 = vadd.f32 %v902, %v1030
      %v1053 = vadd.f32 %v903, %v1035
      %v1054 = vadd.f32 %v904, %v1040
      %v1055 = vadd.f32 %v905, %v1045
      %s1056 = scalar_lea.vmem %s165, 32
      %v1057 = vld [vmem:[%s1056] sm:$0xff]
      %v1058 = vld [vmem:[%s1056 + $0x10] sm:$0xff]
      %v1059 = vld [vmem:[%s1056 + $0x20] sm:$0xff]
      %v1060 = vld [vmem:[%s1056 + $0x30] sm:$0xff]
      %v1061 = vld [vmem:[%s1056 + $0x40] sm:$0xff]
      %v1062 = vld [vmem:[%s1056 + $0x50] sm:$0xff]
      %v1063 = vld [vmem:[%s1056 + $0x60] sm:$0xff]
      %v1064 = vld [vmem:[%s1056 + $0x70] sm:$0xff]
      %s1065 = scalar_lea.vmem %s1, 192
      %v1066 = vld [vmem:[%s1065] sm:$0xff]
      %v1067 = vld [vmem:[%s1065 + $0x8] sm:$0xff]
      %v1068 = vld [vmem:[%s1065 + $0x10] sm:$0xff]
      %v1069 = vld [vmem:[%s1065 + $0x18] sm:$0xff]
      %v1071 = vsel %vm196, %v1057, 0
      %v1074 = vsel %vm196, %v1058, 0
      %v1077 = vsel %vm196, %v1059, 0
      %v1080 = vsel %vm196, %v1060, 0
      %v1083 = vsel %vm196, %v1061, 0
      %v1086 = vsel %vm196, %v1062, 0
      %v1089 = vsel %vm196, %v1063, 0
      %v1092 = vsel %vm196, %v1064, 0
      %1094 = vmatprep.subr.mxu0 0.0
      %1095 = vmatpush1.msra.mxu0 %v1066
      %1096 = vmatprep.subr.mxu0 0.0
      %1097 = vmatpush1.msra.mxu0 %v1067
      %1098 = vmatprep.subr.mxu0 0.0
      %1099 = vmatpush1.msra.mxu0 %v1068
      %1100 = vmatprep.subr.mxu0 0.0
      %1101 = vmatpush1.msra.mxu0 %v1069
      %1102 = vmatprep.subr.mxu0 0.0
      %1103 = vmatpush1.msra.mxu0 0.0
      %1104 = vmatprep.subr.mxu0 0.0
      %1105 = vmatpush1.msra.mxu0 0.0
      %1106 = vmatprep.subr.mxu0 0.0
      %1107 = vmatpush1.msra.mxu0 0.0
      %1108 = vmatprep.subr.mxu0 0.0
      %1109 = vmatpush1.msra.mxu0 0.0
      %1110 = vmatprep.subr.mxu0 0.0
      %1111 = vmatpush1.msra.mxu0 0.0
      %1112 = vmatprep.subr.mxu0 0.0
      %1113 = vmatpush1.msra.mxu0 0.0
      %1114 = vmatprep.subr.mxu0 0.0
      %1115 = vmatpush1.msra.mxu0 0.0
      %1116 = vmatprep.subr.mxu0 0.0
      %1117 = vmatpush1.msra.mxu0 0.0
      %1118 = vmatprep.subr.mxu0 0.0
      %1119 = vmatpush1.msra.mxu0 0.0
      %1120 = vmatprep.subr.mxu0 0.0
      %1121 = vmatpush1.msra.mxu0 0.0
      %1122 = vmatprep.subr.mxu0 0.0
      %1123 = vmatpush1.msra.mxu0 0.0
      %1124 = vmatprep.subr.mxu0 0.0
      %1125 = vmatpush1.msra.mxu0 0.0
      %1126 = vmatprep.subr.mxu0 0.0
      %1127 = vmatpush1.msra.mxu0 0.0
      %1128 = vmatprep.subr.mxu0 0.0
      %1129 = vmatpush1.msra.mxu0 0.0
      %1130 = vmatprep.subr.mxu0 0.0
      %1131 = vmatpush1.msra.mxu0 0.0
      %1132 = vmatprep.subr.mxu0 0.0
      %1133 = vmatpush1.msra.mxu0 0.0
      %1134 = vmatprep.subr.mxu0 0.0
      %1135 = vmatpush1.msra.mxu0 0.0
      %1136 = vmatprep.subr.mxu0 0.0
      %1137 = vmatpush1.msra.mxu0 0.0
      %1138 = vmatprep.subr.mxu0 0.0
      %1139 = vmatpush1.msra.mxu0 0.0
      %1140 = vmatprep.subr.mxu0 0.0
      %1141 = vmatpush1.msra.mxu0 0.0
      %1142 = vmatprep.subr.mxu0 0.0
      %1143 = vmatpush1.msra.mxu0 0.0
      %1144 = vmatprep.subr.mxu0 0.0
      %1145 = vmatpush1.msra.mxu0 0.0
      %1146 = vmatprep.subr.mxu0 0.0
      %1147 = vmatpush1.msra.mxu0 0.0
      %1148 = vmatprep.subr.mxu0 0.0
      %1149 = vmatpush1.msra.mxu0 0.0
      %1150 = vmatprep.subr.mxu0 0.0
      %1151 = vmatpush1.msra.mxu0 0.0
      %1152 = vmatprep.subr.mxu0 0.0
      %1153 = vmatpush1.msra.mxu0 0.0
      %1154 = vmatprep.subr.mxu0 0.0
      %1155 = vmatpush1.msra.mxu0 0.0
      %1156 = vmatprep.subr.mxu0 0.0
      %1157 = vmatpush1.msra.mxu0 0.0
      %1158 = vmatprep.mubr.f32.mxu0 0.0
      %1159 = vmatmul.mubr.f32.gmra.mrb[0].mxu0 %v1071
      %v1160 = vpop.f32.mrb[0].mxu0
      %v1161 = vadd.f32 0.0, %v1160
      %v1162 = vpop.f32.mrb[0].mxu0
      %1163 = vmatprep.mubr.f32.mxu0 0.0
      %1164 = vmatmul.mubr.f32.gmra.mrb[0].mxu0 %v1074
      %v1165 = vpop.f32.mrb[0].mxu0
      %v1166 = vadd.f32 0.0, %v1165
      %v1167 = vpop.f32.mrb[0].mxu0
      %1168 = vmatprep.mubr.f32.mxu0 0.0
      %1169 = vmatmul.mubr.f32.gmra.mrb[0].mxu0 %v1077
      %v1170 = vpop.f32.mrb[0].mxu0
      %v1171 = vadd.f32 0.0, %v1170
      %v1172 = vpop.f32.mrb[0].mxu0
      %1173 = vmatprep.mubr.f32.mxu0 0.0
      %1174 = vmatmul.mubr.f32.gmra.mrb[0].mxu0 %v1080
      %v1175 = vpop.f32.mrb[0].mxu0
      %v1176 = vadd.f32 0.0, %v1175
      %v1177 = vpop.f32.mrb[0].mxu0
      %1178 = vmatprep.mubr.f32.mxu0 0.0
      %1179 = vmatmul.mubr.f32.gmra.mrb[0].mxu0 %v1083
      %v1180 = vpop.f32.mrb[0].mxu0
      %v1181 = vadd.f32 0.0, %v1180
      %v1182 = vpop.f32.mrb[0].mxu0
      %1183 = vmatprep.mubr.f32.mxu0 0.0
      %1184 = vmatmul.mubr.f32.gmra.mrb[0].mxu0 %v1086
      %v1185 = vpop.f32.mrb[0].mxu0
      %v1186 = vadd.f32 0.0, %v1185
      %v1187 = vpop.f32.mrb[0].mxu0
      %1188 = vmatprep.mubr.f32.mxu0 0.0
      %1189 = vmatmul.mubr.f32.gmra.mrb[0].mxu0 %v1089
      %v1190 = vpop.f32.mrb[0].mxu0
      %v1191 = vadd.f32 0.0, %v1190
      %v1192 = vpop.f32.mrb[0].mxu0
      %1193 = vmatprep.mubr.f32.mxu0 0.0
      %1194 = vmatmul.mubr.f32.gmra.mrb[0].mxu0 %v1092
      %v1195 = vpop.f32.mrb[0].mxu0
      %v1196 = vadd.f32 0.0, %v1195
      %v1197 = vpop.f32.mrb[0].mxu0
      %1198 = vdwg.mxu0
      %v1199 = vadd.f32 %v1048, %v1161
      %v1200 = vadd.f32 %v1049, %v1166
      %v1201 = vadd.f32 %v1050, %v1171
      %v1202 = vadd.f32 %v1051, %v1176
      %v1203 = vadd.f32 %v1052, %v1181
      %v1204 = vadd.f32 %v1053, %v1186
      %v1205 = vadd.f32 %v1054, %v1191
      %v1206 = vadd.f32 %v1055, %v1196
      %v1207 = vld [vmem:[%s1056 + $0x1] sm:$0xff]
      %v1208 = vld [vmem:[%s1056 + $0x11] sm:$0xff]
      %v1209 = vld [vmem:[%s1056 + $0x21] sm:$0xff]
      %v1210 = vld [vmem:[%s1056 + $0x31] sm:$0xff]
      %v1211 = vld [vmem:[%s1056 + $0x41] sm:$0xff]
      %v1212 = vld [vmem:[%s1056 + $0x51] sm:$0xff]
      %v1213 = vld [vmem:[%s1056 + $0x61] sm:$0xff]
      %v1214 = vld [vmem:[%s1056 + $0x71] sm:$0xff]
      %s1215 = scalar_lea.vmem %s1, 224
      %v1216 = vld [vmem:[%s1215] sm:$0xff]
      %v1217 = vld [vmem:[%s1215 + $0x8] sm:$0xff]
      %v1218 = vld [vmem:[%s1215 + $0x10] sm:$0xff]
      %v1219 = vld [vmem:[%s1215 + $0x18] sm:$0xff]
      %v1221 = vsel %vm196, %v1207, 0
      %v1224 = vsel %vm196, %v1208, 0
      %v1227 = vsel %vm196, %v1209, 0
      %v1230 = vsel %vm196, %v1210, 0
      %v1233 = vsel %vm196, %v1211, 0
      %v1236 = vsel %vm196, %v1212, 0
      %v1239 = vsel %vm196, %v1213, 0
      %v1242 = vsel %vm196, %v1214, 0
      %1244 = vmatprep.subr.mxu0 0.0
      %1245 = vmatpush1.msra.mxu0 %v1216
      %1246 = vmatprep.subr.mxu0 0.0
      %1247 = vmatpush1.msra.mxu0 %v1217
      %1248 = vmatprep.subr.mxu0 0.0
      %1249 = vmatpush1.msra.mxu0 %v1218
      %1250 = vmatprep.subr.mxu0 0.0
      %1251 = vmatpush1.msra.mxu0 %v1219
      %1252 = vmatprep.subr.mxu0 0.0
      %1253 = vmatpush1.msra.mxu0 0.0
      %1254 = vmatprep.subr.mxu0 0.0
      %1255 = vmatpush1.msra.mxu0 0.0
      %1256 = vmatprep.subr.mxu0 0.0
      %1257 = vmatpush1.msra.mxu0 0.0
      %1258 = vmatprep.subr.mxu0 0.0
      %1259 = vmatpush1.msra.mxu0 0.0
      %1260 = vmatprep.subr.mxu0 0.0
      %1261 = vmatpush1.msra.mxu0 0.0
      %1262 = vmatprep.subr.mxu0 0.0
      %1263 = vmatpush1.msra.mxu0 0.0
      %1264 = vmatprep.subr.mxu0 0.0
      %1265 = vmatpush1.msra.mxu0 0.0
      %1266 = vmatprep.subr.mxu0 0.0
      %1267 = vmatpush1.msra.mxu0 0.0
      %1268 = vmatprep.subr.mxu0 0.0
      %1269 = vmatpush1.msra.mxu0 0.0
      %1270 = vmatprep.subr.mxu0 0.0
      %1271 = vmatpush1.msra.mxu0 0.0
      %1272 = vmatprep.subr.mxu0 0.0
      %1273 = vmatpush1.msra.mxu0 0.0
      %1274 = vmatprep.subr.mxu0 0.0
      %1275 = vmatpush1.msra.mxu0 0.0
      %1276 = vmatprep.subr.mxu0 0.0
      %1277 = vmatpush1.msra.mxu0 0.0
      %1278 = vmatprep.subr.mxu0 0.0
      %1279 = vmatpush1.msra.mxu0 0.0
      %1280 = vmatprep.subr.mxu0 0.0
      %1281 = vmatpush1.msra.mxu0 0.0
      %1282 = vmatprep.subr.mxu0 0.0
      %1283 = vmatpush1.msra.mxu0 0.0
      %1284 = vmatprep.subr.mxu0 0.0
      %1285 = vmatpush1.msra.mxu0 0.0
      %1286 = vmatprep.subr.mxu0 0.0
      %1287 = vmatpush1.msra.mxu0 0.0
      %1288 = vmatprep.subr.mxu0 0.0
      %1289 = vmatpush1.msra.mxu0 0.0
      %1290 = vmatprep.subr.mxu0 0.0
      %1291 = vmatpush1.msra.mxu0 0.0
      %1292 = vmatprep.subr.mxu0 0.0
      %1293 = vmatpush1.msra.mxu0 0.0
      %1294 = vmatprep.subr.mxu0 0.0
      %1295 = vmatpush1.msra.mxu0 0.0
      %1296 = vmatprep.subr.mxu0 0.0
      %1297 = vmatpush1.msra.mxu0 0.0
      %1298 = vmatprep.subr.mxu0 0.0
      %1299 = vmatpush1.msra.mxu0 0.0
      %1300 = vmatprep.subr.mxu0 0.0
      %1301 = vmatpush1.msra.mxu0 0.0
      %1302 = vmatprep.subr.mxu0 0.0
      %1303 = vmatpush1.msra.mxu0 0.0
      %1304 = vmatprep.subr.mxu0 0.0
      %1305 = vmatpush1.msra.mxu0 0.0
      %1306 = vmatprep.subr.mxu0 0.0
      %1307 = vmatpush1.msra.mxu0 0.0
      %1308 = vmatprep.mubr.f32.mxu0 0.0
      %1309 = vmatmul.mubr.f32.gmra.mrb[0].mxu0 %v1221
      %v1310 = vpop.f32.mrb[0].mxu0
      %v1311 = vadd.f32 0.0, %v1310
      %v1312 = vpop.f32.mrb[0].mxu0
      %1313 = vmatprep.mubr.f32.mxu0 0.0
      %1314 = vmatmul.mubr.f32.gmra.mrb[0].mxu0 %v1224
      %v1315 = vpop.f32.mrb[0].mxu0
      %v1316 = vadd.f32 0.0, %v1315
      %v1317 = vpop.f32.mrb[0].mxu0
      %1318 = vmatprep.mubr.f32.mxu0 0.0
      %1319 = vmatmul.mubr.f32.gmra.mrb[0].mxu0 %v1227
      %v1320 = vpop.f32.mrb[0].mxu0
      %v1321 = vadd.f32 0.0, %v1320
      %v1322 = vpop.f32.mrb[0].mxu0
      %1323 = vmatprep.mubr.f32.mxu0 0.0
      %1324 = vmatmul.mubr.f32.gmra.mrb[0].mxu0 %v1230
      %v1325 = vpop.f32.mrb[0].mxu0
      %v1326 = vadd.f32 0.0, %v1325
      %v1327 = vpop.f32.mrb[0].mxu0
      %1328 = vmatprep.mubr.f32.mxu0 0.0
      %1329 = vmatmul.mubr.f32.gmra.mrb[0].mxu0 %v1233
      %v1330 = vpop.f32.mrb[0].mxu0
      %v1331 = vadd.f32 0.0, %v1330
      %v1332 = vpop.f32.mrb[0].mxu0
      %1333 = vmatprep.mubr.f32.mxu0 0.0
      %1334 = vmatmul.mubr.f32.gmra.mrb[0].mxu0 %v1236
      %v1335 = vpop.f32.mrb[0].mxu0
      %v1336 = vadd.f32 0.0, %v1335
      %v1337 = vpop.f32.mrb[0].mxu0
      %1338 = vmatprep.mubr.f32.mxu0 0.0
      %1339 = vmatmul.mubr.f32.gmra.mrb[0].mxu0 %v1239
      %v1340 = vpop.f32.mrb[0].mxu0
      %v1341 = vadd.f32 0.0, %v1340
      %v1342 = vpop.f32.mrb[0].mxu0
      %1343 = vmatprep.mubr.f32.mxu0 0.0
      %1344 = vmatmul.mubr.f32.gmra.mrb[0].mxu0 %v1242
      %v1345 = vpop.f32.mrb[0].mxu0
      %v1346 = vadd.f32 0.0, %v1345
      %v1347 = vpop.f32.mrb[0].mxu0
      %1348 = vdwg.mxu0
      %v1349 = vadd.f32 %v1199, %v1311
      %v1350 = vadd.f32 %v1200, %v1316
      %v1351 = vadd.f32 %v1201, %v1321
      %v1352 = vadd.f32 %v1202, %v1326
      %v1353 = vadd.f32 %v1203, %v1331
      %v1354 = vadd.f32 %v1204, %v1336
      %v1355 = vadd.f32 %v1205, %v1341
      %v1356 = vadd.f32 %v1206, %v1346
      %v1357 = vld [vmem:[%s1056 + $0x2] sm:$0xff]
      %v1358 = vld [vmem:[%s1056 + $0x12] sm:$0xff]
      %v1359 = vld [vmem:[%s1056 + $0x22] sm:$0xff]
      %v1360 = vld [vmem:[%s1056 + $0x32] sm:$0xff]
      %v1361 = vld [vmem:[%s1056 + $0x42] sm:$0xff]
      %v1362 = vld [vmem:[%s1056 + $0x52] sm:$0xff]
      %v1363 = vld [vmem:[%s1056 + $0x62] sm:$0xff]
      %v1364 = vld [vmem:[%s1056 + $0x72] sm:$0xff]
      %s1365 = scalar_lea.vmem %s1, 256
      %v1366 = vld [vmem:[%s1365] sm:$0xff]
      %v1367 = vld [vmem:[%s1365 + $0x8] sm:$0xff]
      %v1368 = vld [vmem:[%s1365 + $0x10] sm:$0xff]
      %v1369 = vld [vmem:[%s1365 + $0x18] sm:$0xff]
      %v1371 = vsel %vm196, %v1357, 0
      %v1374 = vsel %vm196, %v1358, 0
      %v1377 = vsel %vm196, %v1359, 0
      %v1380 = vsel %vm196, %v1360, 0
      %v1383 = vsel %vm196, %v1361, 0
      %v1386 = vsel %vm196, %v1362, 0
      %v1389 = vsel %vm196, %v1363, 0
      %v1392 = vsel %vm196, %v1364, 0
      %1394 = vmatprep.subr.mxu0 0.0
      %1395 = vmatpush1.msra.mxu0 %v1366
      %1396 = vmatprep.subr.mxu0 0.0
      %1397 = vmatpush1.msra.mxu0 %v1367
      %1398 = vmatprep.subr.mxu0 0.0
      %1399 = vmatpush1.msra.mxu0 %v1368
      %1400 = vmatprep.subr.mxu0 0.0
      %1401 = vmatpush1.msra.mxu0 %v1369
      %1402 = vmatprep.subr.mxu0 0.0
      %1403 = vmatpush1.msra.mxu0 0.0
      %1404 = vmatprep.subr.mxu0 0.0
      %1405 = vmatpush1.msra.mxu0 0.0
      %1406 = vmatprep.subr.mxu0 0.0
      %1407 = vmatpush1.msra.mxu0 0.0
      %1408 = vmatprep.subr.mxu0 0.0
      %1409 = vmatpush1.msra.mxu0 0.0
      %1410 = vmatprep.subr.mxu0 0.0
      %1411 = vmatpush1.msra.mxu0 0.0
      %1412 = vmatprep.subr.mxu0 0.0
      %1413 = vmatpush1.msra.mxu0 0.0
      %1414 = vmatprep.subr.mxu0 0.0
      %1415 = vmatpush1.msra.mxu0 0.0
      %1416 = vmatprep.subr.mxu0 0.0
      %1417 = vmatpush1.msra.mxu0 0.0
      %1418 = vmatprep.subr.mxu0 0.0
      %1419 = vmatpush1.msra.mxu0 0.0
      %1420 = vmatprep.subr.mxu0 0.0
      %1421 = vmatpush1.msra.mxu0 0.0
      %1422 = vmatprep.subr.mxu0 0.0
      %1423 = vmatpush1.msra.mxu0 0.0
      %1424 = vmatprep.subr.mxu0 0.0
      %1425 = vmatpush1.msra.mxu0 0.0
      %1426 = vmatprep.subr.mxu0 0.0
      %1427 = vmatpush1.msra.mxu0 0.0
      %1428 = vmatprep.subr.mxu0 0.0
      %1429 = vmatpush1.msra.mxu0 0.0
      %1430 = vmatprep.subr.mxu0 0.0
      %1431 = vmatpush1.msra.mxu0 0.0
      %1432 = vmatprep.subr.mxu0 0.0
      %1433 = vmatpush1.msra.mxu0 0.0
      %1434 = vmatprep.subr.mxu0 0.0
      %1435 = vmatpush1.msra.mxu0 0.0
      %1436 = vmatprep.subr.mxu0 0.0
      %1437 = vmatpush1.msra.mxu0 0.0
      %1438 = vmatprep.subr.mxu0 0.0
      %1439 = vmatpush1.msra.mxu0 0.0
      %1440 = vmatprep.subr.mxu0 0.0
      %1441 = vmatpush1.msra.mxu0 0.0
      %1442 = vmatprep.subr.mxu0 0.0
      %1443 = vmatpush1.msra.mxu0 0.0
      %1444 = vmatprep.subr.mxu0 0.0
      %1445 = vmatpush1.msra.mxu0 0.0
      %1446 = vmatprep.subr.mxu0 0.0
      %1447 = vmatpush1.msra.mxu0 0.0
      %1448 = vmatprep.subr.mxu0 0.0
      %1449 = vmatpush1.msra.mxu0 0.0
      %1450 = vmatprep.subr.mxu0 0.0
      %1451 = vmatpush1.msra.mxu0 0.0
      %1452 = vmatprep.subr.mxu0 0.0
      %1453 = vmatpush1.msra.mxu0 0.0
      %1454 = vmatprep.subr.mxu0 0.0
      %1455 = vmatpush1.msra.mxu0 0.0
      %1456 = vmatprep.subr.mxu0 0.0
      %1457 = vmatpush1.msra.mxu0 0.0
      %1458 = vmatprep.mubr.f32.mxu0 0.0
      %1459 = vmatmul.mubr.f32.gmra.mrb[0].mxu0 %v1371
      %v1460 = vpop.f32.mrb[0].mxu0
      %v1461 = vadd.f32 0.0, %v1460
      %v1462 = vpop.f32.mrb[0].mxu0
      %1463 = vmatprep.mubr.f32.mxu0 0.0
      %1464 = vmatmul.mubr.f32.gmra.mrb[0].mxu0 %v1374
      %v1465 = vpop.f32.mrb[0].mxu0
      %v1466 = vadd.f32 0.0, %v1465
      %v1467 = vpop.f32.mrb[0].mxu0
      %1468 = vmatprep.mubr.f32.mxu0 0.0
      %1469 = vmatmul.mubr.f32.gmra.mrb[0].mxu0 %v1377
      %v1470 = vpop.f32.mrb[0].mxu0
      %v1471 = vadd.f32 0.0, %v1470
      %v1472 = vpop.f32.mrb[0].mxu0
      %1473 = vmatprep.mubr.f32.mxu0 0.0
      %1474 = vmatmul.mubr.f32.gmra.mrb[0].mxu0 %v1380
      %v1475 = vpop.f32.mrb[0].mxu0
      %v1476 = vadd.f32 0.0, %v1475
      %v1477 = vpop.f32.mrb[0].mxu0
      %1478 = vmatprep.mubr.f32.mxu0 0.0
      %1479 = vmatmul.mubr.f32.gmra.mrb[0].mxu0 %v1383
      %v1480 = vpop.f32.mrb[0].mxu0
      %v1481 = vadd.f32 0.0, %v1480
      %v1482 = vpop.f32.mrb[0].mxu0
      %1483 = vmatprep.mubr.f32.mxu0 0.0
      %1484 = vmatmul.mubr.f32.gmra.mrb[0].mxu0 %v1386
      %v1485 = vpop.f32.mrb[0].mxu0
      %v1486 = vadd.f32 0.0, %v1485
      %v1487 = vpop.f32.mrb[0].mxu0
      %1488 = vmatprep.mubr.f32.mxu0 0.0
      %1489 = vmatmul.mubr.f32.gmra.mrb[0].mxu0 %v1389
      %v1490 = vpop.f32.mrb[0].mxu0
      %v1491 = vadd.f32 0.0, %v1490
      %v1492 = vpop.f32.mrb[0].mxu0
      %1493 = vmatprep.mubr.f32.mxu0 0.0
      %1494 = vmatmul.mubr.f32.gmra.mrb[0].mxu0 %v1392
      %v1495 = vpop.f32.mrb[0].mxu0
      %v1496 = vadd.f32 0.0, %v1495
      %v1497 = vpop.f32.mrb[0].mxu0
      %1498 = vdwg.mxu0
      %v1499 = vadd.f32 %v1349, %v1461
      %v1500 = vadd.f32 %v1350, %v1466
      %v1501 = vadd.f32 %v1351, %v1471
      %v1502 = vadd.f32 %v1352, %v1476
      %v1503 = vadd.f32 %v1353, %v1481
      %v1504 = vadd.f32 %v1354, %v1486
      %v1505 = vadd.f32 %v1355, %v1491
      %v1506 = vadd.f32 %v1356, %v1496
      %v1507 = vld [vmem:[%s2] sm:$0x1]
      %v1509 = vlaneseq
      %v1510 = vshrl.u32 %v1509, 7
      %v1511 = vsub.s32 0, %v1510
      %v1512 = vrot.slane %v1507, %v1511
      %v1514 = vadd.f32 %v1499, %v1512
      %v1515 = vadd.f32 %v1500, %v1512
      %v1516 = vadd.f32 %v1501, %v1512
      %v1517 = vadd.f32 %v1502, %v1512
      %v1518 = vadd.f32 %v1503, %v1512
      %v1519 = vadd.f32 %v1504, %v1512
      %v1520 = vadd.f32 %v1505, %v1512
      %v1521 = vadd.f32 %v1506, %v1512
      %1522 = vst.msk [vmem:[%s170] sm:$0xff] %vm196, %v1514
      %1523 = vst.msk [vmem:[%s170 + $0x8] sm:$0xff] %vm196, %v1515
      %1524 = vst.msk [vmem:[%s170 + $0x10] sm:$0xff] %vm196, %v1516
      %1525 = vst.msk [vmem:[%s170 + $0x18] sm:$0xff] %vm196, %v1517
      %1526 = vst.msk [vmem:[%s170 + $0x20] sm:$0xff] %vm196, %v1518
      %1527 = vst.msk [vmem:[%s170 + $0x28] sm:$0xff] %vm196, %v1519
      %1528 = vst.msk [vmem:[%s170 + $0x30] sm:$0xff] %vm196, %v1520
      %1529 = vst.msk [vmem:[%s170 + $0x38] sm:$0xff] %vm196, %v1521
      %p1530 = scmp.lt.s32.totalorder %s14, 1
      %s1531 = scalar_select %p1530, %s14, 1
      %s1532 = smul.addr %s1531, 8
      %s1533 = smul.addr %s1532, 8
      %s1534 = scalar_lea.vmem %s3, %s1533
      // Predicated region
      $region33: #{speech_recognition_forward.16} parent=31 // pred_check
        %p1535 = pneg %p100
      $region34: #{speech_recognition_forward.16} parent=31 // pred_check_branch
        %1537 = sbr.rel (%p1535) target = $region36
      $region35: #{speech_recognition_forward.16} parent=31 // pred_region
        _
      $region36: #{speech_recognition_forward.16} parent=31 // pred_fallthru
        _
    $region32: #{speech_recognition_forward.16} parent=5 // pred_fallthru
      _
    %p1538 = scmp.le.s32.totalorder 2, %s9
    // Predicated region
    $region37: #{speech_recognition_forward.16} parent=5 // pred_check
      %p1539 = pneg %p1538
    $region38: #{speech_recognition_forward.16} parent=5 // pred_check_branch
      %1541 = sbr.rel (%p1539) target = $region40
    $region39: #{speech_recognition_forward.16} parent=5 // pred_region
      %s1542 = ssub.s32 %s9, 2
      // Predicated region
      $region41: #{speech_recognition_forward.16} parent=39 // pred_check
        %p1543 = pneg %p106
      $region42: #{speech_recognition_forward.16} parent=39 // pred_check_branch
        %1545 = sbr.rel (%p1543) target = $region44
      $region43: #{speech_recognition_forward.16} parent=39 // pred_region
        %p1546 = scmp.lt.s32.totalorder %s15, 1
        %s1547 = scalar_select %p1546, %s15, 1
        %s1548 = smul.addr %s1547, 8
        %s1549 = smul.addr %s1548, 8
        %s1550 = scalar_lea.vmem %s3, %s1549
      $region44: #{speech_recognition_forward.16} parent=39 // pred_fallthru
        _
    $region40: #{speech_recognition_forward.16} parent=5 // pred_fallthru
      _
  $region6: #{speech_recognition_forward.16} parent=0 // loop_footer
    %s13 = sadd.s32 1, %s9
  $region7: #{speech_recognition_forward.16} parent=0 // loop_footer_branch
    %8 = sbr.rel target = $region3
  $region8: #{speech_recognition_forward.16} parent=0 // loop_exit
    _

// kernel: speech_recognition_forward.18
$region0: #{speech_recognition_forward.18}
  #allocation0 [shape = 'u32[]', space=smem, size = 0x4, offset = 0x4, fixed_abs, tag = 'smem constant byte address 0x4 - core index']
  #allocation1 [shape = 'u32[144,128]{1,0:T(1,128)}', space=vmem, size = 0x12000, scoped, tag = 'internal scratch']
  %s0 = inlined_call_operand.vmem [shape: f32[2,10,10,32], index: 0, kind: input, shape index: {}]
  %s1 = inlined_call_operand.vmem [shape: f32[9,32,32], index: 1, kind: input, shape index: {}]
  %s2 = inlined_call_operand.vmem [shape: f32[1,32], index: 2, kind: input, shape index: {}]
  %s3 = inlined_call_operand.vmem [shape: f32[2,8,8,32], index: 3, kind: input, shape index: {}]
  %s4 = inlined_call_operand.vmem [shape: f32[2,8,8,32], index: 4, kind: output, shape index: {}]
  %s5 = sld [smem:[#allocation0]]
  $region49: #{speech_recognition_forward.18} parent=0
    _
  %s7 = ssub.s32 1, %s5
  %s8 = scalar_select 0, %s7, %s5
  loop: start=0, step=1, limit=4
  $region2: #{speech_recognition_forward.18} parent=0 // loop_pre_header
    _
  $region3: #{speech_recognition_forward.18} parent=0 // loop_header
    %s10 = sphi 0, %s14
    %p11 = scmp.ge.s32.totalorder %s10, 4
    %s20 = sphi 0, %s22
    %s23 = sphi 0, %s20
    %s24 = sphi 0, %s23
    %s40 = sphi 0, %s24
    %s44 = sphi 0, %s44
    %s46 = sphi 0, %s44
    %s47 = sphi 0, %s46
    %s61 = sphi 0, %s47
    %s65 = sphi 0, %s65
    %s67 = sphi 0, %s65
    %s68 = sphi 0, %s67
    %s82 = sphi 0, %s68
    %s88 = sphi 0, %s90
    %s91 = sphi 0, %s88
    %s92 = sphi 0, %s91
    %s108 = sphi 0, %s92
    %s114 = sphi 0, %s116
    %s117 = sphi 0, %s114
    %s118 = sphi 0, %s117
    %s134 = sphi 0, %s118
  $region4: #{speech_recognition_forward.18} parent=0 // loop_header_branch
    %13 = sbr.rel (%p11) target = $region8
  $region5: #{speech_recognition_forward.18} parent=0 // loop_body
    %s15 = ssub.s32 %s10, 1
    %s16 = ssub.s32 %s10, 2
    %s17 = sadd.s32 %s10, 1
    %s18 = ssub.s32 %s10, %s17
    %p19 = scmp.eq.s32.totalorder %s18, 0
    %s21 = sadd.s32 %s20, 1
    %s22 = scalar_select %p19, %s20, %s21
    %p25 = pneg %p19
    %p26 = scmp.eq.s32.totalorder %s10, 1
    %p27 = por %p25, %p26
    %p28 = scmp.ne.s32.totalorder %s20, %s23
    %p29 = scmp.eq.s32.totalorder %s10, 0
    %p30 = por %p28, %p29
    %p31 = scmp.ne.s32.totalorder %s20, %s23
    %p32 = scmp.eq.s32.totalorder %s15, 1
    %p33 = por %p31, %p32
    %p34 = scmp.ne.s32.totalorder %s23, %s24
    %p35 = scmp.eq.s32.totalorder %s15, 0
    %p36 = por %p34, %p35
    %p37 = scmp.ne.s32.totalorder %s23, %s24
    %p38 = scmp.eq.s32.totalorder %s16, 1
    %p39 = por %p37, %p38
    %p41 = scmp.ne.s32.totalorder %s24, %s40
    %p42 = scmp.eq.s32.totalorder %s16, 0
    %p43 = por %p41, %p42
    %s45 = sadd.s32 %s44, 1
    %p48 = scmp.eq.s32.totalorder %s10, 1
    %p49 = scmp.ne.s32.totalorder %s44, %s46
    %p50 = scmp.eq.s32.totalorder %s10, 0
    %p51 = por %p49, %p50
    %p52 = scmp.ne.s32.totalorder %s44, %s46
    %p53 = scmp.eq.s32.totalorder %s15, 1
    %p54 = por %p52, %p53
    %p55 = scmp.ne.s32.totalorder %s46, %s47
    %p56 = scmp.eq.s32.totalorder %s15, 0
    %p57 = por %p55, %p56
    %p58 = scmp.ne.s32.totalorder %s46, %s47
    %p59 = scmp.eq.s32.totalorder %s16, 1
    %p60 = por %p58, %p59
    %p62 = scmp.ne.s32.totalorder %s47, %s61
    %p63 = scmp.eq.s32.totalorder %s16, 0
    %p64 = por %p62, %p63
    %s66 = sadd.s32 %s65, 1
    %p69 = scmp.eq.s32.totalorder %s10, 1
    %p70 = scmp.ne.s32.totalorder %s65, %s67
    %p71 = scmp.eq.s32.totalorder %s10, 0
    %p72 = por %p70, %p71
    %p73 = scmp.ne.s32.totalorder %s65, %s67
    %p74 = scmp.eq.s32.totalorder %s15, 1
    %p75 = por %p73, %p74
    %p76 = scmp.ne.s32.totalorder %s67, %s68
    %p77 = scmp.eq.s32.totalorder %s15, 0
    %p78 = por %p76, %p77
    %p79 = scmp.ne.s32.totalorder %s67, %s68
    %p80 = scmp.eq.s32.totalorder %s16, 1
    %p81 = por %p79, %p80
    %p83 = scmp.ne.s32.totalorder %s68, %s82
    %p84 = scmp.eq.s32.totalorder %s16, 0
    %p85 = por %p83, %p84
    %s86 = ssub.s32 %s10, %s17
    %p87 = scmp.eq.s32.totalorder %s86, 0
    %s89 = sadd.s32 %s88, 1
    %s90 = scalar_select %p87, %s88, %s89
    %p93 = pneg %p87
    %p94 = scmp.eq.s32.totalorder %s10, 1
    %p95 = por %p93, %p94
    %p96 = scmp.ne.s32.totalorder %s88, %s91
    %p97 = scmp.eq.s32.totalorder %s10, 0
    %p98 = por %p96, %p97
    %p99 = scmp.ne.s32.totalorder %s88, %s91
    %p100 = scmp.eq.s32.totalorder %s15, 1
    %p101 = por %p99, %p100
    %p102 = scmp.ne.s32.totalorder %s91, %s92
    %p103 = scmp.eq.s32.totalorder %s15, 0
    %p104 = por %p102, %p103
    %p105 = scmp.ne.s32.totalorder %s91, %s92
    %p106 = scmp.eq.s32.totalorder %s16, 1
    %p107 = por %p105, %p106
    %p109 = scmp.ne.s32.totalorder %s92, %s108
    %p110 = scmp.eq.s32.totalorder %s16, 0
    %p111 = por %p109, %p110
    %s112 = ssub.s32 %s10, %s17
    %p113 = scmp.eq.s32.totalorder %s112, 0
    %s115 = sadd.s32 %s114, 1
    %s116 = scalar_select %p113, %s114, %s115
    %p119 = pneg %p113
    %p120 = scmp.eq.s32.totalorder %s10, 1
    %p121 = por %p119, %p120
    %p122 = scmp.ne.s32.totalorder %s114, %s117
    %p123 = scmp.eq.s32.totalorder %s10, 0
    %p124 = por %p122, %p123
    %p125 = scmp.ne.s32.totalorder %s114, %s117
    %p126 = scmp.eq.s32.totalorder %s15, 1
    %p127 = por %p125, %p126
    %p128 = scmp.ne.s32.totalorder %s117, %s118
    %p129 = scmp.eq.s32.totalorder %s15, 0
    %p130 = por %p128, %p129
    %p131 = scmp.ne.s32.totalorder %s117, %s118
    %p132 = scmp.eq.s32.totalorder %s16, 1
    %p133 = por %p131, %p132
    %p135 = scmp.ne.s32.totalorder %s118, %s134
    %p136 = scmp.eq.s32.totalorder %s16, 0
    %p137 = por %p135, %p136
    %p138 = scmp.le.s32.totalorder 1, %s10
    %p139 = scmp.lt.s32.totalorder %s10, 3
    %p140 = pnand %p138, %p139
    %p141 = pneg %p140
    // Predicated region
    $region9: #{speech_recognition_forward.18} parent=5 // pred_check
      _
    $region10: #{speech_recognition_forward.18} parent=5 // pred_check_branch
      %143 = sbr.rel (%p140) target = $region12
    $region11: #{speech_recognition_forward.18} parent=5 // pred_region
      %s144 = ssub.s32 %s10, 1
      // Predicated region
      $region13: #{speech_recognition_forward.18} parent=11 // pred_check
        %p145 = pneg %p57
      $region14: #{speech_recognition_forward.18} parent=11 // pred_check_branch
        %147 = sbr.rel (%p145) target = $region16
      $region15: #{speech_recognition_forward.18} parent=11 // pred_region
        _
      $region16: #{speech_recognition_forward.18} parent=11 // pred_fallthru
        _
      // Predicated region
      $region17: #{speech_recognition_forward.18} parent=11 // pred_check
        %p148 = pneg %p78
      $region18: #{speech_recognition_forward.18} parent=11 // pred_check_branch
        %150 = sbr.rel (%p148) target = $region20
      $region19: #{speech_recognition_forward.18} parent=11 // pred_region
        _
      $region20: #{speech_recognition_forward.18} parent=11 // pred_fallthru
        _
    $region12: #{speech_recognition_forward.18} parent=5 // pred_fallthru
      _
    %p151 = scmp.lt.s32.totalorder %s10, 2
    // Predicated region
    $region21: #{speech_recognition_forward.18} parent=5 // pred_check
      %p152 = pneg %p151
    $region22: #{speech_recognition_forward.18} parent=5 // pred_check_branch
      %154 = sbr.rel (%p152) target = $region24
    $region23: #{speech_recognition_forward.18} parent=5 // pred_region
      // Predicated region
      $region25: #{speech_recognition_forward.18} parent=23 // pred_check
        %p155 = pneg %p30
      $region26: #{speech_recognition_forward.18} parent=23 // pred_check_branch
        %157 = sbr.rel (%p155) target = $region28
      $region27: #{speech_recognition_forward.18} parent=23 // pred_region
        %p158 = scmp.lt.s32.totalorder %s10, 1
        %s159 = scalar_select %p158, %s10, 1
        %s160 = smul.addr %s159, 20
        %s161 = smul.addr %s160, 8
        %s162 = scalar_lea.vmem %s0, %s161
      $region28: #{speech_recognition_forward.18} parent=23 // pred_fallthru
        _
      // Predicated region
      $region29: #{speech_recognition_forward.18} parent=23 // pred_check
        %p163 = pneg %p98
      $region30: #{speech_recognition_forward.18} parent=23 // pred_check_branch
        %165 = sbr.rel (%p163) target = $region32
      $region31: #{speech_recognition_forward.18} parent=23 // pred_region
        %p166 = scmp.lt.s32.totalorder %s10, 1
        %s167 = scalar_select %p166, %s10, 1
        %s168 = smul.addr %s167, 8
        %s169 = smul.addr %s168, 8
        %s170 = scalar_lea.vmem %s3, %s169
      $region32: #{speech_recognition_forward.18} parent=23 // pred_fallthru
        _
    $region24: #{speech_recognition_forward.18} parent=5 // pred_fallthru
      _
    %p171 = scmp.le.s32.totalorder 1, %s10
    %p172 = scmp.lt.s32.totalorder %s10, 3
    %p173 = pnand %p171, %p172
    %p174 = pneg %p173
    // Predicated region
    $region33: #{speech_recognition_forward.18} parent=5 // pred_check
      _
    $region34: #{speech_recognition_forward.18} parent=5 // pred_check_branch
      %176 = sbr.rel (%p173) target = $region36
    $region35: #{speech_recognition_forward.18} parent=5 // pred_region
      %s177 = ssub.s32 %s10, 1
      %p178 = scmp.lt.s32.totalorder %s15, 1
      %s179 = scalar_select %p178, %s15, 1
      %s180 = smul.addr %s179, 20
      %s181 = smul.addr %s180, 8
      %s182 = scalar_lea.vmem %s0, %s181
      %p183 = pneg %p36
      %p184 = pneg %p33
      %p185 = pneg %p57
      %p186 = pneg %p54
      %p187 = pneg %p78
      %p188 = pneg %p75
      %p189 = scmp.lt.s32.totalorder %s15, 1
      %s190 = scalar_select %p189, %s15, 1
      %s191 = smul.addr %s190, 8
      %s192 = smul.addr %s191, 8
      %s193 = scalar_lea.vmem %s3, %s192
      %p194 = pneg %p104
      %p195 = pneg %p101
      %p196 = pneg %p130
      %p197 = pneg %p127
      %p198 = scmp.lt.s32.totalorder %s15, 1
      %s199 = scalar_select %p198, %s15, 1
      %s200 = smul.addr %s199, 8
      %s201 = smul.addr %s200, 8
      %s202 = scalar_lea.vmem %s4, %s201
      %p203 = scmp.lt.s32.totalorder %s15, 1
      %s204 = scalar_select %p203, %s15, 1
      %s205 = smul.addr %s204, 20
      %s206 = smul.addr %s205, 8
      %s207 = scalar_lea.vmem %s0, %s206
      %p208 = scmp.lt.s32.totalorder %s15, 1
      %s209 = scalar_select %p208, %s15, 1
      %s210 = smul.addr %s209, 8
      %s211 = smul.addr %s210, 8
      %s212 = scalar_lea.vmem %s3, %s211
      %p213 = scmp.lt.s32.totalorder %s15, 1
      %s214 = scalar_select %p213, %s15, 1
      %s215 = smul.addr %s214, 8
      %s216 = smul.addr %s215, 8
      %s217 = scalar_lea.vmem %s4, %s216
      %v218 = vld [vmem:[%s207] sm:$0xff]
      %v219 = vld [vmem:[%s207 + $0x10] sm:$0xff]
      %v220 = vld [vmem:[%s207 + $0x20] sm:$0xff]
      %v221 = vld [vmem:[%s207 + $0x30] sm:$0xff]
      %v222 = vld [vmem:[%s207 + $0x40] sm:$0xff]
      %v223 = vld [vmem:[%s207 + $0x50] sm:$0xff]
      %v224 = vld [vmem:[%s207 + $0x60] sm:$0xff]
      %v225 = vld [vmem:[%s207 + $0x70] sm:$0xff]
      %v226 = vld [vmem:[%s1] sm:$0xff]
      %v227 = vld [vmem:[%s1 + $0x8] sm:$0xff]
      %v228 = vld [vmem:[%s1 + $0x10] sm:$0xff]
      %v229 = vld [vmem:[%s1 + $0x18] sm:$0xff]
      %v230 = vld [vmem:[%s207 + $0x1] sm:$0xff]
      %v231 = vld [vmem:[%s207 + $0x11] sm:$0xff]
      %v232 = vld [vmem:[%s207 + $0x21] sm:$0xff]
      %v233 = vld [vmem:[%s207 + $0x31] sm:$0xff]
      %v234 = vld [vmem:[%s207 + $0x41] sm:$0xff]
      %v235 = vld [vmem:[%s207 + $0x51] sm:$0xff]
      %v236 = vld [vmem:[%s207 + $0x61] sm:$0xff]
      %v237 = vld [vmem:[%s207 + $0x71] sm:$0xff]
      %s238 = scalar_lea.vmem %s1, 32
      %v239 = vld [vmem:[%s238] sm:$0xff]
      %v240 = vld [vmem:[%s238 + $0x8] sm:$0xff]
      %v241 = vld [vmem:[%s238 + $0x10] sm:$0xff]
      %v242 = vld [vmem:[%s238 + $0x18] sm:$0xff]
      %vm243 = vcmask 261120
      %v245 = vsel %vm243, %v230, 0
      %v248 = vsel %vm243, %v231, 0
      %v251 = vsel %vm243, %v232, 0
      %v254 = vsel %vm243, %v233, 0
      %v257 = vsel %vm243, %v234, 0
      %v260 = vsel %vm243, %v235, 0
      %v263 = vsel %vm243, %v236, 0
      %v266 = vsel %vm243, %v237, 0
      %268 = vmatprep.subr.mxu0 0.0
      %269 = vmatpush1.msra.mxu0 %v239
      %270 = vmatprep.subr.mxu0 0.0
      %271 = vmatpush1.msra.mxu0 %v240
      %272 = vmatprep.subr.mxu0 0.0
      %273 = vmatpush1.msra.mxu0 %v241
      %274 = vmatprep.subr.mxu0 0.0
      %275 = vmatpush1.msra.mxu0 %v242
      %276 = vmatprep.subr.mxu0 0.0
      %277 = vmatpush1.msra.mxu0 0.0
      %278 = vmatprep.subr.mxu0 0.0
      %279 = vmatpush1.msra.mxu0 0.0
      %280 = vmatprep.subr.mxu0 0.0
      %281 = vmatpush1.msra.mxu0 0.0
      %282 = vmatprep.subr.mxu0 0.0
      %283 = vmatpush1.msra.mxu0 0.0
      %284 = vmatprep.subr.mxu0 0.0
      %285 = vmatpush1.msra.mxu0 0.0
      %286 = vmatprep.subr.mxu0 0.0
      %287 = vmatpush1.msra.mxu0 0.0
      %288 = vmatprep.subr.mxu0 0.0
      %289 = vmatpush1.msra.mxu0 0.0
      %290 = vmatprep.subr.mxu0 0.0
      %291 = vmatpush1.msra.mxu0 0.0
      %292 = vmatprep.subr.mxu0 0.0
      %293 = vmatpush1.msra.mxu0 0.0
      %294 = vmatprep.subr.mxu0 0.0
      %295 = vmatpush1.msra.mxu0 0.0
      %296 = vmatprep.subr.mxu0 0.0
      %297 = vmatpush1.msra.mxu0 0.0
      %298 = vmatprep.subr.mxu0 0.0
      %299 = vmatpush1.msra.mxu0 0.0
      %300 = vmatprep.subr.mxu0 0.0
      %301 = vmatpush1.msra.mxu0 0.0
      %302 = vmatprep.subr.mxu0 0.0
      %303 = vmatpush1.msra.mxu0 0.0
      %304 = vmatprep.subr.mxu0 0.0
      %305 = vmatpush1.msra.mxu0 0.0
      %306 = vmatprep.subr.mxu0 0.0
      %307 = vmatpush1.msra.mxu0 0.0
      %308 = vmatprep.subr.mxu0 0.0
      %309 = vmatpush1.msra.mxu0 0.0
      %310 = vmatprep.subr.mxu0 0.0
      %311 = vmatpush1.msra.mxu0 0.0
      %312 = vmatprep.subr.mxu0 0.0
      %313 = vmatpush1.msra.mxu0 0.0
      %314 = vmatprep.subr.mxu0 0.0
      %315 = vmatpush1.msra.mxu0 0.0
      %316 = vmatprep.subr.mxu0 0.0
      %317 = vmatpush1.msra.mxu0 0.0
      %318 = vmatprep.subr.mxu0 0.0
      %319 = vmatpush1.msra.mxu0 0.0
      %320 = vmatprep.subr.mxu0 0.0
      %321 = vmatpush1.msra.mxu0 0.0
      %322 = vmatprep.subr.mxu0 0.0
      %323 = vmatpush1.msra.mxu0 0.0
      %324 = vmatprep.subr.mxu0 0.0
      %325 = vmatpush1.msra.mxu0 0.0
      %326 = vmatprep.subr.mxu0 0.0
      %327 = vmatpush1.msra.mxu0 0.0
      %328 = vmatprep.subr.mxu0 0.0
      %329 = vmatpush1.msra.mxu0 0.0
      %330 = vmatprep.subr.mxu0 0.0
      %331 = vmatpush1.msra.mxu0 0.0
      %332 = vmatprep.mubr.f32.mxu0 0.0
      %333 = vmatmul.mubr.f32.gmra.mrb[0].mxu0 %v245
      %v334 = vpop.f32.mrb[0].mxu0
      %v335 = vadd.f32 0.0, %v334
      %v336 = vpop.f32.mrb[0].mxu0
      %337 = vmatprep.mubr.f32.mxu0 0.0
      %338 = vmatmul.mubr.f32.gmra.mrb[0].mxu0 %v248
      %v339 = vpop.f32.mrb[0].mxu0
      %v340 = vadd.f32 0.0, %v339
      %v341 = vpop.f32.mrb[0].mxu0
      %342 = vmatprep.mubr.f32.mxu0 0.0
      %343 = vmatmul.mubr.f32.gmra.mrb[0].mxu0 %v251
      %v344 = vpop.f32.mrb[0].mxu0
      %v345 = vadd.f32 0.0, %v344
      %v346 = vpop.f32.mrb[0].mxu0
      %347 = vmatprep.mubr.f32.mxu0 0.0
      %348 = vmatmul.mubr.f32.gmra.mrb[0].mxu0 %v254
      %v349 = vpop.f32.mrb[0].mxu0
      %v350 = vadd.f32 0.0, %v349
      %v351 = vpop.f32.mrb[0].mxu0
      %352 = vmatprep.mubr.f32.mxu0 0.0
      %353 = vmatmul.mubr.f32.gmra.mrb[0].mxu0 %v257
      %v354 = vpop.f32.mrb[0].mxu0
      %v355 = vadd.f32 0.0, %v354
      %v356 = vpop.f32.mrb[0].mxu0
      %357 = vmatprep.mubr.f32.mxu0 0.0
      %358 = vmatmul.mubr.f32.gmra.mrb[0].mxu0 %v260
      %v359 = vpop.f32.mrb[0].mxu0
      %v360 = vadd.f32 0.0, %v359
      %v361 = vpop.f32.mrb[0].mxu0
      %362 = vmatprep.mubr.f32.mxu0 0.0
      %363 = vmatmul.mubr.f32.gmra.mrb[0].mxu0 %v263
      %v364 = vpop.f32.mrb[0].mxu0
      %v365 = vadd.f32 0.0, %v364
      %v366 = vpop.f32.mrb[0].mxu0
      %367 = vmatprep.mubr.f32.mxu0 0.0
      %368 = vmatmul.mubr.f32.gmra.mrb[0].mxu0 %v266
      %v369 = vpop.f32.mrb[0].mxu0
      %v370 = vadd.f32 0.0, %v369
      %v371 = vpop.f32.mrb[0].mxu0
      %372 = vdwg.mxu0
      %v374 = vsel %vm243, %v218, 0
      %v377 = vsel %vm243, %v219, 0
      %v380 = vsel %vm243, %v220, 0
      %v383 = vsel %vm243, %v221, 0
      %v386 = vsel %vm243, %v222, 0
      %v389 = vsel %vm243, %v223, 0
      %v392 = vsel %vm243, %v224, 0
      %v395 = vsel %vm243, %v225, 0
      %397 = vmatprep.subr.mxu0 0.0
      %398 = vmatpush1.msra.mxu0 %v226
      %399 = vmatprep.subr.mxu0 0.0
      %400 = vmatpush1.msra.mxu0 %v227
      %401 = vmatprep.subr.mxu0 0.0
      %402 = vmatpush1.msra.mxu0 %v228
      %403 = vmatprep.subr.mxu0 0.0
      %404 = vmatpush1.msra.mxu0 %v229
      %405 = vmatprep.subr.mxu0 0.0
      %406 = vmatpush1.msra.mxu0 0.0
      %407 = vmatprep.subr.mxu0 0.0
      %408 = vmatpush1.msra.mxu0 0.0
      %409 = vmatprep.subr.mxu0 0.0
      %410 = vmatpush1.msra.mxu0 0.0
      %411 = vmatprep.subr.mxu0 0.0
      %412 = vmatpush1.msra.mxu0 0.0
      %413 = vmatprep.subr.mxu0 0.0
      %414 = vmatpush1.msra.mxu0 0.0
      %415 = vmatprep.subr.mxu0 0.0
      %416 = vmatpush1.msra.mxu0 0.0
      %417 = vmatprep.subr.mxu0 0.0
      %418 = vmatpush1.msra.mxu0 0.0
      %419 = vmatprep.subr.mxu0 0.0
      %420 = vmatpush1.msra.mxu0 0.0
      %421 = vmatprep.subr.mxu0 0.0
      %422 = vmatpush1.msra.mxu0 0.0
      %423 = vmatprep.subr.mxu0 0.0
      %424 = vmatpush1.msra.mxu0 0.0
      %425 = vmatprep.subr.mxu0 0.0
      %426 = vmatpush1.msra.mxu0 0.0
      %427 = vmatprep.subr.mxu0 0.0
      %428 = vmatpush1.msra.mxu0 0.0
      %429 = vmatprep.subr.mxu0 0.0
      %430 = vmatpush1.msra.mxu0 0.0
      %431 = vmatprep.subr.mxu0 0.0
      %432 = vmatpush1.msra.mxu0 0.0
      %433 = vmatprep.subr.mxu0 0.0
      %434 = vmatpush1.msra.mxu0 0.0
      %435 = vmatprep.subr.mxu0 0.0
      %436 = vmatpush1.msra.mxu0 0.0
      %437 = vmatprep.subr.mxu0 0.0
      %438 = vmatpush1.msra.mxu0 0.0
      %439 = vmatprep.subr.mxu0 0.0
      %440 = vmatpush1.msra.mxu0 0.0
      %441 = vmatprep.subr.mxu0 0.0
      %442 = vmatpush1.msra.mxu0 0.0
      %443 = vmatprep.subr.mxu0 0.0
      %444 = vmatpush1.msra.mxu0 0.0
      %445 = vmatprep.subr.mxu0 0.0
      %446 = vmatpush1.msra.mxu0 0.0
      %447 = vmatprep.subr.mxu0 0.0
      %448 = vmatpush1.msra.mxu0 0.0
      %449 = vmatprep.subr.mxu0 0.0
      %450 = vmatpush1.msra.mxu0 0.0
      %451 = vmatprep.subr.mxu0 0.0
      %452 = vmatpush1.msra.mxu0 0.0
      %453 = vmatprep.subr.mxu0 0.0
      %454 = vmatpush1.msra.mxu0 0.0
      %455 = vmatprep.subr.mxu0 0.0
      %456 = vmatpush1.msra.mxu0 0.0
      %457 = vmatprep.subr.mxu0 0.0
      %458 = vmatpush1.msra.mxu0 0.0
      %459 = vmatprep.subr.mxu0 0.0
      %460 = vmatpush1.msra.mxu0 0.0
      %461 = vmatprep.mubr.f32.mxu0 0.0
      %462 = vmatmul.mubr.f32.gmra.mrb[0].mxu0 %v374
      %v463 = vpop.f32.mrb[0].mxu0
      %v464 = vadd.f32 %v335, %v463
      %v465 = vpop.f32.mrb[0].mxu0
      %466 = vmatprep.mubr.f32.mxu0 0.0
      %467 = vmatmul.mubr.f32.gmra.mrb[0].mxu0 %v377
      %v468 = vpop.f32.mrb[0].mxu0
      %v469 = vadd.f32 %v340, %v468
      %v470 = vpop.f32.mrb[0].mxu0
      %471 = vmatprep.mubr.f32.mxu0 0.0
      %472 = vmatmul.mubr.f32.gmra.mrb[0].mxu0 %v380
      %v473 = vpop.f32.mrb[0].mxu0
      %v474 = vadd.f32 %v345, %v473
      %v475 = vpop.f32.mrb[0].mxu0
      %476 = vmatprep.mubr.f32.mxu0 0.0
      %477 = vmatmul.mubr.f32.gmra.mrb[0].mxu0 %v383
      %v478 = vpop.f32.mrb[0].mxu0
      %v479 = vadd.f32 %v350, %v478
      %v480 = vpop.f32.mrb[0].mxu0
      %481 = vmatprep.mubr.f32.mxu0 0.0
      %482 = vmatmul.mubr.f32.gmra.mrb[0].mxu0 %v386
      %v483 = vpop.f32.mrb[0].mxu0
      %v484 = vadd.f32 %v355, %v483
      %v485 = vpop.f32.mrb[0].mxu0
      %486 = vmatprep.mubr.f32.mxu0 0.0
      %487 = vmatmul.mubr.f32.gmra.mrb[0].mxu0 %v389
      %v488 = vpop.f32.mrb[0].mxu0
      %v489 = vadd.f32 %v360, %v488
      %v490 = vpop.f32.mrb[0].mxu0
      %491 = vmatprep.mubr.f32.mxu0 0.0
      %492 = vmatmul.mubr.f32.gmra.mrb[0].mxu0 %v392
      %v493 = vpop.f32.mrb[0].mxu0
      %v494 = vadd.f32 %v365, %v493
      %v495 = vpop.f32.mrb[0].mxu0
      %496 = vmatprep.mubr.f32.mxu0 0.0
      %497 = vmatmul.mubr.f32.gmra.mrb[0].mxu0 %v395
      %v498 = vpop.f32.mrb[0].mxu0
      %v499 = vadd.f32 %v370, %v498
      %v500 = vpop.f32.mrb[0].mxu0
      %501 = vdwg.mxu0
      %v502 = vld [vmem:[%s207 + $0x2] sm:$0xff]
      %v503 = vld [vmem:[%s207 + $0x12] sm:$0xff]
      %v504 = vld [vmem:[%s207 + $0x22] sm:$0xff]
      %v505 = vld [vmem:[%s207 + $0x32] sm:$0xff]
      %v506 = vld [vmem:[%s207 + $0x42] sm:$0xff]
      %v507 = vld [vmem:[%s207 + $0x52] sm:$0xff]
      %v508 = vld [vmem:[%s207 + $0x62] sm:$0xff]
      %v509 = vld [vmem:[%s207 + $0x72] sm:$0xff]
      %s510 = scalar_lea.vmem %s1, 64
      %v511 = vld [vmem:[%s510] sm:$0xff]
      %v512 = vld [vmem:[%s510 + $0x8] sm:$0xff]
      %v513 = vld [vmem:[%s510 + $0x10] sm:$0xff]
      %v514 = vld [vmem:[%s510 + $0x18] sm:$0xff]
      %v516 = vsel %vm243, %v502, 0
      %v519 = vsel %vm243, %v503, 0
      %v522 = vsel %vm243, %v504, 0
      %v525 = vsel %vm243, %v505, 0
      %v528 = vsel %vm243, %v506, 0
      %v531 = vsel %vm243, %v507, 0
      %v534 = vsel %vm243, %v508, 0
      %v537 = vsel %vm243, %v509, 0
      %539 = vmatprep.subr.mxu0 0.0
      %540 = vmatpush1.msra.mxu0 %v511
      %541 = vmatprep.subr.mxu0 0.0
      %542 = vmatpush1.msra.mxu0 %v512
      %543 = vmatprep.subr.mxu0 0.0
      %544 = vmatpush1.msra.mxu0 %v513
      %545 = vmatprep.subr.mxu0 0.0
      %546 = vmatpush1.msra.mxu0 %v514
      %547 = vmatprep.subr.mxu0 0.0
      %548 = vmatpush1.msra.mxu0 0.0
      %549 = vmatprep.subr.mxu0 0.0
      %550 = vmatpush1.msra.mxu0 0.0
      %551 = vmatprep.subr.mxu0 0.0
      %552 = vmatpush1.msra.mxu0 0.0
      %553 = vmatprep.subr.mxu0 0.0
      %554 = vmatpush1.msra.mxu0 0.0
      %555 = vmatprep.subr.mxu0 0.0
      %556 = vmatpush1.msra.mxu0 0.0
      %557 = vmatprep.subr.mxu0 0.0
      %558 = vmatpush1.msra.mxu0 0.0
      %559 = vmatprep.subr.mxu0 0.0
      %560 = vmatpush1.msra.mxu0 0.0
      %561 = vmatprep.subr.mxu0 0.0
      %562 = vmatpush1.msra.mxu0 0.0
      %563 = vmatprep.subr.mxu0 0.0
      %564 = vmatpush1.msra.mxu0 0.0
      %565 = vmatprep.subr.mxu0 0.0
      %566 = vmatpush1.msra.mxu0 0.0
      %567 = vmatprep.subr.mxu0 0.0
      %568 = vmatpush1.msra.mxu0 0.0
      %569 = vmatprep.subr.mxu0 0.0
      %570 = vmatpush1.msra.mxu0 0.0
      %571 = vmatprep.subr.mxu0 0.0
      %572 = vmatpush1.msra.mxu0 0.0
      %573 = vmatprep.subr.mxu0 0.0
      %574 = vmatpush1.msra.mxu0 0.0
      %575 = vmatprep.subr.mxu0 0.0
      %576 = vmatpush1.msra.mxu0 0.0
      %577 = vmatprep.subr.mxu0 0.0
      %578 = vmatpush1.msra.mxu0 0.0
      %579 = vmatprep.subr.mxu0 0.0
      %580 = vmatpush1.msra.mxu0 0.0
      %581 = vmatprep.subr.mxu0 0.0
      %582 = vmatpush1.msra.mxu0 0.0
      %583 = vmatprep.subr.mxu0 0.0
      %584 = vmatpush1.msra.mxu0 0.0
      %585 = vmatprep.subr.mxu0 0.0
      %586 = vmatpush1.msra.mxu0 0.0
      %587 = vmatprep.subr.mxu0 0.0
      %588 = vmatpush1.msra.mxu0 0.0
      %589 = vmatprep.subr.mxu0 0.0
      %590 = vmatpush1.msra.mxu0 0.0
      %591 = vmatprep.subr.mxu0 0.0
      %592 = vmatpush1.msra.mxu0 0.0
      %593 = vmatprep.subr.mxu0 0.0
      %594 = vmatpush1.msra.mxu0 0.0
      %595 = vmatprep.subr.mxu0 0.0
      %596 = vmatpush1.msra.mxu0 0.0
      %597 = vmatprep.subr.mxu0 0.0
      %598 = vmatpush1.msra.mxu0 0.0
      %599 = vmatprep.subr.mxu0 0.0
      %600 = vmatpush1.msra.mxu0 0.0
      %601 = vmatprep.subr.mxu0 0.0
      %602 = vmatpush1.msra.mxu0 0.0
      %603 = vmatprep.mubr.f32.mxu0 0.0
      %604 = vmatmul.mubr.f32.gmra.mrb[0].mxu0 %v516
      %v605 = vpop.f32.mrb[0].mxu0
      %v606 = vadd.f32 0.0, %v605
      %v607 = vpop.f32.mrb[0].mxu0
      %608 = vmatprep.mubr.f32.mxu0 0.0
      %609 = vmatmul.mubr.f32.gmra.mrb[0].mxu0 %v519
      %v610 = vpop.f32.mrb[0].mxu0
      %v611 = vadd.f32 0.0, %v610
      %v612 = vpop.f32.mrb[0].mxu0
      %613 = vmatprep.mubr.f32.mxu0 0.0
      %614 = vmatmul.mubr.f32.gmra.mrb[0].mxu0 %v522
      %v615 = vpop.f32.mrb[0].mxu0
      %v616 = vadd.f32 0.0, %v615
      %v617 = vpop.f32.mrb[0].mxu0
      %618 = vmatprep.mubr.f32.mxu0 0.0
      %619 = vmatmul.mubr.f32.gmra.mrb[0].mxu0 %v525
      %v620 = vpop.f32.mrb[0].mxu0
      %v621 = vadd.f32 0.0, %v620
      %v622 = vpop.f32.mrb[0].mxu0
      %623 = vmatprep.mubr.f32.mxu0 0.0
      %624 = vmatmul.mubr.f32.gmra.mrb[0].mxu0 %v528
      %v625 = vpop.f32.mrb[0].mxu0
      %v626 = vadd.f32 0.0, %v625
      %v627 = vpop.f32.mrb[0].mxu0
      %628 = vmatprep.mubr.f32.mxu0 0.0
      %629 = vmatmul.mubr.f32.gmra.mrb[0].mxu0 %v531
      %v630 = vpop.f32.mrb[0].mxu0
      %v631 = vadd.f32 0.0, %v630
      %v632 = vpop.f32.mrb[0].mxu0
      %633 = vmatprep.mubr.f32.mxu0 0.0
      %634 = vmatmul.mubr.f32.gmra.mrb[0].mxu0 %v534
      %v635 = vpop.f32.mrb[0].mxu0
      %v636 = vadd.f32 0.0, %v635
      %v637 = vpop.f32.mrb[0].mxu0
      %638 = vmatprep.mubr.f32.mxu0 0.0
      %639 = vmatmul.mubr.f32.gmra.mrb[0].mxu0 %v537
      %v640 = vpop.f32.mrb[0].mxu0
      %v641 = vadd.f32 0.0, %v640
      %v642 = vpop.f32.mrb[0].mxu0
      %643 = vdwg.mxu0
      %v644 = vadd.f32 %v464, %v606
      %v645 = vadd.f32 %v469, %v611
      %v646 = vadd.f32 %v474, %v616
      %v647 = vadd.f32 %v479, %v621
      %v648 = vadd.f32 %v484, %v626
      %v649 = vadd.f32 %v489, %v631
      %v650 = vadd.f32 %v494, %v636
      %v651 = vadd.f32 %v499, %v641
      %s652 = scalar_lea.vmem %s207, 16
      %v653 = vld [vmem:[%s652] sm:$0xff]
      %v654 = vld [vmem:[%s652 + $0x10] sm:$0xff]
      %v655 = vld [vmem:[%s652 + $0x20] sm:$0xff]
      %v656 = vld [vmem:[%s652 + $0x30] sm:$0xff]
      %v657 = vld [vmem:[%s652 + $0x40] sm:$0xff]
      %v658 = vld [vmem:[%s652 + $0x50] sm:$0xff]
      %v659 = vld [vmem:[%s652 + $0x60] sm:$0xff]
      %v660 = vld [vmem:[%s652 + $0x70] sm:$0xff]
      %s661 = scalar_lea.vmem %s1, 96
      %v662 = vld [vmem:[%s661] sm:$0xff]
      %v663 = vld [vmem:[%s661 + $0x8] sm:$0xff]
      %v664 = vld [vmem:[%s661 + $0x10] sm:$0xff]
      %v665 = vld [vmem:[%s661 + $0x18] sm:$0xff]
      %v667 = vsel %vm243, %v653, 0
      %v670 = vsel %vm243, %v654, 0
      %v673 = vsel %vm243, %v655, 0
      %v676 = vsel %vm243, %v656, 0
      %v679 = vsel %vm243, %v657, 0
      %v682 = vsel %vm243, %v658, 0
      %v685 = vsel %vm243, %v659, 0
      %v688 = vsel %vm243, %v660, 0
      %690 = vmatprep.subr.mxu0 0.0
      %691 = vmatpush1.msra.mxu0 %v662
      %692 = vmatprep.subr.mxu0 0.0
      %693 = vmatpush1.msra.mxu0 %v663
      %694 = vmatprep.subr.mxu0 0.0
      %695 = vmatpush1.msra.mxu0 %v664
      %696 = vmatprep.subr.mxu0 0.0
      %697 = vmatpush1.msra.mxu0 %v665
      %698 = vmatprep.subr.mxu0 0.0
      %699 = vmatpush1.msra.mxu0 0.0
      %700 = vmatprep.subr.mxu0 0.0
      %701 = vmatpush1.msra.mxu0 0.0
      %702 = vmatprep.subr.mxu0 0.0
      %703 = vmatpush1.msra.mxu0 0.0
      %704 = vmatprep.subr.mxu0 0.0
      %705 = vmatpush1.msra.mxu0 0.0
      %706 = vmatprep.subr.mxu0 0.0
      %707 = vmatpush1.msra.mxu0 0.0
      %708 = vmatprep.subr.mxu0 0.0
      %709 = vmatpush1.msra.mxu0 0.0
      %710 = vmatprep.subr.mxu0 0.0
      %711 = vmatpush1.msra.mxu0 0.0
      %712 = vmatprep.subr.mxu0 0.0
      %713 = vmatpush1.msra.mxu0 0.0
      %714 = vmatprep.subr.mxu0 0.0
      %715 = vmatpush1.msra.mxu0 0.0
      %716 = vmatprep.subr.mxu0 0.0
      %717 = vmatpush1.msra.mxu0 0.0
      %718 = vmatprep.subr.mxu0 0.0
      %719 = vmatpush1.msra.mxu0 0.0
      %720 = vmatprep.subr.mxu0 0.0
      %721 = vmatpush1.msra.mxu0 0.0
      %722 = vmatprep.subr.mxu0 0.0
      %723 = vmatpush1.msra.mxu0 0.0
      %724 = vmatprep.subr.mxu0 0.0
      %725 = vmatpush1.msra.mxu0 0.0
      %726 = vmatprep.subr.mxu0 0.0
      %727 = vmatpush1.msra.mxu0 0.0
      %728 = vmatprep.subr.mxu0 0.0
      %729 = vmatpush1.msra.mxu0 0.0
      %730 = vmatprep.subr.mxu0 0.0
      %731 = vmatpush1.msra.mxu0 0.0
      %732 = vmatprep.subr.mxu0 0.0
      %733 = vmatpush1.msra.mxu0 0.0
      %734 = vmatprep.subr.mxu0 0.0
      %735 = vmatpush1.msra.mxu0 0.0
      %736 = vmatprep.subr.mxu0 0.0
      %737 = vmatpush1.msra.mxu0 0.0
      %738 = vmatprep.subr.mxu0 0.0
      %739 = vmatpush1.msra.mxu0 0.0
      %740 = vmatprep.subr.mxu0 0.0
      %741 = vmatpush1.msra.mxu0 0.0
      %742 = vmatprep.subr.mxu0 0.0
      %743 = vmatpush1.msra.mxu0 0.0
      %744 = vmatprep.subr.mxu0 0.0
      %745 = vmatpush1.msra.mxu0 0.0
      %746 = vmatprep.subr.mxu0 0.0
      %747 = vmatpush1.msra.mxu0 0.0
      %748 = vmatprep.subr.mxu0 0.0
      %749 = vmatpush1.msra.mxu0 0.0
      %750 = vmatprep.subr.mxu0 0.0
      %751 = vmatpush1.msra.mxu0 0.0
      %752 = vmatprep.subr.mxu0 0.0
      %753 = vmatpush1.msra.mxu0 0.0
      %754 = vmatprep.mubr.f32.mxu0 0.0
      %755 = vmatmul.mubr.f32.gmra.mrb[0].mxu0 %v667
      %v756 = vpop.f32.mrb[0].mxu0
      %v757 = vadd.f32 0.0, %v756
      %v758 = vpop.f32.mrb[0].mxu0
      %759 = vmatprep.mubr.f32.mxu0 0.0
      %760 = vmatmul.mubr.f32.gmra.mrb[0].mxu0 %v670
      %v761 = vpop.f32.mrb[0].mxu0
      %v762 = vadd.f32 0.0, %v761
      %v763 = vpop.f32.mrb[0].mxu0
      %764 = vmatprep.mubr.f32.mxu0 0.0
      %765 = vmatmul.mubr.f32.gmra.mrb[0].mxu0 %v673
      %v766 = vpop.f32.mrb[0].mxu0
      %v767 = vadd.f32 0.0, %v766
      %v768 = vpop.f32.mrb[0].mxu0
      %769 = vmatprep.mubr.f32.mxu0 0.0
      %770 = vmatmul.mubr.f32.gmra.mrb[0].mxu0 %v676
      %v771 = vpop.f32.mrb[0].mxu0
      %v772 = vadd.f32 0.0, %v771
      %v773 = vpop.f32.mrb[0].mxu0
      %774 = vmatprep.mubr.f32.mxu0 0.0
      %775 = vmatmul.mubr.f32.gmra.mrb[0].mxu0 %v679
      %v776 = vpop.f32.mrb[0].mxu0
      %v777 = vadd.f32 0.0, %v776
      %v778 = vpop.f32.mrb[0].mxu0
      %779 = vmatprep.mubr.f32.mxu0 0.0
      %780 = vmatmul.mubr.f32.gmra.mrb[0].mxu0 %v682
      %v781 = vpop.f32.mrb[0].mxu0
      %v782 = vadd.f32 0.0, %v781
      %v783 = vpop.f32.mrb[0].mxu0
      %784 = vmatprep.mubr.f32.mxu0 0.0
      %785 = vmatmul.mubr.f32.gmra.mrb[0].mxu0 %v685
      %v786 = vpop.f32.mrb[0].mxu0
      %v787 = vadd.f32 0.0, %v786
      %v788 = vpop.f32.mrb[0].mxu0
      %789 = vmatprep.mubr.f32.mxu0 0.0
      %790 = vmatmul.mubr.f32.gmra.mrb[0].mxu0 %v688
      %v791 = vpop.f32.mrb[0].mxu0
      %v792 = vadd.f32 0.0, %v791
      %v793 = vpop.f32.mrb[0].mxu0
      %794 = vdwg.mxu0
      %v795 = vadd.f32 %v644, %v757
      %v796 = vadd.f32 %v645, %v762
      %v797 = vadd.f32 %v646, %v767
      %v798 = vadd.f32 %v647, %v772
      %v799 = vadd.f32 %v648, %v777
      %v800 = vadd.f32 %v649, %v782
      %v801 = vadd.f32 %v650, %v787
      %v802 = vadd.f32 %v651, %v792
      %v803 = vld [vmem:[%s652 + $0x1] sm:$0xff]
      %v804 = vld [vmem:[%s652 + $0x11] sm:$0xff]
      %v805 = vld [vmem:[%s652 + $0x21] sm:$0xff]
      %v806 = vld [vmem:[%s652 + $0x31] sm:$0xff]
      %v807 = vld [vmem:[%s652 + $0x41] sm:$0xff]
      %v808 = vld [vmem:[%s652 + $0x51] sm:$0xff]
      %v809 = vld [vmem:[%s652 + $0x61] sm:$0xff]
      %v810 = vld [vmem:[%s652 + $0x71] sm:$0xff]
      %s811 = scalar_lea.vmem %s1, 128
      %v812 = vld [vmem:[%s811] sm:$0xff]
      %v813 = vld [vmem:[%s811 + $0x8] sm:$0xff]
      %v814 = vld [vmem:[%s811 + $0x10] sm:$0xff]
      %v815 = vld [vmem:[%s811 + $0x18] sm:$0xff]
      %v817 = vsel %vm243, %v803, 0
      %v820 = vsel %vm243, %v804, 0
      %v823 = vsel %vm243, %v805, 0
      %v826 = vsel %vm243, %v806, 0
      %v829 = vsel %vm243, %v807, 0
      %v832 = vsel %vm243, %v808, 0
      %v835 = vsel %vm243, %v809, 0
      %v838 = vsel %vm243, %v810, 0
      %840 = vmatprep.subr.mxu0 0.0
      %841 = vmatpush1.msra.mxu0 %v812
      %842 = vmatprep.subr.mxu0 0.0
      %843 = vmatpush1.msra.mxu0 %v813
      %844 = vmatprep.subr.mxu0 0.0
      %845 = vmatpush1.msra.mxu0 %v814
      %846 = vmatprep.subr.mxu0 0.0
      %847 = vmatpush1.msra.mxu0 %v815
      %848 = vmatprep.subr.mxu0 0.0
      %849 = vmatpush1.msra.mxu0 0.0
      %850 = vmatprep.subr.mxu0 0.0
      %851 = vmatpush1.msra.mxu0 0.0
      %852 = vmatprep.subr.mxu0 0.0
      %853 = vmatpush1.msra.mxu0 0.0
      %854 = vmatprep.subr.mxu0 0.0
      %855 = vmatpush1.msra.mxu0 0.0
      %856 = vmatprep.subr.mxu0 0.0
      %857 = vmatpush1.msra.mxu0 0.0
      %858 = vmatprep.subr.mxu0 0.0
      %859 = vmatpush1.msra.mxu0 0.0
      %860 = vmatprep.subr.mxu0 0.0
      %861 = vmatpush1.msra.mxu0 0.0
      %862 = vmatprep.subr.mxu0 0.0
      %863 = vmatpush1.msra.mxu0 0.0
      %864 = vmatprep.subr.mxu0 0.0
      %865 = vmatpush1.msra.mxu0 0.0
      %866 = vmatprep.subr.mxu0 0.0
      %867 = vmatpush1.msra.mxu0 0.0
      %868 = vmatprep.subr.mxu0 0.0
      %869 = vmatpush1.msra.mxu0 0.0
      %870 = vmatprep.subr.mxu0 0.0
      %871 = vmatpush1.msra.mxu0 0.0
      %872 = vmatprep.subr.mxu0 0.0
      %873 = vmatpush1.msra.mxu0 0.0
      %874 = vmatprep.subr.mxu0 0.0
      %875 = vmatpush1.msra.mxu0 0.0
      %876 = vmatprep.subr.mxu0 0.0
      %877 = vmatpush1.msra.mxu0 0.0
      %878 = vmatprep.subr.mxu0 0.0
      %879 = vmatpush1.msra.mxu0 0.0
      %880 = vmatprep.subr.mxu0 0.0
      %881 = vmatpush1.msra.mxu0 0.0
      %882 = vmatprep.subr.mxu0 0.0
      %883 = vmatpush1.msra.mxu0 0.0
      %884 = vmatprep.subr.mxu0 0.0
      %885 = vmatpush1.msra.mxu0 0.0
      %886 = vmatprep.subr.mxu0 0.0
      %887 = vmatpush1.msra.mxu0 0.0
      %888 = vmatprep.subr.mxu0 0.0
      %889 = vmatpush1.msra.mxu0 0.0
      %890 = vmatprep.subr.mxu0 0.0
      %891 = vmatpush1.msra.mxu0 0.0
      %892 = vmatprep.subr.mxu0 0.0
      %893 = vmatpush1.msra.mxu0 0.0
      %894 = vmatprep.subr.mxu0 0.0
      %895 = vmatpush1.msra.mxu0 0.0
      %896 = vmatprep.subr.mxu0 0.0
      %897 = vmatpush1.msra.mxu0 0.0
      %898 = vmatprep.subr.mxu0 0.0
      %899 = vmatpush1.msra.mxu0 0.0
      %900 = vmatprep.subr.mxu0 0.0
      %901 = vmatpush1.msra.mxu0 0.0
      %902 = vmatprep.subr.mxu0 0.0
      %903 = vmatpush1.msra.mxu0 0.0
      %904 = vmatprep.mubr.f32.mxu0 0.0
      %905 = vmatmul.mubr.f32.gmra.mrb[0].mxu0 %v817
      %v906 = vpop.f32.mrb[0].mxu0
      %v907 = vadd.f32 0.0, %v906
      %v908 = vpop.f32.mrb[0].mxu0
      %909 = vmatprep.mubr.f32.mxu0 0.0
      %910 = vmatmul.mubr.f32.gmra.mrb[0].mxu0 %v820
      %v911 = vpop.f32.mrb[0].mxu0
      %v912 = vadd.f32 0.0, %v911
      %v913 = vpop.f32.mrb[0].mxu0
      %914 = vmatprep.mubr.f32.mxu0 0.0
      %915 = vmatmul.mubr.f32.gmra.mrb[0].mxu0 %v823
      %v916 = vpop.f32.mrb[0].mxu0
      %v917 = vadd.f32 0.0, %v916
      %v918 = vpop.f32.mrb[0].mxu0
      %919 = vmatprep.mubr.f32.mxu0 0.0
      %920 = vmatmul.mubr.f32.gmra.mrb[0].mxu0 %v826
      %v921 = vpop.f32.mrb[0].mxu0
      %v922 = vadd.f32 0.0, %v921
      %v923 = vpop.f32.mrb[0].mxu0
      %924 = vmatprep.mubr.f32.mxu0 0.0
      %925 = vmatmul.mubr.f32.gmra.mrb[0].mxu0 %v829
      %v926 = vpop.f32.mrb[0].mxu0
      %v927 = vadd.f32 0.0, %v926
      %v928 = vpop.f32.mrb[0].mxu0
      %929 = vmatprep.mubr.f32.mxu0 0.0
      %930 = vmatmul.mubr.f32.gmra.mrb[0].mxu0 %v832
      %v931 = vpop.f32.mrb[0].mxu0
      %v932 = vadd.f32 0.0, %v931
      %v933 = vpop.f32.mrb[0].mxu0
      %934 = vmatprep.mubr.f32.mxu0 0.0
      %935 = vmatmul.mubr.f32.gmra.mrb[0].mxu0 %v835
      %v936 = vpop.f32.mrb[0].mxu0
      %v937 = vadd.f32 0.0, %v936
      %v938 = vpop.f32.mrb[0].mxu0
      %939 = vmatprep.mubr.f32.mxu0 0.0
      %940 = vmatmul.mubr.f32.gmra.mrb[0].mxu0 %v838
      %v941 = vpop.f32.mrb[0].mxu0
      %v942 = vadd.f32 0.0, %v941
      %v943 = vpop.f32.mrb[0].mxu0
      %944 = vdwg.mxu0
      %v945 = vadd.f32 %v795, %v907
      %v946 = vadd.f32 %v796, %v912
      %v947 = vadd.f32 %v797, %v917
      %v948 = vadd.f32 %v798, %v922
      %v949 = vadd.f32 %v799, %v927
      %v950 = vadd.f32 %v800, %v932
      %v951 = vadd.f32 %v801, %v937
      %v952 = vadd.f32 %v802, %v942
      %v953 = vld [vmem:[%s652 + $0x2] sm:$0xff]
      %v954 = vld [vmem:[%s652 + $0x12] sm:$0xff]
      %v955 = vld [vmem:[%s652 + $0x22] sm:$0xff]
      %v956 = vld [vmem:[%s652 + $0x32] sm:$0xff]
      %v957 = vld [vmem:[%s652 + $0x42] sm:$0xff]
      %v958 = vld [vmem:[%s652 + $0x52] sm:$0xff]
      %v959 = vld [vmem:[%s652 + $0x62] sm:$0xff]
      %v960 = vld [vmem:[%s652 + $0x72] sm:$0xff]
      %s961 = scalar_lea.vmem %s1, 160
      %v962 = vld [vmem:[%s961] sm:$0xff]
      %v963 = vld [vmem:[%s961 + $0x8] sm:$0xff]
      %v964 = vld [vmem:[%s961 + $0x10] sm:$0xff]
      %v965 = vld [vmem:[%s961 + $0x18] sm:$0xff]
      %v967 = vsel %vm243, %v953, 0
      %v970 = vsel %vm243, %v954, 0
      %v973 = vsel %vm243, %v955, 0
      %v976 = vsel %vm243, %v956, 0
      %v979 = vsel %vm243, %v957, 0
      %v982 = vsel %vm243, %v958, 0
      %v985 = vsel %vm243, %v959, 0
      %v988 = vsel %vm243, %v960, 0
      %990 = vmatprep.subr.mxu0 0.0
      %991 = vmatpush1.msra.mxu0 %v962
      %992 = vmatprep.subr.mxu0 0.0
      %993 = vmatpush1.msra.mxu0 %v963
      %994 = vmatprep.subr.mxu0 0.0
      %995 = vmatpush1.msra.mxu0 %v964
      %996 = vmatprep.subr.mxu0 0.0
      %997 = vmatpush1.msra.mxu0 %v965
      %998 = vmatprep.subr.mxu0 0.0
      %999 = vmatpush1.msra.mxu0 0.0
      %1000 = vmatprep.subr.mxu0 0.0
      %1001 = vmatpush1.msra.mxu0 0.0
      %1002 = vmatprep.subr.mxu0 0.0
      %1003 = vmatpush1.msra.mxu0 0.0
      %1004 = vmatprep.subr.mxu0 0.0
      %1005 = vmatpush1.msra.mxu0 0.0
      %1006 = vmatprep.subr.mxu0 0.0
      %1007 = vmatpush1.msra.mxu0 0.0
      %1008 = vmatprep.subr.mxu0 0.0
      %1009 = vmatpush1.msra.mxu0 0.0
      %1010 = vmatprep.subr.mxu0 0.0
      %1011 = vmatpush1.msra.mxu0 0.0
      %1012 = vmatprep.subr.mxu0 0.0
      %1013 = vmatpush1.msra.mxu0 0.0
      %1014 = vmatprep.subr.mxu0 0.0
      %1015 = vmatpush1.msra.mxu0 0.0
      %1016 = vmatprep.subr.mxu0 0.0
      %1017 = vmatpush1.msra.mxu0 0.0
      %1018 = vmatprep.subr.mxu0 0.0
      %1019 = vmatpush1.msra.mxu0 0.0
      %1020 = vmatprep.subr.mxu0 0.0
      %1021 = vmatpush1.msra.mxu0 0.0
      %1022 = vmatprep.subr.mxu0 0.0
      %1023 = vmatpush1.msra.mxu0 0.0
      %1024 = vmatprep.subr.mxu0 0.0
      %1025 = vmatpush1.msra.mxu0 0.0
      %1026 = vmatprep.subr.mxu0 0.0
      %1027 = vmatpush1.msra.mxu0 0.0
      %1028 = vmatprep.subr.mxu0 0.0
      %1029 = vmatpush1.msra.mxu0 0.0
      %1030 = vmatprep.subr.mxu0 0.0
      %1031 = vmatpush1.msra.mxu0 0.0
      %1032 = vmatprep.subr.mxu0 0.0
      %1033 = vmatpush1.msra.mxu0 0.0
      %1034 = vmatprep.subr.mxu0 0.0
      %1035 = vmatpush1.msra.mxu0 0.0
      %1036 = vmatprep.subr.mxu0 0.0
      %1037 = vmatpush1.msra.mxu0 0.0
      %1038 = vmatprep.subr.mxu0 0.0
      %1039 = vmatpush1.msra.mxu0 0.0
      %1040 = vmatprep.subr.mxu0 0.0
      %1041 = vmatpush1.msra.mxu0 0.0
      %1042 = vmatprep.subr.mxu0 0.0
      %1043 = vmatpush1.msra.mxu0 0.0
      %1044 = vmatprep.subr.mxu0 0.0
      %1045 = vmatpush1.msra.mxu0 0.0
      %1046 = vmatprep.subr.mxu0 0.0
      %1047 = vmatpush1.msra.mxu0 0.0
      %1048 = vmatprep.subr.mxu0 0.0
      %1049 = vmatpush1.msra.mxu0 0.0
      %1050 = vmatprep.subr.mxu0 0.0
      %1051 = vmatpush1.msra.mxu0 0.0
      %1052 = vmatprep.subr.mxu0 0.0
      %1053 = vmatpush1.msra.mxu0 0.0
      %1054 = vmatprep.mubr.f32.mxu0 0.0
      %1055 = vmatmul.mubr.f32.gmra.mrb[0].mxu0 %v967
      %v1056 = vpop.f32.mrb[0].mxu0
      %v1057 = vadd.f32 0.0, %v1056
      %v1058 = vpop.f32.mrb[0].mxu0
      %1059 = vmatprep.mubr.f32.mxu0 0.0
      %1060 = vmatmul.mubr.f32.gmra.mrb[0].mxu0 %v970
      %v1061 = vpop.f32.mrb[0].mxu0
      %v1062 = vadd.f32 0.0, %v1061
      %v1063 = vpop.f32.mrb[0].mxu0
      %1064 = vmatprep.mubr.f32.mxu0 0.0
      %1065 = vmatmul.mubr.f32.gmra.mrb[0].mxu0 %v973
      %v1066 = vpop.f32.mrb[0].mxu0
      %v1067 = vadd.f32 0.0, %v1066
      %v1068 = vpop.f32.mrb[0].mxu0
      %1069 = vmatprep.mubr.f32.mxu0 0.0
      %1070 = vmatmul.mubr.f32.gmra.mrb[0].mxu0 %v976
      %v1071 = vpop.f32.mrb[0].mxu0
      %v1072 = vadd.f32 0.0, %v1071
      %v1073 = vpop.f32.mrb[0].mxu0
      %1074 = vmatprep.mubr.f32.mxu0 0.0
      %1075 = vmatmul.mubr.f32.gmra.mrb[0].mxu0 %v979
      %v1076 = vpop.f32.mrb[0].mxu0
      %v1077 = vadd.f32 0.0, %v1076
      %v1078 = vpop.f32.mrb[0].mxu0
      %1079 = vmatprep.mubr.f32.mxu0 0.0
      %1080 = vmatmul.mubr.f32.gmra.mrb[0].mxu0 %v982
      %v1081 = vpop.f32.mrb[0].mxu0
      %v1082 = vadd.f32 0.0, %v1081
      %v1083 = vpop.f32.mrb[0].mxu0
      %1084 = vmatprep.mubr.f32.mxu0 0.0
      %1085 = vmatmul.mubr.f32.gmra.mrb[0].mxu0 %v985
      %v1086 = vpop.f32.mrb[0].mxu0
      %v1087 = vadd.f32 0.0, %v1086
      %v1088 = vpop.f32.mrb[0].mxu0
      %1089 = vmatprep.mubr.f32.mxu0 0.0
      %1090 = vmatmul.mubr.f32.gmra.mrb[0].mxu0 %v988
      %v1091 = vpop.f32.mrb[0].mxu0
      %v1092 = vadd.f32 0.0, %v1091
      %v1093 = vpop.f32.mrb[0].mxu0
      %1094 = vdwg.mxu0
      %v1095 = vadd.f32 %v945, %v1057
      %v1096 = vadd.f32 %v946, %v1062
      %v1097 = vadd.f32 %v947, %v1067
      %v1098 = vadd.f32 %v948, %v1072
      %v1099 = vadd.f32 %v949, %v1077
      %v1100 = vadd.f32 %v950, %v1082
      %v1101 = vadd.f32 %v951, %v1087
      %v1102 = vadd.f32 %v952, %v1092
      %s1103 = scalar_lea.vmem %s207, 32
      %v1104 = vld [vmem:[%s1103] sm:$0xff]
      %v1105 = vld [vmem:[%s1103 + $0x10] sm:$0xff]
      %v1106 = vld [vmem:[%s1103 + $0x20] sm:$0xff]
      %v1107 = vld [vmem:[%s1103 + $0x30] sm:$0xff]
      %v1108 = vld [vmem:[%s1103 + $0x40] sm:$0xff]
      %v1109 = vld [vmem:[%s1103 + $0x50] sm:$0xff]
      %v1110 = vld [vmem:[%s1103 + $0x60] sm:$0xff]
      %v1111 = vld [vmem:[%s1103 + $0x70] sm:$0xff]
      %s1112 = scalar_lea.vmem %s1, 192
      %v1113 = vld [vmem:[%s1112] sm:$0xff]
      %v1114 = vld [vmem:[%s1112 + $0x8] sm:$0xff]
      %v1115 = vld [vmem:[%s1112 + $0x10] sm:$0xff]
      %v1116 = vld [vmem:[%s1112 + $0x18] sm:$0xff]
      %v1118 = vsel %vm243, %v1104, 0
      %v1121 = vsel %vm243, %v1105, 0
      %v1124 = vsel %vm243, %v1106, 0
      %v1127 = vsel %vm243, %v1107, 0
      %v1130 = vsel %vm243, %v1108, 0
      %v1133 = vsel %vm243, %v1109, 0
      %v1136 = vsel %vm243, %v1110, 0
      %v1139 = vsel %vm243, %v1111, 0
      %1141 = vmatprep.subr.mxu0 0.0
      %1142 = vmatpush1.msra.mxu0 %v1113
      %1143 = vmatprep.subr.mxu0 0.0
      %1144 = vmatpush1.msra.mxu0 %v1114
      %1145 = vmatprep.subr.mxu0 0.0
      %1146 = vmatpush1.msra.mxu0 %v1115
      %1147 = vmatprep.subr.mxu0 0.0
      %1148 = vmatpush1.msra.mxu0 %v1116
      %1149 = vmatprep.subr.mxu0 0.0
      %1150 = vmatpush1.msra.mxu0 0.0
      %1151 = vmatprep.subr.mxu0 0.0
      %1152 = vmatpush1.msra.mxu0 0.0
      %1153 = vmatprep.subr.mxu0 0.0
      %1154 = vmatpush1.msra.mxu0 0.0
      %1155 = vmatprep.subr.mxu0 0.0
      %1156 = vmatpush1.msra.mxu0 0.0
      %1157 = vmatprep.subr.mxu0 0.0
      %1158 = vmatpush1.msra.mxu0 0.0
      %1159 = vmatprep.subr.mxu0 0.0
      %1160 = vmatpush1.msra.mxu0 0.0
      %1161 = vmatprep.subr.mxu0 0.0
      %1162 = vmatpush1.msra.mxu0 0.0
      %1163 = vmatprep.subr.mxu0 0.0
      %1164 = vmatpush1.msra.mxu0 0.0
      %1165 = vmatprep.subr.mxu0 0.0
      %1166 = vmatpush1.msra.mxu0 0.0
      %1167 = vmatprep.subr.mxu0 0.0
      %1168 = vmatpush1.msra.mxu0 0.0
      %1169 = vmatprep.subr.mxu0 0.0
      %1170 = vmatpush1.msra.mxu0 0.0
      %1171 = vmatprep.subr.mxu0 0.0
      %1172 = vmatpush1.msra.mxu0 0.0
      %1173 = vmatprep.subr.mxu0 0.0
      %1174 = vmatpush1.msra.mxu0 0.0
      %1175 = vmatprep.subr.mxu0 0.0
      %1176 = vmatpush1.msra.mxu0 0.0
      %1177 = vmatprep.subr.mxu0 0.0
      %1178 = vmatpush1.msra.mxu0 0.0
      %1179 = vmatprep.subr.mxu0 0.0
      %1180 = vmatpush1.msra.mxu0 0.0
      %1181 = vmatprep.subr.mxu0 0.0
      %1182 = vmatpush1.msra.mxu0 0.0
      %1183 = vmatprep.subr.mxu0 0.0
      %1184 = vmatpush1.msra.mxu0 0.0
      %1185 = vmatprep.subr.mxu0 0.0
      %1186 = vmatpush1.msra.mxu0 0.0
      %1187 = vmatprep.subr.mxu0 0.0
      %1188 = vmatpush1.msra.mxu0 0.0
      %1189 = vmatprep.subr.mxu0 0.0
      %1190 = vmatpush1.msra.mxu0 0.0
      %1191 = vmatprep.subr.mxu0 0.0
      %1192 = vmatpush1.msra.mxu0 0.0
      %1193 = vmatprep.subr.mxu0 0.0
      %1194 = vmatpush1.msra.mxu0 0.0
      %1195 = vmatprep.subr.mxu0 0.0
      %1196 = vmatpush1.msra.mxu0 0.0
      %1197 = vmatprep.subr.mxu0 0.0
      %1198 = vmatpush1.msra.mxu0 0.0
      %1199 = vmatprep.subr.mxu0 0.0
      %1200 = vmatpush1.msra.mxu0 0.0
      %1201 = vmatprep.subr.mxu0 0.0
      %1202 = vmatpush1.msra.mxu0 0.0
      %1203 = vmatprep.subr.mxu0 0.0
      %1204 = vmatpush1.msra.mxu0 0.0
      %1205 = vmatprep.mubr.f32.mxu0 0.0
      %1206 = vmatmul.mubr.f32.gmra.mrb[0].mxu0 %v1118
      %v1207 = vpop.f32.mrb[0].mxu0
      %v1208 = vadd.f32 0.0, %v1207
      %v1209 = vpop.f32.mrb[0].mxu0
      %1210 = vmatprep.mubr.f32.mxu0 0.0
      %1211 = vmatmul.mubr.f32.gmra.mrb[0].mxu0 %v1121
      %v1212 = vpop.f32.mrb[0].mxu0
      %v1213 = vadd.f32 0.0, %v1212
      %v1214 = vpop.f32.mrb[0].mxu0
      %1215 = vmatprep.mubr.f32.mxu0 0.0
      %1216 = vmatmul.mubr.f32.gmra.mrb[0].mxu0 %v1124
      %v1217 = vpop.f32.mrb[0].mxu0
      %v1218 = vadd.f32 0.0, %v1217
      %v1219 = vpop.f32.mrb[0].mxu0
      %1220 = vmatprep.mubr.f32.mxu0 0.0
      %1221 = vmatmul.mubr.f32.gmra.mrb[0].mxu0 %v1127
      %v1222 = vpop.f32.mrb[0].mxu0
      %v1223 = vadd.f32 0.0, %v1222
      %v1224 = vpop.f32.mrb[0].mxu0
      %1225 = vmatprep.mubr.f32.mxu0 0.0
      %1226 = vmatmul.mubr.f32.gmra.mrb[0].mxu0 %v1130
      %v1227 = vpop.f32.mrb[0].mxu0
      %v1228 = vadd.f32 0.0, %v1227
      %v1229 = vpop.f32.mrb[0].mxu0
      %1230 = vmatprep.mubr.f32.mxu0 0.0
      %1231 = vmatmul.mubr.f32.gmra.mrb[0].mxu0 %v1133
      %v1232 = vpop.f32.mrb[0].mxu0
      %v1233 = vadd.f32 0.0, %v1232
      %v1234 = vpop.f32.mrb[0].mxu0
      %1235 = vmatprep.mubr.f32.mxu0 0.0
      %1236 = vmatmul.mubr.f32.gmra.mrb[0].mxu0 %v1136
      %v1237 = vpop.f32.mrb[0].mxu0
      %v1238 = vadd.f32 0.0, %v1237
      %v1239 = vpop.f32.mrb[0].mxu0
      %1240 = vmatprep.mubr.f32.mxu0 0.0
      %1241 = vmatmul.mubr.f32.gmra.mrb[0].mxu0 %v1139
      %v1242 = vpop.f32.mrb[0].mxu0
      %v1243 = vadd.f32 0.0, %v1242
      %v1244 = vpop.f32.mrb[0].mxu0
      %1245 = vdwg.mxu0
      %v1246 = vadd.f32 %v1095, %v1208
      %v1247 = vadd.f32 %v1096, %v1213
      %v1248 = vadd.f32 %v1097, %v1218
      %v1249 = vadd.f32 %v1098, %v1223
      %v1250 = vadd.f32 %v1099, %v1228
      %v1251 = vadd.f32 %v1100, %v1233
      %v1252 = vadd.f32 %v1101, %v1238
      %v1253 = vadd.f32 %v1102, %v1243
      %v1254 = vld [vmem:[%s1103 + $0x1] sm:$0xff]
      %v1255 = vld [vmem:[%s1103 + $0x11] sm:$0xff]
      %v1256 = vld [vmem:[%s1103 + $0x21] sm:$0xff]
      %v1257 = vld [vmem:[%s1103 + $0x31] sm:$0xff]
      %v1258 = vld [vmem:[%s1103 + $0x41] sm:$0xff]
      %v1259 = vld [vmem:[%s1103 + $0x51] sm:$0xff]
      %v1260 = vld [vmem:[%s1103 + $0x61] sm:$0xff]
      %v1261 = vld [vmem:[%s1103 + $0x71] sm:$0xff]
      %s1262 = scalar_lea.vmem %s1, 224
      %v1263 = vld [vmem:[%s1262] sm:$0xff]
      %v1264 = vld [vmem:[%s1262 + $0x8] sm:$0xff]
      %v1265 = vld [vmem:[%s1262 + $0x10] sm:$0xff]
      %v1266 = vld [vmem:[%s1262 + $0x18] sm:$0xff]
      %v1268 = vsel %vm243, %v1254, 0
      %v1271 = vsel %vm243, %v1255, 0
      %v1274 = vsel %vm243, %v1256, 0
      %v1277 = vsel %vm243, %v1257, 0
      %v1280 = vsel %vm243, %v1258, 0
      %v1283 = vsel %vm243, %v1259, 0
      %v1286 = vsel %vm243, %v1260, 0
      %v1289 = vsel %vm243, %v1261, 0
      %1291 = vmatprep.subr.mxu0 0.0
      %1292 = vmatpush1.msra.mxu0 %v1263
      %1293 = vmatprep.subr.mxu0 0.0
      %1294 = vmatpush1.msra.mxu0 %v1264
      %1295 = vmatprep.subr.mxu0 0.0
      %1296 = vmatpush1.msra.mxu0 %v1265
      %1297 = vmatprep.subr.mxu0 0.0
      %1298 = vmatpush1.msra.mxu0 %v1266
      %1299 = vmatprep.subr.mxu0 0.0
      %1300 = vmatpush1.msra.mxu0 0.0
      %1301 = vmatprep.subr.mxu0 0.0
      %1302 = vmatpush1.msra.mxu0 0.0
      %1303 = vmatprep.subr.mxu0 0.0
      %1304 = vmatpush1.msra.mxu0 0.0
      %1305 = vmatprep.subr.mxu0 0.0
      %1306 = vmatpush1.msra.mxu0 0.0
      %1307 = vmatprep.subr.mxu0 0.0
      %1308 = vmatpush1.msra.mxu0 0.0
      %1309 = vmatprep.subr.mxu0 0.0
      %1310 = vmatpush1.msra.mxu0 0.0
      %1311 = vmatprep.subr.mxu0 0.0
      %1312 = vmatpush1.msra.mxu0 0.0
      %1313 = vmatprep.subr.mxu0 0.0
      %1314 = vmatpush1.msra.mxu0 0.0
      %1315 = vmatprep.subr.mxu0 0.0
      %1316 = vmatpush1.msra.mxu0 0.0
      %1317 = vmatprep.subr.mxu0 0.0
      %1318 = vmatpush1.msra.mxu0 0.0
      %1319 = vmatprep.subr.mxu0 0.0
      %1320 = vmatpush1.msra.mxu0 0.0
      %1321 = vmatprep.subr.mxu0 0.0
      %1322 = vmatpush1.msra.mxu0 0.0
      %1323 = vmatprep.subr.mxu0 0.0
      %1324 = vmatpush1.msra.mxu0 0.0
      %1325 = vmatprep.subr.mxu0 0.0
      %1326 = vmatpush1.msra.mxu0 0.0
      %1327 = vmatprep.subr.mxu0 0.0
      %1328 = vmatpush1.msra.mxu0 0.0
      %1329 = vmatprep.subr.mxu0 0.0
      %1330 = vmatpush1.msra.mxu0 0.0
      %1331 = vmatprep.subr.mxu0 0.0
      %1332 = vmatpush1.msra.mxu0 0.0
      %1333 = vmatprep.subr.mxu0 0.0
      %1334 = vmatpush1.msra.mxu0 0.0
      %1335 = vmatprep.subr.mxu0 0.0
      %1336 = vmatpush1.msra.mxu0 0.0
      %1337 = vmatprep.subr.mxu0 0.0
      %1338 = vmatpush1.msra.mxu0 0.0
      %1339 = vmatprep.subr.mxu0 0.0
      %1340 = vmatpush1.msra.mxu0 0.0
      %1341 = vmatprep.subr.mxu0 0.0
      %1342 = vmatpush1.msra.mxu0 0.0
      %1343 = vmatprep.subr.mxu0 0.0
      %1344 = vmatpush1.msra.mxu0 0.0
      %1345 = vmatprep.subr.mxu0 0.0
      %1346 = vmatpush1.msra.mxu0 0.0
      %1347 = vmatprep.subr.mxu0 0.0
      %1348 = vmatpush1.msra.mxu0 0.0
      %1349 = vmatprep.subr.mxu0 0.0
      %1350 = vmatpush1.msra.mxu0 0.0
      %1351 = vmatprep.subr.mxu0 0.0
      %1352 = vmatpush1.msra.mxu0 0.0
      %1353 = vmatprep.subr.mxu0 0.0
      %1354 = vmatpush1.msra.mxu0 0.0
      %1355 = vmatprep.mubr.f32.mxu0 0.0
      %1356 = vmatmul.mubr.f32.gmra.mrb[0].mxu0 %v1268
      %v1357 = vpop.f32.mrb[0].mxu0
      %v1358 = vadd.f32 0.0, %v1357
      %v1359 = vpop.f32.mrb[0].mxu0
      %1360 = vmatprep.mubr.f32.mxu0 0.0
      %1361 = vmatmul.mubr.f32.gmra.mrb[0].mxu0 %v1271
      %v1362 = vpop.f32.mrb[0].mxu0
      %v1363 = vadd.f32 0.0, %v1362
      %v1364 = vpop.f32.mrb[0].mxu0
      %1365 = vmatprep.mubr.f32.mxu0 0.0
      %1366 = vmatmul.mubr.f32.gmra.mrb[0].mxu0 %v1274
      %v1367 = vpop.f32.mrb[0].mxu0
      %v1368 = vadd.f32 0.0, %v1367
      %v1369 = vpop.f32.mrb[0].mxu0
      %1370 = vmatprep.mubr.f32.mxu0 0.0
      %1371 = vmatmul.mubr.f32.gmra.mrb[0].mxu0 %v1277
      %v1372 = vpop.f32.mrb[0].mxu0
      %v1373 = vadd.f32 0.0, %v1372
      %v1374 = vpop.f32.mrb[0].mxu0
      %1375 = vmatprep.mubr.f32.mxu0 0.0
      %1376 = vmatmul.mubr.f32.gmra.mrb[0].mxu0 %v1280
      %v1377 = vpop.f32.mrb[0].mxu0
      %v1378 = vadd.f32 0.0, %v1377
      %v1379 = vpop.f32.mrb[0].mxu0
      %1380 = vmatprep.mubr.f32.mxu0 0.0
      %1381 = vmatmul.mubr.f32.gmra.mrb[0].mxu0 %v1283
      %v1382 = vpop.f32.mrb[0].mxu0
      %v1383 = vadd.f32 0.0, %v1382
      %v1384 = vpop.f32.mrb[0].mxu0
      %1385 = vmatprep.mubr.f32.mxu0 0.0
      %1386 = vmatmul.mubr.f32.gmra.mrb[0].mxu0 %v1286
      %v1387 = vpop.f32.mrb[0].mxu0
      %v1388 = vadd.f32 0.0, %v1387
      %v1389 = vpop.f32.mrb[0].mxu0
      %1390 = vmatprep.mubr.f32.mxu0 0.0
      %1391 = vmatmul.mubr.f32.gmra.mrb[0].mxu0 %v1289
      %v1392 = vpop.f32.mrb[0].mxu0
      %v1393 = vadd.f32 0.0, %v1392
      %v1394 = vpop.f32.mrb[0].mxu0
      %1395 = vdwg.mxu0
      %v1396 = vadd.f32 %v1246, %v1358
      %v1397 = vadd.f32 %v1247, %v1363
      %v1398 = vadd.f32 %v1248, %v1368
      %v1399 = vadd.f32 %v1249, %v1373
      %v1400 = vadd.f32 %v1250, %v1378
      %v1401 = vadd.f32 %v1251, %v1383
      %v1402 = vadd.f32 %v1252, %v1388
      %v1403 = vadd.f32 %v1253, %v1393
      %v1404 = vld [vmem:[%s1103 + $0x2] sm:$0xff]
      %v1405 = vld [vmem:[%s1103 + $0x12] sm:$0xff]
      %v1406 = vld [vmem:[%s1103 + $0x22] sm:$0xff]
      %v1407 = vld [vmem:[%s1103 + $0x32] sm:$0xff]
      %v1408 = vld [vmem:[%s1103 + $0x42] sm:$0xff]
      %v1409 = vld [vmem:[%s1103 + $0x52] sm:$0xff]
      %v1410 = vld [vmem:[%s1103 + $0x62] sm:$0xff]
      %v1411 = vld [vmem:[%s1103 + $0x72] sm:$0xff]
      %s1412 = scalar_lea.vmem %s1, 256
      %v1413 = vld [vmem:[%s1412] sm:$0xff]
      %v1414 = vld [vmem:[%s1412 + $0x8] sm:$0xff]
      %v1415 = vld [vmem:[%s1412 + $0x10] sm:$0xff]
      %v1416 = vld [vmem:[%s1412 + $0x18] sm:$0xff]
      %v1418 = vsel %vm243, %v1404, 0
      %v1421 = vsel %vm243, %v1405, 0
      %v1424 = vsel %vm243, %v1406, 0
      %v1427 = vsel %vm243, %v1407, 0
      %v1430 = vsel %vm243, %v1408, 0
      %v1433 = vsel %vm243, %v1409, 0
      %v1436 = vsel %vm243, %v1410, 0
      %v1439 = vsel %vm243, %v1411, 0
      %1441 = vmatprep.subr.mxu0 0.0
      %1442 = vmatpush1.msra.mxu0 %v1413
      %1443 = vmatprep.subr.mxu0 0.0
      %1444 = vmatpush1.msra.mxu0 %v1414
      %1445 = vmatprep.subr.mxu0 0.0
      %1446 = vmatpush1.msra.mxu0 %v1415
      %1447 = vmatprep.subr.mxu0 0.0
      %1448 = vmatpush1.msra.mxu0 %v1416
      %1449 = vmatprep.subr.mxu0 0.0
      %1450 = vmatpush1.msra.mxu0 0.0
      %1451 = vmatprep.subr.mxu0 0.0
      %1452 = vmatpush1.msra.mxu0 0.0
      %1453 = vmatprep.subr.mxu0 0.0
      %1454 = vmatpush1.msra.mxu0 0.0
      %1455 = vmatprep.subr.mxu0 0.0
      %1456 = vmatpush1.msra.mxu0 0.0
      %1457 = vmatprep.subr.mxu0 0.0
      %1458 = vmatpush1.msra.mxu0 0.0
      %1459 = vmatprep.subr.mxu0 0.0
      %1460 = vmatpush1.msra.mxu0 0.0
      %1461 = vmatprep.subr.mxu0 0.0
      %1462 = vmatpush1.msra.mxu0 0.0
      %1463 = vmatprep.subr.mxu0 0.0
      %1464 = vmatpush1.msra.mxu0 0.0
      %1465 = vmatprep.subr.mxu0 0.0
      %1466 = vmatpush1.msra.mxu0 0.0
      %1467 = vmatprep.subr.mxu0 0.0
      %1468 = vmatpush1.msra.mxu0 0.0
      %1469 = vmatprep.subr.mxu0 0.0
      %1470 = vmatpush1.msra.mxu0 0.0
      %1471 = vmatprep.subr.mxu0 0.0
      %1472 = vmatpush1.msra.mxu0 0.0
      %1473 = vmatprep.subr.mxu0 0.0
      %1474 = vmatpush1.msra.mxu0 0.0
      %1475 = vmatprep.subr.mxu0 0.0
      %1476 = vmatpush1.msra.mxu0 0.0
      %1477 = vmatprep.subr.mxu0 0.0
      %1478 = vmatpush1.msra.mxu0 0.0
      %1479 = vmatprep.subr.mxu0 0.0
      %1480 = vmatpush1.msra.mxu0 0.0
      %1481 = vmatprep.subr.mxu0 0.0
      %1482 = vmatpush1.msra.mxu0 0.0
      %1483 = vmatprep.subr.mxu0 0.0
      %1484 = vmatpush1.msra.mxu0 0.0
      %1485 = vmatprep.subr.mxu0 0.0
      %1486 = vmatpush1.msra.mxu0 0.0
      %1487 = vmatprep.subr.mxu0 0.0
      %1488 = vmatpush1.msra.mxu0 0.0
      %1489 = vmatprep.subr.mxu0 0.0
      %1490 = vmatpush1.msra.mxu0 0.0
      %1491 = vmatprep.subr.mxu0 0.0
      %1492 = vmatpush1.msra.mxu0 0.0
      %1493 = vmatprep.subr.mxu0 0.0
      %1494 = vmatpush1.msra.mxu0 0.0
      %1495 = vmatprep.subr.mxu0 0.0
      %1496 = vmatpush1.msra.mxu0 0.0
      %1497 = vmatprep.subr.mxu0 0.0
      %1498 = vmatpush1.msra.mxu0 0.0
      %1499 = vmatprep.subr.mxu0 0.0
      %1500 = vmatpush1.msra.mxu0 0.0
      %1501 = vmatprep.subr.mxu0 0.0
      %1502 = vmatpush1.msra.mxu0 0.0
      %1503 = vmatprep.subr.mxu0 0.0
      %1504 = vmatpush1.msra.mxu0 0.0
      %1505 = vmatprep.mubr.f32.mxu0 0.0
      %1506 = vmatmul.mubr.f32.gmra.mrb[0].mxu0 %v1418
      %v1507 = vpop.f32.mrb[0].mxu0
      %v1508 = vadd.f32 0.0, %v1507
      %v1509 = vpop.f32.mrb[0].mxu0
      %1510 = vmatprep.mubr.f32.mxu0 0.0
      %1511 = vmatmul.mubr.f32.gmra.mrb[0].mxu0 %v1421
      %v1512 = vpop.f32.mrb[0].mxu0
      %v1513 = vadd.f32 0.0, %v1512
      %v1514 = vpop.f32.mrb[0].mxu0
      %1515 = vmatprep.mubr.f32.mxu0 0.0
      %1516 = vmatmul.mubr.f32.gmra.mrb[0].mxu0 %v1424
      %v1517 = vpop.f32.mrb[0].mxu0
      %v1518 = vadd.f32 0.0, %v1517
      %v1519 = vpop.f32.mrb[0].mxu0
      %1520 = vmatprep.mubr.f32.mxu0 0.0
      %1521 = vmatmul.mubr.f32.gmra.mrb[0].mxu0 %v1427
      %v1522 = vpop.f32.mrb[0].mxu0
      %v1523 = vadd.f32 0.0, %v1522
      %v1524 = vpop.f32.mrb[0].mxu0
      %1525 = vmatprep.mubr.f32.mxu0 0.0
      %1526 = vmatmul.mubr.f32.gmra.mrb[0].mxu0 %v1430
      %v1527 = vpop.f32.mrb[0].mxu0
      %v1528 = vadd.f32 0.0, %v1527
      %v1529 = vpop.f32.mrb[0].mxu0
      %1530 = vmatprep.mubr.f32.mxu0 0.0
      %1531 = vmatmul.mubr.f32.gmra.mrb[0].mxu0 %v1433
      %v1532 = vpop.f32.mrb[0].mxu0
      %v1533 = vadd.f32 0.0, %v1532
      %v1534 = vpop.f32.mrb[0].mxu0
      %1535 = vmatprep.mubr.f32.mxu0 0.0
      %1536 = vmatmul.mubr.f32.gmra.mrb[0].mxu0 %v1436
      %v1537 = vpop.f32.mrb[0].mxu0
      %v1538 = vadd.f32 0.0, %v1537
      %v1539 = vpop.f32.mrb[0].mxu0
      %1540 = vmatprep.mubr.f32.mxu0 0.0
      %1541 = vmatmul.mubr.f32.gmra.mrb[0].mxu0 %v1439
      %v1542 = vpop.f32.mrb[0].mxu0
      %v1543 = vadd.f32 0.0, %v1542
      %v1544 = vpop.f32.mrb[0].mxu0
      %1545 = vdwg.mxu0
      %v1546 = vadd.f32 %v1396, %v1508
      %v1547 = vadd.f32 %v1397, %v1513
      %v1548 = vadd.f32 %v1398, %v1518
      %v1549 = vadd.f32 %v1399, %v1523
      %v1550 = vadd.f32 %v1400, %v1528
      %v1551 = vadd.f32 %v1401, %v1533
      %v1552 = vadd.f32 %v1402, %v1538
      %v1553 = vadd.f32 %v1403, %v1543
      %v1554 = vld [vmem:[%s2] sm:$0x1]
      %v1556 = vlaneseq
      %v1557 = vshrl.u32 %v1556, 7
      %v1558 = vsub.s32 0, %v1557
      %v1559 = vrot.slane %v1554, %v1558
      %v1561 = vadd.f32 %v1546, %v1559
      %v1562 = vadd.f32 %v1547, %v1559
      %v1563 = vadd.f32 %v1548, %v1559
      %v1564 = vadd.f32 %v1549, %v1559
      %v1565 = vadd.f32 %v1550, %v1559
      %v1566 = vadd.f32 %v1551, %v1559
      %v1567 = vadd.f32 %v1552, %v1559
      %v1568 = vadd.f32 %v1553, %v1559
      %v1569 = vld [vmem:[%s212] sm:$0xff]
      %v1570 = vld [vmem:[%s212 + $0x8] sm:$0xff]
      %v1571 = vld [vmem:[%s212 + $0x10] sm:$0xff]
      %v1572 = vld [vmem:[%s212 + $0x18] sm:$0xff]
      %v1573 = vld [vmem:[%s212 + $0x20] sm:$0xff]
      %v1574 = vld [vmem:[%s212 + $0x28] sm:$0xff]
      %v1575 = vld [vmem:[%s212 + $0x30] sm:$0xff]
      %v1576 = vld [vmem:[%s212 + $0x38] sm:$0xff]
      %v1577 = vadd.f32 %v1561, %v1569
      %v1578 = vadd.f32 %v1562, %v1570
      %v1579 = vadd.f32 %v1563, %v1571
      %v1580 = vadd.f32 %v1564, %v1572
      %v1581 = vadd.f32 %v1565, %v1573
      %v1582 = vadd.f32 %v1566, %v1574
      %v1583 = vadd.f32 %v1567, %v1575
      %v1584 = vadd.f32 %v1568, %v1576
      %1585 = vst.msk [vmem:[%s217] sm:$0xff] %vm243, %v1577
      %1586 = vst.msk [vmem:[%s217 + $0x8] sm:$0xff] %vm243, %v1578
      %1587 = vst.msk [vmem:[%s217 + $0x10] sm:$0xff] %vm243, %v1579
      %1588 = vst.msk [vmem:[%s217 + $0x18] sm:$0xff] %vm243, %v1580
      %1589 = vst.msk [vmem:[%s217 + $0x20] sm:$0xff] %vm243, %v1581
      %1590 = vst.msk [vmem:[%s217 + $0x28] sm:$0xff] %vm243, %v1582
      %1591 = vst.msk [vmem:[%s217 + $0x30] sm:$0xff] %vm243, %v1583
      %1592 = vst.msk [vmem:[%s217 + $0x38] sm:$0xff] %vm243, %v1584
      %p1593 = scmp.lt.s32.totalorder %s15, 1
      %s1594 = scalar_select %p1593, %s15, 1
      %s1595 = smul.addr %s1594, 8
      %s1596 = smul.addr %s1595, 8
      %s1597 = scalar_lea.vmem %s4, %s1596
      // Predicated region
      $region37: #{speech_recognition_forward.18} parent=35 // pred_check
        %p1598 = pneg %p127
      $region38: #{speech_recognition_forward.18} parent=35 // pred_check_branch
        %1600 = sbr.rel (%p1598) target = $region40
      $region39: #{speech_recognition_forward.18} parent=35 // pred_region
        _
      $region40: #{speech_recognition_forward.18} parent=35 // pred_fallthru
        _
    $region36: #{speech_recognition_forward.18} parent=5 // pred_fallthru
      _
    %p1601 = scmp.le.s32.totalorder 2, %s10
    // Predicated region
    $region41: #{speech_recognition_forward.18} parent=5 // pred_check
      %p1602 = pneg %p1601
    $region42: #{speech_recognition_forward.18} parent=5 // pred_check_branch
      %1604 = sbr.rel (%p1602) target = $region44
    $region43: #{speech_recognition_forward.18} parent=5 // pred_region
      %s1605 = ssub.s32 %s10, 2
      // Predicated region
      $region45: #{speech_recognition_forward.18} parent=43 // pred_check
        %p1606 = pneg %p133
      $region46: #{speech_recognition_forward.18} parent=43 // pred_check_branch
        %1608 = sbr.rel (%p1606) target = $region48
      $region47: #{speech_recognition_forward.18} parent=43 // pred_region
        %p1609 = scmp.lt.s32.totalorder %s16, 1
        %s1610 = scalar_select %p1609, %s16, 1
        %s1611 = smul.addr %s1610, 8
        %s1612 = smul.addr %s1611, 8
        %s1613 = scalar_lea.vmem %s4, %s1612
      $region48: #{speech_recognition_forward.18} parent=43 // pred_fallthru
        _
    $region44: #{speech_recognition_forward.18} parent=5 // pred_fallthru
      _
  $region6: #{speech_recognition_forward.18} parent=0 // loop_footer
    %s14 = sadd.s32 1, %s10
  $region7: #{speech_recognition_forward.18} parent=0 // loop_footer_branch
    %9 = sbr.rel target = $region3
  $region8: #{speech_recognition_forward.18} parent=0 // loop_exit
    _

// kernel: speech_recognition_forward.25
$region0: #{speech_recognition_forward.25}
  #allocation0 [shape = 'u32[]', space=smem, size = 0x4, offset = 0x4, fixed_abs, tag = 'smem constant byte address 0x4 - core index']
  #allocation1 [shape = 'u32[144,128]{1,0:T(1,128)}', space=vmem, size = 0x12000, scoped, tag = 'internal scratch']
  %s0 = inlined_call_operand.vmem [shape: f32[16,32], index: 0, kind: input, shape index: {}]
  %s1 = inlined_call_operand.vmem [shape: f32[16,32], index: 1, kind: input, shape index: {}]
  %s2 = inlined_call_operand.vmem [shape: f32[1,64], index: 2, kind: input, shape index: {}]
  %s3 = inlined_call_operand.vmem [shape: f32[1,64], index: 3, kind: input, shape index: {}]
  %s4 = inlined_call_operand.vmem [shape: f32[64,192], index: 4, kind: input, shape index: {}]
  %s5 = inlined_call_operand.vmem [shape: f32[1,192], index: 5, kind: input, shape index: {}]
  %s6 = inlined_call_operand.vmem [shape: f32[2,16,96], index: 6, kind: output, shape index: {}]
  %s7 = sld [smem:[#allocation0]]
  $region34: #{speech_recognition_forward.25} parent=0
    _
  %s9 = ssub.s32 1, %s7
  %s10 = scalar_select 0, %s9, %s7
  // Predicated region
  $region2: #{speech_recognition_forward.25} parent=0 // pred_check
    _
  $region3: #{speech_recognition_forward.25} parent=0 // pred_check_branch
    %12 = sbr.rel (0) target = $region5
  $region4: #{speech_recognition_forward.25} parent=0 // pred_region
    _
  $region5: #{speech_recognition_forward.25} parent=0 // pred_fallthru
    _
  // Predicated region
  $region6: #{speech_recognition_forward.25} parent=0 // pred_check
    _
  $region7: #{speech_recognition_forward.25} parent=0 // pred_check_branch
    %14 = sbr.rel (0) target = $region9
  $region8: #{speech_recognition_forward.25} parent=0 // pred_region
    _
  $region9: #{speech_recognition_forward.25} parent=0 // pred_fallthru
    _
  // Predicated region
  $region10: #{speech_recognition_forward.25} parent=0 // pred_check
    _
  $region11: #{speech_recognition_forward.25} parent=0 // pred_check_branch
    %16 = sbr.rel (0) target = $region13
  $region12: #{speech_recognition_forward.25} parent=0 // pred_region
    _
  $region13: #{speech_recognition_forward.25} parent=0 // pred_fallthru
    _
  // Predicated region
  $region14: #{speech_recognition_forward.25} parent=0 // pred_check
    _
  $region15: #{speech_recognition_forward.25} parent=0 // pred_check_branch
    %18 = sbr.rel (0) target = $region17
  $region16: #{speech_recognition_forward.25} parent=0 // pred_region
    _
  $region17: #{speech_recognition_forward.25} parent=0 // pred_fallthru
    _
  // Predicated region
  $region18: #{speech_recognition_forward.25} parent=0 // pred_check
    _
  $region19: #{speech_recognition_forward.25} parent=0 // pred_check_branch
    %20 = sbr.rel (0) target = $region21
  $region20: #{speech_recognition_forward.25} parent=0 // pred_region
    _
  $region21: #{speech_recognition_forward.25} parent=0 // pred_fallthru
    _
  // Predicated region
  $region22: #{speech_recognition_forward.25} parent=0 // pred_check
    _
  $region23: #{speech_recognition_forward.25} parent=0 // pred_check_branch
    %22 = sbr.rel (0) target = $region25
  $region24: #{speech_recognition_forward.25} parent=0 // pred_region
    _
  $region25: #{speech_recognition_forward.25} parent=0 // pred_fallthru
    _
  %v23 = vld [vmem:[%s0] sm:$0xff]
  %v24 = vld [vmem:[%s0 + $0x8] sm:$0xff]
  %v25 = vld [vmem:[%s1] sm:$0xff]
  %v26 = vld [vmem:[%s1 + $0x8] sm:$0xff]
  %29 = vrot.lane.b32.xlu0 %v25, 32
  %v30 = vpop.permute.xlu0 %29
  %31 = vrot.lane.b32.xlu0 %v26, 32
  %v32 = vpop.permute.xlu0 %31
  %vm35 = vcmask 261120
  %v36 = vsel %vm35, %v23, %v30
  %v37 = vsel %vm35, %v24, %v32
  %vm38 = vcmask 523264
  %v39 = vsel %vm38, %v36, 0.0
  %40 = vadd.xlane.f32.xlu0 %v39
  %v41 = vpop.xlane.xlu0 %40
  %v42 = vsel %vm38, %v37, 0.0
  %43 = vadd.xlane.f32.xlu0 %v42
  %v44 = vpop.xlane.xlu0 %43
  %v45 = vrcp.pop 64.0
  %v46 = vmul.f32 %v41, %v45
  %v47 = vmul.f32 %v44, %v45
  %v48 = vsub.f32 %v36, %v46
  %v49 = vsub.f32 %v37, %v47
  %v50 = vmul.f32 %v48, %v48
  %v51 = vmul.f32 %v49, %v49
  %v52 = vsel %vm38, %v50, 0.0
  %53 = vadd.xlane.f32.xlu0 %v52
  %v54 = vpop.xlane.xlu0 %53
  %v55 = vsel %vm38, %v51, 0.0
  %56 = vadd.xlane.f32.xlu0 %v55
  %v57 = vpop.xlane.xlu0 %56
  %v58 = vmul.f32 %v54, %v45
  %v59 = vmul.f32 %v57, %v45
  %v60 = vadd.f32 %v58, 1e-05
  %v61 = vadd.f32 %v59, 1e-05
  %v62 = vrsqrt.pop %v60
  %v63 = vrsqrt.pop %v61
  %v64 = vmul.f32 %v48, %v62
  %v65 = vmul.f32 %v49, %v63
  %v66 = vld [vmem:[%s2] sm:$0x1]
  %v68 = vlaneseq
  %v69 = vshrl.u32 %v68, 7
  %v70 = vsub.s32 0, %v69
  %v71 = vrot.slane %v66, %v70
  %v73 = vmul.f32 %v64, %v71
  %v74 = vmul.f32 %v65, %v71
  %v75 = vld [vmem:[%s3] sm:$0x1]
  %v77 = vlaneseq
  %v78 = vshrl.u32 %v77, 7
  %v79 = vsub.s32 0, %v78
  %v80 = vrot.slane %v75, %v79
  %v82 = vadd.f32 %v73, %v80
  %v83 = vadd.f32 %v74, %v80
  %v84 = vmul.f32 %v82, 0.5
  %v85 = vmul.f32 %v83, 0.5
  %v86 = vmul.f32 %v82, 0.70710677
  %v87 = vmul.f32 %v83, 0.70710677
  %vm88 = vcmp.ge.f32.partialorder %v86, 0.0
  %vm89 = vcmp.ge.f32.partialorder %v87, 0.0
  %v90 = vsel %vm88, 1.0, -1.0
  %v91 = vsel %vm89, 1.0, -1.0
  %v92 = vand.u32 2147483647, %v86
  %v93 = vand.u32 2147483647, %v87
  %v94 = vmul.f32 %v92, 0.3275911
  %v95 = vmul.f32 %v93, 0.3275911
  %v96 = vadd.f32 %v94, 1.0
  %v97 = vadd.f32 %v95, 1.0
  %v98 = vrcp.pop %v96
  %v99 = vmul.f32 1.0, %v98
  %v100 = vrcp.pop %v97
  %v101 = vmul.f32 1.0, %v100
  %v102 = vmul.f32 %v99, 1.0614054
  %v103 = vmul.f32 %v101, 1.0614054
  %v104 = vadd.f32 %v102, -1.4531521
  %v105 = vadd.f32 %v103, -1.4531521
  %v106 = vmul.f32 %v104, %v99
  %v107 = vmul.f32 %v105, %v101
  %v108 = vadd.f32 %v106, 1.4214138
  %v109 = vadd.f32 %v107, 1.4214138
  %v110 = vmul.f32 %v108, %v99
  %v111 = vmul.f32 %v109, %v101
  %v112 = vadd.f32 %v110, -0.28449672
  %v113 = vadd.f32 %v111, -0.28449672
  %v114 = vmul.f32 %v112, %v99
  %v115 = vmul.f32 %v113, %v101
  %v116 = vadd.f32 %v114, 0.2548296
  %v117 = vadd.f32 %v115, 0.2548296
  %v118 = vmul.f32 %v116, %v99
  %v119 = vmul.f32 %v117, %v101
  %v120 = vsub.f32 0.0, %v92
  %v121 = vsub.f32 0.0, %v93
  %v122 = vmul.f32 %v120, %v92
  %v123 = vmul.f32 %v121, %v93
  %v124 = vmul.f32 %v122, 1.442695
  %v125 = vpow.pop %v124
  %v126 = vmul.f32 %v123, 1.442695
  %v127 = vpow.pop %v126
  %v128 = vmul.f32 %v118, %v125
  %v129 = vmul.f32 %v119, %v127
  %v130 = vsub.f32 1.0, %v128
  %v131 = vsub.f32 1.0, %v129
  %v132 = vmul.f32 %v90, %v130
  %v133 = vmul.f32 %v91, %v131
  %v134 = vadd.f32 %v132, 1.0
  %v135 = vadd.f32 %v133, 1.0
  %v136 = vmul.f32 %v84, %v134
  %v137 = vmul.f32 %v85, %v135
  %v138 = vld [vmem:[%s4] sm:$0xff]
  %v139 = vld [vmem:[%s4 + $0x8] sm:$0xff]
  %v140 = vld [vmem:[%s4 + $0x10] sm:$0xff]
  %v141 = vld [vmem:[%s4 + $0x18] sm:$0xff]
  %v142 = vld [vmem:[%s4 + $0x20] sm:$0xff]
  %v143 = vld [vmem:[%s4 + $0x28] sm:$0xff]
  %v144 = vld [vmem:[%s4 + $0x30] sm:$0xff]
  %v145 = vld [vmem:[%s4 + $0x38] sm:$0xff]
  %v146 = vld [vmem:[%s4 + $0x40] sm:$0xff]
  %v147 = vld [vmem:[%s4 + $0x48] sm:$0xff]
  %v148 = vld [vmem:[%s4 + $0x50] sm:$0xff]
  %v149 = vld [vmem:[%s4 + $0x58] sm:$0xff]
  %v150 = vld [vmem:[%s4 + $0x60] sm:$0xff]
  %v151 = vld [vmem:[%s4 + $0x68] sm:$0xff]
  %v152 = vld [vmem:[%s4 + $0x70] sm:$0xff]
  %v153 = vld [vmem:[%s4 + $0x78] sm:$0xff]
  %v154 = vld [vmem:[%s5] sm:$0x3]
  %v156 = vlaneseq
  %v157 = vshrl.u32 %v156, 7
  %v158 = vsub.s32 0, %v157
  %v159 = vrot.slane %v154, %v158
  %v160 = vlaneseq
  %v161 = vshrl.u32 %v160, 7
  %v162 = vsub.s32 1, %v161
  %v163 = vrot.slane %v154, %v162
  %v167 = vsel %vm38, %v136, 0
  %v170 = vsel %vm38, %v137, 0
  %172 = vmatprep.subr.mxu0 %v139
  %173 = vmatpush1.msra.mxu0 %v138
  %174 = vmatprep.subr.mxu0 %v141
  %175 = vmatpush1.msra.mxu0 %v140
  %176 = vmatprep.subr.mxu0 %v143
  %177 = vmatpush1.msra.mxu0 %v142
  %178 = vmatprep.subr.mxu0 %v145
  %179 = vmatpush1.msra.mxu0 %v144
  %180 = vmatprep.subr.mxu0 %v147
  %181 = vmatpush1.msra.mxu0 %v146
  %182 = vmatprep.subr.mxu0 %v149
  %183 = vmatpush1.msra.mxu0 %v148
  %184 = vmatprep.subr.mxu0 %v151
  %185 = vmatpush1.msra.mxu0 %v150
  %186 = vmatprep.subr.mxu0 %v153
  %187 = vmatpush1.msra.mxu0 %v152
  %188 = vmatprep.subr.mxu0 0.0
  %189 = vmatpush1.msra.mxu0 0.0
  %190 = vmatprep.subr.mxu0 0.0
  %191 = vmatpush1.msra.mxu0 0.0
  %192 = vmatprep.subr.mxu0 0.0
  %193 = vmatpush1.msra.mxu0 0.0
  %194 = vmatprep.subr.mxu0 0.0
  %195 = vmatpush1.msra.mxu0 0.0
  %196 = vmatprep.subr.mxu0 0.0
  %197 = vmatpush1.msra.mxu0 0.0
  %198 = vmatprep.subr.mxu0 0.0
  %199 = vmatpush1.msra.mxu0 0.0
  %200 = vmatprep.subr.mxu0 0.0
  %201 = vmatpush1.msra.mxu0 0.0
  %202 = vmatprep.subr.mxu0 0.0
  %203 = vmatpush1.msra.mxu0 0.0
  %204 = vmatprep.subr.mxu0 0.0
  %205 = vmatpush1.msra.mxu0 0.0
  %206 = vmatprep.subr.mxu0 0.0
  %207 = vmatpush1.msra.mxu0 0.0
  %208 = vmatprep.subr.mxu0 0.0
  %209 = vmatpush1.msra.mxu0 0.0
  %210 = vmatprep.subr.mxu0 0.0
  %211 = vmatpush1.msra.mxu0 0.0
  %212 = vmatprep.subr.mxu0 0.0
  %213 = vmatpush1.msra.mxu0 0.0
  %214 = vmatprep.subr.mxu0 0.0
  %215 = vmatpush1.msra.mxu0 0.0
  %216 = vmatprep.subr.mxu0 0.0
  %217 = vmatpush1.msra.mxu0 0.0
  %218 = vmatprep.subr.mxu0 0.0
  %219 = vmatpush1.msra.mxu0 0.0
  %220 = vmatprep.subr.mxu0 0.0
  %221 = vmatpush1.msra.mxu0 0.0
  %222 = vmatprep.subr.mxu0 0.0
  %223 = vmatpush1.msra.mxu0 0.0
  %224 = vmatprep.subr.mxu0 0.0
  %225 = vmatpush1.msra.mxu0 0.0
  %226 = vmatprep.subr.mxu0 0.0
  %227 = vmatpush1.msra.mxu0 0.0
  %228 = vmatprep.subr.mxu0 0.0
  %229 = vmatpush1.msra.mxu0 0.0
  %230 = vmatprep.subr.mxu0 0.0
  %231 = vmatpush1.msra.mxu0 0.0
  %232 = vmatprep.subr.mxu0 0.0
  %233 = vmatpush1.msra.mxu0 0.0
  %234 = vmatprep.subr.mxu0 0.0
  %235 = vmatpush1.msra.mxu0 0.0
  %236 = vmatprep.mubr.f32.mxu0 0.0
  %237 = vmatmul.mubr.f32.gmra.mrb[0].mxu0 %v167
  %v238 = vpop.f32.mrb[0].mxu0
  %v239 = vadd.f32 %v159, %v238
  %v240 = vpop.f32.mrb[0].mxu0
  %v241 = vadd.f32 %v163, %v240
  %242 = vmatprep.mubr.f32.mxu0 0.0
  %243 = vmatmul.mubr.f32.gmra.mrb[0].mxu0 %v170
  %v244 = vpop.f32.mrb[0].mxu0
  %v245 = vadd.f32 %v159, %v244
  %v246 = vpop.f32.mrb[0].mxu0
  %v247 = vadd.f32 %v163, %v246
  %248 = vdwg.mxu0
  %vm249 = vcmask 785408
  %250 = vst.msk [vmem:[%s6] sm:$0xff] %vm249, %v239
  %251 = vst.msk [vmem:[%s6 + $0x8] sm:$0xff] %vm249, %v245
  %256 = vrot.lane.b32.xlu0 %v239, 32
  %v257 = vpop.permute.xlu0 %256
  %258 = vrot.lane.b32.xlu0 %v241, 32
  %v259 = vpop.permute.xlu0 %258
  %260 = vrot.lane.b32.xlu0 %v245, 32
  %v261 = vpop.permute.xlu0 %260
  %262 = vrot.lane.b32.xlu0 %v247, 32
  %v263 = vpop.permute.xlu0 %262
  %v264 = vsel %vm35, %v257, %v259
  %v265 = vsel %vm35, %v261, %v263
  %s268 = scalar_lea.vmem %s6, 16
  %269 = vst.msk [vmem:[%s268] sm:$0xff] %vm249, %v264
  %270 = vst.msk [vmem:[%s268 + $0x8] sm:$0xff] %vm249, %v265
  // Predicated region
  $region26: #{speech_recognition_forward.25} parent=0 // pred_check
    _
  $region27: #{speech_recognition_forward.25} parent=0 // pred_check_branch
    %272 = sbr.rel (0) target = $region29
  $region28: #{speech_recognition_forward.25} parent=0 // pred_region
    _
  $region29: #{speech_recognition_forward.25} parent=0 // pred_fallthru
    _
  // Predicated region
  $region30: #{speech_recognition_forward.25} parent=0 // pred_check
    _
  $region31: #{speech_recognition_forward.25} parent=0 // pred_check_branch
    %274 = sbr.rel (0) target = $region33
  $region32: #{speech_recognition_forward.25} parent=0 // pred_region
    _
  $region33: #{speech_recognition_forward.25} parent=0 // pred_fallthru
    _

// kernel: speech_recognition_forward.24
$region0: #{speech_recognition_forward.24}
  #allocation0 [shape = 'u32[]', space=smem, size = 0x4, offset = 0x4, fixed_abs, tag = 'smem constant byte address 0x4 - core index']
  #allocation1 [shape = 'u32[144,128]{1,0:T(1,128)}', space=vmem, size = 0x12000, scoped, tag = 'internal scratch']
  #allocation2 [shape = 'f32[2,64]{1,0:T(2,128)}', space=vmem, size = 0x400, scoped, tag = 'scratch operand']
  %s0 = inlined_call_operand.vmem [shape: f32[2,8,2,96], index: 0, kind: input, shape index: {}, may-alias: {0,1}]
  %s1 = inlined_call_operand.vmem [shape: f32[2,8,2,96], index: 1, kind: input, shape index: {}, may-alias: {0,1}]
  %s2 = inlined_call_operand.vmem [shape: f32[64,192], index: 2, kind: input, shape index: {}]
  %s3 = inlined_call_operand.vmem [shape: f32[1,192], index: 3, kind: input, shape index: {}]
  %s4 = inlined_call_operand.vmem [shape: f32[8,2,32], index: 4, kind: output, shape index: {0}]
  %s5 = inlined_call_operand.vmem [shape: f32[8,2,32], index: 5, kind: output, shape index: {1}]
  %6 = xla_tuple %s4, %s5
  %s7 = sld [smem:[#allocation0]]
  $region45: #{speech_recognition_forward.24} parent=0
    _
  %s9 = ssub.s32 1, %s7
  %s10 = scalar_select 0, %s9, %s7
  // Predicated region
  $region2: #{speech_recognition_forward.24} parent=0 // pred_check
    _
  $region3: #{speech_recognition_forward.24} parent=0 // pred_check_branch
    %12 = sbr.rel (0) target = $region5
  $region4: #{speech_recognition_forward.24} parent=0 // pred_region
    _
  $region5: #{speech_recognition_forward.24} parent=0 // pred_fallthru
    _
  // Predicated region
  $region6: #{speech_recognition_forward.24} parent=0 // pred_check
    _
  $region7: #{speech_recognition_forward.24} parent=0 // pred_check_branch
    %14 = sbr.rel (0) target = $region9
  $region8: #{speech_recognition_forward.24} parent=0 // pred_region
    %s15 = ssub.s32 0, 0
    %s16 = smul.u32 8, %s15
    %p17 = scmp.lt.s32.totalorder %s16, 7
    %s18 = scalar_select %p17, %s16, 7
    %s19 = sadd.s32 %s18, 8
    %s20 = smul.addr %s19, 2
    %s21 = scalar_lea.vmem %s1, %s20
    %s22 = ssub.s32 0, 0
    %s23 = smul.u32 8, %s22
  $region9: #{speech_recognition_forward.24} parent=0 // pred_fallthru
    _
  // Predicated region
  $region10: #{speech_recognition_forward.24} parent=0 // pred_check
    _
  $region11: #{speech_recognition_forward.24} parent=0 // pred_check_branch
    %25 = sbr.rel (0) target = $region13
  $region12: #{speech_recognition_forward.24} parent=0 // pred_region
    _
  $region13: #{speech_recognition_forward.24} parent=0 // pred_fallthru
    _
  // Predicated region
  $region14: #{speech_recognition_forward.24} parent=0 // pred_check
    _
  $region15: #{speech_recognition_forward.24} parent=0 // pred_check_branch
    %27 = sbr.rel (0) target = $region17
  $region16: #{speech_recognition_forward.24} parent=0 // pred_region
    _
  $region17: #{speech_recognition_forward.24} parent=0 // pred_fallthru
    _
  %s28 = ssub.s32 0, 0
  %s29 = smul.u32 8, %s28
  %p30 = scmp.lt.s32.totalorder %s29, 7
  %s31 = scalar_select %p30, %s29, 7
  %s32 = sadd.s32 %s31, 8
  %s33 = smul.addr %s32, 2
  %s34 = scalar_lea.vmem %s1, %s33
  %s35 = ssub.s32 0, 0
  %s36 = smul.u32 8, %s35
  %p37 = scmp.lt.s32.totalorder %s36, 7
  %s38 = scalar_select %p37, %s36, 7
  %s39 = smul.addr %s38, 2
  %s40 = scalar_lea.vmem %s5, %s39
  %s41 = ssub.s32 0, 0
  %s42 = smul.u32 8, %s41
  %p43 = scmp.lt.s32.totalorder %s42, 7
  %s44 = scalar_select %p43, %s42, 7
  %s45 = sadd.s32 %s44, 8
  %s46 = smul.addr %s45, 2
  %s47 = scalar_lea.vmem %s1, %s46
  %s48 = ssub.s32 0, 0
  %s49 = smul.u32 8, %s48
  %s50 = ssub.s32 0, 0
  %s51 = smul.u32 8, %s50
  %p52 = scmp.lt.s32.totalorder %s51, 7
  %s53 = scalar_select %p52, %s51, 7
  %s54 = smul.addr %s53, 2
  %s55 = scalar_lea.vmem %s5, %s54
  %s56 = ssub.s32 0, 0
  %s57 = smul.u32 8, %s56
  %p58 = scmp.eq.s32.totalorder 0, 0
  // Predicated region
  $region18: #{speech_recognition_forward.24} parent=0 // pred_check
    %p59 = pneg %p58
  $region19: #{speech_recognition_forward.24} parent=0 // pred_check_branch
    %61 = sbr.rel (%p59) target = $region21
  $region20: #{speech_recognition_forward.24} parent=0 // pred_region
    %vm62 = vcmask 517120
    %63 = vst.msk [vmem:[#allocation2] sm:$0x3] %vm62, 0.0
  $region21: #{speech_recognition_forward.24} parent=0 // pred_fallthru
    _
  %v64 = vld [vmem:[%s2] sm:$0xff]
  %v65 = vld [vmem:[%s2 + $0x8] sm:$0xff]
  %v66 = vld [vmem:[%s2 + $0x10] sm:$0xff]
  %v67 = vld [vmem:[%s2 + $0x18] sm:$0xff]
  %v68 = vld [vmem:[%s2 + $0x20] sm:$0xff]
  %v69 = vld [vmem:[%s2 + $0x28] sm:$0xff]
  %v70 = vld [vmem:[%s2 + $0x30] sm:$0xff]
  %v71 = vld [vmem:[%s2 + $0x38] sm:$0xff]
  %v72 = vld [vmem:[%s2 + $0x40] sm:$0xff]
  %v73 = vld [vmem:[%s2 + $0x48] sm:$0xff]
  %v74 = vld [vmem:[%s2 + $0x50] sm:$0xff]
  %v75 = vld [vmem:[%s2 + $0x58] sm:$0xff]
  %v76 = vld [vmem:[%s2 + $0x60] sm:$0xff]
  %v77 = vld [vmem:[%s2 + $0x68] sm:$0xff]
  %v78 = vld [vmem:[%s2 + $0x70] sm:$0xff]
  %v79 = vld [vmem:[%s2 + $0x78] sm:$0xff]
  %v80 = vld [vmem:[%s3] sm:$0x3]
  %v81 = vld [vmem:[#allocation2] sm:$0x3]
  loop: start=0, step=1, limit=8
  $region22: #{speech_recognition_forward.24} parent=0 // loop_pre_header
    _
  $region23: #{speech_recognition_forward.24} parent=0 // loop_header
    %s83 = sphi 0, %s87
    %p84 = scmp.ge.s32.totalorder %s83, 8
    %v88 = vphi %v81, %v264
  $region24: #{speech_recognition_forward.24} parent=0 // loop_header_branch
    %86 = sbr.rel (%p84) target = $region28
  $region25: #{speech_recognition_forward.24} parent=0 // loop_body
    %s89 = smul.u32 %s83, 2
    %s90 = scalar_lea.vmem %s0, %s89
    %v91 = vld [vmem:[%s90] sm:$0x3]
    %s92 = ssub.s32 7, %s83
    %s93 = smul.u32 %s92, 2
    %s94 = scalar_lea.vmem %s47, %s93
    %v95 = vld [vmem:[%s94] sm:$0x3]
    %v97 = vlaneseq
    %v98 = vshrl.u32 %v97, 7
    %v99 = vsub.s32 0, %v98
    %v100 = vrot.slane %v80, %v99
    %v101 = vlaneseq
    %v102 = vshrl.u32 %v101, 7
    %v103 = vsub.s32 1, %v102
    %v104 = vrot.slane %v80, %v103
    %vm107 = vcmask 523264
    %v109 = vsel %vm107, %v88, 0
    %111 = vmatprep.subr.mxu0 %v65
    %112 = vmatpush1.msra.mxu0 %v64
    %113 = vmatprep.subr.mxu0 %v67
    %114 = vmatpush1.msra.mxu0 %v66
    %115 = vmatprep.subr.mxu0 %v69
    %116 = vmatpush1.msra.mxu0 %v68
    %117 = vmatprep.subr.mxu0 %v71
    %118 = vmatpush1.msra.mxu0 %v70
    %119 = vmatprep.subr.mxu0 %v73
    %120 = vmatpush1.msra.mxu0 %v72
    %121 = vmatprep.subr.mxu0 %v75
    %122 = vmatpush1.msra.mxu0 %v74
    %123 = vmatprep.subr.mxu0 %v77
    %124 = vmatpush1.msra.mxu0 %v76
    %125 = vmatprep.subr.mxu0 %v79
    %126 = vmatpush1.msra.mxu0 %v78
    %127 = vmatprep.subr.mxu0 0.0
    %128 = vmatpush1.msra.mxu0 0.0
    %129 = vmatprep.subr.mxu0 0.0
    %130 = vmatpush1.msra.mxu0 0.0
    %131 = vmatprep.subr.mxu0 0.0
    %132 = vmatpush1.msra.mxu0 0.0
    %133 = vmatprep.subr.mxu0 0.0
    %134 = vmatpush1.msra.mxu0 0.0
    %135 = vmatprep.subr.mxu0 0.0
    %136 = vmatpush1.msra.mxu0 0.0
    %137 = vmatprep.subr.mxu0 0.0
    %138 = vmatpush1.msra.mxu0 0.0
    %139 = vmatprep.subr.mxu0 0.0
    %140 = vmatpush1.msra.mxu0 0.0
    %141 = vmatprep.subr.mxu0 0.0
    %142 = vmatpush1.msra.mxu0 0.0
    %143 = vmatprep.subr.mxu0 0.0
    %144 = vmatpush1.msra.mxu0 0.0
    %145 = vmatprep.subr.mxu0 0.0
    %146 = vmatpush1.msra.mxu0 0.0
    %147 = vmatprep.subr.mxu0 0.0
    %148 = vmatpush1.msra.mxu0 0.0
    %149 = vmatprep.subr.mxu0 0.0
    %150 = vmatpush1.msra.mxu0 0.0
    %151 = vmatprep.subr.mxu0 0.0
    %152 = vmatpush1.msra.mxu0 0.0
    %153 = vmatprep.subr.mxu0 0.0
    %154 = vmatpush1.msra.mxu0 0.0
    %155 = vmatprep.subr.mxu0 0.0
    %156 = vmatpush1.msra.mxu0 0.0
    %157 = vmatprep.subr.mxu0 0.0
    %158 = vmatpush1.msra.mxu0 0.0
    %159 = vmatprep.subr.mxu0 0.0
    %160 = vmatpush1.msra.mxu0 0.0
    %161 = vmatprep.subr.mxu0 0.0
    %162 = vmatpush1.msra.mxu0 0.0
    %163 = vmatprep.subr.mxu0 0.0
    %164 = vmatpush1.msra.mxu0 0.0
    %165 = vmatprep.subr.mxu0 0.0
    %166 = vmatpush1.msra.mxu0 0.0
    %167 = vmatprep.subr.mxu0 0.0
    %168 = vmatpush1.msra.mxu0 0.0
    %169 = vmatprep.subr.mxu0 0.0
    %170 = vmatpush1.msra.mxu0 0.0
    %171 = vmatprep.subr.mxu0 0.0
    %172 = vmatpush1.msra.mxu0 0.0
    %173 = vmatprep.subr.mxu0 0.0
    %174 = vmatpush1.msra.mxu0 0.0
    %175 = vmatprep.mubr.f32.mxu0 0.0
    %176 = vmatmul.mubr.f32.gmra.mrb[0].mxu0 %v109
    %v177 = vpop.f32.mrb[0].mxu0
    %v178 = vadd.f32 %v100, %v177
    %v179 = vpop.f32.mrb[0].mxu0
    %v180 = vadd.f32 %v104, %v179
    %181 = vdwg.mxu0
    %v182 = vadd.f32 %v91, %v178
    %v183 = vxor.u32 %v182, 2147483648
    %v184 = vmul.f32 %v183, 1.442695
    %v185 = vpow.pop %v184
    %v186 = vadd.f32 %v185, 1.0
    %v187 = vrcp.pop %v186
    %v188 = vmul.f32 1.0, %v187
    %190 = vrot.lane.b32.xlu0 %v178, 64
    %v191 = vpop.permute.xlu0 %190
    %v193 = vmul.f32 %v188, %v191
    %195 = vrot.lane.b32.xlu0 %v193, 64
    %v196 = vpop.permute.xlu0 %195
    %v198 = vadd.f32 %v91, %v196
    %v199 = vtanh.pop %v198
    %v200 = vsub.f32 1.0, %v188
    %202 = vrot.lane.b32.xlu0 %v199, 96
    %v203 = vpop.permute.xlu0 %202
    %v205 = vmul.f32 %v200, %v203
    %206 = vrot.lane.b32.xlu0 %v88, 32
    %v207 = vpop.permute.xlu0 %206
    %v209 = vmul.f32 %v188, %v207
    %v210 = vadd.f32 %v205, %v209
    %211 = vrot.lane.b32.xlu0 %v178, 32
    %v212 = vpop.permute.xlu0 %211
    %v214 = vadd.f32 %v95, %v212
    %v215 = vxor.u32 %v214, 2147483648
    %v216 = vmul.f32 %v215, 1.442695
    %v217 = vpow.pop %v216
    %v218 = vadd.f32 %v217, 1.0
    %v219 = vrcp.pop %v218
    %v220 = vmul.f32 1.0, %v219
    %222 = vrot.lane.b32.xlu0 %v180, 32
    %v223 = vpop.permute.xlu0 %222
    %v225 = vadd.f32 %v95, %v223
    %v226 = vxor.u32 %v225, 2147483648
    %v227 = vmul.f32 %v226, 1.442695
    %v228 = vpow.pop %v227
    %v229 = vadd.f32 %v228, 1.0
    %v230 = vrcp.pop %v229
    %v231 = vmul.f32 1.0, %v230
    %232 = vrot.lane.b32.xlu0 %v180, 96
    %v233 = vpop.permute.xlu0 %232
    %v235 = vmul.f32 %v220, %v233
    %237 = vrot.lane.b32.xlu0 %v235, 64
    %v238 = vpop.permute.xlu0 %237
    %v240 = vadd.f32 %v95, %v238
    %v241 = vtanh.pop %v240
    %v242 = vsub.f32 1.0, %v231
    %244 = vrot.lane.b32.xlu0 %v241, 96
    %v245 = vpop.permute.xlu0 %244
    %v247 = vmul.f32 %v242, %v245
    %v248 = vmul.f32 %v231, %v88
    %v249 = vadd.f32 %v247, %v248
    %251 = vrot.lane.b32.xlu0 %v210, 96
    %v252 = vpop.permute.xlu0 %251
    %s254 = scalar_lea.vmem %s4, %s89
    %vm255 = vcmask 254976
    %256 = vst.msk [vmem:[%s254] sm:$0x3] %vm255, %v252
    %258 = vrot.lane.b32.xlu0 %v249, 96
    %v259 = vpop.permute.xlu0 %258
    %s261 = scalar_lea.vmem %s55, %s93
    %262 = vst.msk [vmem:[%s261] sm:$0x3] %vm255, %v259
    %vm263 = vcmask 261120
    %v264 = vsel %vm263, %v252, %v249
  $region26: #{speech_recognition_forward.24} parent=0 // loop_footer
    %s87 = sadd.s32 1, %s83
  $region27: #{speech_recognition_forward.24} parent=0 // loop_footer_branch
    %82 = sbr.rel target = $region23
  $region28: #{speech_recognition_forward.24} parent=0 // loop_exit
    _
  %vm265 = vcmask 517120
  %266 = vst.msk [vmem:[#allocation2] sm:$0x3] %vm265, %v88
  %s267 = ssub.s32 0, 0
  %s268 = smul.u32 8, %s267
  %p269 = scmp.lt.s32.totalorder %s268, 7
  %s270 = scalar_select %p269, %s268, 7
  %s271 = smul.addr %s270, 2
  %s272 = scalar_lea.vmem %s5, %s271
  // Predicated region
  $region29: #{speech_recognition_forward.24} parent=0 // pred_check
    _
  $region30: #{speech_recognition_forward.24} parent=0 // pred_check_branch
    %274 = sbr.rel (0) target = $region32
  $region31: #{speech_recognition_forward.24} parent=0 // pred_region
    _
  $region32: #{speech_recognition_forward.24} parent=0 // pred_fallthru
    _
  // Predicated region
  $region33: #{speech_recognition_forward.24} parent=0 // pred_check
    _
  $region34: #{speech_recognition_forward.24} parent=0 // pred_check_branch
    %276 = sbr.rel (0) target = $region36
  $region35: #{speech_recognition_forward.24} parent=0 // pred_region
    %s277 = ssub.s32 0, 0
    %s278 = smul.u32 8, %s277
  $region36: #{speech_recognition_forward.24} parent=0 // pred_fallthru
    _
  // Predicated region
  $region37: #{speech_recognition_forward.24} parent=0 // pred_check
    _
  $region38: #{speech_recognition_forward.24} parent=0 // pred_check_branch
    %280 = sbr.rel (0) target = $region40
  $region39: #{speech_recognition_forward.24} parent=0 // pred_region
    _
  $region40: #{speech_recognition_forward.24} parent=0 // pred_fallthru
    _
  // Predicated region
  $region41: #{speech_recognition_forward.24} parent=0 // pred_check
    _
  $region42: #{speech_recognition_forward.24} parent=0 // pred_check_branch
    %282 = sbr.rel (0) target = $region44
  $region43: #{speech_recognition_forward.24} parent=0 // pred_region
    %s283 = ssub.s32 0, 0
    %s284 = smul.u32 8, %s283
    %p285 = scmp.lt.s32.totalorder %s284, 7
    %s286 = scalar_select %p285, %s284, 7
    %s287 = smul.addr %s286, 2
    %s288 = scalar_lea.vmem %s5, %s287
  $region44: #{speech_recognition_forward.24} parent=0 // pred_fallthru
    _

// kernel: speech_recognition_forward.23
$region0: #{speech_recognition_forward.23}
  #allocation0 [shape = 'u32[]', space=smem, size = 0x4, offset = 0x4, fixed_abs, tag = 'smem constant byte address 0x4 - core index']
  #allocation1 [shape = 'u32[144,128]{1,0:T(1,128)}', space=vmem, size = 0x12000, scoped, tag = 'internal scratch']
  %s0 = inlined_call_operand.vmem [shape: f32[16,256], index: 0, kind: input, shape index: {}]
  %s1 = inlined_call_operand.vmem [shape: f32[256,32], index: 1, kind: input, shape index: {}]
  %s2 = inlined_call_operand.vmem [shape: f32[1,32], index: 2, kind: input, shape index: {}]
  %s3 = inlined_call_operand.vmem [shape: f32[1,32], index: 3, kind: input, shape index: {}]
  %s4 = inlined_call_operand.vmem [shape: f32[1,32], index: 4, kind: input, shape index: {}]
  %s5 = inlined_call_operand.vmem [shape: f32[32,192], index: 5, kind: input, shape index: {}]
  %s6 = inlined_call_operand.vmem [shape: f32[1,192], index: 6, kind: input, shape index: {}]
  %s7 = inlined_call_operand.vmem [shape: f32[2,16,96], index: 7, kind: output, shape index: {}]
  %s8 = sld [smem:[#allocation0]]
  $region38: #{speech_recognition_forward.23} parent=0
    _
  %s10 = ssub.s32 1, %s8
  %s11 = scalar_select 0, %s10, %s8
  // Predicated region
  $region2: #{speech_recognition_forward.23} parent=0 // pred_check
    _
  $region3: #{speech_recognition_forward.23} parent=0 // pred_check_branch
    %13 = sbr.rel (0) target = $region5
  $region4: #{speech_recognition_forward.23} parent=0 // pred_region
    _
  $region5: #{speech_recognition_forward.23} parent=0 // pred_fallthru
    _
  // Predicated region
  $region6: #{speech_recognition_forward.23} parent=0 // pred_check
    _
  $region7: #{speech_recognition_forward.23} parent=0 // pred_check_branch
    %15 = sbr.rel (0) target = $region9
  $region8: #{speech_recognition_forward.23} parent=0 // pred_region
    _
  $region9: #{speech_recognition_forward.23} parent=0 // pred_fallthru
    _
  // Predicated region
  $region10: #{speech_recognition_forward.23} parent=0 // pred_check
    _
  $region11: #{speech_recognition_forward.23} parent=0 // pred_check_branch
    %17 = sbr.rel (0) target = $region13
  $region12: #{speech_recognition_forward.23} parent=0 // pred_region
    _
  $region13: #{speech_recognition_forward.23} parent=0 // pred_fallthru
    _
  // Predicated region
  $region14: #{speech_recognition_forward.23} parent=0 // pred_check
    _
  $region15: #{speech_recognition_forward.23} parent=0 // pred_check_branch
    %19 = sbr.rel (0) target = $region17
  $region16: #{speech_recognition_forward.23} parent=0 // pred_region
    _
  $region17: #{speech_recognition_forward.23} parent=0 // pred_fallthru
    _
  // Predicated region
  $region18: #{speech_recognition_forward.23} parent=0 // pred_check
    _
  $region19: #{speech_recognition_forward.23} parent=0 // pred_check_branch
    %21 = sbr.rel (0) target = $region21
  $region20: #{speech_recognition_forward.23} parent=0 // pred_region
    _
  $region21: #{speech_recognition_forward.23} parent=0 // pred_fallthru
    _
  // Predicated region
  $region22: #{speech_recognition_forward.23} parent=0 // pred_check
    _
  $region23: #{speech_recognition_forward.23} parent=0 // pred_check_branch
    %23 = sbr.rel (0) target = $region25
  $region24: #{speech_recognition_forward.23} parent=0 // pred_region
    _
  $region25: #{speech_recognition_forward.23} parent=0 // pred_fallthru
    _
  // Predicated region
  $region26: #{speech_recognition_forward.23} parent=0 // pred_check
    _
  $region27: #{speech_recognition_forward.23} parent=0 // pred_check_branch
    %25 = sbr.rel (0) target = $region29
  $region28: #{speech_recognition_forward.23} parent=0 // pred_region
    _
  $region29: #{speech_recognition_forward.23} parent=0 // pred_fallthru
    _
  %v26 = vld [vmem:[%s0] sm:$0xff]
  %v27 = vld [vmem:[%s0 + $0x8] sm:$0xff]
  %v28 = vld [vmem:[%s0 + $0x10] sm:$0xff]
  %v29 = vld [vmem:[%s0 + $0x18] sm:$0xff]
  %v30 = vld [vmem:[%s1] sm:$0xff]
  %v31 = vld [vmem:[%s1 + $0x8] sm:$0xff]
  %v32 = vld [vmem:[%s1 + $0x10] sm:$0xff]
  %v33 = vld [vmem:[%s1 + $0x18] sm:$0xff]
  %v34 = vld [vmem:[%s1 + $0x20] sm:$0xff]
  %v35 = vld [vmem:[%s1 + $0x28] sm:$0xff]
  %v36 = vld [vmem:[%s1 + $0x30] sm:$0xff]
  %v37 = vld [vmem:[%s1 + $0x38] sm:$0xff]
  %v38 = vld [vmem:[%s1 + $0x40] sm:$0xff]
  %v39 = vld [vmem:[%s1 + $0x48] sm:$0xff]
  %v40 = vld [vmem:[%s1 + $0x50] sm:$0xff]
  %v41 = vld [vmem:[%s1 + $0x58] sm:$0xff]
  %v42 = vld [vmem:[%s1 + $0x60] sm:$0xff]
  %v43 = vld [vmem:[%s1 + $0x68] sm:$0xff]
  %v44 = vld [vmem:[%s1 + $0x70] sm:$0xff]
  %v45 = vld [vmem:[%s1 + $0x78] sm:$0xff]
  %v46 = vld [vmem:[%s1 + $0x80] sm:$0xff]
  %v47 = vld [vmem:[%s1 + $0x88] sm:$0xff]
  %v48 = vld [vmem:[%s1 + $0x90] sm:$0xff]
  %v49 = vld [vmem:[%s1 + $0x98] sm:$0xff]
  %v50 = vld [vmem:[%s1 + $0xa0] sm:$0xff]
  %v51 = vld [vmem:[%s1 + $0xa8] sm:$0xff]
  %v52 = vld [vmem:[%s1 + $0xb0] sm:$0xff]
  %v53 = vld [vmem:[%s1 + $0xb8] sm:$0xff]
  %v54 = vld [vmem:[%s1 + $0xc0] sm:$0xff]
  %v55 = vld [vmem:[%s1 + $0xc8] sm:$0xff]
  %v56 = vld [vmem:[%s1 + $0xd0] sm:$0xff]
  %v57 = vld [vmem:[%s1 + $0xd8] sm:$0xff]
  %v58 = vld [vmem:[%s1 + $0xe0] sm:$0xff]
  %v59 = vld [vmem:[%s1 + $0xe8] sm:$0xff]
  %v60 = vld [vmem:[%s1 + $0xf0] sm:$0xff]
  %v61 = vld [vmem:[%s1 + $0xf8] sm:$0xff]
  %v62 = vld [vmem:[%s2] sm:$0x1]
  %v64 = vlaneseq
  %v65 = vshrl.u32 %v64, 7
  %v66 = vsub.s32 0, %v65
  %v67 = vrot.slane %v62, %v66
  %69 = vmatprep.subr.mxu0 0.0
  %70 = vmatpush1.msra.mxu0 %v30
  %71 = vmatprep.subr.mxu0 0.0
  %72 = vmatpush1.msra.mxu0 %v31
  %73 = vmatprep.subr.mxu0 0.0
  %74 = vmatpush1.msra.mxu0 %v32
  %75 = vmatprep.subr.mxu0 0.0
  %76 = vmatpush1.msra.mxu0 %v33
  %77 = vmatprep.subr.mxu0 0.0
  %78 = vmatpush1.msra.mxu0 %v34
  %79 = vmatprep.subr.mxu0 0.0
  %80 = vmatpush1.msra.mxu0 %v35
  %81 = vmatprep.subr.mxu0 0.0
  %82 = vmatpush1.msra.mxu0 %v36
  %83 = vmatprep.subr.mxu0 0.0
  %84 = vmatpush1.msra.mxu0 %v37
  %85 = vmatprep.subr.mxu0 0.0
  %86 = vmatpush1.msra.mxu0 %v38
  %87 = vmatprep.subr.mxu0 0.0
  %88 = vmatpush1.msra.mxu0 %v39
  %89 = vmatprep.subr.mxu0 0.0
  %90 = vmatpush1.msra.mxu0 %v40
  %91 = vmatprep.subr.mxu0 0.0
  %92 = vmatpush1.msra.mxu0 %v41
  %93 = vmatprep.subr.mxu0 0.0
  %94 = vmatpush1.msra.mxu0 %v42
  %95 = vmatprep.subr.mxu0 0.0
  %96 = vmatpush1.msra.mxu0 %v43
  %97 = vmatprep.subr.mxu0 0.0
  %98 = vmatpush1.msra.mxu0 %v44
  %99 = vmatprep.subr.mxu0 0.0
  %100 = vmatpush1.msra.mxu0 %v45
  %101 = vmatprep.subr.mxu0 0.0
  %102 = vmatpush1.msra.mxu0 %v46
  %103 = vmatprep.subr.mxu0 0.0
  %104 = vmatpush1.msra.mxu0 %v47
  %105 = vmatprep.subr.mxu0 0.0
  %106 = vmatpush1.msra.mxu0 %v48
  %107 = vmatprep.subr.mxu0 0.0
  %108 = vmatpush1.msra.mxu0 %v49
  %109 = vmatprep.subr.mxu0 0.0
  %110 = vmatpush1.msra.mxu0 %v50
  %111 = vmatprep.subr.mxu0 0.0
  %112 = vmatpush1.msra.mxu0 %v51
  %113 = vmatprep.subr.mxu0 0.0
  %114 = vmatpush1.msra.mxu0 %v52
  %115 = vmatprep.subr.mxu0 0.0
  %116 = vmatpush1.msra.mxu0 %v53
  %117 = vmatprep.subr.mxu0 0.0
  %118 = vmatpush1.msra.mxu0 %v54
  %119 = vmatprep.subr.mxu0 0.0
  %120 = vmatpush1.msra.mxu0 %v55
  %121 = vmatprep.subr.mxu0 0.0
  %122 = vmatpush1.msra.mxu0 %v56
  %123 = vmatprep.subr.mxu0 0.0
  %124 = vmatpush1.msra.mxu0 %v57
  %125 = vmatprep.subr.mxu0 0.0
  %126 = vmatpush1.msra.mxu0 %v58
  %127 = vmatprep.subr.mxu0 0.0
  %128 = vmatpush1.msra.mxu0 %v59
  %129 = vmatprep.subr.mxu0 0.0
  %130 = vmatpush1.msra.mxu0 %v60
  %131 = vmatprep.subr.mxu0 0.0
  %132 = vmatpush1.msra.mxu0 %v61
  %133 = vmatprep.mubr.f32.mxu0 %v27
  %134 = vmatmul.mubr.f32.gmra.mrb[0].mxu0 %v26
  %v135 = vpop.f32.mrb[0].mxu0
  %v136 = vadd.f32 %v67, %v135
  %v137 = vpop.f32.mrb[0].mxu0
  %138 = vmatprep.mubr.f32.mxu0 %v29
  %139 = vmatmul.mubr.f32.gmra.mrb[0].mxu0 %v28
  %v140 = vpop.f32.mrb[0].mxu0
  %v141 = vadd.f32 %v67, %v140
  %v142 = vpop.f32.mrb[0].mxu0
  %143 = vdwg.mxu0
  %vm144 = vcmask 261120
  %v145 = vsel %vm144, %v136, 0.0
  %146 = vadd.xlane.f32.xlu0 %v145
  %v147 = vpop.xlane.xlu0 %146
  %v148 = vsel %vm144, %v141, 0.0
  %149 = vadd.xlane.f32.xlu0 %v148
  %v150 = vpop.xlane.xlu0 %149
  %v151 = vrcp.pop 32.0
  %v152 = vmul.f32 %v147, %v151
  %v153 = vmul.f32 %v150, %v151
  %v154 = vsub.f32 %v136, %v152
  %v155 = vsub.f32 %v141, %v153
  %v156 = vmul.f32 %v154, %v154
  %v157 = vmul.f32 %v155, %v155
  %v158 = vsel %vm144, %v156, 0.0
  %159 = vadd.xlane.f32.xlu0 %v158
  %v160 = vpop.xlane.xlu0 %159
  %v161 = vsel %vm144, %v157, 0.0
  %162 = vadd.xlane.f32.xlu0 %v161
  %v163 = vpop.xlane.xlu0 %162
  %v164 = vmul.f32 %v160, %v151
  %v165 = vmul.f32 %v163, %v151
  %v166 = vadd.f32 %v164, 1e-05
  %v167 = vadd.f32 %v165, 1e-05
  %v168 = vrsqrt.pop %v166
  %v169 = vrsqrt.pop %v167
  %v170 = vmul.f32 %v154, %v168
  %v171 = vmul.f32 %v155, %v169
  %v172 = vld [vmem:[%s3] sm:$0x1]
  %v174 = vlaneseq
  %v175 = vshrl.u32 %v174, 7
  %v176 = vsub.s32 0, %v175
  %v177 = vrot.slane %v172, %v176
  %v179 = vmul.f32 %v170, %v177
  %v180 = vmul.f32 %v171, %v177
  %v181 = vld [vmem:[%s4] sm:$0x1]
  %v183 = vlaneseq
  %v184 = vshrl.u32 %v183, 7
  %v185 = vsub.s32 0, %v184
  %v186 = vrot.slane %v181, %v185
  %v188 = vadd.f32 %v179, %v186
  %v189 = vadd.f32 %v180, %v186
  %v190 = vmul.f32 %v188, 0.5
  %v191 = vmul.f32 %v189, 0.5
  %v192 = vmul.f32 %v188, 0.70710677
  %v193 = vmul.f32 %v189, 0.70710677
  %vm194 = vcmp.ge.f32.partialorder %v192, 0.0
  %vm195 = vcmp.ge.f32.partialorder %v193, 0.0
  %v196 = vsel %vm194, 1.0, -1.0
  %v197 = vsel %vm195, 1.0, -1.0
  %v198 = vand.u32 2147483647, %v192
  %v199 = vand.u32 2147483647, %v193
  %v200 = vmul.f32 %v198, 0.3275911
  %v201 = vmul.f32 %v199, 0.3275911
  %v202 = vadd.f32 %v200, 1.0
  %v203 = vadd.f32 %v201, 1.0
  %v204 = vrcp.pop %v202
  %v205 = vmul.f32 1.0, %v204
  %v206 = vrcp.pop %v203
  %v207 = vmul.f32 1.0, %v206
  %v208 = vmul.f32 %v205, 1.0614054
  %v209 = vmul.f32 %v207, 1.0614054
  %v210 = vadd.f32 %v208, -1.4531521
  %v211 = vadd.f32 %v209, -1.4531521
  %v212 = vmul.f32 %v210, %v205
  %v213 = vmul.f32 %v211, %v207
  %v214 = vadd.f32 %v212, 1.4214138
  %v215 = vadd.f32 %v213, 1.4214138
  %v216 = vmul.f32 %v214, %v205
  %v217 = vmul.f32 %v215, %v207
  %v218 = vadd.f32 %v216, -0.28449672
  %v219 = vadd.f32 %v217, -0.28449672
  %v220 = vmul.f32 %v218, %v205
  %v221 = vmul.f32 %v219, %v207
  %v222 = vadd.f32 %v220, 0.2548296
  %v223 = vadd.f32 %v221, 0.2548296
  %v224 = vmul.f32 %v222, %v205
  %v225 = vmul.f32 %v223, %v207
  %v226 = vsub.f32 0.0, %v198
  %v227 = vsub.f32 0.0, %v199
  %v228 = vmul.f32 %v226, %v198
  %v229 = vmul.f32 %v227, %v199
  %v230 = vmul.f32 %v228, 1.442695
  %v231 = vpow.pop %v230
  %v232 = vmul.f32 %v229, 1.442695
  %v233 = vpow.pop %v232
  %v234 = vmul.f32 %v224, %v231
  %v235 = vmul.f32 %v225, %v233
  %v236 = vsub.f32 1.0, %v234
  %v237 = vsub.f32 1.0, %v235
  %v238 = vmul.f32 %v196, %v236
  %v239 = vmul.f32 %v197, %v237
  %v240 = vadd.f32 %v238, 1.0
  %v241 = vadd.f32 %v239, 1.0
  %v242 = vmul.f32 %v190, %v240
  %v243 = vmul.f32 %v191, %v241
  %v244 = vld [vmem:[%s5] sm:$0xff]
  %v245 = vld [vmem:[%s5 + $0x8] sm:$0xff]
  %v246 = vld [vmem:[%s5 + $0x10] sm:$0xff]
  %v247 = vld [vmem:[%s5 + $0x18] sm:$0xff]
  %v248 = vld [vmem:[%s5 + $0x20] sm:$0xff]
  %v249 = vld [vmem:[%s5 + $0x28] sm:$0xff]
  %v250 = vld [vmem:[%s5 + $0x30] sm:$0xff]
  %v251 = vld [vmem:[%s5 + $0x38] sm:$0xff]
  %v252 = vld [vmem:[%s6] sm:$0x3]
  %v254 = vlaneseq
  %v255 = vshrl.u32 %v254, 7
  %v256 = vsub.s32 0, %v255
  %v257 = vrot.slane %v252, %v256
  %v258 = vlaneseq
  %v259 = vshrl.u32 %v258, 7
  %v260 = vsub.s32 1, %v259
  %v261 = vrot.slane %v252, %v260
  %v265 = vsel %vm144, %v242, 0
  %v268 = vsel %vm144, %v243, 0
  %270 = vmatprep.subr.mxu0 %v245
  %271 = vmatpush1.msra.mxu0 %v244
  %272 = vmatprep.subr.mxu0 %v247
  %273 = vmatpush1.msra.mxu0 %v246
  %274 = vmatprep.subr.mxu0 %v249
  %275 = vmatpush1.msra.mxu0 %v248
  %276 = vmatprep.subr.mxu0 %v251
  %277 = vmatpush1.msra.mxu0 %v250
  %278 = vmatprep.subr.mxu0 0.0
  %279 = vmatpush1.msra.mxu0 0.0
  %280 = vmatprep.subr.mxu0 0.0
  %281 = vmatpush1.msra.mxu0 0.0
  %282 = vmatprep.subr.mxu0 0.0
  %283 = vmatpush1.msra.mxu0 0.0
  %284 = vmatprep.subr.mxu0 0.0
  %285 = vmatpush1.msra.mxu0 0.0
  %286 = vmatprep.subr.mxu0 0.0
  %287 = vmatpush1.msra.mxu0 0.0
  %288 = vmatprep.subr.mxu0 0.0
  %289 = vmatpush1.msra.mxu0 0.0
  %290 = vmatprep.subr.mxu0 0.0
  %291 = vmatpush1.msra.mxu0 0.0
  %292 = vmatprep.subr.mxu0 0.0
  %293 = vmatpush1.msra.mxu0 0.0
  %294 = vmatprep.subr.mxu0 0.0
  %295 = vmatpush1.msra.mxu0 0.0
  %296 = vmatprep.subr.mxu0 0.0
  %297 = vmatpush1.msra.mxu0 0.0
  %298 = vmatprep.subr.mxu0 0.0
  %299 = vmatpush1.msra.mxu0 0.0
  %300 = vmatprep.subr.mxu0 0.0
  %301 = vmatpush1.msra.mxu0 0.0
  %302 = vmatprep.subr.mxu0 0.0
  %303 = vmatpush1.msra.mxu0 0.0
  %304 = vmatprep.subr.mxu0 0.0
  %305 = vmatpush1.msra.mxu0 0.0
  %306 = vmatprep.subr.mxu0 0.0
  %307 = vmatpush1.msra.mxu0 0.0
  %308 = vmatprep.subr.mxu0 0.0
  %309 = vmatpush1.msra.mxu0 0.0
  %310 = vmatprep.subr.mxu0 0.0
  %311 = vmatpush1.msra.mxu0 0.0
  %312 = vmatprep.subr.mxu0 0.0
  %313 = vmatpush1.msra.mxu0 0.0
  %314 = vmatprep.subr.mxu0 0.0
  %315 = vmatpush1.msra.mxu0 0.0
  %316 = vmatprep.subr.mxu0 0.0
  %317 = vmatpush1.msra.mxu0 0.0
  %318 = vmatprep.subr.mxu0 0.0
  %319 = vmatpush1.msra.mxu0 0.0
  %320 = vmatprep.subr.mxu0 0.0
  %321 = vmatpush1.msra.mxu0 0.0
  %322 = vmatprep.subr.mxu0 0.0
  %323 = vmatpush1.msra.mxu0 0.0
  %324 = vmatprep.subr.mxu0 0.0
  %325 = vmatpush1.msra.mxu0 0.0
  %326 = vmatprep.subr.mxu0 0.0
  %327 = vmatpush1.msra.mxu0 0.0
  %328 = vmatprep.subr.mxu0 0.0
  %329 = vmatpush1.msra.mxu0 0.0
  %330 = vmatprep.subr.mxu0 0.0
  %331 = vmatpush1.msra.mxu0 0.0
  %332 = vmatprep.subr.mxu0 0.0
  %333 = vmatpush1.msra.mxu0 0.0
  %334 = vmatprep.mubr.f32.mxu0 0.0
  %335 = vmatmul.mubr.f32.gmra.mrb[0].mxu0 %v265
  %v336 = vpop.f32.mrb[0].mxu0
  %v337 = vadd.f32 %v257, %v336
  %v338 = vpop.f32.mrb[0].mxu0
  %v339 = vadd.f32 %v261, %v338
  %340 = vmatprep.mubr.f32.mxu0 0.0
  %341 = vmatmul.mubr.f32.gmra.mrb[0].mxu0 %v268
  %v342 = vpop.f32.mrb[0].mxu0
  %v343 = vadd.f32 %v257, %v342
  %v344 = vpop.f32.mrb[0].mxu0
  %v345 = vadd.f32 %v261, %v344
  %346 = vdwg.mxu0
  %vm347 = vcmask 785408
  %348 = vst.msk [vmem:[%s7] sm:$0xff] %vm347, %v337
  %349 = vst.msk [vmem:[%s7 + $0x8] sm:$0xff] %vm347, %v343
  %354 = vrot.lane.b32.xlu0 %v337, 32
  %v355 = vpop.permute.xlu0 %354
  %356 = vrot.lane.b32.xlu0 %v339, 32
  %v357 = vpop.permute.xlu0 %356
  %358 = vrot.lane.b32.xlu0 %v343, 32
  %v359 = vpop.permute.xlu0 %358
  %360 = vrot.lane.b32.xlu0 %v345, 32
  %v361 = vpop.permute.xlu0 %360
  %v362 = vsel %vm144, %v355, %v357
  %v363 = vsel %vm144, %v359, %v361
  %s366 = scalar_lea.vmem %s7, 16
  %367 = vst.msk [vmem:[%s366] sm:$0xff] %vm347, %v362
  %368 = vst.msk [vmem:[%s366 + $0x8] sm:$0xff] %vm347, %v363
  // Predicated region
  $region30: #{speech_recognition_forward.23} parent=0 // pred_check
    _
  $region31: #{speech_recognition_forward.23} parent=0 // pred_check_branch
    %370 = sbr.rel (0) target = $region33
  $region32: #{speech_recognition_forward.23} parent=0 // pred_region
    _
  $region33: #{speech_recognition_forward.23} parent=0 // pred_fallthru
    _
  // Predicated region
  $region34: #{speech_recognition_forward.23} parent=0 // pred_check
    _
  $region35: #{speech_recognition_forward.23} parent=0 // pred_check_branch
    %372 = sbr.rel (0) target = $region37
  $region36: #{speech_recognition_forward.23} parent=0 // pred_region
    _
  $region37: #{speech_recognition_forward.23} parent=0 // pred_fallthru
    _

// kernel: speech_recognition_forward.27
$region0: #{speech_recognition_forward.27}
  #allocation0 [shape = 'u32[]', space=smem, size = 0x4, offset = 0x4, fixed_abs, tag = 'smem constant byte address 0x4 - core index']
  #allocation1 [shape = 'u32[144,128]{1,0:T(1,128)}', space=vmem, size = 0x12000, scoped, tag = 'internal scratch']
  %s0 = inlined_call_operand.vmem [shape: f32[16,32], index: 0, kind: input, shape index: {}]
  %s1 = inlined_call_operand.vmem [shape: f32[16,32], index: 1, kind: input, shape index: {}]
  %s2 = inlined_call_operand.vmem [shape: f32[64,32], index: 2, kind: input, shape index: {}]
  %s3 = inlined_call_operand.vmem [shape: f32[1,32], index: 3, kind: input, shape index: {}]
  %s4 = inlined_call_operand.vmem [shape: f32[32,10], index: 4, kind: input, shape index: {}]
  %s5 = inlined_call_operand.vmem [shape: f32[1,10], index: 5, kind: input, shape index: {}]
  %s6 = inlined_call_operand.vmem [shape: f32[16,10], index: 6, kind: output, shape index: {}]
  %s7 = sld [smem:[#allocation0]]
  $region34: #{speech_recognition_forward.27} parent=0
    _
  %s9 = ssub.s32 1, %s7
  %s10 = scalar_select 0, %s9, %s7
  // Predicated region
  $region2: #{speech_recognition_forward.27} parent=0 // pred_check
    _
  $region3: #{speech_recognition_forward.27} parent=0 // pred_check_branch
    %12 = sbr.rel (0) target = $region5
  $region4: #{speech_recognition_forward.27} parent=0 // pred_region
    _
  $region5: #{speech_recognition_forward.27} parent=0 // pred_fallthru
    _
  // Predicated region
  $region6: #{speech_recognition_forward.27} parent=0 // pred_check
    _
  $region7: #{speech_recognition_forward.27} parent=0 // pred_check_branch
    %14 = sbr.rel (0) target = $region9
  $region8: #{speech_recognition_forward.27} parent=0 // pred_region
    _
  $region9: #{speech_recognition_forward.27} parent=0 // pred_fallthru
    _
  // Predicated region
  $region10: #{speech_recognition_forward.27} parent=0 // pred_check
    _
  $region11: #{speech_recognition_forward.27} parent=0 // pred_check_branch
    %16 = sbr.rel (0) target = $region13
  $region12: #{speech_recognition_forward.27} parent=0 // pred_region
    _
  $region13: #{speech_recognition_forward.27} parent=0 // pred_fallthru
    _
  // Predicated region
  $region14: #{speech_recognition_forward.27} parent=0 // pred_check
    _
  $region15: #{speech_recognition_forward.27} parent=0 // pred_check_branch
    %18 = sbr.rel (0) target = $region17
  $region16: #{speech_recognition_forward.27} parent=0 // pred_region
    _
  $region17: #{speech_recognition_forward.27} parent=0 // pred_fallthru
    _
  // Predicated region
  $region18: #{speech_recognition_forward.27} parent=0 // pred_check
    _
  $region19: #{speech_recognition_forward.27} parent=0 // pred_check_branch
    %20 = sbr.rel (0) target = $region21
  $region20: #{speech_recognition_forward.27} parent=0 // pred_region
    _
  $region21: #{speech_recognition_forward.27} parent=0 // pred_fallthru
    _
  // Predicated region
  $region22: #{speech_recognition_forward.27} parent=0 // pred_check
    _
  $region23: #{speech_recognition_forward.27} parent=0 // pred_check_branch
    %22 = sbr.rel (0) target = $region25
  $region24: #{speech_recognition_forward.27} parent=0 // pred_region
    _
  $region25: #{speech_recognition_forward.27} parent=0 // pred_fallthru
    _
  %v23 = vld [vmem:[%s0] sm:$0xff]
  %v24 = vld [vmem:[%s0 + $0x8] sm:$0xff]
  %v25 = vld [vmem:[%s1] sm:$0xff]
  %v26 = vld [vmem:[%s1 + $0x8] sm:$0xff]
  %29 = vrot.lane.b32.xlu0 %v25, 32
  %v30 = vpop.permute.xlu0 %29
  %31 = vrot.lane.b32.xlu0 %v26, 32
  %v32 = vpop.permute.xlu0 %31
  %vm35 = vcmask 261120
  %v36 = vsel %vm35, %v23, %v30
  %v37 = vsel %vm35, %v24, %v32
  %v38 = vld [vmem:[%s2] sm:$0xff]
  %v39 = vld [vmem:[%s2 + $0x8] sm:$0xff]
  %v40 = vld [vmem:[%s2 + $0x10] sm:$0xff]
  %v41 = vld [vmem:[%s2 + $0x18] sm:$0xff]
  %v42 = vld [vmem:[%s2 + $0x20] sm:$0xff]
  %v43 = vld [vmem:[%s2 + $0x28] sm:$0xff]
  %v44 = vld [vmem:[%s2 + $0x30] sm:$0xff]
  %v45 = vld [vmem:[%s2 + $0x38] sm:$0xff]
  %v46 = vld [vmem:[%s3] sm:$0x1]
  %v48 = vlaneseq
  %v49 = vshrl.u32 %v48, 7
  %v50 = vsub.s32 0, %v49
  %v51 = vrot.slane %v46, %v50
  %vm53 = vcmask 523264
  %v55 = vsel %vm53, %v36, 0
  %v58 = vsel %vm53, %v37, 0
  %60 = vmatprep.subr.mxu0 0.0
  %61 = vmatpush1.msra.mxu0 %v38
  %62 = vmatprep.subr.mxu0 0.0
  %63 = vmatpush1.msra.mxu0 %v39
  %64 = vmatprep.subr.mxu0 0.0
  %65 = vmatpush1.msra.mxu0 %v40
  %66 = vmatprep.subr.mxu0 0.0
  %67 = vmatpush1.msra.mxu0 %v41
  %68 = vmatprep.subr.mxu0 0.0
  %69 = vmatpush1.msra.mxu0 %v42
  %70 = vmatprep.subr.mxu0 0.0
  %71 = vmatpush1.msra.mxu0 %v43
  %72 = vmatprep.subr.mxu0 0.0
  %73 = vmatpush1.msra.mxu0 %v44
  %74 = vmatprep.subr.mxu0 0.0
  %75 = vmatpush1.msra.mxu0 %v45
  %76 = vmatprep.subr.mxu0 0.0
  %77 = vmatpush1.msra.mxu0 0.0
  %78 = vmatprep.subr.mxu0 0.0
  %79 = vmatpush1.msra.mxu0 0.0
  %80 = vmatprep.subr.mxu0 0.0
  %81 = vmatpush1.msra.mxu0 0.0
  %82 = vmatprep.subr.mxu0 0.0
  %83 = vmatpush1.msra.mxu0 0.0
  %84 = vmatprep.subr.mxu0 0.0
  %85 = vmatpush1.msra.mxu0 0.0
  %86 = vmatprep.subr.mxu0 0.0
  %87 = vmatpush1.msra.mxu0 0.0
  %88 = vmatprep.subr.mxu0 0.0
  %89 = vmatpush1.msra.mxu0 0.0
  %90 = vmatprep.subr.mxu0 0.0
  %91 = vmatpush1.msra.mxu0 0.0
  %92 = vmatprep.subr.mxu0 0.0
  %93 = vmatpush1.msra.mxu0 0.0
  %94 = vmatprep.subr.mxu0 0.0
  %95 = vmatpush1.msra.mxu0 0.0
  %96 = vmatprep.subr.mxu0 0.0
  %97 = vmatpush1.msra.mxu0 0.0
  %98 = vmatprep.subr.mxu0 0.0
  %99 = vmatpush1.msra.mxu0 0.0
  %100 = vmatprep.subr.mxu0 0.0
  %101 = vmatpush1.msra.mxu0 0.0
  %102 = vmatprep.subr.mxu0 0.0
  %103 = vmatpush1.msra.mxu0 0.0
  %104 = vmatprep.subr.mxu0 0.0
  %105 = vmatpush1.msra.mxu0 0.0
  %106 = vmatprep.subr.mxu0 0.0
  %107 = vmatpush1.msra.mxu0 0.0
  %108 = vmatprep.subr.mxu0 0.0
  %109 = vmatpush1.msra.mxu0 0.0
  %110 = vmatprep.subr.mxu0 0.0
  %111 = vmatpush1.msra.mxu0 0.0
  %112 = vmatprep.subr.mxu0 0.0
  %113 = vmatpush1.msra.mxu0 0.0
  %114 = vmatprep.subr.mxu0 0.0
  %115 = vmatpush1.msra.mxu0 0.0
  %116 = vmatprep.subr.mxu0 0.0
  %117 = vmatpush1.msra.mxu0 0.0
  %118 = vmatprep.subr.mxu0 0.0
  %119 = vmatpush1.msra.mxu0 0.0
  %120 = vmatprep.subr.mxu0 0.0
  %121 = vmatpush1.msra.mxu0 0.0
  %122 = vmatprep.subr.mxu0 0.0
  %123 = vmatpush1.msra.mxu0 0.0
  %124 = vmatprep.mubr.f32.mxu0 0.0
  %125 = vmatmul.mubr.f32.gmra.mrb[0].mxu0 %v55
  %v126 = vpop.f32.mrb[0].mxu0
  %v127 = vadd.f32 %v51, %v126
  %v128 = vpop.f32.mrb[0].mxu0
  %129 = vmatprep.mubr.f32.mxu0 0.0
  %130 = vmatmul.mubr.f32.gmra.mrb[0].mxu0 %v58
  %v131 = vpop.f32.mrb[0].mxu0
  %v132 = vadd.f32 %v51, %v131
  %v133 = vpop.f32.mrb[0].mxu0
  %134 = vdwg.mxu0
  %v135 = vmul.f32 %v127, 0.5
  %v136 = vmul.f32 %v132, 0.5
  %v137 = vmul.f32 %v127, 0.70710677
  %v138 = vmul.f32 %v132, 0.70710677
  %vm139 = vcmp.ge.f32.partialorder %v137, 0.0
  %vm140 = vcmp.ge.f32.partialorder %v138, 0.0
  %v141 = vsel %vm139, 1.0, -1.0
  %v142 = vsel %vm140, 1.0, -1.0
  %v143 = vand.u32 2147483647, %v137
  %v144 = vand.u32 2147483647, %v138
  %v145 = vmul.f32 %v143, 0.3275911
  %v146 = vmul.f32 %v144, 0.3275911
  %v147 = vadd.f32 %v145, 1.0
  %v148 = vadd.f32 %v146, 1.0
  %v149 = vrcp.pop %v147
  %v150 = vmul.f32 1.0, %v149
  %v151 = vrcp.pop %v148
  %v152 = vmul.f32 1.0, %v151
  %v153 = vmul.f32 %v150, 1.0614054
  %v154 = vmul.f32 %v152, 1.0614054
  %v155 = vadd.f32 %v153, -1.4531521
  %v156 = vadd.f32 %v154, -1.4531521
  %v157 = vmul.f32 %v155, %v150
  %v158 = vmul.f32 %v156, %v152
  %v159 = vadd.f32 %v157, 1.4214138
  %v160 = vadd.f32 %v158, 1.4214138
  %v161 = vmul.f32 %v159, %v150
  %v162 = vmul.f32 %v160, %v152
  %v163 = vadd.f32 %v161, -0.28449672
  %v164 = vadd.f32 %v162, -0.28449672
  %v165 = vmul.f32 %v163, %v150
  %v166 = vmul.f32 %v164, %v152
  %v167 = vadd.f32 %v165, 0.2548296
  %v168 = vadd.f32 %v166, 0.2548296
  %v169 = vmul.f32 %v167, %v150
  %v170 = vmul.f32 %v168, %v152
  %v171 = vsub.f32 0.0, %v143
  %v172 = vsub.f32 0.0, %v144
  %v173 = vmul.f32 %v171, %v143
  %v174 = vmul.f32 %v172, %v144
  %v175 = vmul.f32 %v173, 1.442695
  %v176 = vpow.pop %v175
  %v177 = vmul.f32 %v174, 1.442695
  %v178 = vpow.pop %v177
  %v179 = vmul.f32 %v169, %v176
  %v180 = vmul.f32 %v170, %v178
  %v181 = vsub.f32 1.0, %v179
  %v182 = vsub.f32 1.0, %v180
  %v183 = vmul.f32 %v141, %v181
  %v184 = vmul.f32 %v142, %v182
  %v185 = vadd.f32 %v183, 1.0
  %v186 = vadd.f32 %v184, 1.0
  %v187 = vmul.f32 %v135, %v185
  %v188 = vmul.f32 %v136, %v186
  %v189 = vld [vmem:[%s4] sm:$0xff]
  %v190 = vld [vmem:[%s4 + $0x8] sm:$0xff]
  %v191 = vld [vmem:[%s4 + $0x10] sm:$0xff]
  %v192 = vld [vmem:[%s4 + $0x18] sm:$0xff]
  %v193 = vld [vmem:[%s5] sm:$0x1]
  %v195 = vlaneseq
  %v196 = vshrl.u32 %v195, 7
  %v197 = vsub.s32 0, %v196
  %v198 = vrot.slane %v193, %v197
  %v201 = vsel %vm35, %v187, 0
  %v204 = vsel %vm35, %v188, 0
  %206 = vmatprep.subr.mxu0 0.0
  %207 = vmatpush1.msra.mxu0 %v189
  %208 = vmatprep.subr.mxu0 0.0
  %209 = vmatpush1.msra.mxu0 %v190
  %210 = vmatprep.subr.mxu0 0.0
  %211 = vmatpush1.msra.mxu0 %v191
  %212 = vmatprep.subr.mxu0 0.0
  %213 = vmatpush1.msra.mxu0 %v192
  %214 = vmatprep.subr.mxu0 0.0
  %215 = vmatpush1.msra.mxu0 0.0
  %216 = vmatprep.subr.mxu0 0.0
  %217 = vmatpush1.msra.mxu0 0.0
  %218 = vmatprep.subr.mxu0 0.0
  %219 = vmatpush1.msra.mxu0 0.0
  %220 = vmatprep.subr.mxu0 0.0
  %221 = vmatpush1.msra.mxu0 0.0
  %222 = vmatprep.subr.mxu0 0.0
  %223 = vmatpush1.msra.mxu0 0.0
  %224 = vmatprep.subr.mxu0 0.0
  %225 = vmatpush1.msra.mxu0 0.0
  %226 = vmatprep.subr.mxu0 0.0
  %227 = vmatpush1.msra.mxu0 0.0
  %228 = vmatprep.subr.mxu0 0.0
  %229 = vmatpush1.msra.mxu0 0.0
  %230 = vmatprep.subr.mxu0 0.0
  %231 = vmatpush1.msra.mxu0 0.0
  %232 = vmatprep.subr.mxu0 0.0
  %233 = vmatpush1.msra.mxu0 0.0
  %234 = vmatprep.subr.mxu0 0.0
  %235 = vmatpush1.msra.mxu0 0.0
  %236 = vmatprep.subr.mxu0 0.0
  %237 = vmatpush1.msra.mxu0 0.0
  %238 = vmatprep.subr.mxu0 0.0
  %239 = vmatpush1.msra.mxu0 0.0
  %240 = vmatprep.subr.mxu0 0.0
  %241 = vmatpush1.msra.mxu0 0.0
  %242 = vmatprep.subr.mxu0 0.0
  %243 = vmatpush1.msra.mxu0 0.0
  %244 = vmatprep.subr.mxu0 0.0
  %245 = vmatpush1.msra.mxu0 0.0
  %246 = vmatprep.subr.mxu0 0.0
  %247 = vmatpush1.msra.mxu0 0.0
  %248 = vmatprep.subr.mxu0 0.0
  %249 = vmatpush1.msra.mxu0 0.0
  %250 = vmatprep.subr.mxu0 0.0
  %251 = vmatpush1.msra.mxu0 0.0
  %252 = vmatprep.subr.mxu0 0.0
  %253 = vmatpush1.msra.mxu0 0.0
  %254 = vmatprep.subr.mxu0 0.0
  %255 = vmatpush1.msra.mxu0 0.0
  %256 = vmatprep.subr.mxu0 0.0
  %257 = vmatpush1.msra.mxu0 0.0
  %258 = vmatprep.subr.mxu0 0.0
  %259 = vmatpush1.msra.mxu0 0.0
  %260 = vmatprep.subr.mxu0 0.0
  %261 = vmatpush1.msra.mxu0 0.0
  %262 = vmatprep.subr.mxu0 0.0
  %263 = vmatpush1.msra.mxu0 0.0
  %264 = vmatprep.subr.mxu0 0.0
  %265 = vmatpush1.msra.mxu0 0.0
  %266 = vmatprep.subr.mxu0 0.0
  %267 = vmatpush1.msra.mxu0 0.0
  %268 = vmatprep.subr.mxu0 0.0
  %269 = vmatpush1.msra.mxu0 0.0
  %270 = vmatprep.mubr.f32.mxu0 0.0
  %271 = vmatmul.mubr.f32.gmra.mrb[0].mxu0 %v201
  %v272 = vpop.f32.mrb[0].mxu0
  %v273 = vadd.f32 %v198, %v272
  %v274 = vpop.f32.mrb[0].mxu0
  %275 = vmatprep.mubr.f32.mxu0 0.0
  %276 = vmatmul.mubr.f32.gmra.mrb[0].mxu0 %v204
  %v277 = vpop.f32.mrb[0].mxu0
  %v278 = vadd.f32 %v198, %v277
  %v279 = vpop.f32.mrb[0].mxu0
  %280 = vdwg.mxu0
  %vm281 = vcmask 80896
  %282 = vst.msk [vmem:[%s6] sm:$0xff] %vm281, %v273
  %283 = vst.msk [vmem:[%s6 + $0x8] sm:$0xff] %vm281, %v278
  // Predicated region
  $region26: #{speech_recognition_forward.27} parent=0 // pred_check
    _
  $region27: #{speech_recognition_forward.27} parent=0 // pred_check_branch
    %285 = sbr.rel (0) target = $region29
  $region28: #{speech_recognition_forward.27} parent=0 // pred_region
    _
  $region29: #{speech_recognition_forward.27} parent=0 // pred_fallthru
    _
  // Predicated region
  $region30: #{speech_recognition_forward.27} parent=0 // pred_check
    _
  $region31: #{speech_recognition_forward.27} parent=0 // pred_check_branch
    %287 = sbr.rel (0) target = $region33
  $region32: #{speech_recognition_forward.27} parent=0 // pred_region
    _
  $region33: #{speech_recognition_forward.27} parent=0 // pred_fallthru
    _

</llo_original>
